<compile_context>
chip_gen: v7x
topology: tpu7x:2x2x1
jax: 0.10.0
libtpu: 0.0.40
codegen_flags: <defaults>
</compile_context>

<pallas_src>
import jax
import jax.numpy as jnp
from jax.experimental import pallas as pl
from jax.experimental.pallas import tpu as pltpu


def _pow(base, exponent):
    """base ** gamma; exact repeated-multiply for integral gamma (default 2.0)."""
    if float(exponent).is_integer() and exponent >= 0:
        out = None
        for _ in range(int(exponent)):
            out = base if out is None else out * base
        return jnp.ones_like(base) if out is None else out
    # Non-integer gamma: clamp so saturated p / (1-p) == 0 cannot produce
    # inf * 0 -> NaN through exp(gamma * log(0)).
    return jnp.exp(exponent * jnp.log(jnp.maximum(base, 1e-30)))


def peak_finder_forward(batch_img, batch_mask, w1, b1, w2, b2,
                        *, focal_alpha=0.8, focal_gamma=2.0, block_b=None):
    """Returns (batch_fmap_predicted, batch_mask_true, loss) like the nn.Module."""
    B, CIN, H, W = batch_img.shape
    CH = w1.shape[0]
    KH, KW = w1.shape[2], w1.shape[3]
    assert w2.shape == (1, CH, KH, KW)
    HO1, WO1 = H - KH + 1, W - KW + 1          # after conv1 (valid)
    HO2, WO2 = HO1 - KH + 1, WO1 - KW + 1      # after conv2 (valid)
    alpha = float(focal_alpha)
    gamma = float(focal_gamma)

    # torchvision-style center crop of the mask -> pure slice, done in XLA.
    OFF_Y = int(round((batch_mask.shape[-2] - HO2) / 2.0))
    OFF_X = int(round((batch_mask.shape[-1] - WO2) / 2.0))
    mask_true = batch_mask[:, :, OFF_Y:OFF_Y + HO2, OFF_X:OFF_X + WO2]

    # ---- generation-aware batch tiling ------------------------------------
    LANE = 128
    vmem_cap = 64 << 20                       # conservative fallback (v7x-sized)
    try:
        vmem_cap = int(pltpu.get_tpu_info().vmem_capacity_bytes)
    except Exception:
        pass

    if B >= LANE:
        padB = pl.cdiv(B, LANE) * LANE
        if block_b is None:
            # 1024 on 128 MiB-VMEM parts (v5e/v6e), 512 on 64 MiB parts (v7x).
            block_b = 1024 if vmem_cap >= (100 << 20) else 512
        block_b = max(LANE, (block_b // LANE) * LANE)
        block_b = min(block_b, padB)
        # Keep >= 2 grid steps where possible so the "parallel" batch axis can
        # shard across v7x's two TensorCores.
        while block_b > LANE and pl.cdiv(padB, block_b) < 2:
            block_b //= 2
        padB = pl.cdiv(padB, block_b) * block_b
    else:
        # Small-batch escape hatch: one block over the un-padded batch.  The
        # lane-on-batch layout only pays off for B >= 128; skipping the
        # pad-to-128 avoids up to 64x wasted DMA/compute on tiny batches.
        padB = B
        block_b = B
    nblk = padB // block_b

    # TODO(synk): callers that can produce/consume the lane-major (.., padB)
    # layout directly could drop these pad+transpose HBM passes entirely.
    img_t = jnp.transpose(
        jnp.pad(batch_img.astype(jnp.float32),
                ((0, padB - B), (0, 0), (0, 0), (0, 0))),
        (1, 2, 3, 0))                                   # (CIN, H, W, padB)
    mask_t = jnp.transpose(
        jnp.pad(mask_true.astype(jnp.float32),
                ((0, padB - B), (0, 0), (0, 0), (0, 0)))[:, 0],
        (1, 2, 0))                                      # (HO2, WO2, padB)

    def kernel(w1_ref, b1_ref, w2_ref, b2_ref, img_ref, mask_ref,
               fmap_ref, loss_ref):
        # ---- hoist all SMEM weight reads out of the per-pixel work ----
        w1_v = [[[[w1_ref[((ci * CIN + kin) * KH + ky) * KW + kx]
                   for kx in range(KW)] for ky in range(KH)]
                 for kin in range(CIN)] for ci in range(CH)]
        b1_v = [b1_ref[ci] for ci in range(CH)]
        w2_v = [[[w2_ref[(ci * KH + ky) * KW + kx]
                  for kx in range(KW)] for ky in range(KH)] for ci in range(CH)]
        b2_v = b2_ref[0]

        x = img_ref[...]                                # (CIN, H, W, Bt)
        # Only KW sublane-crossing (kx) slices per input plane; the ky window is
        # taken later as a cheap leading-dim (vreg-row) slice at point of use.
        x_kx = [[x[kin, :, kx:kx + WO1, :] for kx in range(KW)]
                for kin in range(CIN)]

        # ---- conv1 -> ReLU -> conv2 (lane axis = images per vreg) ----
        out2 = None
        for ci in range(CH):
            h = None
            for kin in range(CIN):
                for kx in range(KW):
                    slab = x_kx[kin][kx]                # (H, WO1, Bt)
                    for ky in range(KH):
                        t = w1_v[ci][kin][ky][kx] * slab[ky:ky + HO1]
                        h = t if h is None else h + t
            h = jnp.maximum(h + b1_v[ci], 0.0)          # bias + ReLU, (HO1, WO1, Bt)
            # Again only KW sublane-crossing slices of h per output channel.
            h_kx = [h[:, kx:kx + WO2, :] for kx in range(KW)]
            for kx in range(KW):
                slab = h_kx[kx]                         # (HO1, WO2, Bt)
                for ky in range(KH):
                    t = w2_v[ci][ky][kx] * slab[ky:ky + HO2]
                    out2 = t if out2 is None else out2 + t
        out2 = out2 + b2_v                              # logits (HO2, WO2, Bt)

        fmap_ref[...] = out2                            # lane-dense store

        # ---- binary focal loss with logits (numerically stable) ----
        y = mask_ref[...]                               # (HO2, WO2, Bt)
        xl = out2
        a = jnp.maximum(-xl, 0.0)
        ena = jnp.exp(-a)
        enxa = jnp.exp(-xl - a)
        den = ena + enxa
        logit = a + jnp.log(den)                        # log(1 + exp(-x))
        # approx reciprocal on the EUP + one Newton step (frees the VALU slot).
        inv_den = pl.reciprocal(den, approx=True)
        inv_den = inv_den * (2.0 - den * inv_den)
        p = ena * inv_den                               # == exp(-logit)
        one_m_p = enxa * inv_den                        # == 1 - p, no cancellation
        p_g = _pow(p, gamma)
        omp_g = _pow(one_m_p, gamma)
        bfl = alpha * y * omp_g * logit + p_g * (1.0 - y) * (xl + logit)

        # Per-image partial sums: keep the lane axis, no cross-lane reduction
        # and no carried accumulator (grid axis stays "parallel").
        loss_ref[...] = jnp.sum(jnp.sum(bfl, axis=0), axis=0, keepdims=True)

    grid_spec = pltpu.PrefetchScalarGridSpec(
        num_scalar_prefetch=0,
        grid=(nblk,),
        in_specs=[
            pl.BlockSpec(memory_space=pltpu.MemorySpace.SMEM),   # w1 (flat)
            pl.BlockSpec(memory_space=pltpu.MemorySpace.SMEM),   # b1
            pl.BlockSpec(memory_space=pltpu.MemorySpace.SMEM),   # w2 (flat)
            pl.BlockSpec(memory_space=pltpu.MemorySpace.SMEM),   # b2
            pl.BlockSpec((CIN, H, W, block_b), lambda i: (0, 0, 0, i)),  # img
            pl.BlockSpec((HO2, WO2, block_b), lambda i: (0, 0, i)),      # mask
        ],
        out_specs=[
            pl.BlockSpec((HO2, WO2, block_b), lambda i: (0, 0, i)),      # fmap
            pl.BlockSpec((1, block_b), lambda i: (0, i)),                # loss/img
        ],
    )
    out_shape = (
        jax.ShapeDtypeStruct((HO2, WO2, padB), jnp.float32),
        jax.ShapeDtypeStruct((1, padB), jnp.float32),
    )

    # Advisory cost so XLA can schedule the wrapper transposes around the call.
    flops = int(padB) * (2 * CH * CIN * KH * KW * HO1 * WO1
                         + 2 * CH * KH * KW * HO2 * WO2
                         + 30 * HO2 * WO2)
    transcendentals = int(padB) * 4 * HO2 * WO2
    bytes_accessed = 4 * int(padB) * (CIN * H * W + 2 * HO2 * WO2 + 1)
    cost = pl.CostEstimate(flops=flops, transcendentals=transcendentals,
                           bytes_accessed=bytes_accessed)

    vmem_limit = max(32 << 20, min(vmem_cap // 2, 96 << 20))
    compiler_params = pltpu.CompilerParams(
        dimension_semantics=("parallel",),
        vmem_limit_bytes=vmem_limit)

    fmap_t, loss_lane = pl.pallas_call(
        kernel,
        out_shape=out_shape,
        grid_spec=grid_spec,
        compiler_params=compiler_params,
        cost_estimate=cost,
    )(w1.reshape(-1).astype(jnp.float32), b1.astype(jnp.float32),
      w2.reshape(-1).astype(jnp.float32), b2.astype(jnp.float32),
      img_t, mask_t)

    fmap = jnp.transpose(fmap_t, (2, 0, 1))[:B, None, :, :]   # (B,1,HO2,WO2)
    loss = jnp.sum(loss_lane[0, :B]) / float(B * 1 * HO2 * WO2)
    return fmap, mask_true.astype(jnp.float32), loss


def reference_forward(batch_img, batch_mask, w1, b1, w2, b2,
                      *, focal_alpha=0.8, focal_gamma=2.0):
    """Pure-JAX reference mirroring the PyTorch module's forward()."""
    dn = ("NCHW", "OIHW", "NCHW")
    h = jax.lax.conv_general_dilated(batch_img, w1, (1, 1), "VALID",
                                     dimension_numbers=dn)
    h = jnp.maximum(h + b1[None, :, None, None], 0.0)
    f = jax.lax.conv_general_dilated(h, w2, (1, 1), "VALID",
                                     dimension_numbers=dn)
    f = f + b2[None, :, None, None]
    Ho, Wo = f.shape[-2:]
    oy = int(round((batch_mask.shape[-2] - Ho) / 2.0))
    ox = int(round((batch_mask.shape[-1] - Wo) / 2.0))
    y = batch_mask[:, :, oy:oy + Ho, ox:ox + Wo]
    x = f
    a = jnp.maximum(-x, 0.0)
    logit = a + jnp.log(jnp.exp(-a) + jnp.exp(-x - a))
    p = jnp.exp(-logit)
    bfl = (focal_alpha * y * (1.0 - p) ** focal_gamma * logit
           + (1.0 - y) * p ** focal_gamma * x
           + p ** focal_gamma * (1.0 - y) * logit)
    return f, y, jnp.mean(bfl)


if __name__ == "__main__":
    # TODO(synk): checkpoint loading (`init_params(from_timestamp=...)`) and the
    # Adam optimizer config have no kernel equivalent; weights are synthesized here.
    key = jax.random.PRNGKey(0)
    B, CIN, H, W = 2, 1, 16, 16
    CH, KH, KW = 4, 3, 3

    k_img, k_mask, k_w1, k_w2 = jax.random.split(key, 4)
    batch_img = jax.random.normal(k_img, (B, CIN, H, W), jnp.float32)
    batch_mask = (jax.random.uniform(k_mask, (B, 1, H, W)) < 0.1).astype(jnp.float32)

    # Kaiming-normal init (nonlinearity='relu'): std = sqrt(2 / fan_in); bias = 0.
    fan_in1 = CIN * KH * KW
    fan_in2 = CH * KH * KW
    w1 = jax.random.normal(k_w1, (CH, CIN, KH, KW), jnp.float32) * jnp.sqrt(2.0 / fan_in1)
    b1 = jnp.zeros((CH,), jnp.float32)
    w2 = jax.random.normal(k_w2, (1, CH, KH, KW), jnp.float32) * jnp.sqrt(2.0 / fan_in2)
    b2 = jnp.zeros((1,), jnp.float32)

    fmap, mask_true, loss = peak_finder_forward(
        batch_img, batch_mask, w1, b1, w2, b2, focal_alpha=0.8, focal_gamma=2.0)
    jax.block_until_ready((fmap, mask_true, loss))

    fmap_ref, mask_ref, loss_ref = reference_forward(
        batch_img, batch_mask, w1, b1, w2, b2, focal_alpha=0.8, focal_gamma=2.0)

    assert fmap.shape == (B, 1, H - 4, W - 4)
    assert mask_true.shape == fmap.shape
    assert jnp.allclose(fmap, fmap_ref, rtol=1e-4, atol=1e-4)
    assert jnp.allclose(mask_true, mask_ref, rtol=0, atol=0)
    assert jnp.allclose(loss, loss_ref, rtol=1e-4, atol=1e-5)

    print("KERNEL_OK")
</pallas_src>

<mosaic_0001>
module attributes {stable_mosaic.version = 11 : i64} {
  func.func @kernel(%arg0: i32, %arg1: memref<36xf32, #tpu.memory_space<smem>>, %arg2: memref<4xf32, #tpu.memory_space<smem>>, %arg3: memref<36xf32, #tpu.memory_space<smem>>, %arg4: memref<1xf32, #tpu.memory_space<smem>>, %arg5: memref<1x16x16x2xf32, #tpu.memory_space<vmem>>, %arg6: memref<12x12x2xf32, #tpu.memory_space<vmem>>, %arg7: memref<12x12x2xf32, #tpu.memory_space<vmem>>, %arg8: memref<1x2xf32, #tpu.memory_space<vmem>>) attributes {dimension_semantics = [#tpu.dimension_semantics<parallel>], iteration_bounds = array<i64: 1>, scalar_prefetch = 0 : i64, scratch_operands = 0 : i64, tpu.core_type = #tpu.core_type<tc>, window_params = [{transform_indices = @transform_0, window_bounds = array<i64: 36>}, {transform_indices = @transform_1, window_bounds = array<i64: 4>}, {transform_indices = @transform_2, window_bounds = array<i64: 36>}, {transform_indices = @transform_3, window_bounds = array<i64: 1>}, {transform_indices = @transform_4, window_bounds = array<i64: 1, 16, 16, 2>}, {transform_indices = @transform_5, window_bounds = array<i64: 12, 12, 2>}, {transform_indices = @transform_6, window_bounds = array<i64: 12, 12, 2>}, {transform_indices = @transform_7, window_bounds = array<i64: 1, 2>}]} {
    %c0 = arith.constant 0 : index
    %0 = memref.load %arg1[%c0] : memref<36xf32, #tpu.memory_space<smem>>
    %c1 = arith.constant 1 : index
    %1 = memref.load %arg1[%c1] : memref<36xf32, #tpu.memory_space<smem>>
    %c2 = arith.constant 2 : index
    %2 = memref.load %arg1[%c2] : memref<36xf32, #tpu.memory_space<smem>>
    %c3 = arith.constant 3 : index
    %3 = memref.load %arg1[%c3] : memref<36xf32, #tpu.memory_space<smem>>
    %c4 = arith.constant 4 : index
    %4 = memref.load %arg1[%c4] : memref<36xf32, #tpu.memory_space<smem>>
    %c5 = arith.constant 5 : index
    %5 = memref.load %arg1[%c5] : memref<36xf32, #tpu.memory_space<smem>>
    %c6 = arith.constant 6 : index
    %6 = memref.load %arg1[%c6] : memref<36xf32, #tpu.memory_space<smem>>
    %c7 = arith.constant 7 : index
    %7 = memref.load %arg1[%c7] : memref<36xf32, #tpu.memory_space<smem>>
    %c8 = arith.constant 8 : index
    %8 = memref.load %arg1[%c8] : memref<36xf32, #tpu.memory_space<smem>>
    %c9 = arith.constant 9 : index
    %9 = memref.load %arg1[%c9] : memref<36xf32, #tpu.memory_space<smem>>
    %c10 = arith.constant 10 : index
    %10 = memref.load %arg1[%c10] : memref<36xf32, #tpu.memory_space<smem>>
    %c11 = arith.constant 11 : index
    %11 = memref.load %arg1[%c11] : memref<36xf32, #tpu.memory_space<smem>>
    %c12 = arith.constant 12 : index
    %12 = memref.load %arg1[%c12] : memref<36xf32, #tpu.memory_space<smem>>
    %c13 = arith.constant 13 : index
    %13 = memref.load %arg1[%c13] : memref<36xf32, #tpu.memory_space<smem>>
    %c14 = arith.constant 14 : index
    %14 = memref.load %arg1[%c14] : memref<36xf32, #tpu.memory_space<smem>>
    %c15 = arith.constant 15 : index
    %15 = memref.load %arg1[%c15] : memref<36xf32, #tpu.memory_space<smem>>
    %c16 = arith.constant 16 : index
    %16 = memref.load %arg1[%c16] : memref<36xf32, #tpu.memory_space<smem>>
    %c17 = arith.constant 17 : index
    %17 = memref.load %arg1[%c17] : memref<36xf32, #tpu.memory_space<smem>>
    %c18 = arith.constant 18 : index
    %18 = memref.load %arg1[%c18] : memref<36xf32, #tpu.memory_space<smem>>
    %c19 = arith.constant 19 : index
    %19 = memref.load %arg1[%c19] : memref<36xf32, #tpu.memory_space<smem>>
    %c20 = arith.constant 20 : index
    %20 = memref.load %arg1[%c20] : memref<36xf32, #tpu.memory_space<smem>>
    %c21 = arith.constant 21 : index
    %21 = memref.load %arg1[%c21] : memref<36xf32, #tpu.memory_space<smem>>
    %c22 = arith.constant 22 : index
    %22 = memref.load %arg1[%c22] : memref<36xf32, #tpu.memory_space<smem>>
    %c23 = arith.constant 23 : index
    %23 = memref.load %arg1[%c23] : memref<36xf32, #tpu.memory_space<smem>>
    %c24 = arith.constant 24 : index
    %24 = memref.load %arg1[%c24] : memref<36xf32, #tpu.memory_space<smem>>
    %c25 = arith.constant 25 : index
    %25 = memref.load %arg1[%c25] : memref<36xf32, #tpu.memory_space<smem>>
    %c26 = arith.constant 26 : index
    %26 = memref.load %arg1[%c26] : memref<36xf32, #tpu.memory_space<smem>>
    %c27 = arith.constant 27 : index
    %27 = memref.load %arg1[%c27] : memref<36xf32, #tpu.memory_space<smem>>
    %c28 = arith.constant 28 : index
    %28 = memref.load %arg1[%c28] : memref<36xf32, #tpu.memory_space<smem>>
    %c29 = arith.constant 29 : index
    %29 = memref.load %arg1[%c29] : memref<36xf32, #tpu.memory_space<smem>>
    %c30 = arith.constant 30 : index
    %30 = memref.load %arg1[%c30] : memref<36xf32, #tpu.memory_space<smem>>
    %c31 = arith.constant 31 : index
    %31 = memref.load %arg1[%c31] : memref<36xf32, #tpu.memory_space<smem>>
    %c32 = arith.constant 32 : index
    %32 = memref.load %arg1[%c32] : memref<36xf32, #tpu.memory_space<smem>>
    %c33 = arith.constant 33 : index
    %33 = memref.load %arg1[%c33] : memref<36xf32, #tpu.memory_space<smem>>
    %c34 = arith.constant 34 : index
    %34 = memref.load %arg1[%c34] : memref<36xf32, #tpu.memory_space<smem>>
    %c35 = arith.constant 35 : index
    %35 = memref.load %arg1[%c35] : memref<36xf32, #tpu.memory_space<smem>>
    %c0_0 = arith.constant 0 : index
    %36 = memref.load %arg2[%c0_0] : memref<4xf32, #tpu.memory_space<smem>>
    %c1_1 = arith.constant 1 : index
    %37 = memref.load %arg2[%c1_1] : memref<4xf32, #tpu.memory_space<smem>>
    %c2_2 = arith.constant 2 : index
    %38 = memref.load %arg2[%c2_2] : memref<4xf32, #tpu.memory_space<smem>>
    %c3_3 = arith.constant 3 : index
    %39 = memref.load %arg2[%c3_3] : memref<4xf32, #tpu.memory_space<smem>>
    %c0_4 = arith.constant 0 : index
    %40 = memref.load %arg3[%c0_4] : memref<36xf32, #tpu.memory_space<smem>>
    %c1_5 = arith.constant 1 : index
    %41 = memref.load %arg3[%c1_5] : memref<36xf32, #tpu.memory_space<smem>>
    %c2_6 = arith.constant 2 : index
    %42 = memref.load %arg3[%c2_6] : memref<36xf32, #tpu.memory_space<smem>>
    %c3_7 = arith.constant 3 : index
    %43 = memref.load %arg3[%c3_7] : memref<36xf32, #tpu.memory_space<smem>>
    %c4_8 = arith.constant 4 : index
    %44 = memref.load %arg3[%c4_8] : memref<36xf32, #tpu.memory_space<smem>>
    %c5_9 = arith.constant 5 : index
    %45 = memref.load %arg3[%c5_9] : memref<36xf32, #tpu.memory_space<smem>>
    %c6_10 = arith.constant 6 : index
    %46 = memref.load %arg3[%c6_10] : memref<36xf32, #tpu.memory_space<smem>>
    %c7_11 = arith.constant 7 : index
    %47 = memref.load %arg3[%c7_11] : memref<36xf32, #tpu.memory_space<smem>>
    %c8_12 = arith.constant 8 : index
    %48 = memref.load %arg3[%c8_12] : memref<36xf32, #tpu.memory_space<smem>>
    %c9_13 = arith.constant 9 : index
    %49 = memref.load %arg3[%c9_13] : memref<36xf32, #tpu.memory_space<smem>>
    %c10_14 = arith.constant 10 : index
    %50 = memref.load %arg3[%c10_14] : memref<36xf32, #tpu.memory_space<smem>>
    %c11_15 = arith.constant 11 : index
    %51 = memref.load %arg3[%c11_15] : memref<36xf32, #tpu.memory_space<smem>>
    %c12_16 = arith.constant 12 : index
    %52 = memref.load %arg3[%c12_16] : memref<36xf32, #tpu.memory_space<smem>>
    %c13_17 = arith.constant 13 : index
    %53 = memref.load %arg3[%c13_17] : memref<36xf32, #tpu.memory_space<smem>>
    %c14_18 = arith.constant 14 : index
    %54 = memref.load %arg3[%c14_18] : memref<36xf32, #tpu.memory_space<smem>>
    %c15_19 = arith.constant 15 : index
    %55 = memref.load %arg3[%c15_19] : memref<36xf32, #tpu.memory_space<smem>>
    %c16_20 = arith.constant 16 : index
    %56 = memref.load %arg3[%c16_20] : memref<36xf32, #tpu.memory_space<smem>>
    %c17_21 = arith.constant 17 : index
    %57 = memref.load %arg3[%c17_21] : memref<36xf32, #tpu.memory_space<smem>>
    %c18_22 = arith.constant 18 : index
    %58 = memref.load %arg3[%c18_22] : memref<36xf32, #tpu.memory_space<smem>>
    %c19_23 = arith.constant 19 : index
    %59 = memref.load %arg3[%c19_23] : memref<36xf32, #tpu.memory_space<smem>>
    %c20_24 = arith.constant 20 : index
    %60 = memref.load %arg3[%c20_24] : memref<36xf32, #tpu.memory_space<smem>>
    %c21_25 = arith.constant 21 : index
    %61 = memref.load %arg3[%c21_25] : memref<36xf32, #tpu.memory_space<smem>>
    %c22_26 = arith.constant 22 : index
    %62 = memref.load %arg3[%c22_26] : memref<36xf32, #tpu.memory_space<smem>>
    %c23_27 = arith.constant 23 : index
    %63 = memref.load %arg3[%c23_27] : memref<36xf32, #tpu.memory_space<smem>>
    %c24_28 = arith.constant 24 : index
    %64 = memref.load %arg3[%c24_28] : memref<36xf32, #tpu.memory_space<smem>>
    %c25_29 = arith.constant 25 : index
    %65 = memref.load %arg3[%c25_29] : memref<36xf32, #tpu.memory_space<smem>>
    %c26_30 = arith.constant 26 : index
    %66 = memref.load %arg3[%c26_30] : memref<36xf32, #tpu.memory_space<smem>>
    %c27_31 = arith.constant 27 : index
    %67 = memref.load %arg3[%c27_31] : memref<36xf32, #tpu.memory_space<smem>>
    %c28_32 = arith.constant 28 : index
    %68 = memref.load %arg3[%c28_32] : memref<36xf32, #tpu.memory_space<smem>>
    %c29_33 = arith.constant 29 : index
    %69 = memref.load %arg3[%c29_33] : memref<36xf32, #tpu.memory_space<smem>>
    %c30_34 = arith.constant 30 : index
    %70 = memref.load %arg3[%c30_34] : memref<36xf32, #tpu.memory_space<smem>>
    %c31_35 = arith.constant 31 : index
    %71 = memref.load %arg3[%c31_35] : memref<36xf32, #tpu.memory_space<smem>>
    %c32_36 = arith.constant 32 : index
    %72 = memref.load %arg3[%c32_36] : memref<36xf32, #tpu.memory_space<smem>>
    %c33_37 = arith.constant 33 : index
    %73 = memref.load %arg3[%c33_37] : memref<36xf32, #tpu.memory_space<smem>>
    %c34_38 = arith.constant 34 : index
    %74 = memref.load %arg3[%c34_38] : memref<36xf32, #tpu.memory_space<smem>>
    %c35_39 = arith.constant 35 : index
    %75 = memref.load %arg3[%c35_39] : memref<36xf32, #tpu.memory_space<smem>>
    %c0_40 = arith.constant 0 : index
    %76 = memref.load %arg4[%c0_40] : memref<1xf32, #tpu.memory_space<smem>>
    %c0_41 = arith.constant 0 : index
    %c0_42 = arith.constant 0 : index
    %c0_43 = arith.constant 0 : index
    %c0_44 = arith.constant 0 : index
    %77 = vector.load %arg5[%c0_41, %c0_42, %c0_43, %c0_44] : memref<1x16x16x2xf32, #tpu.memory_space<vmem>>, vector<1x16x16x2xf32>
    %78 = vector.extract_strided_slice %77 {offsets = [0, 0, 0, 0], sizes = [1, 16, 14, 2], strides = [1, 1, 1, 1]} : vector<1x16x16x2xf32> to vector<1x16x14x2xf32>
    %79 = vector.shape_cast %78 : vector<1x16x14x2xf32> to vector<16x14x2xf32>
    %80 = vector.extract_strided_slice %77 {offsets = [0, 0, 1, 0], sizes = [1, 16, 14, 2], strides = [1, 1, 1, 1]} : vector<1x16x16x2xf32> to vector<1x16x14x2xf32>
    %81 = vector.shape_cast %80 : vector<1x16x14x2xf32> to vector<16x14x2xf32>
    %82 = vector.extract_strided_slice %77 {offsets = [0, 0, 2, 0], sizes = [1, 16, 14, 2], strides = [1, 1, 1, 1]} : vector<1x16x16x2xf32> to vector<1x16x14x2xf32>
    %83 = vector.shape_cast %82 : vector<1x16x14x2xf32> to vector<16x14x2xf32>
    %84 = vector.extract_strided_slice %79 {offsets = [0, 0, 0], sizes = [14, 14, 2], strides = [1, 1, 1]} : vector<16x14x2xf32> to vector<14x14x2xf32>
    %85 = vector.broadcast %0 : f32 to vector<14x14x2xf32>
    %86 = arith.mulf %85, %84 : vector<14x14x2xf32>
    %87 = vector.extract_strided_slice %79 {offsets = [1, 0, 0], sizes = [14, 14, 2], strides = [1, 1, 1]} : vector<16x14x2xf32> to vector<14x14x2xf32>
    %88 = vector.broadcast %3 : f32 to vector<14x14x2xf32>
    %89 = arith.mulf %88, %87 : vector<14x14x2xf32>
    %90 = arith.addf %86, %89 : vector<14x14x2xf32>
    %91 = vector.extract_strided_slice %79 {offsets = [2, 0, 0], sizes = [14, 14, 2], strides = [1, 1, 1]} : vector<16x14x2xf32> to vector<14x14x2xf32>
    %92 = vector.broadcast %6 : f32 to vector<14x14x2xf32>
    %93 = arith.mulf %92, %91 : vector<14x14x2xf32>
    %94 = arith.addf %90, %93 : vector<14x14x2xf32>
    %95 = vector.extract_strided_slice %81 {offsets = [0, 0, 0], sizes = [14, 14, 2], strides = [1, 1, 1]} : vector<16x14x2xf32> to vector<14x14x2xf32>
    %96 = vector.broadcast %1 : f32 to vector<14x14x2xf32>
    %97 = arith.mulf %96, %95 : vector<14x14x2xf32>
    %98 = arith.addf %94, %97 : vector<14x14x2xf32>
    %99 = vector.extract_strided_slice %81 {offsets = [1, 0, 0], sizes = [14, 14, 2], strides = [1, 1, 1]} : vector<16x14x2xf32> to vector<14x14x2xf32>
    %100 = vector.broadcast %4 : f32 to vector<14x14x2xf32>
    %101 = arith.mulf %100, %99 : vector<14x14x2xf32>
    %102 = arith.addf %98, %101 : vector<14x14x2xf32>
    %103 = vector.extract_strided_slice %81 {offsets = [2, 0, 0], sizes = [14, 14, 2], strides = [1, 1, 1]} : vector<16x14x2xf32> to vector<14x14x2xf32>
    %104 = vector.broadcast %7 : f32 to vector<14x14x2xf32>
    %105 = arith.mulf %104, %103 : vector<14x14x2xf32>
    %106 = arith.addf %102, %105 : vector<14x14x2xf32>
    %107 = vector.extract_strided_slice %83 {offsets = [0, 0, 0], sizes = [14, 14, 2], strides = [1, 1, 1]} : vector<16x14x2xf32> to vector<14x14x2xf32>
    %108 = vector.broadcast %2 : f32 to vector<14x14x2xf32>
    %109 = arith.mulf %108, %107 : vector<14x14x2xf32>
    %110 = arith.addf %106, %109 : vector<14x14x2xf32>
    %111 = vector.extract_strided_slice %83 {offsets = [1, 0, 0], sizes = [14, 14, 2], strides = [1, 1, 1]} : vector<16x14x2xf32> to vector<14x14x2xf32>
    %112 = vector.broadcast %5 : f32 to vector<14x14x2xf32>
    %113 = arith.mulf %112, %111 : vector<14x14x2xf32>
    %114 = arith.addf %110, %113 : vector<14x14x2xf32>
    %115 = vector.extract_strided_slice %83 {offsets = [2, 0, 0], sizes = [14, 14, 2], strides = [1, 1, 1]} : vector<16x14x2xf32> to vector<14x14x2xf32>
    %116 = vector.broadcast %8 : f32 to vector<14x14x2xf32>
    %117 = arith.mulf %116, %115 : vector<14x14x2xf32>
    %118 = arith.addf %114, %117 : vector<14x14x2xf32>
    %119 = vector.broadcast %36 : f32 to vector<14x14x2xf32>
    %120 = arith.addf %118, %119 : vector<14x14x2xf32>
    %cst = arith.constant 0.000000e+00 : f32
    %121 = vector.broadcast %cst : f32 to vector<14x14x2xf32>
    %122 = arith.maximumf %120, %121 : vector<14x14x2xf32>
    %123 = vector.extract_strided_slice %122 {offsets = [0, 0, 0], sizes = [14, 12, 2], strides = [1, 1, 1]} : vector<14x14x2xf32> to vector<14x12x2xf32>
    %124 = vector.extract_strided_slice %122 {offsets = [0, 1, 0], sizes = [14, 12, 2], strides = [1, 1, 1]} : vector<14x14x2xf32> to vector<14x12x2xf32>
    %125 = vector.extract_strided_slice %122 {offsets = [0, 2, 0], sizes = [14, 12, 2], strides = [1, 1, 1]} : vector<14x14x2xf32> to vector<14x12x2xf32>
    %126 = vector.extract_strided_slice %123 {offsets = [0, 0, 0], sizes = [12, 12, 2], strides = [1, 1, 1]} : vector<14x12x2xf32> to vector<12x12x2xf32>
    %127 = vector.broadcast %40 : f32 to vector<12x12x2xf32>
    %128 = arith.mulf %127, %126 : vector<12x12x2xf32>
    %129 = vector.extract_strided_slice %123 {offsets = [1, 0, 0], sizes = [12, 12, 2], strides = [1, 1, 1]} : vector<14x12x2xf32> to vector<12x12x2xf32>
    %130 = vector.broadcast %43 : f32 to vector<12x12x2xf32>
    %131 = arith.mulf %130, %129 : vector<12x12x2xf32>
    %132 = arith.addf %128, %131 : vector<12x12x2xf32>
    %133 = vector.extract_strided_slice %123 {offsets = [2, 0, 0], sizes = [12, 12, 2], strides = [1, 1, 1]} : vector<14x12x2xf32> to vector<12x12x2xf32>
    %134 = vector.broadcast %46 : f32 to vector<12x12x2xf32>
    %135 = arith.mulf %134, %133 : vector<12x12x2xf32>
    %136 = arith.addf %132, %135 : vector<12x12x2xf32>
    %137 = vector.extract_strided_slice %124 {offsets = [0, 0, 0], sizes = [12, 12, 2], strides = [1, 1, 1]} : vector<14x12x2xf32> to vector<12x12x2xf32>
    %138 = vector.broadcast %41 : f32 to vector<12x12x2xf32>
    %139 = arith.mulf %138, %137 : vector<12x12x2xf32>
    %140 = arith.addf %136, %139 : vector<12x12x2xf32>
    %141 = vector.extract_strided_slice %124 {offsets = [1, 0, 0], sizes = [12, 12, 2], strides = [1, 1, 1]} : vector<14x12x2xf32> to vector<12x12x2xf32>
    %142 = vector.broadcast %44 : f32 to vector<12x12x2xf32>
    %143 = arith.mulf %142, %141 : vector<12x12x2xf32>
    %144 = arith.addf %140, %143 : vector<12x12x2xf32>
    %145 = vector.extract_strided_slice %124 {offsets = [2, 0, 0], sizes = [12, 12, 2], strides = [1, 1, 1]} : vector<14x12x2xf32> to vector<12x12x2xf32>
    %146 = vector.broadcast %47 : f32 to vector<12x12x2xf32>
    %147 = arith.mulf %146, %145 : vector<12x12x2xf32>
    %148 = arith.addf %144, %147 : vector<12x12x2xf32>
    %149 = vector.extract_strided_slice %125 {offsets = [0, 0, 0], sizes = [12, 12, 2], strides = [1, 1, 1]} : vector<14x12x2xf32> to vector<12x12x2xf32>
    %150 = vector.broadcast %42 : f32 to vector<12x12x2xf32>
    %151 = arith.mulf %150, %149 : vector<12x12x2xf32>
    %152 = arith.addf %148, %151 : vector<12x12x2xf32>
    %153 = vector.extract_strided_slice %125 {offsets = [1, 0, 0], sizes = [12, 12, 2], strides = [1, 1, 1]} : vector<14x12x2xf32> to vector<12x12x2xf32>
    %154 = vector.broadcast %45 : f32 to vector<12x12x2xf32>
    %155 = arith.mulf %154, %153 : vector<12x12x2xf32>
    %156 = arith.addf %152, %155 : vector<12x12x2xf32>
    %157 = vector.extract_strided_slice %125 {offsets = [2, 0, 0], sizes = [12, 12, 2], strides = [1, 1, 1]} : vector<14x12x2xf32> to vector<12x12x2xf32>
    %158 = vector.broadcast %48 : f32 to vector<12x12x2xf32>
    %159 = arith.mulf %158, %157 : vector<12x12x2xf32>
    %160 = arith.addf %156, %159 : vector<12x12x2xf32>
    %161 = vector.extract_strided_slice %79 {offsets = [0, 0, 0], sizes = [14, 14, 2], strides = [1, 1, 1]} : vector<16x14x2xf32> to vector<14x14x2xf32>
    %162 = vector.broadcast %9 : f32 to vector<14x14x2xf32>
    %163 = arith.mulf %162, %161 : vector<14x14x2xf32>
    %164 = vector.extract_strided_slice %79 {offsets = [1, 0, 0], sizes = [14, 14, 2], strides = [1, 1, 1]} : vector<16x14x2xf32> to vector<14x14x2xf32>
    %165 = vector.broadcast %12 : f32 to vector<14x14x2xf32>
    %166 = arith.mulf %165, %164 : vector<14x14x2xf32>
    %167 = arith.addf %163, %166 : vector<14x14x2xf32>
    %168 = vector.extract_strided_slice %79 {offsets = [2, 0, 0], sizes = [14, 14, 2], strides = [1, 1, 1]} : vector<16x14x2xf32> to vector<14x14x2xf32>
    %169 = vector.broadcast %15 : f32 to vector<14x14x2xf32>
    %170 = arith.mulf %169, %168 : vector<14x14x2xf32>
    %171 = arith.addf %167, %170 : vector<14x14x2xf32>
    %172 = vector.extract_strided_slice %81 {offsets = [0, 0, 0], sizes = [14, 14, 2], strides = [1, 1, 1]} : vector<16x14x2xf32> to vector<14x14x2xf32>
    %173 = vector.broadcast %10 : f32 to vector<14x14x2xf32>
    %174 = arith.mulf %173, %172 : vector<14x14x2xf32>
    %175 = arith.addf %171, %174 : vector<14x14x2xf32>
    %176 = vector.extract_strided_slice %81 {offsets = [1, 0, 0], sizes = [14, 14, 2], strides = [1, 1, 1]} : vector<16x14x2xf32> to vector<14x14x2xf32>
    %177 = vector.broadcast %13 : f32 to vector<14x14x2xf32>
    %178 = arith.mulf %177, %176 : vector<14x14x2xf32>
    %179 = arith.addf %175, %178 : vector<14x14x2xf32>
    %180 = vector.extract_strided_slice %81 {offsets = [2, 0, 0], sizes = [14, 14, 2], strides = [1, 1, 1]} : vector<16x14x2xf32> to vector<14x14x2xf32>
    %181 = vector.broadcast %16 : f32 to vector<14x14x2xf32>
    %182 = arith.mulf %181, %180 : vector<14x14x2xf32>
    %183 = arith.addf %179, %182 : vector<14x14x2xf32>
    %184 = vector.extract_strided_slice %83 {offsets = [0, 0, 0], sizes = [14, 14, 2], strides = [1, 1, 1]} : vector<16x14x2xf32> to vector<14x14x2xf32>
    %185 = vector.broadcast %11 : f32 to vector<14x14x2xf32>
    %186 = arith.mulf %185, %184 : vector<14x14x2xf32>
    %187 = arith.addf %183, %186 : vector<14x14x2xf32>
    %188 = vector.extract_strided_slice %83 {offsets = [1, 0, 0], sizes = [14, 14, 2], strides = [1, 1, 1]} : vector<16x14x2xf32> to vector<14x14x2xf32>
    %189 = vector.broadcast %14 : f32 to vector<14x14x2xf32>
    %190 = arith.mulf %189, %188 : vector<14x14x2xf32>
    %191 = arith.addf %187, %190 : vector<14x14x2xf32>
    %192 = vector.extract_strided_slice %83 {offsets = [2, 0, 0], sizes = [14, 14, 2], strides = [1, 1, 1]} : vector<16x14x2xf32> to vector<14x14x2xf32>
    %193 = vector.broadcast %17 : f32 to vector<14x14x2xf32>
    %194 = arith.mulf %193, %192 : vector<14x14x2xf32>
    %195 = arith.addf %191, %194 : vector<14x14x2xf32>
    %196 = vector.broadcast %37 : f32 to vector<14x14x2xf32>
    %197 = arith.addf %195, %196 : vector<14x14x2xf32>
    %cst_45 = arith.constant 0.000000e+00 : f32
    %198 = vector.broadcast %cst_45 : f32 to vector<14x14x2xf32>
    %199 = arith.maximumf %197, %198 : vector<14x14x2xf32>
    %200 = vector.extract_strided_slice %199 {offsets = [0, 0, 0], sizes = [14, 12, 2], strides = [1, 1, 1]} : vector<14x14x2xf32> to vector<14x12x2xf32>
    %201 = vector.extract_strided_slice %199 {offsets = [0, 1, 0], sizes = [14, 12, 2], strides = [1, 1, 1]} : vector<14x14x2xf32> to vector<14x12x2xf32>
    %202 = vector.extract_strided_slice %199 {offsets = [0, 2, 0], sizes = [14, 12, 2], strides = [1, 1, 1]} : vector<14x14x2xf32> to vector<14x12x2xf32>
    %203 = vector.extract_strided_slice %200 {offsets = [0, 0, 0], sizes = [12, 12, 2], strides = [1, 1, 1]} : vector<14x12x2xf32> to vector<12x12x2xf32>
    %204 = vector.broadcast %49 : f32 to vector<12x12x2xf32>
    %205 = arith.mulf %204, %203 : vector<12x12x2xf32>
    %206 = arith.addf %160, %205 : vector<12x12x2xf32>
    %207 = vector.extract_strided_slice %200 {offsets = [1, 0, 0], sizes = [12, 12, 2], strides = [1, 1, 1]} : vector<14x12x2xf32> to vector<12x12x2xf32>
    %208 = vector.broadcast %52 : f32 to vector<12x12x2xf32>
    %209 = arith.mulf %208, %207 : vector<12x12x2xf32>
    %210 = arith.addf %206, %209 : vector<12x12x2xf32>
    %211 = vector.extract_strided_slice %200 {offsets = [2, 0, 0], sizes = [12, 12, 2], strides = [1, 1, 1]} : vector<14x12x2xf32> to vector<12x12x2xf32>
    %212 = vector.broadcast %55 : f32 to vector<12x12x2xf32>
    %213 = arith.mulf %212, %211 : vector<12x12x2xf32>
    %214 = arith.addf %210, %213 : vector<12x12x2xf32>
    %215 = vector.extract_strided_slice %201 {offsets = [0, 0, 0], sizes = [12, 12, 2], strides = [1, 1, 1]} : vector<14x12x2xf32> to vector<12x12x2xf32>
    %216 = vector.broadcast %50 : f32 to vector<12x12x2xf32>
    %217 = arith.mulf %216, %215 : vector<12x12x2xf32>
    %218 = arith.addf %214, %217 : vector<12x12x2xf32>
    %219 = vector.extract_strided_slice %201 {offsets = [1, 0, 0], sizes = [12, 12, 2], strides = [1, 1, 1]} : vector<14x12x2xf32> to vector<12x12x2xf32>
    %220 = vector.broadcast %53 : f32 to vector<12x12x2xf32>
    %221 = arith.mulf %220, %219 : vector<12x12x2xf32>
    %222 = arith.addf %218, %221 : vector<12x12x2xf32>
    %223 = vector.extract_strided_slice %201 {offsets = [2, 0, 0], sizes = [12, 12, 2], strides = [1, 1, 1]} : vector<14x12x2xf32> to vector<12x12x2xf32>
    %224 = vector.broadcast %56 : f32 to vector<12x12x2xf32>
    %225 = arith.mulf %224, %223 : vector<12x12x2xf32>
    %226 = arith.addf %222, %225 : vector<12x12x2xf32>
    %227 = vector.extract_strided_slice %202 {offsets = [0, 0, 0], sizes = [12, 12, 2], strides = [1, 1, 1]} : vector<14x12x2xf32> to vector<12x12x2xf32>
    %228 = vector.broadcast %51 : f32 to vector<12x12x2xf32>
    %229 = arith.mulf %228, %227 : vector<12x12x2xf32>
    %230 = arith.addf %226, %229 : vector<12x12x2xf32>
    %231 = vector.extract_strided_slice %202 {offsets = [1, 0, 0], sizes = [12, 12, 2], strides = [1, 1, 1]} : vector<14x12x2xf32> to vector<12x12x2xf32>
    %232 = vector.broadcast %54 : f32 to vector<12x12x2xf32>
    %233 = arith.mulf %232, %231 : vector<12x12x2xf32>
    %234 = arith.addf %230, %233 : vector<12x12x2xf32>
    %235 = vector.extract_strided_slice %202 {offsets = [2, 0, 0], sizes = [12, 12, 2], strides = [1, 1, 1]} : vector<14x12x2xf32> to vector<12x12x2xf32>
    %236 = vector.broadcast %57 : f32 to vector<12x12x2xf32>
    %237 = arith.mulf %236, %235 : vector<12x12x2xf32>
    %238 = arith.addf %234, %237 : vector<12x12x2xf32>
    %239 = vector.extract_strided_slice %79 {offsets = [0, 0, 0], sizes = [14, 14, 2], strides = [1, 1, 1]} : vector<16x14x2xf32> to vector<14x14x2xf32>
    %240 = vector.broadcast %18 : f32 to vector<14x14x2xf32>
    %241 = arith.mulf %240, %239 : vector<14x14x2xf32>
    %242 = vector.extract_strided_slice %79 {offsets = [1, 0, 0], sizes = [14, 14, 2], strides = [1, 1, 1]} : vector<16x14x2xf32> to vector<14x14x2xf32>
    %243 = vector.broadcast %21 : f32 to vector<14x14x2xf32>
    %244 = arith.mulf %243, %242 : vector<14x14x2xf32>
    %245 = arith.addf %241, %244 : vector<14x14x2xf32>
    %246 = vector.extract_strided_slice %79 {offsets = [2, 0, 0], sizes = [14, 14, 2], strides = [1, 1, 1]} : vector<16x14x2xf32> to vector<14x14x2xf32>
    %247 = vector.broadcast %24 : f32 to vector<14x14x2xf32>
    %248 = arith.mulf %247, %246 : vector<14x14x2xf32>
    %249 = arith.addf %245, %248 : vector<14x14x2xf32>
    %250 = vector.extract_strided_slice %81 {offsets = [0, 0, 0], sizes = [14, 14, 2], strides = [1, 1, 1]} : vector<16x14x2xf32> to vector<14x14x2xf32>
    %251 = vector.broadcast %19 : f32 to vector<14x14x2xf32>
    %252 = arith.mulf %251, %250 : vector<14x14x2xf32>
    %253 = arith.addf %249, %252 : vector<14x14x2xf32>
    %254 = vector.extract_strided_slice %81 {offsets = [1, 0, 0], sizes = [14, 14, 2], strides = [1, 1, 1]} : vector<16x14x2xf32> to vector<14x14x2xf32>
    %255 = vector.broadcast %22 : f32 to vector<14x14x2xf32>
    %256 = arith.mulf %255, %254 : vector<14x14x2xf32>
    %257 = arith.addf %253, %256 : vector<14x14x2xf32>
    %258 = vector.extract_strided_slice %81 {offsets = [2, 0, 0], sizes = [14, 14, 2], strides = [1, 1, 1]} : vector<16x14x2xf32> to vector<14x14x2xf32>
    %259 = vector.broadcast %25 : f32 to vector<14x14x2xf32>
    %260 = arith.mulf %259, %258 : vector<14x14x2xf32>
    %261 = arith.addf %257, %260 : vector<14x14x2xf32>
    %262 = vector.extract_strided_slice %83 {offsets = [0, 0, 0], sizes = [14, 14, 2], strides = [1, 1, 1]} : vector<16x14x2xf32> to vector<14x14x2xf32>
    %263 = vector.broadcast %20 : f32 to vector<14x14x2xf32>
    %264 = arith.mulf %263, %262 : vector<14x14x2xf32>
    %265 = arith.addf %261, %264 : vector<14x14x2xf32>
    %266 = vector.extract_strided_slice %83 {offsets = [1, 0, 0], sizes = [14, 14, 2], strides = [1, 1, 1]} : vector<16x14x2xf32> to vector<14x14x2xf32>
    %267 = vector.broadcast %23 : f32 to vector<14x14x2xf32>
    %268 = arith.mulf %267, %266 : vector<14x14x2xf32>
    %269 = arith.addf %265, %268 : vector<14x14x2xf32>
    %270 = vector.extract_strided_slice %83 {offsets = [2, 0, 0], sizes = [14, 14, 2], strides = [1, 1, 1]} : vector<16x14x2xf32> to vector<14x14x2xf32>
    %271 = vector.broadcast %26 : f32 to vector<14x14x2xf32>
    %272 = arith.mulf %271, %270 : vector<14x14x2xf32>
    %273 = arith.addf %269, %272 : vector<14x14x2xf32>
    %274 = vector.broadcast %38 : f32 to vector<14x14x2xf32>
    %275 = arith.addf %273, %274 : vector<14x14x2xf32>
    %cst_46 = arith.constant 0.000000e+00 : f32
    %276 = vector.broadcast %cst_46 : f32 to vector<14x14x2xf32>
    %277 = arith.maximumf %275, %276 : vector<14x14x2xf32>
    %278 = vector.extract_strided_slice %277 {offsets = [0, 0, 0], sizes = [14, 12, 2], strides = [1, 1, 1]} : vector<14x14x2xf32> to vector<14x12x2xf32>
    %279 = vector.extract_strided_slice %277 {offsets = [0, 1, 0], sizes = [14, 12, 2], strides = [1, 1, 1]} : vector<14x14x2xf32> to vector<14x12x2xf32>
    %280 = vector.extract_strided_slice %277 {offsets = [0, 2, 0], sizes = [14, 12, 2], strides = [1, 1, 1]} : vector<14x14x2xf32> to vector<14x12x2xf32>
    %281 = vector.extract_strided_slice %278 {offsets = [0, 0, 0], sizes = [12, 12, 2], strides = [1, 1, 1]} : vector<14x12x2xf32> to vector<12x12x2xf32>
    %282 = vector.broadcast %58 : f32 to vector<12x12x2xf32>
    %283 = arith.mulf %282, %281 : vector<12x12x2xf32>
    %284 = arith.addf %238, %283 : vector<12x12x2xf32>
    %285 = vector.extract_strided_slice %278 {offsets = [1, 0, 0], sizes = [12, 12, 2], strides = [1, 1, 1]} : vector<14x12x2xf32> to vector<12x12x2xf32>
    %286 = vector.broadcast %61 : f32 to vector<12x12x2xf32>
    %287 = arith.mulf %286, %285 : vector<12x12x2xf32>
    %288 = arith.addf %284, %287 : vector<12x12x2xf32>
    %289 = vector.extract_strided_slice %278 {offsets = [2, 0, 0], sizes = [12, 12, 2], strides = [1, 1, 1]} : vector<14x12x2xf32> to vector<12x12x2xf32>
    %290 = vector.broadcast %64 : f32 to vector<12x12x2xf32>
    %291 = arith.mulf %290, %289 : vector<12x12x2xf32>
    %292 = arith.addf %288, %291 : vector<12x12x2xf32>
    %293 = vector.extract_strided_slice %279 {offsets = [0, 0, 0], sizes = [12, 12, 2], strides = [1, 1, 1]} : vector<14x12x2xf32> to vector<12x12x2xf32>
    %294 = vector.broadcast %59 : f32 to vector<12x12x2xf32>
    %295 = arith.mulf %294, %293 : vector<12x12x2xf32>
    %296 = arith.addf %292, %295 : vector<12x12x2xf32>
    %297 = vector.extract_strided_slice %279 {offsets = [1, 0, 0], sizes = [12, 12, 2], strides = [1, 1, 1]} : vector<14x12x2xf32> to vector<12x12x2xf32>
    %298 = vector.broadcast %62 : f32 to vector<12x12x2xf32>
    %299 = arith.mulf %298, %297 : vector<12x12x2xf32>
    %300 = arith.addf %296, %299 : vector<12x12x2xf32>
    %301 = vector.extract_strided_slice %279 {offsets = [2, 0, 0], sizes = [12, 12, 2], strides = [1, 1, 1]} : vector<14x12x2xf32> to vector<12x12x2xf32>
    %302 = vector.broadcast %65 : f32 to vector<12x12x2xf32>
    %303 = arith.mulf %302, %301 : vector<12x12x2xf32>
    %304 = arith.addf %300, %303 : vector<12x12x2xf32>
    %305 = vector.extract_strided_slice %280 {offsets = [0, 0, 0], sizes = [12, 12, 2], strides = [1, 1, 1]} : vector<14x12x2xf32> to vector<12x12x2xf32>
    %306 = vector.broadcast %60 : f32 to vector<12x12x2xf32>
    %307 = arith.mulf %306, %305 : vector<12x12x2xf32>
    %308 = arith.addf %304, %307 : vector<12x12x2xf32>
    %309 = vector.extract_strided_slice %280 {offsets = [1, 0, 0], sizes = [12, 12, 2], strides = [1, 1, 1]} : vector<14x12x2xf32> to vector<12x12x2xf32>
    %310 = vector.broadcast %63 : f32 to vector<12x12x2xf32>
    %311 = arith.mulf %310, %309 : vector<12x12x2xf32>
    %312 = arith.addf %308, %311 : vector<12x12x2xf32>
    %313 = vector.extract_strided_slice %280 {offsets = [2, 0, 0], sizes = [12, 12, 2], strides = [1, 1, 1]} : vector<14x12x2xf32> to vector<12x12x2xf32>
    %314 = vector.broadcast %66 : f32 to vector<12x12x2xf32>
    %315 = arith.mulf %314, %313 : vector<12x12x2xf32>
    %316 = arith.addf %312, %315 : vector<12x12x2xf32>
    %317 = vector.extract_strided_slice %79 {offsets = [0, 0, 0], sizes = [14, 14, 2], strides = [1, 1, 1]} : vector<16x14x2xf32> to vector<14x14x2xf32>
    %318 = vector.broadcast %27 : f32 to vector<14x14x2xf32>
    %319 = arith.mulf %318, %317 : vector<14x14x2xf32>
    %320 = vector.extract_strided_slice %79 {offsets = [1, 0, 0], sizes = [14, 14, 2], strides = [1, 1, 1]} : vector<16x14x2xf32> to vector<14x14x2xf32>
    %321 = vector.broadcast %30 : f32 to vector<14x14x2xf32>
    %322 = arith.mulf %321, %320 : vector<14x14x2xf32>
    %323 = arith.addf %319, %322 : vector<14x14x2xf32>
    %324 = vector.extract_strided_slice %79 {offsets = [2, 0, 0], sizes = [14, 14, 2], strides = [1, 1, 1]} : vector<16x14x2xf32> to vector<14x14x2xf32>
    %325 = vector.broadcast %33 : f32 to vector<14x14x2xf32>
    %326 = arith.mulf %325, %324 : vector<14x14x2xf32>
    %327 = arith.addf %323, %326 : vector<14x14x2xf32>
    %328 = vector.extract_strided_slice %81 {offsets = [0, 0, 0], sizes = [14, 14, 2], strides = [1, 1, 1]} : vector<16x14x2xf32> to vector<14x14x2xf32>
    %329 = vector.broadcast %28 : f32 to vector<14x14x2xf32>
    %330 = arith.mulf %329, %328 : vector<14x14x2xf32>
    %331 = arith.addf %327, %330 : vector<14x14x2xf32>
    %332 = vector.extract_strided_slice %81 {offsets = [1, 0, 0], sizes = [14, 14, 2], strides = [1, 1, 1]} : vector<16x14x2xf32> to vector<14x14x2xf32>
    %333 = vector.broadcast %31 : f32 to vector<14x14x2xf32>
    %334 = arith.mulf %333, %332 : vector<14x14x2xf32>
    %335 = arith.addf %331, %334 : vector<14x14x2xf32>
    %336 = vector.extract_strided_slice %81 {offsets = [2, 0, 0], sizes = [14, 14, 2], strides = [1, 1, 1]} : vector<16x14x2xf32> to vector<14x14x2xf32>
    %337 = vector.broadcast %34 : f32 to vector<14x14x2xf32>
    %338 = arith.mulf %337, %336 : vector<14x14x2xf32>
    %339 = arith.addf %335, %338 : vector<14x14x2xf32>
    %340 = vector.extract_strided_slice %83 {offsets = [0, 0, 0], sizes = [14, 14, 2], strides = [1, 1, 1]} : vector<16x14x2xf32> to vector<14x14x2xf32>
    %341 = vector.broadcast %29 : f32 to vector<14x14x2xf32>
    %342 = arith.mulf %341, %340 : vector<14x14x2xf32>
    %343 = arith.addf %339, %342 : vector<14x14x2xf32>
    %344 = vector.extract_strided_slice %83 {offsets = [1, 0, 0], sizes = [14, 14, 2], strides = [1, 1, 1]} : vector<16x14x2xf32> to vector<14x14x2xf32>
    %345 = vector.broadcast %32 : f32 to vector<14x14x2xf32>
    %346 = arith.mulf %345, %344 : vector<14x14x2xf32>
    %347 = arith.addf %343, %346 : vector<14x14x2xf32>
    %348 = vector.extract_strided_slice %83 {offsets = [2, 0, 0], sizes = [14, 14, 2], strides = [1, 1, 1]} : vector<16x14x2xf32> to vector<14x14x2xf32>
    %349 = vector.broadcast %35 : f32 to vector<14x14x2xf32>
    %350 = arith.mulf %349, %348 : vector<14x14x2xf32>
    %351 = arith.addf %347, %350 : vector<14x14x2xf32>
    %352 = vector.broadcast %39 : f32 to vector<14x14x2xf32>
    %353 = arith.addf %351, %352 : vector<14x14x2xf32>
    %cst_47 = arith.constant 0.000000e+00 : f32
    %354 = vector.broadcast %cst_47 : f32 to vector<14x14x2xf32>
    %355 = arith.maximumf %353, %354 : vector<14x14x2xf32>
    %356 = vector.extract_strided_slice %355 {offsets = [0, 0, 0], sizes = [14, 12, 2], strides = [1, 1, 1]} : vector<14x14x2xf32> to vector<14x12x2xf32>
    %357 = vector.extract_strided_slice %355 {offsets = [0, 1, 0], sizes = [14, 12, 2], strides = [1, 1, 1]} : vector<14x14x2xf32> to vector<14x12x2xf32>
    %358 = vector.extract_strided_slice %355 {offsets = [0, 2, 0], sizes = [14, 12, 2], strides = [1, 1, 1]} : vector<14x14x2xf32> to vector<14x12x2xf32>
    %359 = vector.extract_strided_slice %356 {offsets = [0, 0, 0], sizes = [12, 12, 2], strides = [1, 1, 1]} : vector<14x12x2xf32> to vector<12x12x2xf32>
    %360 = vector.broadcast %67 : f32 to vector<12x12x2xf32>
    %361 = arith.mulf %360, %359 : vector<12x12x2xf32>
    %362 = arith.addf %316, %361 : vector<12x12x2xf32>
    %363 = vector.extract_strided_slice %356 {offsets = [1, 0, 0], sizes = [12, 12, 2], strides = [1, 1, 1]} : vector<14x12x2xf32> to vector<12x12x2xf32>
    %364 = vector.broadcast %70 : f32 to vector<12x12x2xf32>
    %365 = arith.mulf %364, %363 : vector<12x12x2xf32>
    %366 = arith.addf %362, %365 : vector<12x12x2xf32>
    %367 = vector.extract_strided_slice %356 {offsets = [2, 0, 0], sizes = [12, 12, 2], strides = [1, 1, 1]} : vector<14x12x2xf32> to vector<12x12x2xf32>
    %368 = vector.broadcast %73 : f32 to vector<12x12x2xf32>
    %369 = arith.mulf %368, %367 : vector<12x12x2xf32>
    %370 = arith.addf %366, %369 : vector<12x12x2xf32>
    %371 = vector.extract_strided_slice %357 {offsets = [0, 0, 0], sizes = [12, 12, 2], strides = [1, 1, 1]} : vector<14x12x2xf32> to vector<12x12x2xf32>
    %372 = vector.broadcast %68 : f32 to vector<12x12x2xf32>
    %373 = arith.mulf %372, %371 : vector<12x12x2xf32>
    %374 = arith.addf %370, %373 : vector<12x12x2xf32>
    %375 = vector.extract_strided_slice %357 {offsets = [1, 0, 0], sizes = [12, 12, 2], strides = [1, 1, 1]} : vector<14x12x2xf32> to vector<12x12x2xf32>
    %376 = vector.broadcast %71 : f32 to vector<12x12x2xf32>
    %377 = arith.mulf %376, %375 : vector<12x12x2xf32>
    %378 = arith.addf %374, %377 : vector<12x12x2xf32>
    %379 = vector.extract_strided_slice %357 {offsets = [2, 0, 0], sizes = [12, 12, 2], strides = [1, 1, 1]} : vector<14x12x2xf32> to vector<12x12x2xf32>
    %380 = vector.broadcast %74 : f32 to vector<12x12x2xf32>
    %381 = arith.mulf %380, %379 : vector<12x12x2xf32>
    %382 = arith.addf %378, %381 : vector<12x12x2xf32>
    %383 = vector.extract_strided_slice %358 {offsets = [0, 0, 0], sizes = [12, 12, 2], strides = [1, 1, 1]} : vector<14x12x2xf32> to vector<12x12x2xf32>
    %384 = vector.broadcast %69 : f32 to vector<12x12x2xf32>
    %385 = arith.mulf %384, %383 : vector<12x12x2xf32>
    %386 = arith.addf %382, %385 : vector<12x12x2xf32>
    %387 = vector.extract_strided_slice %358 {offsets = [1, 0, 0], sizes = [12, 12, 2], strides = [1, 1, 1]} : vector<14x12x2xf32> to vector<12x12x2xf32>
    %388 = vector.broadcast %72 : f32 to vector<12x12x2xf32>
    %389 = arith.mulf %388, %387 : vector<12x12x2xf32>
    %390 = arith.addf %386, %389 : vector<12x12x2xf32>
    %391 = vector.extract_strided_slice %358 {offsets = [2, 0, 0], sizes = [12, 12, 2], strides = [1, 1, 1]} : vector<14x12x2xf32> to vector<12x12x2xf32>
    %392 = vector.broadcast %75 : f32 to vector<12x12x2xf32>
    %393 = arith.mulf %392, %391 : vector<12x12x2xf32>
    %394 = arith.addf %390, %393 : vector<12x12x2xf32>
    %395 = vector.broadcast %76 : f32 to vector<12x12x2xf32>
    %396 = arith.addf %394, %395 : vector<12x12x2xf32>
    %c0_48 = arith.constant 0 : index
    %c0_49 = arith.constant 0 : index
    %c0_50 = arith.constant 0 : index
    %397 = vector.load %arg7[%c0_48, %c0_49, %c0_50] : memref<12x12x2xf32, #tpu.memory_space<vmem>>, vector<12x12x2xf32>
    tpu.vector_store %arg7[%c0_48, %c0_49, %c0_50], %396 {strides = array<i32>} : memref<12x12x2xf32, #tpu.memory_space<vmem>>, vector<12x12x2xf32>,
    %c0_51 = arith.constant 0 : index
    %c0_52 = arith.constant 0 : index
    %c0_53 = arith.constant 0 : index
    %398 = vector.load %arg6[%c0_51, %c0_52, %c0_53] : memref<12x12x2xf32, #tpu.memory_space<vmem>>, vector<12x12x2xf32>
    %cst_54 = arith.constant 0.000000e+00 : f32
    %399 = vector.broadcast %cst_54 : f32 to vector<12x12x2xf32>
    %400 = arith.subf %399, %396 : vector<12x12x2xf32>
    %cst_55 = arith.constant 0.000000e+00 : f32
    %401 = vector.broadcast %cst_55 : f32 to vector<12x12x2xf32>
    %402 = arith.maximumf %400, %401 : vector<12x12x2xf32>
    %cst_56 = arith.constant 0.000000e+00 : f32
    %403 = vector.broadcast %cst_56 : f32 to vector<12x12x2xf32>
    %404 = arith.subf %403, %402 : vector<12x12x2xf32>
    %405 = math.exp %404 : vector<12x12x2xf32>
    %cst_57 = arith.constant 0.000000e+00 : f32
    %406 = vector.broadcast %cst_57 : f32 to vector<12x12x2xf32>
    %407 = arith.subf %406, %396 : vector<12x12x2xf32>
    %408 = arith.subf %407, %402 : vector<12x12x2xf32>
    %409 = math.exp %408 : vector<12x12x2xf32>
    %410 = arith.addf %405, %409 : vector<12x12x2xf32>
    %411 = math.log %410 : vector<12x12x2xf32>
    %412 = arith.addf %402, %411 : vector<12x12x2xf32>
    %413 = tpu.reciprocal %410 {approx = true} : vector<12x12x2xf32> -> vector<12x12x2xf32>
    %414 = arith.mulf %410, %413 : vector<12x12x2xf32>
    %cst_58 = arith.constant 2.000000e+00 : f32
    %415 = vector.broadcast %cst_58 : f32 to vector<12x12x2xf32>
    %416 = arith.subf %415, %414 : vector<12x12x2xf32>
    %417 = arith.mulf %413, %416 : vector<12x12x2xf32>
    %418 = arith.mulf %405, %417 : vector<12x12x2xf32>
    %419 = arith.mulf %409, %417 : vector<12x12x2xf32>
    %420 = arith.mulf %418, %418 : vector<12x12x2xf32>
    %421 = arith.mulf %419, %419 : vector<12x12x2xf32>
    %cst_59 = arith.constant 8.000000e-01 : f32
    %422 = vector.broadcast %cst_59 : f32 to vector<12x12x2xf32>
    %423 = arith.mulf %422, %398 : vector<12x12x2xf32>
    %424 = arith.mulf %423, %421 : vector<12x12x2xf32>
    %425 = arith.mulf %424, %412 : vector<12x12x2xf32>
    %cst_60 = arith.constant 1.000000e+00 : f32
    %426 = vector.broadcast %cst_60 : f32 to vector<12x12x2xf32>
    %427 = arith.subf %426, %398 : vector<12x12x2xf32>
    %428 = arith.mulf %420, %427 : vector<12x12x2xf32>
    %429 = arith.addf %396, %412 : vector<12x12x2xf32>
    %430 = arith.mulf %428, %429 : vector<12x12x2xf32>
    %431 = arith.addf %425, %430 : vector<12x12x2xf32>
    %cst_61 = arith.constant dense<0.000000e+00> : vector<12x2xf32>
    %432 = vector.multi_reduction <add>, %431, %cst_61 [0] : vector<12x12x2xf32> to vector<12x2xf32>
    %cst_62 = arith.constant dense<0.000000e+00> : vector<2xf32>
    %433 = vector.multi_reduction <add>, %432, %cst_62 [0] : vector<12x2xf32> to vector<2xf32>
    %434 = vector.shape_cast %433 : vector<2xf32> to vector<1x2xf32>
    %c0_63 = arith.constant 0 : index
    %c0_64 = arith.constant 0 : index
    %435 = vector.load %arg8[%c0_63, %c0_64] : memref<1x2xf32, #tpu.memory_space<vmem>>, vector<1x2xf32>
    tpu.vector_store %arg8[%c0_63, %c0_64], %434 {strides = array<i32>} : memref<1x2xf32, #tpu.memory_space<vmem>>, vector<1x2xf32>,
    return
  }
  func.func @transform_0(%arg0: i32) -> i32 {
    %c0_i32 = arith.constant 0 : i32
    %c0_i32_0 = arith.constant 0 : i32
    return %c0_i32 : i32
  }
  func.func @transform_1(%arg0: i32) -> i32 {
    %c0_i32 = arith.constant 0 : i32
    %c0_i32_0 = arith.constant 0 : i32
    return %c0_i32 : i32
  }
  func.func @transform_2(%arg0: i32) -> i32 {
    %c0_i32 = arith.constant 0 : i32
    %c0_i32_0 = arith.constant 0 : i32
    return %c0_i32 : i32
  }
  func.func @transform_3(%arg0: i32) -> i32 {
    %c0_i32 = arith.constant 0 : i32
    %c0_i32_0 = arith.constant 0 : i32
    return %c0_i32 : i32
  }
  func.func @transform_4(%arg0: i32) -> (i32, i32, i32, i32) {
    %c0_i32 = arith.constant 0 : i32
    %c0_i32_0 = arith.constant 0 : i32
    %c0_i32_1 = arith.constant 0 : i32
    %c0_i32_2 = arith.constant 0 : i32
    return %c0_i32, %c0_i32_0, %c0_i32_1, %arg0 : i32, i32, i32, i32
  }
  func.func @transform_5(%arg0: i32) -> (i32, i32, i32) {
    %c0_i32 = arith.constant 0 : i32
    %c0_i32_0 = arith.constant 0 : i32
    %c0_i32_1 = arith.constant 0 : i32
    return %c0_i32, %c0_i32_0, %arg0 : i32, i32, i32
  }
  func.func @transform_6(%arg0: i32) -> (i32, i32, i32) {
    %c0_i32 = arith.constant 0 : i32
    %c0_i32_0 = arith.constant 0 : i32
    %c0_i32_1 = arith.constant 0 : i32
    return %c0_i32, %c0_i32_0, %arg0 : i32, i32, i32
  }
  func.func @transform_7(%arg0: i32) -> (i32, i32) {
    %c0_i32 = arith.constant 0 : i32
    %c0_i32_0 = arith.constant 0 : i32
    return %c0_i32, %arg0 : i32, i32
  }
}

</mosaic_0001>

<llo_original>
// kernel: tpu_custom_call.1
$region0: #{tpu_custom_call.1}
  #allocation0 [shape = 'u32[]', space=smem, size = 0x4, offset = 0x4, fixed_abs, tag = 'smem constant byte address 0x4 - core index']
  #allocation1 [shape = 'u32[144,128]{1,0:T(1,128)}', space=vmem, size = 0x12000, scoped, tag = 'internal scratch']
  #allocation2 [shape = 'f32[1]{0:T(128)S(6)}', space=smem, size = 0x200, scoped, tag = 'scoped memory for tpu_custom_call.1']
  %s0 = inlined_call_operand.vmem [shape: f32[36], index: 0, kind: input, shape index: {}]
  %s1 = inlined_call_operand.vmem [shape: f32[4], index: 1, kind: input, shape index: {}]
  %s2 = inlined_call_operand.vmem [shape: f32[36], index: 2, kind: input, shape index: {}]
  %s3 = inlined_call_operand.<no memory space> [shape: f32[1], index: 3, kind: input, shape index: {}]
  %s4 = inlined_call_operand.vmem [shape: f32[1,16,16,2], index: 4, kind: input, shape index: {}]
  %s5 = inlined_call_operand.vmem [shape: f32[12,12,2], index: 5, kind: input, shape index: {}]
  %s6 = inlined_call_operand.vmem [shape: f32[12,12,2], index: 6, kind: output, shape index: {0}]
  %s7 = inlined_call_operand.hbm [shape: f32[1,2], index: 7, kind: output, shape index: {1}]
  %8 = xla_tuple %s6, %s7
  %s9 = sld [smem:[#allocation0]]
  $region54: #{tpu_custom_call.1} parent=0
    _
  %s11 = ssub.s32 1, %s9
  %s12 = scalar_select 0, %s11, %s9
  %13 = sst [smem:[#allocation2]] %s3
  $region1: #{tpu_custom_call.1} parent=0
    #allocation3 [shape = 'u8[512]{0}', space=smem, size = 0x200, scoped, tag = 'input window, operand 0, single buffered']
    #allocation4 [shape = 's32[1]{0}', space=sflag, size = 0x4, scoped, tag = 'scoped memory for tpu_custom_call.1']
    #allocation5 [shape = 's32[1]{0}', space=sflag, size = 0x4, scoped, tag = 'scoped memory for tpu_custom_call.1']
    #allocation6 [shape = 'u8[512]{0}', space=smem, size = 0x200, scoped, tag = 'input window, operand 1, single buffered']
    #allocation7 [shape = 's32[1]{0}', space=sflag, size = 0x4, scoped, tag = 'scoped memory for tpu_custom_call.1']
    #allocation8 [shape = 'u8[512]{0}', space=smem, size = 0x200, scoped, tag = 'input window, operand 2, single buffered']
    #allocation9 [shape = 'u8[512]{0}', space=vmem, size = 0x400, scoped, tag = 'output window, operand 1, single buffered']
    %14 = vsyncpa [#allocation5], 0
    %15 = vsyncpa [#allocation7], 0
    %16 = vsyncpa [#allocation4], 0
    // Predicated region
    $region2: #{tpu_custom_call.1} parent=1 // pred_check
      _
    $region3: #{tpu_custom_call.1} parent=1 // pred_check_branch
      %18 = sbr.rel (0) target = $region5
    $region4: #{tpu_custom_call.1} parent=1 // pred_region
      %s20 = ssub.s32 16, 16
      %21 = vsyncadd [#allocation5], %s20
      %s23 = sshll.u32 %s0, 4
      %s24 = int_to_ptr.vmem [resolvable:$true] %s23
      %26 = dma.vmem_to_smem %s24, 16, [#allocation3], [#allocation5]
    $region5: #{tpu_custom_call.1} parent=1 // pred_fallthru
      _
    // Predicated region
    $region6: #{tpu_custom_call.1} parent=1 // pred_check
      _
    $region7: #{tpu_custom_call.1} parent=1 // pred_check_branch
      %28 = sbr.rel (0) target = $region9
    $region8: #{tpu_custom_call.1} parent=1 // pred_region
      %s30 = ssub.s32 16, 16
      %31 = vsyncadd [#allocation7], %s30
      %s33 = sshll.u32 %s1, 4
      %s34 = int_to_ptr.vmem [resolvable:$true] %s33
      %36 = dma.vmem_to_smem %s34, 16, [#allocation6], [#allocation7]
    $region9: #{tpu_custom_call.1} parent=1 // pred_fallthru
      _
    // Predicated region
    $region10: #{tpu_custom_call.1} parent=1 // pred_check
      _
    $region11: #{tpu_custom_call.1} parent=1 // pred_check_branch
      %38 = sbr.rel (0) target = $region13
    $region12: #{tpu_custom_call.1} parent=1 // pred_region
      %s40 = ssub.s32 16, 16
      %41 = vsyncadd [#allocation7], %s40
      %s43 = sshll.u32 %s2, 4
      %s44 = int_to_ptr.vmem [resolvable:$true] %s43
      %46 = dma.vmem_to_smem %s44, 16, [#allocation8], [#allocation7]
    $region13: #{tpu_custom_call.1} parent=1 // pred_fallthru
      _
    // Predicated region
    $region14: #{tpu_custom_call.1} parent=1 // pred_check
      _
    $region15: #{tpu_custom_call.1} parent=1 // pred_check_branch
      %48 = sbr.rel (0) target = $region17
    $region16: #{tpu_custom_call.1} parent=1 // pred_region
      _
    $region17: #{tpu_custom_call.1} parent=1 // pred_fallthru
      _
    // Predicated region
    $region18: #{tpu_custom_call.1} parent=1 // pred_check
      _
    $region19: #{tpu_custom_call.1} parent=1 // pred_check_branch
      %50 = sbr.rel (0) target = $region21
    $region20: #{tpu_custom_call.1} parent=1 // pred_region
      _
    $region21: #{tpu_custom_call.1} parent=1 // pred_fallthru
      _
    // Predicated region
    $region22: #{tpu_custom_call.1} parent=1 // pred_check
      _
    $region23: #{tpu_custom_call.1} parent=1 // pred_check_branch
      %52 = sbr.rel (0) target = $region25
    $region24: #{tpu_custom_call.1} parent=1 // pred_region
      _
    $region25: #{tpu_custom_call.1} parent=1 // pred_fallthru
      _
    // Predicated region
    $region26: #{tpu_custom_call.1} parent=1 // pred_check
      _
    $region27: #{tpu_custom_call.1} parent=1 // pred_check_branch
      %54 = sbr.rel (0) target = $region29
    $region28: #{tpu_custom_call.1} parent=1 // pred_region
      %55 = dma.done [#allocation5], 16
    $region29: #{tpu_custom_call.1} parent=1 // pred_fallthru
      _
    // Predicated region
    $region30: #{tpu_custom_call.1} parent=1 // pred_check
      _
    $region31: #{tpu_custom_call.1} parent=1 // pred_check_branch
      %57 = sbr.rel (0) target = $region33
    $region32: #{tpu_custom_call.1} parent=1 // pred_region
      %58 = dma.done [#allocation7], 16
    $region33: #{tpu_custom_call.1} parent=1 // pred_fallthru
      _
    // Predicated region
    $region34: #{tpu_custom_call.1} parent=1 // pred_check
      _
    $region35: #{tpu_custom_call.1} parent=1 // pred_check_branch
      %60 = sbr.rel (0) target = $region37
    $region36: #{tpu_custom_call.1} parent=1 // pred_region
      %61 = dma.done [#allocation7], 16
    $region37: #{tpu_custom_call.1} parent=1 // pred_fallthru
      _
    %62 = sfence
    %s63 = sld [smem:[#allocation3]]
    %s64 = sld [smem:[#allocation3 + $0x1]]
    %s65 = sld [smem:[#allocation3 + $0x2]]
    %s66 = sld [smem:[#allocation3 + $0x3]]
    %s67 = sld [smem:[#allocation3 + $0x4]]
    %s68 = sld [smem:[#allocation3 + $0x5]]
    %s69 = sld [smem:[#allocation3 + $0x6]]
    %s70 = sld [smem:[#allocation3 + $0x7]]
    %s71 = sld [smem:[#allocation3 + $0x8]]
    %s72 = sld [smem:[#allocation3 + $0x9]]
    %s73 = sld [smem:[#allocation3 + $0xa]]
    %s74 = sld [smem:[#allocation3 + $0xb]]
    %s75 = sld [smem:[#allocation3 + $0xc]]
    %s76 = sld [smem:[#allocation3 + $0xd]]
    %s77 = sld [smem:[#allocation3 + $0xe]]
    %s78 = sld [smem:[#allocation3 + $0xf]]
    %s79 = sld [smem:[#allocation3 + $0x10]]
    %s80 = sld [smem:[#allocation3 + $0x11]]
    %s81 = sld [smem:[#allocation3 + $0x12]]
    %s82 = sld [smem:[#allocation3 + $0x13]]
    %s83 = sld [smem:[#allocation3 + $0x14]]
    %s84 = sld [smem:[#allocation3 + $0x15]]
    %s85 = sld [smem:[#allocation3 + $0x16]]
    %s86 = sld [smem:[#allocation3 + $0x17]]
    %s87 = sld [smem:[#allocation3 + $0x18]]
    %s88 = sld [smem:[#allocation3 + $0x19]]
    %s89 = sld [smem:[#allocation3 + $0x1a]]
    %s90 = sld [smem:[#allocation3 + $0x1b]]
    %s91 = sld [smem:[#allocation3 + $0x1c]]
    %s92 = sld [smem:[#allocation3 + $0x1d]]
    %s93 = sld [smem:[#allocation3 + $0x1e]]
    %s94 = sld [smem:[#allocation3 + $0x1f]]
    %s95 = sld [smem:[#allocation3 + $0x20]]
    %s96 = sld [smem:[#allocation3 + $0x21]]
    %s97 = sld [smem:[#allocation3 + $0x22]]
    %s98 = sld [smem:[#allocation3 + $0x23]]
    %s99 = sld [smem:[#allocation6]]
    %s100 = sld [smem:[#allocation6 + $0x1]]
    %s101 = sld [smem:[#allocation6 + $0x2]]
    %s102 = sld [smem:[#allocation6 + $0x3]]
    %s103 = sld [smem:[#allocation8]]
    %s104 = sld [smem:[#allocation8 + $0x1]]
    %s105 = sld [smem:[#allocation8 + $0x2]]
    %s106 = sld [smem:[#allocation8 + $0x3]]
    %s107 = sld [smem:[#allocation8 + $0x4]]
    %s108 = sld [smem:[#allocation8 + $0x5]]
    %s109 = sld [smem:[#allocation8 + $0x6]]
    %s110 = sld [smem:[#allocation8 + $0x7]]
    %s111 = sld [smem:[#allocation8 + $0x8]]
    %s112 = sld [smem:[#allocation8 + $0x9]]
    %s113 = sld [smem:[#allocation8 + $0xa]]
    %s114 = sld [smem:[#allocation8 + $0xb]]
    %s115 = sld [smem:[#allocation8 + $0xc]]
    %s116 = sld [smem:[#allocation8 + $0xd]]
    %s117 = sld [smem:[#allocation8 + $0xe]]
    %s118 = sld [smem:[#allocation8 + $0xf]]
    %s119 = sld [smem:[#allocation8 + $0x10]]
    %s120 = sld [smem:[#allocation8 + $0x11]]
    %s121 = sld [smem:[#allocation8 + $0x12]]
    %s122 = sld [smem:[#allocation8 + $0x13]]
    %s123 = sld [smem:[#allocation8 + $0x14]]
    %s124 = sld [smem:[#allocation8 + $0x15]]
    %s125 = sld [smem:[#allocation8 + $0x16]]
    %s126 = sld [smem:[#allocation8 + $0x17]]
    %s127 = sld [smem:[#allocation8 + $0x18]]
    %s128 = sld [smem:[#allocation8 + $0x19]]
    %s129 = sld [smem:[#allocation8 + $0x1a]]
    %s130 = sld [smem:[#allocation8 + $0x1b]]
    %s131 = sld [smem:[#allocation8 + $0x1c]]
    %s132 = sld [smem:[#allocation8 + $0x1d]]
    %s133 = sld [smem:[#allocation8 + $0x1e]]
    %s134 = sld [smem:[#allocation8 + $0x1f]]
    %s135 = sld [smem:[#allocation8 + $0x20]]
    %s136 = sld [smem:[#allocation8 + $0x21]]
    %s137 = sld [smem:[#allocation8 + $0x22]]
    %s138 = sld [smem:[#allocation8 + $0x23]]
    %s139 = sld [smem:[#allocation2]]
    %v140 = vld [vmem:[%s4] sm:$0xff]
    %v141 = vld [vmem:[%s4 + $0x8] sm:$0xff]
    %v142 = vld [vmem:[%s4 + $0x10] sm:$0xff]
    %v143 = vld [vmem:[%s4 + $0x18] sm:$0xff]
    %v144 = vld [vmem:[%s4 + $0x20] sm:$0xff]
    %v145 = vld [vmem:[%s4 + $0x28] sm:$0xff]
    %v146 = vld [vmem:[%s4 + $0x30] sm:$0xff]
    %v147 = vld [vmem:[%s4 + $0x38] sm:$0xff]
    %v148 = vld [vmem:[%s4 + $0x40] sm:$0xff]
    %v149 = vld [vmem:[%s4 + $0x48] sm:$0xff]
    %v150 = vld [vmem:[%s4 + $0x50] sm:$0xff]
    %v151 = vld [vmem:[%s4 + $0x58] sm:$0xff]
    %v152 = vld [vmem:[%s4 + $0x60] sm:$0xff]
    %v153 = vld [vmem:[%s4 + $0x68] sm:$0xff]
    %v154 = vld [vmem:[%s4 + $0x70] sm:$0xff]
    %v155 = vld [vmem:[%s4 + $0x78] sm:$0xff]
    %v156 = vld [vmem:[%s4 + $0x80] sm:$0xff]
    %v157 = vld [vmem:[%s4 + $0x88] sm:$0xff]
    %v158 = vld [vmem:[%s4 + $0x90] sm:$0xff]
    %v159 = vld [vmem:[%s4 + $0x98] sm:$0xff]
    %v160 = vld [vmem:[%s4 + $0xa0] sm:$0xff]
    %v161 = vld [vmem:[%s4 + $0xa8] sm:$0xff]
    %v162 = vld [vmem:[%s4 + $0xb0] sm:$0xff]
    %v163 = vld [vmem:[%s4 + $0xb8] sm:$0xff]
    %v164 = vld [vmem:[%s4 + $0xc0] sm:$0xff]
    %v165 = vld [vmem:[%s4 + $0xc8] sm:$0xff]
    %v166 = vld [vmem:[%s4 + $0xd0] sm:$0xff]
    %v167 = vld [vmem:[%s4 + $0xd8] sm:$0xff]
    %v168 = vld [vmem:[%s4 + $0xe0] sm:$0xff]
    %v169 = vld [vmem:[%s4 + $0xe8] sm:$0xff]
    %v170 = vld [vmem:[%s4 + $0xf0] sm:$0xff]
    %v171 = vld [vmem:[%s4 + $0xf8] sm:$0xff]
    %v172 = vstv %s63
    %v173 = vmul.f32 %v172, %v140
    %v174 = vmul.f32 %v172, %v141
    %v175 = vmul.f32 %v172, %v142
    %v176 = vmul.f32 %v172, %v143
    %v177 = vmul.f32 %v172, %v144
    %v178 = vmul.f32 %v172, %v145
    %v179 = vmul.f32 %v172, %v146
    %v180 = vmul.f32 %v172, %v147
    %v181 = vmul.f32 %v172, %v148
    %v182 = vmul.f32 %v172, %v149
    %v183 = vmul.f32 %v172, %v150
    %v184 = vmul.f32 %v172, %v151
    %v185 = vmul.f32 %v172, %v152
    %v186 = vmul.f32 %v172, %v153
    %v187 = vmul.f32 %v172, %v154
    %v188 = vmul.f32 %v172, %v155
    %v189 = vmul.f32 %v172, %v156
    %v190 = vmul.f32 %v172, %v157
    %v191 = vmul.f32 %v172, %v158
    %v192 = vmul.f32 %v172, %v159
    %v193 = vmul.f32 %v172, %v160
    %v194 = vmul.f32 %v172, %v161
    %v195 = vmul.f32 %v172, %v162
    %v196 = vmul.f32 %v172, %v163
    %v197 = vmul.f32 %v172, %v164
    %v198 = vmul.f32 %v172, %v165
    %v199 = vmul.f32 %v172, %v166
    %v200 = vmul.f32 %v172, %v167
    %v201 = vstv %s66
    %v202 = vmul.f32 %v201, %v142
    %v203 = vmul.f32 %v201, %v143
    %v204 = vmul.f32 %v201, %v144
    %v205 = vmul.f32 %v201, %v145
    %v206 = vmul.f32 %v201, %v146
    %v207 = vmul.f32 %v201, %v147
    %v208 = vmul.f32 %v201, %v148
    %v209 = vmul.f32 %v201, %v149
    %v210 = vmul.f32 %v201, %v150
    %v211 = vmul.f32 %v201, %v151
    %v212 = vmul.f32 %v201, %v152
    %v213 = vmul.f32 %v201, %v153
    %v214 = vmul.f32 %v201, %v154
    %v215 = vmul.f32 %v201, %v155
    %v216 = vmul.f32 %v201, %v156
    %v217 = vmul.f32 %v201, %v157
    %v218 = vmul.f32 %v201, %v158
    %v219 = vmul.f32 %v201, %v159
    %v220 = vmul.f32 %v201, %v160
    %v221 = vmul.f32 %v201, %v161
    %v222 = vmul.f32 %v201, %v162
    %v223 = vmul.f32 %v201, %v163
    %v224 = vmul.f32 %v201, %v164
    %v225 = vmul.f32 %v201, %v165
    %v226 = vmul.f32 %v201, %v166
    %v227 = vmul.f32 %v201, %v167
    %v228 = vmul.f32 %v201, %v168
    %v229 = vmul.f32 %v201, %v169
    %v230 = vadd.f32 %v173, %v202
    %v231 = vadd.f32 %v174, %v203
    %v232 = vadd.f32 %v175, %v204
    %v233 = vadd.f32 %v176, %v205
    %v234 = vadd.f32 %v177, %v206
    %v235 = vadd.f32 %v178, %v207
    %v236 = vadd.f32 %v179, %v208
    %v237 = vadd.f32 %v180, %v209
    %v238 = vadd.f32 %v181, %v210
    %v239 = vadd.f32 %v182, %v211
    %v240 = vadd.f32 %v183, %v212
    %v241 = vadd.f32 %v184, %v213
    %v242 = vadd.f32 %v185, %v214
    %v243 = vadd.f32 %v186, %v215
    %v244 = vadd.f32 %v187, %v216
    %v245 = vadd.f32 %v188, %v217
    %v246 = vadd.f32 %v189, %v218
    %v247 = vadd.f32 %v190, %v219
    %v248 = vadd.f32 %v191, %v220
    %v249 = vadd.f32 %v192, %v221
    %v250 = vadd.f32 %v193, %v222
    %v251 = vadd.f32 %v194, %v223
    %v252 = vadd.f32 %v195, %v224
    %v253 = vadd.f32 %v196, %v225
    %v254 = vadd.f32 %v197, %v226
    %v255 = vadd.f32 %v198, %v227
    %v256 = vadd.f32 %v199, %v228
    %v257 = vadd.f32 %v200, %v229
    %v258 = vstv %s69
    %v259 = vmul.f32 %v258, %v144
    %v260 = vmul.f32 %v258, %v145
    %v261 = vmul.f32 %v258, %v146
    %v262 = vmul.f32 %v258, %v147
    %v263 = vmul.f32 %v258, %v148
    %v264 = vmul.f32 %v258, %v149
    %v265 = vmul.f32 %v258, %v150
    %v266 = vmul.f32 %v258, %v151
    %v267 = vmul.f32 %v258, %v152
    %v268 = vmul.f32 %v258, %v153
    %v269 = vmul.f32 %v258, %v154
    %v270 = vmul.f32 %v258, %v155
    %v271 = vmul.f32 %v258, %v156
    %v272 = vmul.f32 %v258, %v157
    %v273 = vmul.f32 %v258, %v158
    %v274 = vmul.f32 %v258, %v159
    %v275 = vmul.f32 %v258, %v160
    %v276 = vmul.f32 %v258, %v161
    %v277 = vmul.f32 %v258, %v162
    %v278 = vmul.f32 %v258, %v163
    %v279 = vmul.f32 %v258, %v164
    %v280 = vmul.f32 %v258, %v165
    %v281 = vmul.f32 %v258, %v166
    %v282 = vmul.f32 %v258, %v167
    %v283 = vmul.f32 %v258, %v168
    %v284 = vmul.f32 %v258, %v169
    %v285 = vmul.f32 %v258, %v170
    %v286 = vmul.f32 %v258, %v171
    %v287 = vadd.f32 %v230, %v259
    %v288 = vadd.f32 %v231, %v260
    %v289 = vadd.f32 %v232, %v261
    %v290 = vadd.f32 %v233, %v262
    %v291 = vadd.f32 %v234, %v263
    %v292 = vadd.f32 %v235, %v264
    %v293 = vadd.f32 %v236, %v265
    %v294 = vadd.f32 %v237, %v266
    %v295 = vadd.f32 %v238, %v267
    %v296 = vadd.f32 %v239, %v268
    %v297 = vadd.f32 %v240, %v269
    %v298 = vadd.f32 %v241, %v270
    %v299 = vadd.f32 %v242, %v271
    %v300 = vadd.f32 %v243, %v272
    %v301 = vadd.f32 %v244, %v273
    %v302 = vadd.f32 %v245, %v274
    %v303 = vadd.f32 %v246, %v275
    %v304 = vadd.f32 %v247, %v276
    %v305 = vadd.f32 %v248, %v277
    %v306 = vadd.f32 %v249, %v278
    %v307 = vadd.f32 %v250, %v279
    %v308 = vadd.f32 %v251, %v280
    %v309 = vadd.f32 %v252, %v281
    %v310 = vadd.f32 %v253, %v282
    %v311 = vadd.f32 %v254, %v283
    %v312 = vadd.f32 %v255, %v284
    %v313 = vadd.f32 %v256, %v285
    %v314 = vadd.f32 %v257, %v286
    %v315 = vstv %s64
    %v316 = vmul.f32 %v315, %v140
    %v317 = vmul.f32 %v315, %v141
    %v318 = vmul.f32 %v315, %v142
    %v319 = vmul.f32 %v315, %v143
    %v320 = vmul.f32 %v315, %v144
    %v321 = vmul.f32 %v315, %v145
    %v322 = vmul.f32 %v315, %v146
    %v323 = vmul.f32 %v315, %v147
    %v324 = vmul.f32 %v315, %v148
    %v325 = vmul.f32 %v315, %v149
    %v326 = vmul.f32 %v315, %v150
    %v327 = vmul.f32 %v315, %v151
    %v328 = vmul.f32 %v315, %v152
    %v329 = vmul.f32 %v315, %v153
    %v330 = vmul.f32 %v315, %v154
    %v331 = vmul.f32 %v315, %v155
    %v332 = vmul.f32 %v315, %v156
    %v333 = vmul.f32 %v315, %v157
    %v334 = vmul.f32 %v315, %v158
    %v335 = vmul.f32 %v315, %v159
    %v336 = vmul.f32 %v315, %v160
    %v337 = vmul.f32 %v315, %v161
    %v338 = vmul.f32 %v315, %v162
    %v339 = vmul.f32 %v315, %v163
    %v340 = vmul.f32 %v315, %v164
    %v341 = vmul.f32 %v315, %v165
    %v342 = vmul.f32 %v315, %v166
    %v343 = vmul.f32 %v315, %v167
    %vm372 = vcmask 1046528
    %v373 = vrot.slane %v316, 1
    %v374 = vrot.slane %v317, 1
    %v375 = vsel %vm372, %v373, %v374
    %v376 = vrot.slane %v318, 1
    %v377 = vrot.slane %v319, 1
    %v378 = vsel %vm372, %v376, %v377
    %v379 = vrot.slane %v320, 1
    %v380 = vrot.slane %v321, 1
    %v381 = vsel %vm372, %v379, %v380
    %v382 = vrot.slane %v322, 1
    %v383 = vrot.slane %v323, 1
    %v384 = vsel %vm372, %v382, %v383
    %v385 = vrot.slane %v324, 1
    %v386 = vrot.slane %v325, 1
    %v387 = vsel %vm372, %v385, %v386
    %v388 = vrot.slane %v326, 1
    %v389 = vrot.slane %v327, 1
    %v390 = vsel %vm372, %v388, %v389
    %v391 = vrot.slane %v328, 1
    %v392 = vrot.slane %v329, 1
    %v393 = vsel %vm372, %v391, %v392
    %v394 = vrot.slane %v330, 1
    %v395 = vrot.slane %v331, 1
    %v396 = vsel %vm372, %v394, %v395
    %v397 = vrot.slane %v332, 1
    %v398 = vrot.slane %v333, 1
    %v399 = vsel %vm372, %v397, %v398
    %v400 = vrot.slane %v334, 1
    %v401 = vrot.slane %v335, 1
    %v402 = vsel %vm372, %v400, %v401
    %v403 = vrot.slane %v336, 1
    %v404 = vrot.slane %v337, 1
    %v405 = vsel %vm372, %v403, %v404
    %v406 = vrot.slane %v338, 1
    %v407 = vrot.slane %v339, 1
    %v408 = vsel %vm372, %v406, %v407
    %v409 = vrot.slane %v340, 1
    %v410 = vrot.slane %v341, 1
    %v411 = vsel %vm372, %v409, %v410
    %v412 = vrot.slane %v342, 1
    %v413 = vrot.slane %v343, 1
    %v414 = vsel %vm372, %v412, %v413
    %v443 = vadd.f32 %v287, %v375
    %v444 = vadd.f32 %v288, %v374
    %v445 = vadd.f32 %v289, %v378
    %v446 = vadd.f32 %v290, %v377
    %v447 = vadd.f32 %v291, %v381
    %v448 = vadd.f32 %v292, %v380
    %v449 = vadd.f32 %v293, %v384
    %v450 = vadd.f32 %v294, %v383
    %v451 = vadd.f32 %v295, %v387
    %v452 = vadd.f32 %v296, %v386
    %v453 = vadd.f32 %v297, %v390
    %v454 = vadd.f32 %v298, %v389
    %v455 = vadd.f32 %v299, %v393
    %v456 = vadd.f32 %v300, %v392
    %v457 = vadd.f32 %v301, %v396
    %v458 = vadd.f32 %v302, %v395
    %v459 = vadd.f32 %v303, %v399
    %v460 = vadd.f32 %v304, %v398
    %v461 = vadd.f32 %v305, %v402
    %v462 = vadd.f32 %v306, %v401
    %v463 = vadd.f32 %v307, %v405
    %v464 = vadd.f32 %v308, %v404
    %v465 = vadd.f32 %v309, %v408
    %v466 = vadd.f32 %v310, %v407
    %v467 = vadd.f32 %v311, %v411
    %v468 = vadd.f32 %v312, %v410
    %v469 = vadd.f32 %v313, %v414
    %v470 = vadd.f32 %v314, %v413
    %v471 = vstv %s67
    %v472 = vmul.f32 %v471, %v142
    %v473 = vmul.f32 %v471, %v143
    %v474 = vmul.f32 %v471, %v144
    %v475 = vmul.f32 %v471, %v145
    %v476 = vmul.f32 %v471, %v146
    %v477 = vmul.f32 %v471, %v147
    %v478 = vmul.f32 %v471, %v148
    %v479 = vmul.f32 %v471, %v149
    %v480 = vmul.f32 %v471, %v150
    %v481 = vmul.f32 %v471, %v151
    %v482 = vmul.f32 %v471, %v152
    %v483 = vmul.f32 %v471, %v153
    %v484 = vmul.f32 %v471, %v154
    %v485 = vmul.f32 %v471, %v155
    %v486 = vmul.f32 %v471, %v156
    %v487 = vmul.f32 %v471, %v157
    %v488 = vmul.f32 %v471, %v158
    %v489 = vmul.f32 %v471, %v159
    %v490 = vmul.f32 %v471, %v160
    %v491 = vmul.f32 %v471, %v161
    %v492 = vmul.f32 %v471, %v162
    %v493 = vmul.f32 %v471, %v163
    %v494 = vmul.f32 %v471, %v164
    %v495 = vmul.f32 %v471, %v165
    %v496 = vmul.f32 %v471, %v166
    %v497 = vmul.f32 %v471, %v167
    %v498 = vmul.f32 %v471, %v168
    %v499 = vmul.f32 %v471, %v169
    %v528 = vrot.slane %v472, 1
    %v529 = vrot.slane %v473, 1
    %v530 = vsel %vm372, %v528, %v529
    %v531 = vrot.slane %v474, 1
    %v532 = vrot.slane %v475, 1
    %v533 = vsel %vm372, %v531, %v532
    %v534 = vrot.slane %v476, 1
    %v535 = vrot.slane %v477, 1
    %v536 = vsel %vm372, %v534, %v535
    %v537 = vrot.slane %v478, 1
    %v538 = vrot.slane %v479, 1
    %v539 = vsel %vm372, %v537, %v538
    %v540 = vrot.slane %v480, 1
    %v541 = vrot.slane %v481, 1
    %v542 = vsel %vm372, %v540, %v541
    %v543 = vrot.slane %v482, 1
    %v544 = vrot.slane %v483, 1
    %v545 = vsel %vm372, %v543, %v544
    %v546 = vrot.slane %v484, 1
    %v547 = vrot.slane %v485, 1
    %v548 = vsel %vm372, %v546, %v547
    %v549 = vrot.slane %v486, 1
    %v550 = vrot.slane %v487, 1
    %v551 = vsel %vm372, %v549, %v550
    %v552 = vrot.slane %v488, 1
    %v553 = vrot.slane %v489, 1
    %v554 = vsel %vm372, %v552, %v553
    %v555 = vrot.slane %v490, 1
    %v556 = vrot.slane %v491, 1
    %v557 = vsel %vm372, %v555, %v556
    %v558 = vrot.slane %v492, 1
    %v559 = vrot.slane %v493, 1
    %v560 = vsel %vm372, %v558, %v559
    %v561 = vrot.slane %v494, 1
    %v562 = vrot.slane %v495, 1
    %v563 = vsel %vm372, %v561, %v562
    %v564 = vrot.slane %v496, 1
    %v565 = vrot.slane %v497, 1
    %v566 = vsel %vm372, %v564, %v565
    %v567 = vrot.slane %v498, 1
    %v568 = vrot.slane %v499, 1
    %v569 = vsel %vm372, %v567, %v568
    %v598 = vadd.f32 %v443, %v530
    %v599 = vadd.f32 %v444, %v529
    %v600 = vadd.f32 %v445, %v533
    %v601 = vadd.f32 %v446, %v532
    %v602 = vadd.f32 %v447, %v536
    %v603 = vadd.f32 %v448, %v535
    %v604 = vadd.f32 %v449, %v539
    %v605 = vadd.f32 %v450, %v538
    %v606 = vadd.f32 %v451, %v542
    %v607 = vadd.f32 %v452, %v541
    %v608 = vadd.f32 %v453, %v545
    %v609 = vadd.f32 %v454, %v544
    %v610 = vadd.f32 %v455, %v548
    %v611 = vadd.f32 %v456, %v547
    %v612 = vadd.f32 %v457, %v551
    %v613 = vadd.f32 %v458, %v550
    %v614 = vadd.f32 %v459, %v554
    %v615 = vadd.f32 %v460, %v553
    %v616 = vadd.f32 %v461, %v557
    %v617 = vadd.f32 %v462, %v556
    %v618 = vadd.f32 %v463, %v560
    %v619 = vadd.f32 %v464, %v559
    %v620 = vadd.f32 %v465, %v563
    %v621 = vadd.f32 %v466, %v562
    %v622 = vadd.f32 %v467, %v566
    %v623 = vadd.f32 %v468, %v565
    %v624 = vadd.f32 %v469, %v569
    %v625 = vadd.f32 %v470, %v568
    %v626 = vstv %s70
    %v627 = vmul.f32 %v626, %v144
    %v628 = vmul.f32 %v626, %v145
    %v629 = vmul.f32 %v626, %v146
    %v630 = vmul.f32 %v626, %v147
    %v631 = vmul.f32 %v626, %v148
    %v632 = vmul.f32 %v626, %v149
    %v633 = vmul.f32 %v626, %v150
    %v634 = vmul.f32 %v626, %v151
    %v635 = vmul.f32 %v626, %v152
    %v636 = vmul.f32 %v626, %v153
    %v637 = vmul.f32 %v626, %v154
    %v638 = vmul.f32 %v626, %v155
    %v639 = vmul.f32 %v626, %v156
    %v640 = vmul.f32 %v626, %v157
    %v641 = vmul.f32 %v626, %v158
    %v642 = vmul.f32 %v626, %v159
    %v643 = vmul.f32 %v626, %v160
    %v644 = vmul.f32 %v626, %v161
    %v645 = vmul.f32 %v626, %v162
    %v646 = vmul.f32 %v626, %v163
    %v647 = vmul.f32 %v626, %v164
    %v648 = vmul.f32 %v626, %v165
    %v649 = vmul.f32 %v626, %v166
    %v650 = vmul.f32 %v626, %v167
    %v651 = vmul.f32 %v626, %v168
    %v652 = vmul.f32 %v626, %v169
    %v653 = vmul.f32 %v626, %v170
    %v654 = vmul.f32 %v626, %v171
    %v683 = vrot.slane %v627, 1
    %v684 = vrot.slane %v628, 1
    %v685 = vsel %vm372, %v683, %v684
    %v686 = vrot.slane %v629, 1
    %v687 = vrot.slane %v630, 1
    %v688 = vsel %vm372, %v686, %v687
    %v689 = vrot.slane %v631, 1
    %v690 = vrot.slane %v632, 1
    %v691 = vsel %vm372, %v689, %v690
    %v692 = vrot.slane %v633, 1
    %v693 = vrot.slane %v634, 1
    %v694 = vsel %vm372, %v692, %v693
    %v695 = vrot.slane %v635, 1
    %v696 = vrot.slane %v636, 1
    %v697 = vsel %vm372, %v695, %v696
    %v698 = vrot.slane %v637, 1
    %v699 = vrot.slane %v638, 1
    %v700 = vsel %vm372, %v698, %v699
    %v701 = vrot.slane %v639, 1
    %v702 = vrot.slane %v640, 1
    %v703 = vsel %vm372, %v701, %v702
    %v704 = vrot.slane %v641, 1
    %v705 = vrot.slane %v642, 1
    %v706 = vsel %vm372, %v704, %v705
    %v707 = vrot.slane %v643, 1
    %v708 = vrot.slane %v644, 1
    %v709 = vsel %vm372, %v707, %v708
    %v710 = vrot.slane %v645, 1
    %v711 = vrot.slane %v646, 1
    %v712 = vsel %vm372, %v710, %v711
    %v713 = vrot.slane %v647, 1
    %v714 = vrot.slane %v648, 1
    %v715 = vsel %vm372, %v713, %v714
    %v716 = vrot.slane %v649, 1
    %v717 = vrot.slane %v650, 1
    %v718 = vsel %vm372, %v716, %v717
    %v719 = vrot.slane %v651, 1
    %v720 = vrot.slane %v652, 1
    %v721 = vsel %vm372, %v719, %v720
    %v722 = vrot.slane %v653, 1
    %v723 = vrot.slane %v654, 1
    %v724 = vsel %vm372, %v722, %v723
    %v753 = vadd.f32 %v598, %v685
    %v754 = vadd.f32 %v599, %v684
    %v755 = vadd.f32 %v600, %v688
    %v756 = vadd.f32 %v601, %v687
    %v757 = vadd.f32 %v602, %v691
    %v758 = vadd.f32 %v603, %v690
    %v759 = vadd.f32 %v604, %v694
    %v760 = vadd.f32 %v605, %v693
    %v761 = vadd.f32 %v606, %v697
    %v762 = vadd.f32 %v607, %v696
    %v763 = vadd.f32 %v608, %v700
    %v764 = vadd.f32 %v609, %v699
    %v765 = vadd.f32 %v610, %v703
    %v766 = vadd.f32 %v611, %v702
    %v767 = vadd.f32 %v612, %v706
    %v768 = vadd.f32 %v613, %v705
    %v769 = vadd.f32 %v614, %v709
    %v770 = vadd.f32 %v615, %v708
    %v771 = vadd.f32 %v616, %v712
    %v772 = vadd.f32 %v617, %v711
    %v773 = vadd.f32 %v618, %v715
    %v774 = vadd.f32 %v619, %v714
    %v775 = vadd.f32 %v620, %v718
    %v776 = vadd.f32 %v621, %v717
    %v777 = vadd.f32 %v622, %v721
    %v778 = vadd.f32 %v623, %v720
    %v779 = vadd.f32 %v624, %v724
    %v780 = vadd.f32 %v625, %v723
    %v781 = vstv %s65
    %v782 = vmul.f32 %v781, %v140
    %v783 = vmul.f32 %v781, %v141
    %v784 = vmul.f32 %v781, %v142
    %v785 = vmul.f32 %v781, %v143
    %v786 = vmul.f32 %v781, %v144
    %v787 = vmul.f32 %v781, %v145
    %v788 = vmul.f32 %v781, %v146
    %v789 = vmul.f32 %v781, %v147
    %v790 = vmul.f32 %v781, %v148
    %v791 = vmul.f32 %v781, %v149
    %v792 = vmul.f32 %v781, %v150
    %v793 = vmul.f32 %v781, %v151
    %v794 = vmul.f32 %v781, %v152
    %v795 = vmul.f32 %v781, %v153
    %v796 = vmul.f32 %v781, %v154
    %v797 = vmul.f32 %v781, %v155
    %v798 = vmul.f32 %v781, %v156
    %v799 = vmul.f32 %v781, %v157
    %v800 = vmul.f32 %v781, %v158
    %v801 = vmul.f32 %v781, %v159
    %v802 = vmul.f32 %v781, %v160
    %v803 = vmul.f32 %v781, %v161
    %v804 = vmul.f32 %v781, %v162
    %v805 = vmul.f32 %v781, %v163
    %v806 = vmul.f32 %v781, %v164
    %v807 = vmul.f32 %v781, %v165
    %v808 = vmul.f32 %v781, %v166
    %v809 = vmul.f32 %v781, %v167
    %vm838 = vcmask 1045504
    %v839 = vrot.slane %v782, 2
    %v840 = vrot.slane %v783, 2
    %v841 = vsel %vm838, %v839, %v840
    %v842 = vrot.slane %v784, 2
    %v843 = vrot.slane %v785, 2
    %v844 = vsel %vm838, %v842, %v843
    %v845 = vrot.slane %v786, 2
    %v846 = vrot.slane %v787, 2
    %v847 = vsel %vm838, %v845, %v846
    %v848 = vrot.slane %v788, 2
    %v849 = vrot.slane %v789, 2
    %v850 = vsel %vm838, %v848, %v849
    %v851 = vrot.slane %v790, 2
    %v852 = vrot.slane %v791, 2
    %v853 = vsel %vm838, %v851, %v852
    %v854 = vrot.slane %v792, 2
    %v855 = vrot.slane %v793, 2
    %v856 = vsel %vm838, %v854, %v855
    %v857 = vrot.slane %v794, 2
    %v858 = vrot.slane %v795, 2
    %v859 = vsel %vm838, %v857, %v858
    %v860 = vrot.slane %v796, 2
    %v861 = vrot.slane %v797, 2
    %v862 = vsel %vm838, %v860, %v861
    %v863 = vrot.slane %v798, 2
    %v864 = vrot.slane %v799, 2
    %v865 = vsel %vm838, %v863, %v864
    %v866 = vrot.slane %v800, 2
    %v867 = vrot.slane %v801, 2
    %v868 = vsel %vm838, %v866, %v867
    %v869 = vrot.slane %v802, 2
    %v870 = vrot.slane %v803, 2
    %v871 = vsel %vm838, %v869, %v870
    %v872 = vrot.slane %v804, 2
    %v873 = vrot.slane %v805, 2
    %v874 = vsel %vm838, %v872, %v873
    %v875 = vrot.slane %v806, 2
    %v876 = vrot.slane %v807, 2
    %v877 = vsel %vm838, %v875, %v876
    %v878 = vrot.slane %v808, 2
    %v879 = vrot.slane %v809, 2
    %v880 = vsel %vm838, %v878, %v879
    %v909 = vadd.f32 %v753, %v841
    %v910 = vadd.f32 %v754, %v840
    %v911 = vadd.f32 %v755, %v844
    %v912 = vadd.f32 %v756, %v843
    %v913 = vadd.f32 %v757, %v847
    %v914 = vadd.f32 %v758, %v846
    %v915 = vadd.f32 %v759, %v850
    %v916 = vadd.f32 %v760, %v849
    %v917 = vadd.f32 %v761, %v853
    %v918 = vadd.f32 %v762, %v852
    %v919 = vadd.f32 %v763, %v856
    %v920 = vadd.f32 %v764, %v855
    %v921 = vadd.f32 %v765, %v859
    %v922 = vadd.f32 %v766, %v858
    %v923 = vadd.f32 %v767, %v862
    %v924 = vadd.f32 %v768, %v861
    %v925 = vadd.f32 %v769, %v865
    %v926 = vadd.f32 %v770, %v864
    %v927 = vadd.f32 %v771, %v868
    %v928 = vadd.f32 %v772, %v867
    %v929 = vadd.f32 %v773, %v871
    %v930 = vadd.f32 %v774, %v870
    %v931 = vadd.f32 %v775, %v874
    %v932 = vadd.f32 %v776, %v873
    %v933 = vadd.f32 %v777, %v877
    %v934 = vadd.f32 %v778, %v876
    %v935 = vadd.f32 %v779, %v880
    %v936 = vadd.f32 %v780, %v879
    %v937 = vstv %s68
    %v938 = vmul.f32 %v937, %v142
    %v939 = vmul.f32 %v937, %v143
    %v940 = vmul.f32 %v937, %v144
    %v941 = vmul.f32 %v937, %v145
    %v942 = vmul.f32 %v937, %v146
    %v943 = vmul.f32 %v937, %v147
    %v944 = vmul.f32 %v937, %v148
    %v945 = vmul.f32 %v937, %v149
    %v946 = vmul.f32 %v937, %v150
    %v947 = vmul.f32 %v937, %v151
    %v948 = vmul.f32 %v937, %v152
    %v949 = vmul.f32 %v937, %v153
    %v950 = vmul.f32 %v937, %v154
    %v951 = vmul.f32 %v937, %v155
    %v952 = vmul.f32 %v937, %v156
    %v953 = vmul.f32 %v937, %v157
    %v954 = vmul.f32 %v937, %v158
    %v955 = vmul.f32 %v937, %v159
    %v956 = vmul.f32 %v937, %v160
    %v957 = vmul.f32 %v937, %v161
    %v958 = vmul.f32 %v937, %v162
    %v959 = vmul.f32 %v937, %v163
    %v960 = vmul.f32 %v937, %v164
    %v961 = vmul.f32 %v937, %v165
    %v962 = vmul.f32 %v937, %v166
    %v963 = vmul.f32 %v937, %v167
    %v964 = vmul.f32 %v937, %v168
    %v965 = vmul.f32 %v937, %v169
    %v994 = vrot.slane %v938, 2
    %v995 = vrot.slane %v939, 2
    %v996 = vsel %vm838, %v994, %v995
    %v997 = vrot.slane %v940, 2
    %v998 = vrot.slane %v941, 2
    %v999 = vsel %vm838, %v997, %v998
    %v1000 = vrot.slane %v942, 2
    %v1001 = vrot.slane %v943, 2
    %v1002 = vsel %vm838, %v1000, %v1001
    %v1003 = vrot.slane %v944, 2
    %v1004 = vrot.slane %v945, 2
    %v1005 = vsel %vm838, %v1003, %v1004
    %v1006 = vrot.slane %v946, 2
    %v1007 = vrot.slane %v947, 2
    %v1008 = vsel %vm838, %v1006, %v1007
    %v1009 = vrot.slane %v948, 2
    %v1010 = vrot.slane %v949, 2
    %v1011 = vsel %vm838, %v1009, %v1010
    %v1012 = vrot.slane %v950, 2
    %v1013 = vrot.slane %v951, 2
    %v1014 = vsel %vm838, %v1012, %v1013
    %v1015 = vrot.slane %v952, 2
    %v1016 = vrot.slane %v953, 2
    %v1017 = vsel %vm838, %v1015, %v1016
    %v1018 = vrot.slane %v954, 2
    %v1019 = vrot.slane %v955, 2
    %v1020 = vsel %vm838, %v1018, %v1019
    %v1021 = vrot.slane %v956, 2
    %v1022 = vrot.slane %v957, 2
    %v1023 = vsel %vm838, %v1021, %v1022
    %v1024 = vrot.slane %v958, 2
    %v1025 = vrot.slane %v959, 2
    %v1026 = vsel %vm838, %v1024, %v1025
    %v1027 = vrot.slane %v960, 2
    %v1028 = vrot.slane %v961, 2
    %v1029 = vsel %vm838, %v1027, %v1028
    %v1030 = vrot.slane %v962, 2
    %v1031 = vrot.slane %v963, 2
    %v1032 = vsel %vm838, %v1030, %v1031
    %v1033 = vrot.slane %v964, 2
    %v1034 = vrot.slane %v965, 2
    %v1035 = vsel %vm838, %v1033, %v1034
    %v1064 = vadd.f32 %v909, %v996
    %v1065 = vadd.f32 %v910, %v995
    %v1066 = vadd.f32 %v911, %v999
    %v1067 = vadd.f32 %v912, %v998
    %v1068 = vadd.f32 %v913, %v1002
    %v1069 = vadd.f32 %v914, %v1001
    %v1070 = vadd.f32 %v915, %v1005
    %v1071 = vadd.f32 %v916, %v1004
    %v1072 = vadd.f32 %v917, %v1008
    %v1073 = vadd.f32 %v918, %v1007
    %v1074 = vadd.f32 %v919, %v1011
    %v1075 = vadd.f32 %v920, %v1010
    %v1076 = vadd.f32 %v921, %v1014
    %v1077 = vadd.f32 %v922, %v1013
    %v1078 = vadd.f32 %v923, %v1017
    %v1079 = vadd.f32 %v924, %v1016
    %v1080 = vadd.f32 %v925, %v1020
    %v1081 = vadd.f32 %v926, %v1019
    %v1082 = vadd.f32 %v927, %v1023
    %v1083 = vadd.f32 %v928, %v1022
    %v1084 = vadd.f32 %v929, %v1026
    %v1085 = vadd.f32 %v930, %v1025
    %v1086 = vadd.f32 %v931, %v1029
    %v1087 = vadd.f32 %v932, %v1028
    %v1088 = vadd.f32 %v933, %v1032
    %v1089 = vadd.f32 %v934, %v1031
    %v1090 = vadd.f32 %v935, %v1035
    %v1091 = vadd.f32 %v936, %v1034
    %v1092 = vstv %s71
    %v1093 = vmul.f32 %v1092, %v144
    %v1094 = vmul.f32 %v1092, %v145
    %v1095 = vmul.f32 %v1092, %v146
    %v1096 = vmul.f32 %v1092, %v147
    %v1097 = vmul.f32 %v1092, %v148
    %v1098 = vmul.f32 %v1092, %v149
    %v1099 = vmul.f32 %v1092, %v150
    %v1100 = vmul.f32 %v1092, %v151
    %v1101 = vmul.f32 %v1092, %v152
    %v1102 = vmul.f32 %v1092, %v153
    %v1103 = vmul.f32 %v1092, %v154
    %v1104 = vmul.f32 %v1092, %v155
    %v1105 = vmul.f32 %v1092, %v156
    %v1106 = vmul.f32 %v1092, %v157
    %v1107 = vmul.f32 %v1092, %v158
    %v1108 = vmul.f32 %v1092, %v159
    %v1109 = vmul.f32 %v1092, %v160
    %v1110 = vmul.f32 %v1092, %v161
    %v1111 = vmul.f32 %v1092, %v162
    %v1112 = vmul.f32 %v1092, %v163
    %v1113 = vmul.f32 %v1092, %v164
    %v1114 = vmul.f32 %v1092, %v165
    %v1115 = vmul.f32 %v1092, %v166
    %v1116 = vmul.f32 %v1092, %v167
    %v1117 = vmul.f32 %v1092, %v168
    %v1118 = vmul.f32 %v1092, %v169
    %v1119 = vmul.f32 %v1092, %v170
    %v1120 = vmul.f32 %v1092, %v171
    %v1149 = vrot.slane %v1093, 2
    %v1150 = vrot.slane %v1094, 2
    %v1151 = vsel %vm838, %v1149, %v1150
    %v1152 = vrot.slane %v1095, 2
    %v1153 = vrot.slane %v1096, 2
    %v1154 = vsel %vm838, %v1152, %v1153
    %v1155 = vrot.slane %v1097, 2
    %v1156 = vrot.slane %v1098, 2
    %v1157 = vsel %vm838, %v1155, %v1156
    %v1158 = vrot.slane %v1099, 2
    %v1159 = vrot.slane %v1100, 2
    %v1160 = vsel %vm838, %v1158, %v1159
    %v1161 = vrot.slane %v1101, 2
    %v1162 = vrot.slane %v1102, 2
    %v1163 = vsel %vm838, %v1161, %v1162
    %v1164 = vrot.slane %v1103, 2
    %v1165 = vrot.slane %v1104, 2
    %v1166 = vsel %vm838, %v1164, %v1165
    %v1167 = vrot.slane %v1105, 2
    %v1168 = vrot.slane %v1106, 2
    %v1169 = vsel %vm838, %v1167, %v1168
    %v1170 = vrot.slane %v1107, 2
    %v1171 = vrot.slane %v1108, 2
    %v1172 = vsel %vm838, %v1170, %v1171
    %v1173 = vrot.slane %v1109, 2
    %v1174 = vrot.slane %v1110, 2
    %v1175 = vsel %vm838, %v1173, %v1174
    %v1176 = vrot.slane %v1111, 2
    %v1177 = vrot.slane %v1112, 2
    %v1178 = vsel %vm838, %v1176, %v1177
    %v1179 = vrot.slane %v1113, 2
    %v1180 = vrot.slane %v1114, 2
    %v1181 = vsel %vm838, %v1179, %v1180
    %v1182 = vrot.slane %v1115, 2
    %v1183 = vrot.slane %v1116, 2
    %v1184 = vsel %vm838, %v1182, %v1183
    %v1185 = vrot.slane %v1117, 2
    %v1186 = vrot.slane %v1118, 2
    %v1187 = vsel %vm838, %v1185, %v1186
    %v1188 = vrot.slane %v1119, 2
    %v1189 = vrot.slane %v1120, 2
    %v1190 = vsel %vm838, %v1188, %v1189
    %v1219 = vadd.f32 %v1064, %v1151
    %v1220 = vadd.f32 %v1065, %v1150
    %v1221 = vadd.f32 %v1066, %v1154
    %v1222 = vadd.f32 %v1067, %v1153
    %v1223 = vadd.f32 %v1068, %v1157
    %v1224 = vadd.f32 %v1069, %v1156
    %v1225 = vadd.f32 %v1070, %v1160
    %v1226 = vadd.f32 %v1071, %v1159
    %v1227 = vadd.f32 %v1072, %v1163
    %v1228 = vadd.f32 %v1073, %v1162
    %v1229 = vadd.f32 %v1074, %v1166
    %v1230 = vadd.f32 %v1075, %v1165
    %v1231 = vadd.f32 %v1076, %v1169
    %v1232 = vadd.f32 %v1077, %v1168
    %v1233 = vadd.f32 %v1078, %v1172
    %v1234 = vadd.f32 %v1079, %v1171
    %v1235 = vadd.f32 %v1080, %v1175
    %v1236 = vadd.f32 %v1081, %v1174
    %v1237 = vadd.f32 %v1082, %v1178
    %v1238 = vadd.f32 %v1083, %v1177
    %v1239 = vadd.f32 %v1084, %v1181
    %v1240 = vadd.f32 %v1085, %v1180
    %v1241 = vadd.f32 %v1086, %v1184
    %v1242 = vadd.f32 %v1087, %v1183
    %v1243 = vadd.f32 %v1088, %v1187
    %v1244 = vadd.f32 %v1089, %v1186
    %v1245 = vadd.f32 %v1090, %v1190
    %v1246 = vadd.f32 %v1091, %v1189
    %v1247 = vstv %s99
    %v1248 = vadd.f32 %v1219, %v1247
    %v1249 = vadd.f32 %v1220, %v1247
    %v1250 = vadd.f32 %v1221, %v1247
    %v1251 = vadd.f32 %v1222, %v1247
    %v1252 = vadd.f32 %v1223, %v1247
    %v1253 = vadd.f32 %v1224, %v1247
    %v1254 = vadd.f32 %v1225, %v1247
    %v1255 = vadd.f32 %v1226, %v1247
    %v1256 = vadd.f32 %v1227, %v1247
    %v1257 = vadd.f32 %v1228, %v1247
    %v1258 = vadd.f32 %v1229, %v1247
    %v1259 = vadd.f32 %v1230, %v1247
    %v1260 = vadd.f32 %v1231, %v1247
    %v1261 = vadd.f32 %v1232, %v1247
    %v1262 = vadd.f32 %v1233, %v1247
    %v1263 = vadd.f32 %v1234, %v1247
    %v1264 = vadd.f32 %v1235, %v1247
    %v1265 = vadd.f32 %v1236, %v1247
    %v1266 = vadd.f32 %v1237, %v1247
    %v1267 = vadd.f32 %v1238, %v1247
    %v1268 = vadd.f32 %v1239, %v1247
    %v1269 = vadd.f32 %v1240, %v1247
    %v1270 = vadd.f32 %v1241, %v1247
    %v1271 = vadd.f32 %v1242, %v1247
    %v1272 = vadd.f32 %v1243, %v1247
    %v1273 = vadd.f32 %v1244, %v1247
    %v1274 = vadd.f32 %v1245, %v1247
    %v1275 = vadd.f32 %v1246, %v1247
    %v1276 = vmax.f32 %v1248, 0.0
    %v1277 = vmax.f32 %v1249, 0.0
    %v1278 = vmax.f32 %v1250, 0.0
    %v1279 = vmax.f32 %v1251, 0.0
    %v1280 = vmax.f32 %v1252, 0.0
    %v1281 = vmax.f32 %v1253, 0.0
    %v1282 = vmax.f32 %v1254, 0.0
    %v1283 = vmax.f32 %v1255, 0.0
    %v1284 = vmax.f32 %v1256, 0.0
    %v1285 = vmax.f32 %v1257, 0.0
    %v1286 = vmax.f32 %v1258, 0.0
    %v1287 = vmax.f32 %v1259, 0.0
    %v1288 = vmax.f32 %v1260, 0.0
    %v1289 = vmax.f32 %v1261, 0.0
    %v1290 = vmax.f32 %v1262, 0.0
    %v1291 = vmax.f32 %v1263, 0.0
    %v1292 = vmax.f32 %v1264, 0.0
    %v1293 = vmax.f32 %v1265, 0.0
    %v1294 = vmax.f32 %v1266, 0.0
    %v1295 = vmax.f32 %v1267, 0.0
    %v1296 = vmax.f32 %v1268, 0.0
    %v1297 = vmax.f32 %v1269, 0.0
    %v1298 = vmax.f32 %v1270, 0.0
    %v1299 = vmax.f32 %v1271, 0.0
    %v1300 = vmax.f32 %v1272, 0.0
    %v1301 = vmax.f32 %v1273, 0.0
    %v1302 = vmax.f32 %v1274, 0.0
    %v1303 = vmax.f32 %v1275, 0.0
    %v1304 = vstv %s103
    %v1305 = vmul.f32 %v1304, %v1276
    %v1306 = vmul.f32 %v1304, %v1277
    %v1307 = vmul.f32 %v1304, %v1278
    %v1308 = vmul.f32 %v1304, %v1279
    %v1309 = vmul.f32 %v1304, %v1280
    %v1310 = vmul.f32 %v1304, %v1281
    %v1311 = vmul.f32 %v1304, %v1282
    %v1312 = vmul.f32 %v1304, %v1283
    %v1313 = vmul.f32 %v1304, %v1284
    %v1314 = vmul.f32 %v1304, %v1285
    %v1315 = vmul.f32 %v1304, %v1286
    %v1316 = vmul.f32 %v1304, %v1287
    %v1317 = vmul.f32 %v1304, %v1288
    %v1318 = vmul.f32 %v1304, %v1289
    %v1319 = vmul.f32 %v1304, %v1290
    %v1320 = vmul.f32 %v1304, %v1291
    %v1321 = vmul.f32 %v1304, %v1292
    %v1322 = vmul.f32 %v1304, %v1293
    %v1323 = vmul.f32 %v1304, %v1294
    %v1324 = vmul.f32 %v1304, %v1295
    %v1325 = vmul.f32 %v1304, %v1296
    %v1326 = vmul.f32 %v1304, %v1297
    %v1327 = vmul.f32 %v1304, %v1298
    %v1328 = vmul.f32 %v1304, %v1299
    %v1329 = vstv %s106
    %v1330 = vmul.f32 %v1329, %v1278
    %v1331 = vmul.f32 %v1329, %v1279
    %v1332 = vmul.f32 %v1329, %v1280
    %v1333 = vmul.f32 %v1329, %v1281
    %v1334 = vmul.f32 %v1329, %v1282
    %v1335 = vmul.f32 %v1329, %v1283
    %v1336 = vmul.f32 %v1329, %v1284
    %v1337 = vmul.f32 %v1329, %v1285
    %v1338 = vmul.f32 %v1329, %v1286
    %v1339 = vmul.f32 %v1329, %v1287
    %v1340 = vmul.f32 %v1329, %v1288
    %v1341 = vmul.f32 %v1329, %v1289
    %v1342 = vmul.f32 %v1329, %v1290
    %v1343 = vmul.f32 %v1329, %v1291
    %v1344 = vmul.f32 %v1329, %v1292
    %v1345 = vmul.f32 %v1329, %v1293
    %v1346 = vmul.f32 %v1329, %v1294
    %v1347 = vmul.f32 %v1329, %v1295
    %v1348 = vmul.f32 %v1329, %v1296
    %v1349 = vmul.f32 %v1329, %v1297
    %v1350 = vmul.f32 %v1329, %v1298
    %v1351 = vmul.f32 %v1329, %v1299
    %v1352 = vmul.f32 %v1329, %v1300
    %v1353 = vmul.f32 %v1329, %v1301
    %v1354 = vadd.f32 %v1305, %v1330
    %v1355 = vadd.f32 %v1306, %v1331
    %v1356 = vadd.f32 %v1307, %v1332
    %v1357 = vadd.f32 %v1308, %v1333
    %v1358 = vadd.f32 %v1309, %v1334
    %v1359 = vadd.f32 %v1310, %v1335
    %v1360 = vadd.f32 %v1311, %v1336
    %v1361 = vadd.f32 %v1312, %v1337
    %v1362 = vadd.f32 %v1313, %v1338
    %v1363 = vadd.f32 %v1314, %v1339
    %v1364 = vadd.f32 %v1315, %v1340
    %v1365 = vadd.f32 %v1316, %v1341
    %v1366 = vadd.f32 %v1317, %v1342
    %v1367 = vadd.f32 %v1318, %v1343
    %v1368 = vadd.f32 %v1319, %v1344
    %v1369 = vadd.f32 %v1320, %v1345
    %v1370 = vadd.f32 %v1321, %v1346
    %v1371 = vadd.f32 %v1322, %v1347
    %v1372 = vadd.f32 %v1323, %v1348
    %v1373 = vadd.f32 %v1324, %v1349
    %v1374 = vadd.f32 %v1325, %v1350
    %v1375 = vadd.f32 %v1326, %v1351
    %v1376 = vadd.f32 %v1327, %v1352
    %v1377 = vadd.f32 %v1328, %v1353
    %v1378 = vstv %s109
    %v1379 = vmul.f32 %v1378, %v1280
    %v1380 = vmul.f32 %v1378, %v1281
    %v1381 = vmul.f32 %v1378, %v1282
    %v1382 = vmul.f32 %v1378, %v1283
    %v1383 = vmul.f32 %v1378, %v1284
    %v1384 = vmul.f32 %v1378, %v1285
    %v1385 = vmul.f32 %v1378, %v1286
    %v1386 = vmul.f32 %v1378, %v1287
    %v1387 = vmul.f32 %v1378, %v1288
    %v1388 = vmul.f32 %v1378, %v1289
    %v1389 = vmul.f32 %v1378, %v1290
    %v1390 = vmul.f32 %v1378, %v1291
    %v1391 = vmul.f32 %v1378, %v1292
    %v1392 = vmul.f32 %v1378, %v1293
    %v1393 = vmul.f32 %v1378, %v1294
    %v1394 = vmul.f32 %v1378, %v1295
    %v1395 = vmul.f32 %v1378, %v1296
    %v1396 = vmul.f32 %v1378, %v1297
    %v1397 = vmul.f32 %v1378, %v1298
    %v1398 = vmul.f32 %v1378, %v1299
    %v1399 = vmul.f32 %v1378, %v1300
    %v1400 = vmul.f32 %v1378, %v1301
    %v1401 = vmul.f32 %v1378, %v1302
    %v1402 = vmul.f32 %v1378, %v1303
    %v1403 = vadd.f32 %v1354, %v1379
    %v1404 = vadd.f32 %v1355, %v1380
    %v1405 = vadd.f32 %v1356, %v1381
    %v1406 = vadd.f32 %v1357, %v1382
    %v1407 = vadd.f32 %v1358, %v1383
    %v1408 = vadd.f32 %v1359, %v1384
    %v1409 = vadd.f32 %v1360, %v1385
    %v1410 = vadd.f32 %v1361, %v1386
    %v1411 = vadd.f32 %v1362, %v1387
    %v1412 = vadd.f32 %v1363, %v1388
    %v1413 = vadd.f32 %v1364, %v1389
    %v1414 = vadd.f32 %v1365, %v1390
    %v1415 = vadd.f32 %v1366, %v1391
    %v1416 = vadd.f32 %v1367, %v1392
    %v1417 = vadd.f32 %v1368, %v1393
    %v1418 = vadd.f32 %v1369, %v1394
    %v1419 = vadd.f32 %v1370, %v1395
    %v1420 = vadd.f32 %v1371, %v1396
    %v1421 = vadd.f32 %v1372, %v1397
    %v1422 = vadd.f32 %v1373, %v1398
    %v1423 = vadd.f32 %v1374, %v1399
    %v1424 = vadd.f32 %v1375, %v1400
    %v1425 = vadd.f32 %v1376, %v1401
    %v1426 = vadd.f32 %v1377, %v1402
    %v1427 = vstv %s104
    %v1428 = vmul.f32 %v1427, %v1276
    %v1429 = vmul.f32 %v1427, %v1277
    %v1430 = vmul.f32 %v1427, %v1278
    %v1431 = vmul.f32 %v1427, %v1279
    %v1432 = vmul.f32 %v1427, %v1280
    %v1433 = vmul.f32 %v1427, %v1281
    %v1434 = vmul.f32 %v1427, %v1282
    %v1435 = vmul.f32 %v1427, %v1283
    %v1436 = vmul.f32 %v1427, %v1284
    %v1437 = vmul.f32 %v1427, %v1285
    %v1438 = vmul.f32 %v1427, %v1286
    %v1439 = vmul.f32 %v1427, %v1287
    %v1440 = vmul.f32 %v1427, %v1288
    %v1441 = vmul.f32 %v1427, %v1289
    %v1442 = vmul.f32 %v1427, %v1290
    %v1443 = vmul.f32 %v1427, %v1291
    %v1444 = vmul.f32 %v1427, %v1292
    %v1445 = vmul.f32 %v1427, %v1293
    %v1446 = vmul.f32 %v1427, %v1294
    %v1447 = vmul.f32 %v1427, %v1295
    %v1448 = vmul.f32 %v1427, %v1296
    %v1449 = vmul.f32 %v1427, %v1297
    %v1450 = vmul.f32 %v1427, %v1298
    %v1451 = vmul.f32 %v1427, %v1299
    %v1476 = vrot.slane %v1428, 1
    %v1477 = vrot.slane %v1429, 1
    %v1478 = vsel %vm372, %v1476, %v1477
    %v1479 = vrot.slane %v1430, 1
    %v1480 = vrot.slane %v1431, 1
    %v1481 = vsel %vm372, %v1479, %v1480
    %v1482 = vrot.slane %v1432, 1
    %v1483 = vrot.slane %v1433, 1
    %v1484 = vsel %vm372, %v1482, %v1483
    %v1485 = vrot.slane %v1434, 1
    %v1486 = vrot.slane %v1435, 1
    %v1487 = vsel %vm372, %v1485, %v1486
    %v1488 = vrot.slane %v1436, 1
    %v1489 = vrot.slane %v1437, 1
    %v1490 = vsel %vm372, %v1488, %v1489
    %v1491 = vrot.slane %v1438, 1
    %v1492 = vrot.slane %v1439, 1
    %v1493 = vsel %vm372, %v1491, %v1492
    %v1494 = vrot.slane %v1440, 1
    %v1495 = vrot.slane %v1441, 1
    %v1496 = vsel %vm372, %v1494, %v1495
    %v1497 = vrot.slane %v1442, 1
    %v1498 = vrot.slane %v1443, 1
    %v1499 = vsel %vm372, %v1497, %v1498
    %v1500 = vrot.slane %v1444, 1
    %v1501 = vrot.slane %v1445, 1
    %v1502 = vsel %vm372, %v1500, %v1501
    %v1503 = vrot.slane %v1446, 1
    %v1504 = vrot.slane %v1447, 1
    %v1505 = vsel %vm372, %v1503, %v1504
    %v1506 = vrot.slane %v1448, 1
    %v1507 = vrot.slane %v1449, 1
    %v1508 = vsel %vm372, %v1506, %v1507
    %v1509 = vrot.slane %v1450, 1
    %v1510 = vrot.slane %v1451, 1
    %v1511 = vsel %vm372, %v1509, %v1510
    %v1536 = vadd.f32 %v1403, %v1478
    %v1537 = vadd.f32 %v1404, %v1477
    %v1538 = vadd.f32 %v1405, %v1481
    %v1539 = vadd.f32 %v1406, %v1480
    %v1540 = vadd.f32 %v1407, %v1484
    %v1541 = vadd.f32 %v1408, %v1483
    %v1542 = vadd.f32 %v1409, %v1487
    %v1543 = vadd.f32 %v1410, %v1486
    %v1544 = vadd.f32 %v1411, %v1490
    %v1545 = vadd.f32 %v1412, %v1489
    %v1546 = vadd.f32 %v1413, %v1493
    %v1547 = vadd.f32 %v1414, %v1492
    %v1548 = vadd.f32 %v1415, %v1496
    %v1549 = vadd.f32 %v1416, %v1495
    %v1550 = vadd.f32 %v1417, %v1499
    %v1551 = vadd.f32 %v1418, %v1498
    %v1552 = vadd.f32 %v1419, %v1502
    %v1553 = vadd.f32 %v1420, %v1501
    %v1554 = vadd.f32 %v1421, %v1505
    %v1555 = vadd.f32 %v1422, %v1504
    %v1556 = vadd.f32 %v1423, %v1508
    %v1557 = vadd.f32 %v1424, %v1507
    %v1558 = vadd.f32 %v1425, %v1511
    %v1559 = vadd.f32 %v1426, %v1510
    %v1560 = vstv %s107
    %v1561 = vmul.f32 %v1560, %v1278
    %v1562 = vmul.f32 %v1560, %v1279
    %v1563 = vmul.f32 %v1560, %v1280
    %v1564 = vmul.f32 %v1560, %v1281
    %v1565 = vmul.f32 %v1560, %v1282
    %v1566 = vmul.f32 %v1560, %v1283
    %v1567 = vmul.f32 %v1560, %v1284
    %v1568 = vmul.f32 %v1560, %v1285
    %v1569 = vmul.f32 %v1560, %v1286
    %v1570 = vmul.f32 %v1560, %v1287
    %v1571 = vmul.f32 %v1560, %v1288
    %v1572 = vmul.f32 %v1560, %v1289
    %v1573 = vmul.f32 %v1560, %v1290
    %v1574 = vmul.f32 %v1560, %v1291
    %v1575 = vmul.f32 %v1560, %v1292
    %v1576 = vmul.f32 %v1560, %v1293
    %v1577 = vmul.f32 %v1560, %v1294
    %v1578 = vmul.f32 %v1560, %v1295
    %v1579 = vmul.f32 %v1560, %v1296
    %v1580 = vmul.f32 %v1560, %v1297
    %v1581 = vmul.f32 %v1560, %v1298
    %v1582 = vmul.f32 %v1560, %v1299
    %v1583 = vmul.f32 %v1560, %v1300
    %v1584 = vmul.f32 %v1560, %v1301
    %v1609 = vrot.slane %v1561, 1
    %v1610 = vrot.slane %v1562, 1
    %v1611 = vsel %vm372, %v1609, %v1610
    %v1612 = vrot.slane %v1563, 1
    %v1613 = vrot.slane %v1564, 1
    %v1614 = vsel %vm372, %v1612, %v1613
    %v1615 = vrot.slane %v1565, 1
    %v1616 = vrot.slane %v1566, 1
    %v1617 = vsel %vm372, %v1615, %v1616
    %v1618 = vrot.slane %v1567, 1
    %v1619 = vrot.slane %v1568, 1
    %v1620 = vsel %vm372, %v1618, %v1619
    %v1621 = vrot.slane %v1569, 1
    %v1622 = vrot.slane %v1570, 1
    %v1623 = vsel %vm372, %v1621, %v1622
    %v1624 = vrot.slane %v1571, 1
    %v1625 = vrot.slane %v1572, 1
    %v1626 = vsel %vm372, %v1624, %v1625
    %v1627 = vrot.slane %v1573, 1
    %v1628 = vrot.slane %v1574, 1
    %v1629 = vsel %vm372, %v1627, %v1628
    %v1630 = vrot.slane %v1575, 1
    %v1631 = vrot.slane %v1576, 1
    %v1632 = vsel %vm372, %v1630, %v1631
    %v1633 = vrot.slane %v1577, 1
    %v1634 = vrot.slane %v1578, 1
    %v1635 = vsel %vm372, %v1633, %v1634
    %v1636 = vrot.slane %v1579, 1
    %v1637 = vrot.slane %v1580, 1
    %v1638 = vsel %vm372, %v1636, %v1637
    %v1639 = vrot.slane %v1581, 1
    %v1640 = vrot.slane %v1582, 1
    %v1641 = vsel %vm372, %v1639, %v1640
    %v1642 = vrot.slane %v1583, 1
    %v1643 = vrot.slane %v1584, 1
    %v1644 = vsel %vm372, %v1642, %v1643
    %v1669 = vadd.f32 %v1536, %v1611
    %v1670 = vadd.f32 %v1537, %v1610
    %v1671 = vadd.f32 %v1538, %v1614
    %v1672 = vadd.f32 %v1539, %v1613
    %v1673 = vadd.f32 %v1540, %v1617
    %v1674 = vadd.f32 %v1541, %v1616
    %v1675 = vadd.f32 %v1542, %v1620
    %v1676 = vadd.f32 %v1543, %v1619
    %v1677 = vadd.f32 %v1544, %v1623
    %v1678 = vadd.f32 %v1545, %v1622
    %v1679 = vadd.f32 %v1546, %v1626
    %v1680 = vadd.f32 %v1547, %v1625
    %v1681 = vadd.f32 %v1548, %v1629
    %v1682 = vadd.f32 %v1549, %v1628
    %v1683 = vadd.f32 %v1550, %v1632
    %v1684 = vadd.f32 %v1551, %v1631
    %v1685 = vadd.f32 %v1552, %v1635
    %v1686 = vadd.f32 %v1553, %v1634
    %v1687 = vadd.f32 %v1554, %v1638
    %v1688 = vadd.f32 %v1555, %v1637
    %v1689 = vadd.f32 %v1556, %v1641
    %v1690 = vadd.f32 %v1557, %v1640
    %v1691 = vadd.f32 %v1558, %v1644
    %v1692 = vadd.f32 %v1559, %v1643
    %v1693 = vstv %s110
    %v1694 = vmul.f32 %v1693, %v1280
    %v1695 = vmul.f32 %v1693, %v1281
    %v1696 = vmul.f32 %v1693, %v1282
    %v1697 = vmul.f32 %v1693, %v1283
    %v1698 = vmul.f32 %v1693, %v1284
    %v1699 = vmul.f32 %v1693, %v1285
    %v1700 = vmul.f32 %v1693, %v1286
    %v1701 = vmul.f32 %v1693, %v1287
    %v1702 = vmul.f32 %v1693, %v1288
    %v1703 = vmul.f32 %v1693, %v1289
    %v1704 = vmul.f32 %v1693, %v1290
    %v1705 = vmul.f32 %v1693, %v1291
    %v1706 = vmul.f32 %v1693, %v1292
    %v1707 = vmul.f32 %v1693, %v1293
    %v1708 = vmul.f32 %v1693, %v1294
    %v1709 = vmul.f32 %v1693, %v1295
    %v1710 = vmul.f32 %v1693, %v1296
    %v1711 = vmul.f32 %v1693, %v1297
    %v1712 = vmul.f32 %v1693, %v1298
    %v1713 = vmul.f32 %v1693, %v1299
    %v1714 = vmul.f32 %v1693, %v1300
    %v1715 = vmul.f32 %v1693, %v1301
    %v1716 = vmul.f32 %v1693, %v1302
    %v1717 = vmul.f32 %v1693, %v1303
    %v1742 = vrot.slane %v1694, 1
    %v1743 = vrot.slane %v1695, 1
    %v1744 = vsel %vm372, %v1742, %v1743
    %v1745 = vrot.slane %v1696, 1
    %v1746 = vrot.slane %v1697, 1
    %v1747 = vsel %vm372, %v1745, %v1746
    %v1748 = vrot.slane %v1698, 1
    %v1749 = vrot.slane %v1699, 1
    %v1750 = vsel %vm372, %v1748, %v1749
    %v1751 = vrot.slane %v1700, 1
    %v1752 = vrot.slane %v1701, 1
    %v1753 = vsel %vm372, %v1751, %v1752
    %v1754 = vrot.slane %v1702, 1
    %v1755 = vrot.slane %v1703, 1
    %v1756 = vsel %vm372, %v1754, %v1755
    %v1757 = vrot.slane %v1704, 1
    %v1758 = vrot.slane %v1705, 1
    %v1759 = vsel %vm372, %v1757, %v1758
    %v1760 = vrot.slane %v1706, 1
    %v1761 = vrot.slane %v1707, 1
    %v1762 = vsel %vm372, %v1760, %v1761
    %v1763 = vrot.slane %v1708, 1
    %v1764 = vrot.slane %v1709, 1
    %v1765 = vsel %vm372, %v1763, %v1764
    %v1766 = vrot.slane %v1710, 1
    %v1767 = vrot.slane %v1711, 1
    %v1768 = vsel %vm372, %v1766, %v1767
    %v1769 = vrot.slane %v1712, 1
    %v1770 = vrot.slane %v1713, 1
    %v1771 = vsel %vm372, %v1769, %v1770
    %v1772 = vrot.slane %v1714, 1
    %v1773 = vrot.slane %v1715, 1
    %v1774 = vsel %vm372, %v1772, %v1773
    %v1775 = vrot.slane %v1716, 1
    %v1776 = vrot.slane %v1717, 1
    %v1777 = vsel %vm372, %v1775, %v1776
    %v1802 = vadd.f32 %v1669, %v1744
    %v1803 = vadd.f32 %v1670, %v1743
    %v1804 = vadd.f32 %v1671, %v1747
    %v1805 = vadd.f32 %v1672, %v1746
    %v1806 = vadd.f32 %v1673, %v1750
    %v1807 = vadd.f32 %v1674, %v1749
    %v1808 = vadd.f32 %v1675, %v1753
    %v1809 = vadd.f32 %v1676, %v1752
    %v1810 = vadd.f32 %v1677, %v1756
    %v1811 = vadd.f32 %v1678, %v1755
    %v1812 = vadd.f32 %v1679, %v1759
    %v1813 = vadd.f32 %v1680, %v1758
    %v1814 = vadd.f32 %v1681, %v1762
    %v1815 = vadd.f32 %v1682, %v1761
    %v1816 = vadd.f32 %v1683, %v1765
    %v1817 = vadd.f32 %v1684, %v1764
    %v1818 = vadd.f32 %v1685, %v1768
    %v1819 = vadd.f32 %v1686, %v1767
    %v1820 = vadd.f32 %v1687, %v1771
    %v1821 = vadd.f32 %v1688, %v1770
    %v1822 = vadd.f32 %v1689, %v1774
    %v1823 = vadd.f32 %v1690, %v1773
    %v1824 = vadd.f32 %v1691, %v1777
    %v1825 = vadd.f32 %v1692, %v1776
    %v1826 = vstv %s105
    %v1827 = vmul.f32 %v1826, %v1276
    %v1828 = vmul.f32 %v1826, %v1277
    %v1829 = vmul.f32 %v1826, %v1278
    %v1830 = vmul.f32 %v1826, %v1279
    %v1831 = vmul.f32 %v1826, %v1280
    %v1832 = vmul.f32 %v1826, %v1281
    %v1833 = vmul.f32 %v1826, %v1282
    %v1834 = vmul.f32 %v1826, %v1283
    %v1835 = vmul.f32 %v1826, %v1284
    %v1836 = vmul.f32 %v1826, %v1285
    %v1837 = vmul.f32 %v1826, %v1286
    %v1838 = vmul.f32 %v1826, %v1287
    %v1839 = vmul.f32 %v1826, %v1288
    %v1840 = vmul.f32 %v1826, %v1289
    %v1841 = vmul.f32 %v1826, %v1290
    %v1842 = vmul.f32 %v1826, %v1291
    %v1843 = vmul.f32 %v1826, %v1292
    %v1844 = vmul.f32 %v1826, %v1293
    %v1845 = vmul.f32 %v1826, %v1294
    %v1846 = vmul.f32 %v1826, %v1295
    %v1847 = vmul.f32 %v1826, %v1296
    %v1848 = vmul.f32 %v1826, %v1297
    %v1849 = vmul.f32 %v1826, %v1298
    %v1850 = vmul.f32 %v1826, %v1299
    %v1875 = vrot.slane %v1827, 2
    %v1876 = vrot.slane %v1828, 2
    %v1877 = vsel %vm838, %v1875, %v1876
    %v1878 = vrot.slane %v1829, 2
    %v1879 = vrot.slane %v1830, 2
    %v1880 = vsel %vm838, %v1878, %v1879
    %v1881 = vrot.slane %v1831, 2
    %v1882 = vrot.slane %v1832, 2
    %v1883 = vsel %vm838, %v1881, %v1882
    %v1884 = vrot.slane %v1833, 2
    %v1885 = vrot.slane %v1834, 2
    %v1886 = vsel %vm838, %v1884, %v1885
    %v1887 = vrot.slane %v1835, 2
    %v1888 = vrot.slane %v1836, 2
    %v1889 = vsel %vm838, %v1887, %v1888
    %v1890 = vrot.slane %v1837, 2
    %v1891 = vrot.slane %v1838, 2
    %v1892 = vsel %vm838, %v1890, %v1891
    %v1893 = vrot.slane %v1839, 2
    %v1894 = vrot.slane %v1840, 2
    %v1895 = vsel %vm838, %v1893, %v1894
    %v1896 = vrot.slane %v1841, 2
    %v1897 = vrot.slane %v1842, 2
    %v1898 = vsel %vm838, %v1896, %v1897
    %v1899 = vrot.slane %v1843, 2
    %v1900 = vrot.slane %v1844, 2
    %v1901 = vsel %vm838, %v1899, %v1900
    %v1902 = vrot.slane %v1845, 2
    %v1903 = vrot.slane %v1846, 2
    %v1904 = vsel %vm838, %v1902, %v1903
    %v1905 = vrot.slane %v1847, 2
    %v1906 = vrot.slane %v1848, 2
    %v1907 = vsel %vm838, %v1905, %v1906
    %v1908 = vrot.slane %v1849, 2
    %v1909 = vrot.slane %v1850, 2
    %v1910 = vsel %vm838, %v1908, %v1909
    %v1935 = vadd.f32 %v1802, %v1877
    %v1936 = vadd.f32 %v1803, %v1876
    %v1937 = vadd.f32 %v1804, %v1880
    %v1938 = vadd.f32 %v1805, %v1879
    %v1939 = vadd.f32 %v1806, %v1883
    %v1940 = vadd.f32 %v1807, %v1882
    %v1941 = vadd.f32 %v1808, %v1886
    %v1942 = vadd.f32 %v1809, %v1885
    %v1943 = vadd.f32 %v1810, %v1889
    %v1944 = vadd.f32 %v1811, %v1888
    %v1945 = vadd.f32 %v1812, %v1892
    %v1946 = vadd.f32 %v1813, %v1891
    %v1947 = vadd.f32 %v1814, %v1895
    %v1948 = vadd.f32 %v1815, %v1894
    %v1949 = vadd.f32 %v1816, %v1898
    %v1950 = vadd.f32 %v1817, %v1897
    %v1951 = vadd.f32 %v1818, %v1901
    %v1952 = vadd.f32 %v1819, %v1900
    %v1953 = vadd.f32 %v1820, %v1904
    %v1954 = vadd.f32 %v1821, %v1903
    %v1955 = vadd.f32 %v1822, %v1907
    %v1956 = vadd.f32 %v1823, %v1906
    %v1957 = vadd.f32 %v1824, %v1910
    %v1958 = vadd.f32 %v1825, %v1909
    %v1959 = vstv %s108
    %v1960 = vmul.f32 %v1959, %v1278
    %v1961 = vmul.f32 %v1959, %v1279
    %v1962 = vmul.f32 %v1959, %v1280
    %v1963 = vmul.f32 %v1959, %v1281
    %v1964 = vmul.f32 %v1959, %v1282
    %v1965 = vmul.f32 %v1959, %v1283
    %v1966 = vmul.f32 %v1959, %v1284
    %v1967 = vmul.f32 %v1959, %v1285
    %v1968 = vmul.f32 %v1959, %v1286
    %v1969 = vmul.f32 %v1959, %v1287
    %v1970 = vmul.f32 %v1959, %v1288
    %v1971 = vmul.f32 %v1959, %v1289
    %v1972 = vmul.f32 %v1959, %v1290
    %v1973 = vmul.f32 %v1959, %v1291
    %v1974 = vmul.f32 %v1959, %v1292
    %v1975 = vmul.f32 %v1959, %v1293
    %v1976 = vmul.f32 %v1959, %v1294
    %v1977 = vmul.f32 %v1959, %v1295
    %v1978 = vmul.f32 %v1959, %v1296
    %v1979 = vmul.f32 %v1959, %v1297
    %v1980 = vmul.f32 %v1959, %v1298
    %v1981 = vmul.f32 %v1959, %v1299
    %v1982 = vmul.f32 %v1959, %v1300
    %v1983 = vmul.f32 %v1959, %v1301
    %v2008 = vrot.slane %v1960, 2
    %v2009 = vrot.slane %v1961, 2
    %v2010 = vsel %vm838, %v2008, %v2009
    %v2011 = vrot.slane %v1962, 2
    %v2012 = vrot.slane %v1963, 2
    %v2013 = vsel %vm838, %v2011, %v2012
    %v2014 = vrot.slane %v1964, 2
    %v2015 = vrot.slane %v1965, 2
    %v2016 = vsel %vm838, %v2014, %v2015
    %v2017 = vrot.slane %v1966, 2
    %v2018 = vrot.slane %v1967, 2
    %v2019 = vsel %vm838, %v2017, %v2018
    %v2020 = vrot.slane %v1968, 2
    %v2021 = vrot.slane %v1969, 2
    %v2022 = vsel %vm838, %v2020, %v2021
    %v2023 = vrot.slane %v1970, 2
    %v2024 = vrot.slane %v1971, 2
    %v2025 = vsel %vm838, %v2023, %v2024
    %v2026 = vrot.slane %v1972, 2
    %v2027 = vrot.slane %v1973, 2
    %v2028 = vsel %vm838, %v2026, %v2027
    %v2029 = vrot.slane %v1974, 2
    %v2030 = vrot.slane %v1975, 2
    %v2031 = vsel %vm838, %v2029, %v2030
    %v2032 = vrot.slane %v1976, 2
    %v2033 = vrot.slane %v1977, 2
    %v2034 = vsel %vm838, %v2032, %v2033
    %v2035 = vrot.slane %v1978, 2
    %v2036 = vrot.slane %v1979, 2
    %v2037 = vsel %vm838, %v2035, %v2036
    %v2038 = vrot.slane %v1980, 2
    %v2039 = vrot.slane %v1981, 2
    %v2040 = vsel %vm838, %v2038, %v2039
    %v2041 = vrot.slane %v1982, 2
    %v2042 = vrot.slane %v1983, 2
    %v2043 = vsel %vm838, %v2041, %v2042
    %v2068 = vadd.f32 %v1935, %v2010
    %v2069 = vadd.f32 %v1936, %v2009
    %v2070 = vadd.f32 %v1937, %v2013
    %v2071 = vadd.f32 %v1938, %v2012
    %v2072 = vadd.f32 %v1939, %v2016
    %v2073 = vadd.f32 %v1940, %v2015
    %v2074 = vadd.f32 %v1941, %v2019
    %v2075 = vadd.f32 %v1942, %v2018
    %v2076 = vadd.f32 %v1943, %v2022
    %v2077 = vadd.f32 %v1944, %v2021
    %v2078 = vadd.f32 %v1945, %v2025
    %v2079 = vadd.f32 %v1946, %v2024
    %v2080 = vadd.f32 %v1947, %v2028
    %v2081 = vadd.f32 %v1948, %v2027
    %v2082 = vadd.f32 %v1949, %v2031
    %v2083 = vadd.f32 %v1950, %v2030
    %v2084 = vadd.f32 %v1951, %v2034
    %v2085 = vadd.f32 %v1952, %v2033
    %v2086 = vadd.f32 %v1953, %v2037
    %v2087 = vadd.f32 %v1954, %v2036
    %v2088 = vadd.f32 %v1955, %v2040
    %v2089 = vadd.f32 %v1956, %v2039
    %v2090 = vadd.f32 %v1957, %v2043
    %v2091 = vadd.f32 %v1958, %v2042
    %v2092 = vstv %s111
    %v2093 = vmul.f32 %v2092, %v1280
    %v2094 = vmul.f32 %v2092, %v1281
    %v2095 = vmul.f32 %v2092, %v1282
    %v2096 = vmul.f32 %v2092, %v1283
    %v2097 = vmul.f32 %v2092, %v1284
    %v2098 = vmul.f32 %v2092, %v1285
    %v2099 = vmul.f32 %v2092, %v1286
    %v2100 = vmul.f32 %v2092, %v1287
    %v2101 = vmul.f32 %v2092, %v1288
    %v2102 = vmul.f32 %v2092, %v1289
    %v2103 = vmul.f32 %v2092, %v1290
    %v2104 = vmul.f32 %v2092, %v1291
    %v2105 = vmul.f32 %v2092, %v1292
    %v2106 = vmul.f32 %v2092, %v1293
    %v2107 = vmul.f32 %v2092, %v1294
    %v2108 = vmul.f32 %v2092, %v1295
    %v2109 = vmul.f32 %v2092, %v1296
    %v2110 = vmul.f32 %v2092, %v1297
    %v2111 = vmul.f32 %v2092, %v1298
    %v2112 = vmul.f32 %v2092, %v1299
    %v2113 = vmul.f32 %v2092, %v1300
    %v2114 = vmul.f32 %v2092, %v1301
    %v2115 = vmul.f32 %v2092, %v1302
    %v2116 = vmul.f32 %v2092, %v1303
    %v2141 = vrot.slane %v2093, 2
    %v2142 = vrot.slane %v2094, 2
    %v2143 = vsel %vm838, %v2141, %v2142
    %v2144 = vrot.slane %v2095, 2
    %v2145 = vrot.slane %v2096, 2
    %v2146 = vsel %vm838, %v2144, %v2145
    %v2147 = vrot.slane %v2097, 2
    %v2148 = vrot.slane %v2098, 2
    %v2149 = vsel %vm838, %v2147, %v2148
    %v2150 = vrot.slane %v2099, 2
    %v2151 = vrot.slane %v2100, 2
    %v2152 = vsel %vm838, %v2150, %v2151
    %v2153 = vrot.slane %v2101, 2
    %v2154 = vrot.slane %v2102, 2
    %v2155 = vsel %vm838, %v2153, %v2154
    %v2156 = vrot.slane %v2103, 2
    %v2157 = vrot.slane %v2104, 2
    %v2158 = vsel %vm838, %v2156, %v2157
    %v2159 = vrot.slane %v2105, 2
    %v2160 = vrot.slane %v2106, 2
    %v2161 = vsel %vm838, %v2159, %v2160
    %v2162 = vrot.slane %v2107, 2
    %v2163 = vrot.slane %v2108, 2
    %v2164 = vsel %vm838, %v2162, %v2163
    %v2165 = vrot.slane %v2109, 2
    %v2166 = vrot.slane %v2110, 2
    %v2167 = vsel %vm838, %v2165, %v2166
    %v2168 = vrot.slane %v2111, 2
    %v2169 = vrot.slane %v2112, 2
    %v2170 = vsel %vm838, %v2168, %v2169
    %v2171 = vrot.slane %v2113, 2
    %v2172 = vrot.slane %v2114, 2
    %v2173 = vsel %vm838, %v2171, %v2172
    %v2174 = vrot.slane %v2115, 2
    %v2175 = vrot.slane %v2116, 2
    %v2176 = vsel %vm838, %v2174, %v2175
    %v2201 = vadd.f32 %v2068, %v2143
    %v2202 = vadd.f32 %v2069, %v2142
    %v2203 = vadd.f32 %v2070, %v2146
    %v2204 = vadd.f32 %v2071, %v2145
    %v2205 = vadd.f32 %v2072, %v2149
    %v2206 = vadd.f32 %v2073, %v2148
    %v2207 = vadd.f32 %v2074, %v2152
    %v2208 = vadd.f32 %v2075, %v2151
    %v2209 = vadd.f32 %v2076, %v2155
    %v2210 = vadd.f32 %v2077, %v2154
    %v2211 = vadd.f32 %v2078, %v2158
    %v2212 = vadd.f32 %v2079, %v2157
    %v2213 = vadd.f32 %v2080, %v2161
    %v2214 = vadd.f32 %v2081, %v2160
    %v2215 = vadd.f32 %v2082, %v2164
    %v2216 = vadd.f32 %v2083, %v2163
    %v2217 = vadd.f32 %v2084, %v2167
    %v2218 = vadd.f32 %v2085, %v2166
    %v2219 = vadd.f32 %v2086, %v2170
    %v2220 = vadd.f32 %v2087, %v2169
    %v2221 = vadd.f32 %v2088, %v2173
    %v2222 = vadd.f32 %v2089, %v2172
    %v2223 = vadd.f32 %v2090, %v2176
    %v2224 = vadd.f32 %v2091, %v2175
    %v2225 = vstv %s72
    %v2226 = vmul.f32 %v2225, %v140
    %v2227 = vmul.f32 %v2225, %v141
    %v2228 = vmul.f32 %v2225, %v142
    %v2229 = vmul.f32 %v2225, %v143
    %v2230 = vmul.f32 %v2225, %v144
    %v2231 = vmul.f32 %v2225, %v145
    %v2232 = vmul.f32 %v2225, %v146
    %v2233 = vmul.f32 %v2225, %v147
    %v2234 = vmul.f32 %v2225, %v148
    %v2235 = vmul.f32 %v2225, %v149
    %v2236 = vmul.f32 %v2225, %v150
    %v2237 = vmul.f32 %v2225, %v151
    %v2238 = vmul.f32 %v2225, %v152
    %v2239 = vmul.f32 %v2225, %v153
    %v2240 = vmul.f32 %v2225, %v154
    %v2241 = vmul.f32 %v2225, %v155
    %v2242 = vmul.f32 %v2225, %v156
    %v2243 = vmul.f32 %v2225, %v157
    %v2244 = vmul.f32 %v2225, %v158
    %v2245 = vmul.f32 %v2225, %v159
    %v2246 = vmul.f32 %v2225, %v160
    %v2247 = vmul.f32 %v2225, %v161
    %v2248 = vmul.f32 %v2225, %v162
    %v2249 = vmul.f32 %v2225, %v163
    %v2250 = vmul.f32 %v2225, %v164
    %v2251 = vmul.f32 %v2225, %v165
    %v2252 = vmul.f32 %v2225, %v166
    %v2253 = vmul.f32 %v2225, %v167
    %v2254 = vstv %s75
    %v2255 = vmul.f32 %v2254, %v142
    %v2256 = vmul.f32 %v2254, %v143
    %v2257 = vmul.f32 %v2254, %v144
    %v2258 = vmul.f32 %v2254, %v145
    %v2259 = vmul.f32 %v2254, %v146
    %v2260 = vmul.f32 %v2254, %v147
    %v2261 = vmul.f32 %v2254, %v148
    %v2262 = vmul.f32 %v2254, %v149
    %v2263 = vmul.f32 %v2254, %v150
    %v2264 = vmul.f32 %v2254, %v151
    %v2265 = vmul.f32 %v2254, %v152
    %v2266 = vmul.f32 %v2254, %v153
    %v2267 = vmul.f32 %v2254, %v154
    %v2268 = vmul.f32 %v2254, %v155
    %v2269 = vmul.f32 %v2254, %v156
    %v2270 = vmul.f32 %v2254, %v157
    %v2271 = vmul.f32 %v2254, %v158
    %v2272 = vmul.f32 %v2254, %v159
    %v2273 = vmul.f32 %v2254, %v160
    %v2274 = vmul.f32 %v2254, %v161
    %v2275 = vmul.f32 %v2254, %v162
    %v2276 = vmul.f32 %v2254, %v163
    %v2277 = vmul.f32 %v2254, %v164
    %v2278 = vmul.f32 %v2254, %v165
    %v2279 = vmul.f32 %v2254, %v166
    %v2280 = vmul.f32 %v2254, %v167
    %v2281 = vmul.f32 %v2254, %v168
    %v2282 = vmul.f32 %v2254, %v169
    %v2283 = vadd.f32 %v2226, %v2255
    %v2284 = vadd.f32 %v2227, %v2256
    %v2285 = vadd.f32 %v2228, %v2257
    %v2286 = vadd.f32 %v2229, %v2258
    %v2287 = vadd.f32 %v2230, %v2259
    %v2288 = vadd.f32 %v2231, %v2260
    %v2289 = vadd.f32 %v2232, %v2261
    %v2290 = vadd.f32 %v2233, %v2262
    %v2291 = vadd.f32 %v2234, %v2263
    %v2292 = vadd.f32 %v2235, %v2264
    %v2293 = vadd.f32 %v2236, %v2265
    %v2294 = vadd.f32 %v2237, %v2266
    %v2295 = vadd.f32 %v2238, %v2267
    %v2296 = vadd.f32 %v2239, %v2268
    %v2297 = vadd.f32 %v2240, %v2269
    %v2298 = vadd.f32 %v2241, %v2270
    %v2299 = vadd.f32 %v2242, %v2271
    %v2300 = vadd.f32 %v2243, %v2272
    %v2301 = vadd.f32 %v2244, %v2273
    %v2302 = vadd.f32 %v2245, %v2274
    %v2303 = vadd.f32 %v2246, %v2275
    %v2304 = vadd.f32 %v2247, %v2276
    %v2305 = vadd.f32 %v2248, %v2277
    %v2306 = vadd.f32 %v2249, %v2278
    %v2307 = vadd.f32 %v2250, %v2279
    %v2308 = vadd.f32 %v2251, %v2280
    %v2309 = vadd.f32 %v2252, %v2281
    %v2310 = vadd.f32 %v2253, %v2282
    %v2311 = vstv %s78
    %v2312 = vmul.f32 %v2311, %v144
    %v2313 = vmul.f32 %v2311, %v145
    %v2314 = vmul.f32 %v2311, %v146
    %v2315 = vmul.f32 %v2311, %v147
    %v2316 = vmul.f32 %v2311, %v148
    %v2317 = vmul.f32 %v2311, %v149
    %v2318 = vmul.f32 %v2311, %v150
    %v2319 = vmul.f32 %v2311, %v151
    %v2320 = vmul.f32 %v2311, %v152
    %v2321 = vmul.f32 %v2311, %v153
    %v2322 = vmul.f32 %v2311, %v154
    %v2323 = vmul.f32 %v2311, %v155
    %v2324 = vmul.f32 %v2311, %v156
    %v2325 = vmul.f32 %v2311, %v157
    %v2326 = vmul.f32 %v2311, %v158
    %v2327 = vmul.f32 %v2311, %v159
    %v2328 = vmul.f32 %v2311, %v160
    %v2329 = vmul.f32 %v2311, %v161
    %v2330 = vmul.f32 %v2311, %v162
    %v2331 = vmul.f32 %v2311, %v163
    %v2332 = vmul.f32 %v2311, %v164
    %v2333 = vmul.f32 %v2311, %v165
    %v2334 = vmul.f32 %v2311, %v166
    %v2335 = vmul.f32 %v2311, %v167
    %v2336 = vmul.f32 %v2311, %v168
    %v2337 = vmul.f32 %v2311, %v169
    %v2338 = vmul.f32 %v2311, %v170
    %v2339 = vmul.f32 %v2311, %v171
    %v2340 = vadd.f32 %v2283, %v2312
    %v2341 = vadd.f32 %v2284, %v2313
    %v2342 = vadd.f32 %v2285, %v2314
    %v2343 = vadd.f32 %v2286, %v2315
    %v2344 = vadd.f32 %v2287, %v2316
    %v2345 = vadd.f32 %v2288, %v2317
    %v2346 = vadd.f32 %v2289, %v2318
    %v2347 = vadd.f32 %v2290, %v2319
    %v2348 = vadd.f32 %v2291, %v2320
    %v2349 = vadd.f32 %v2292, %v2321
    %v2350 = vadd.f32 %v2293, %v2322
    %v2351 = vadd.f32 %v2294, %v2323
    %v2352 = vadd.f32 %v2295, %v2324
    %v2353 = vadd.f32 %v2296, %v2325
    %v2354 = vadd.f32 %v2297, %v2326
    %v2355 = vadd.f32 %v2298, %v2327
    %v2356 = vadd.f32 %v2299, %v2328
    %v2357 = vadd.f32 %v2300, %v2329
    %v2358 = vadd.f32 %v2301, %v2330
    %v2359 = vadd.f32 %v2302, %v2331
    %v2360 = vadd.f32 %v2303, %v2332
    %v2361 = vadd.f32 %v2304, %v2333
    %v2362 = vadd.f32 %v2305, %v2334
    %v2363 = vadd.f32 %v2306, %v2335
    %v2364 = vadd.f32 %v2307, %v2336
    %v2365 = vadd.f32 %v2308, %v2337
    %v2366 = vadd.f32 %v2309, %v2338
    %v2367 = vadd.f32 %v2310, %v2339
    %v2368 = vstv %s73
    %v2369 = vmul.f32 %v2368, %v140
    %v2370 = vmul.f32 %v2368, %v141
    %v2371 = vmul.f32 %v2368, %v142
    %v2372 = vmul.f32 %v2368, %v143
    %v2373 = vmul.f32 %v2368, %v144
    %v2374 = vmul.f32 %v2368, %v145
    %v2375 = vmul.f32 %v2368, %v146
    %v2376 = vmul.f32 %v2368, %v147
    %v2377 = vmul.f32 %v2368, %v148
    %v2378 = vmul.f32 %v2368, %v149
    %v2379 = vmul.f32 %v2368, %v150
    %v2380 = vmul.f32 %v2368, %v151
    %v2381 = vmul.f32 %v2368, %v152
    %v2382 = vmul.f32 %v2368, %v153
    %v2383 = vmul.f32 %v2368, %v154
    %v2384 = vmul.f32 %v2368, %v155
    %v2385 = vmul.f32 %v2368, %v156
    %v2386 = vmul.f32 %v2368, %v157
    %v2387 = vmul.f32 %v2368, %v158
    %v2388 = vmul.f32 %v2368, %v159
    %v2389 = vmul.f32 %v2368, %v160
    %v2390 = vmul.f32 %v2368, %v161
    %v2391 = vmul.f32 %v2368, %v162
    %v2392 = vmul.f32 %v2368, %v163
    %v2393 = vmul.f32 %v2368, %v164
    %v2394 = vmul.f32 %v2368, %v165
    %v2395 = vmul.f32 %v2368, %v166
    %v2396 = vmul.f32 %v2368, %v167
    %v2425 = vrot.slane %v2369, 1
    %v2426 = vrot.slane %v2370, 1
    %v2427 = vsel %vm372, %v2425, %v2426
    %v2428 = vrot.slane %v2371, 1
    %v2429 = vrot.slane %v2372, 1
    %v2430 = vsel %vm372, %v2428, %v2429
    %v2431 = vrot.slane %v2373, 1
    %v2432 = vrot.slane %v2374, 1
    %v2433 = vsel %vm372, %v2431, %v2432
    %v2434 = vrot.slane %v2375, 1
    %v2435 = vrot.slane %v2376, 1
    %v2436 = vsel %vm372, %v2434, %v2435
    %v2437 = vrot.slane %v2377, 1
    %v2438 = vrot.slane %v2378, 1
    %v2439 = vsel %vm372, %v2437, %v2438
    %v2440 = vrot.slane %v2379, 1
    %v2441 = vrot.slane %v2380, 1
    %v2442 = vsel %vm372, %v2440, %v2441
    %v2443 = vrot.slane %v2381, 1
    %v2444 = vrot.slane %v2382, 1
    %v2445 = vsel %vm372, %v2443, %v2444
    %v2446 = vrot.slane %v2383, 1
    %v2447 = vrot.slane %v2384, 1
    %v2448 = vsel %vm372, %v2446, %v2447
    %v2449 = vrot.slane %v2385, 1
    %v2450 = vrot.slane %v2386, 1
    %v2451 = vsel %vm372, %v2449, %v2450
    %v2452 = vrot.slane %v2387, 1
    %v2453 = vrot.slane %v2388, 1
    %v2454 = vsel %vm372, %v2452, %v2453
    %v2455 = vrot.slane %v2389, 1
    %v2456 = vrot.slane %v2390, 1
    %v2457 = vsel %vm372, %v2455, %v2456
    %v2458 = vrot.slane %v2391, 1
    %v2459 = vrot.slane %v2392, 1
    %v2460 = vsel %vm372, %v2458, %v2459
    %v2461 = vrot.slane %v2393, 1
    %v2462 = vrot.slane %v2394, 1
    %v2463 = vsel %vm372, %v2461, %v2462
    %v2464 = vrot.slane %v2395, 1
    %v2465 = vrot.slane %v2396, 1
    %v2466 = vsel %vm372, %v2464, %v2465
    %v2495 = vadd.f32 %v2340, %v2427
    %v2496 = vadd.f32 %v2341, %v2426
    %v2497 = vadd.f32 %v2342, %v2430
    %v2498 = vadd.f32 %v2343, %v2429
    %v2499 = vadd.f32 %v2344, %v2433
    %v2500 = vadd.f32 %v2345, %v2432
    %v2501 = vadd.f32 %v2346, %v2436
    %v2502 = vadd.f32 %v2347, %v2435
    %v2503 = vadd.f32 %v2348, %v2439
    %v2504 = vadd.f32 %v2349, %v2438
    %v2505 = vadd.f32 %v2350, %v2442
    %v2506 = vadd.f32 %v2351, %v2441
    %v2507 = vadd.f32 %v2352, %v2445
    %v2508 = vadd.f32 %v2353, %v2444
    %v2509 = vadd.f32 %v2354, %v2448
    %v2510 = vadd.f32 %v2355, %v2447
    %v2511 = vadd.f32 %v2356, %v2451
    %v2512 = vadd.f32 %v2357, %v2450
    %v2513 = vadd.f32 %v2358, %v2454
    %v2514 = vadd.f32 %v2359, %v2453
    %v2515 = vadd.f32 %v2360, %v2457
    %v2516 = vadd.f32 %v2361, %v2456
    %v2517 = vadd.f32 %v2362, %v2460
    %v2518 = vadd.f32 %v2363, %v2459
    %v2519 = vadd.f32 %v2364, %v2463
    %v2520 = vadd.f32 %v2365, %v2462
    %v2521 = vadd.f32 %v2366, %v2466
    %v2522 = vadd.f32 %v2367, %v2465
    %v2523 = vstv %s76
    %v2524 = vmul.f32 %v2523, %v142
    %v2525 = vmul.f32 %v2523, %v143
    %v2526 = vmul.f32 %v2523, %v144
    %v2527 = vmul.f32 %v2523, %v145
    %v2528 = vmul.f32 %v2523, %v146
    %v2529 = vmul.f32 %v2523, %v147
    %v2530 = vmul.f32 %v2523, %v148
    %v2531 = vmul.f32 %v2523, %v149
    %v2532 = vmul.f32 %v2523, %v150
    %v2533 = vmul.f32 %v2523, %v151
    %v2534 = vmul.f32 %v2523, %v152
    %v2535 = vmul.f32 %v2523, %v153
    %v2536 = vmul.f32 %v2523, %v154
    %v2537 = vmul.f32 %v2523, %v155
    %v2538 = vmul.f32 %v2523, %v156
    %v2539 = vmul.f32 %v2523, %v157
    %v2540 = vmul.f32 %v2523, %v158
    %v2541 = vmul.f32 %v2523, %v159
    %v2542 = vmul.f32 %v2523, %v160
    %v2543 = vmul.f32 %v2523, %v161
    %v2544 = vmul.f32 %v2523, %v162
    %v2545 = vmul.f32 %v2523, %v163
    %v2546 = vmul.f32 %v2523, %v164
    %v2547 = vmul.f32 %v2523, %v165
    %v2548 = vmul.f32 %v2523, %v166
    %v2549 = vmul.f32 %v2523, %v167
    %v2550 = vmul.f32 %v2523, %v168
    %v2551 = vmul.f32 %v2523, %v169
    %v2580 = vrot.slane %v2524, 1
    %v2581 = vrot.slane %v2525, 1
    %v2582 = vsel %vm372, %v2580, %v2581
    %v2583 = vrot.slane %v2526, 1
    %v2584 = vrot.slane %v2527, 1
    %v2585 = vsel %vm372, %v2583, %v2584
    %v2586 = vrot.slane %v2528, 1
    %v2587 = vrot.slane %v2529, 1
    %v2588 = vsel %vm372, %v2586, %v2587
    %v2589 = vrot.slane %v2530, 1
    %v2590 = vrot.slane %v2531, 1
    %v2591 = vsel %vm372, %v2589, %v2590
    %v2592 = vrot.slane %v2532, 1
    %v2593 = vrot.slane %v2533, 1
    %v2594 = vsel %vm372, %v2592, %v2593
    %v2595 = vrot.slane %v2534, 1
    %v2596 = vrot.slane %v2535, 1
    %v2597 = vsel %vm372, %v2595, %v2596
    %v2598 = vrot.slane %v2536, 1
    %v2599 = vrot.slane %v2537, 1
    %v2600 = vsel %vm372, %v2598, %v2599
    %v2601 = vrot.slane %v2538, 1
    %v2602 = vrot.slane %v2539, 1
    %v2603 = vsel %vm372, %v2601, %v2602
    %v2604 = vrot.slane %v2540, 1
    %v2605 = vrot.slane %v2541, 1
    %v2606 = vsel %vm372, %v2604, %v2605
    %v2607 = vrot.slane %v2542, 1
    %v2608 = vrot.slane %v2543, 1
    %v2609 = vsel %vm372, %v2607, %v2608
    %v2610 = vrot.slane %v2544, 1
    %v2611 = vrot.slane %v2545, 1
    %v2612 = vsel %vm372, %v2610, %v2611
    %v2613 = vrot.slane %v2546, 1
    %v2614 = vrot.slane %v2547, 1
    %v2615 = vsel %vm372, %v2613, %v2614
    %v2616 = vrot.slane %v2548, 1
    %v2617 = vrot.slane %v2549, 1
    %v2618 = vsel %vm372, %v2616, %v2617
    %v2619 = vrot.slane %v2550, 1
    %v2620 = vrot.slane %v2551, 1
    %v2621 = vsel %vm372, %v2619, %v2620
    %v2650 = vadd.f32 %v2495, %v2582
    %v2651 = vadd.f32 %v2496, %v2581
    %v2652 = vadd.f32 %v2497, %v2585
    %v2653 = vadd.f32 %v2498, %v2584
    %v2654 = vadd.f32 %v2499, %v2588
    %v2655 = vadd.f32 %v2500, %v2587
    %v2656 = vadd.f32 %v2501, %v2591
    %v2657 = vadd.f32 %v2502, %v2590
    %v2658 = vadd.f32 %v2503, %v2594
    %v2659 = vadd.f32 %v2504, %v2593
    %v2660 = vadd.f32 %v2505, %v2597
    %v2661 = vadd.f32 %v2506, %v2596
    %v2662 = vadd.f32 %v2507, %v2600
    %v2663 = vadd.f32 %v2508, %v2599
    %v2664 = vadd.f32 %v2509, %v2603
    %v2665 = vadd.f32 %v2510, %v2602
    %v2666 = vadd.f32 %v2511, %v2606
    %v2667 = vadd.f32 %v2512, %v2605
    %v2668 = vadd.f32 %v2513, %v2609
    %v2669 = vadd.f32 %v2514, %v2608
    %v2670 = vadd.f32 %v2515, %v2612
    %v2671 = vadd.f32 %v2516, %v2611
    %v2672 = vadd.f32 %v2517, %v2615
    %v2673 = vadd.f32 %v2518, %v2614
    %v2674 = vadd.f32 %v2519, %v2618
    %v2675 = vadd.f32 %v2520, %v2617
    %v2676 = vadd.f32 %v2521, %v2621
    %v2677 = vadd.f32 %v2522, %v2620
    %v2678 = vstv %s79
    %v2679 = vmul.f32 %v2678, %v144
    %v2680 = vmul.f32 %v2678, %v145
    %v2681 = vmul.f32 %v2678, %v146
    %v2682 = vmul.f32 %v2678, %v147
    %v2683 = vmul.f32 %v2678, %v148
    %v2684 = vmul.f32 %v2678, %v149
    %v2685 = vmul.f32 %v2678, %v150
    %v2686 = vmul.f32 %v2678, %v151
    %v2687 = vmul.f32 %v2678, %v152
    %v2688 = vmul.f32 %v2678, %v153
    %v2689 = vmul.f32 %v2678, %v154
    %v2690 = vmul.f32 %v2678, %v155
    %v2691 = vmul.f32 %v2678, %v156
    %v2692 = vmul.f32 %v2678, %v157
    %v2693 = vmul.f32 %v2678, %v158
    %v2694 = vmul.f32 %v2678, %v159
    %v2695 = vmul.f32 %v2678, %v160
    %v2696 = vmul.f32 %v2678, %v161
    %v2697 = vmul.f32 %v2678, %v162
    %v2698 = vmul.f32 %v2678, %v163
    %v2699 = vmul.f32 %v2678, %v164
    %v2700 = vmul.f32 %v2678, %v165
    %v2701 = vmul.f32 %v2678, %v166
    %v2702 = vmul.f32 %v2678, %v167
    %v2703 = vmul.f32 %v2678, %v168
    %v2704 = vmul.f32 %v2678, %v169
    %v2705 = vmul.f32 %v2678, %v170
    %v2706 = vmul.f32 %v2678, %v171
    %v2735 = vrot.slane %v2679, 1
    %v2736 = vrot.slane %v2680, 1
    %v2737 = vsel %vm372, %v2735, %v2736
    %v2738 = vrot.slane %v2681, 1
    %v2739 = vrot.slane %v2682, 1
    %v2740 = vsel %vm372, %v2738, %v2739
    %v2741 = vrot.slane %v2683, 1
    %v2742 = vrot.slane %v2684, 1
    %v2743 = vsel %vm372, %v2741, %v2742
    %v2744 = vrot.slane %v2685, 1
    %v2745 = vrot.slane %v2686, 1
    %v2746 = vsel %vm372, %v2744, %v2745
    %v2747 = vrot.slane %v2687, 1
    %v2748 = vrot.slane %v2688, 1
    %v2749 = vsel %vm372, %v2747, %v2748
    %v2750 = vrot.slane %v2689, 1
    %v2751 = vrot.slane %v2690, 1
    %v2752 = vsel %vm372, %v2750, %v2751
    %v2753 = vrot.slane %v2691, 1
    %v2754 = vrot.slane %v2692, 1
    %v2755 = vsel %vm372, %v2753, %v2754
    %v2756 = vrot.slane %v2693, 1
    %v2757 = vrot.slane %v2694, 1
    %v2758 = vsel %vm372, %v2756, %v2757
    %v2759 = vrot.slane %v2695, 1
    %v2760 = vrot.slane %v2696, 1
    %v2761 = vsel %vm372, %v2759, %v2760
    %v2762 = vrot.slane %v2697, 1
    %v2763 = vrot.slane %v2698, 1
    %v2764 = vsel %vm372, %v2762, %v2763
    %v2765 = vrot.slane %v2699, 1
    %v2766 = vrot.slane %v2700, 1
    %v2767 = vsel %vm372, %v2765, %v2766
    %v2768 = vrot.slane %v2701, 1
    %v2769 = vrot.slane %v2702, 1
    %v2770 = vsel %vm372, %v2768, %v2769
    %v2771 = vrot.slane %v2703, 1
    %v2772 = vrot.slane %v2704, 1
    %v2773 = vsel %vm372, %v2771, %v2772
    %v2774 = vrot.slane %v2705, 1
    %v2775 = vrot.slane %v2706, 1
    %v2776 = vsel %vm372, %v2774, %v2775
    %v2805 = vadd.f32 %v2650, %v2737
    %v2806 = vadd.f32 %v2651, %v2736
    %v2807 = vadd.f32 %v2652, %v2740
    %v2808 = vadd.f32 %v2653, %v2739
    %v2809 = vadd.f32 %v2654, %v2743
    %v2810 = vadd.f32 %v2655, %v2742
    %v2811 = vadd.f32 %v2656, %v2746
    %v2812 = vadd.f32 %v2657, %v2745
    %v2813 = vadd.f32 %v2658, %v2749
    %v2814 = vadd.f32 %v2659, %v2748
    %v2815 = vadd.f32 %v2660, %v2752
    %v2816 = vadd.f32 %v2661, %v2751
    %v2817 = vadd.f32 %v2662, %v2755
    %v2818 = vadd.f32 %v2663, %v2754
    %v2819 = vadd.f32 %v2664, %v2758
    %v2820 = vadd.f32 %v2665, %v2757
    %v2821 = vadd.f32 %v2666, %v2761
    %v2822 = vadd.f32 %v2667, %v2760
    %v2823 = vadd.f32 %v2668, %v2764
    %v2824 = vadd.f32 %v2669, %v2763
    %v2825 = vadd.f32 %v2670, %v2767
    %v2826 = vadd.f32 %v2671, %v2766
    %v2827 = vadd.f32 %v2672, %v2770
    %v2828 = vadd.f32 %v2673, %v2769
    %v2829 = vadd.f32 %v2674, %v2773
    %v2830 = vadd.f32 %v2675, %v2772
    %v2831 = vadd.f32 %v2676, %v2776
    %v2832 = vadd.f32 %v2677, %v2775
    %v2833 = vstv %s74
    %v2834 = vmul.f32 %v2833, %v140
    %v2835 = vmul.f32 %v2833, %v141
    %v2836 = vmul.f32 %v2833, %v142
    %v2837 = vmul.f32 %v2833, %v143
    %v2838 = vmul.f32 %v2833, %v144
    %v2839 = vmul.f32 %v2833, %v145
    %v2840 = vmul.f32 %v2833, %v146
    %v2841 = vmul.f32 %v2833, %v147
    %v2842 = vmul.f32 %v2833, %v148
    %v2843 = vmul.f32 %v2833, %v149
    %v2844 = vmul.f32 %v2833, %v150
    %v2845 = vmul.f32 %v2833, %v151
    %v2846 = vmul.f32 %v2833, %v152
    %v2847 = vmul.f32 %v2833, %v153
    %v2848 = vmul.f32 %v2833, %v154
    %v2849 = vmul.f32 %v2833, %v155
    %v2850 = vmul.f32 %v2833, %v156
    %v2851 = vmul.f32 %v2833, %v157
    %v2852 = vmul.f32 %v2833, %v158
    %v2853 = vmul.f32 %v2833, %v159
    %v2854 = vmul.f32 %v2833, %v160
    %v2855 = vmul.f32 %v2833, %v161
    %v2856 = vmul.f32 %v2833, %v162
    %v2857 = vmul.f32 %v2833, %v163
    %v2858 = vmul.f32 %v2833, %v164
    %v2859 = vmul.f32 %v2833, %v165
    %v2860 = vmul.f32 %v2833, %v166
    %v2861 = vmul.f32 %v2833, %v167
    %v2890 = vrot.slane %v2834, 2
    %v2891 = vrot.slane %v2835, 2
    %v2892 = vsel %vm838, %v2890, %v2891
    %v2893 = vrot.slane %v2836, 2
    %v2894 = vrot.slane %v2837, 2
    %v2895 = vsel %vm838, %v2893, %v2894
    %v2896 = vrot.slane %v2838, 2
    %v2897 = vrot.slane %v2839, 2
    %v2898 = vsel %vm838, %v2896, %v2897
    %v2899 = vrot.slane %v2840, 2
    %v2900 = vrot.slane %v2841, 2
    %v2901 = vsel %vm838, %v2899, %v2900
    %v2902 = vrot.slane %v2842, 2
    %v2903 = vrot.slane %v2843, 2
    %v2904 = vsel %vm838, %v2902, %v2903
    %v2905 = vrot.slane %v2844, 2
    %v2906 = vrot.slane %v2845, 2
    %v2907 = vsel %vm838, %v2905, %v2906
    %v2908 = vrot.slane %v2846, 2
    %v2909 = vrot.slane %v2847, 2
    %v2910 = vsel %vm838, %v2908, %v2909
    %v2911 = vrot.slane %v2848, 2
    %v2912 = vrot.slane %v2849, 2
    %v2913 = vsel %vm838, %v2911, %v2912
    %v2914 = vrot.slane %v2850, 2
    %v2915 = vrot.slane %v2851, 2
    %v2916 = vsel %vm838, %v2914, %v2915
    %v2917 = vrot.slane %v2852, 2
    %v2918 = vrot.slane %v2853, 2
    %v2919 = vsel %vm838, %v2917, %v2918
    %v2920 = vrot.slane %v2854, 2
    %v2921 = vrot.slane %v2855, 2
    %v2922 = vsel %vm838, %v2920, %v2921
    %v2923 = vrot.slane %v2856, 2
    %v2924 = vrot.slane %v2857, 2
    %v2925 = vsel %vm838, %v2923, %v2924
    %v2926 = vrot.slane %v2858, 2
    %v2927 = vrot.slane %v2859, 2
    %v2928 = vsel %vm838, %v2926, %v2927
    %v2929 = vrot.slane %v2860, 2
    %v2930 = vrot.slane %v2861, 2
    %v2931 = vsel %vm838, %v2929, %v2930
    %v2960 = vadd.f32 %v2805, %v2892
    %v2961 = vadd.f32 %v2806, %v2891
    %v2962 = vadd.f32 %v2807, %v2895
    %v2963 = vadd.f32 %v2808, %v2894
    %v2964 = vadd.f32 %v2809, %v2898
    %v2965 = vadd.f32 %v2810, %v2897
    %v2966 = vadd.f32 %v2811, %v2901
    %v2967 = vadd.f32 %v2812, %v2900
    %v2968 = vadd.f32 %v2813, %v2904
    %v2969 = vadd.f32 %v2814, %v2903
    %v2970 = vadd.f32 %v2815, %v2907
    %v2971 = vadd.f32 %v2816, %v2906
    %v2972 = vadd.f32 %v2817, %v2910
    %v2973 = vadd.f32 %v2818, %v2909
    %v2974 = vadd.f32 %v2819, %v2913
    %v2975 = vadd.f32 %v2820, %v2912
    %v2976 = vadd.f32 %v2821, %v2916
    %v2977 = vadd.f32 %v2822, %v2915
    %v2978 = vadd.f32 %v2823, %v2919
    %v2979 = vadd.f32 %v2824, %v2918
    %v2980 = vadd.f32 %v2825, %v2922
    %v2981 = vadd.f32 %v2826, %v2921
    %v2982 = vadd.f32 %v2827, %v2925
    %v2983 = vadd.f32 %v2828, %v2924
    %v2984 = vadd.f32 %v2829, %v2928
    %v2985 = vadd.f32 %v2830, %v2927
    %v2986 = vadd.f32 %v2831, %v2931
    %v2987 = vadd.f32 %v2832, %v2930
    %v2988 = vstv %s77
    %v2989 = vmul.f32 %v2988, %v142
    %v2990 = vmul.f32 %v2988, %v143
    %v2991 = vmul.f32 %v2988, %v144
    %v2992 = vmul.f32 %v2988, %v145
    %v2993 = vmul.f32 %v2988, %v146
    %v2994 = vmul.f32 %v2988, %v147
    %v2995 = vmul.f32 %v2988, %v148
    %v2996 = vmul.f32 %v2988, %v149
    %v2997 = vmul.f32 %v2988, %v150
    %v2998 = vmul.f32 %v2988, %v151
    %v2999 = vmul.f32 %v2988, %v152
    %v3000 = vmul.f32 %v2988, %v153
    %v3001 = vmul.f32 %v2988, %v154
    %v3002 = vmul.f32 %v2988, %v155
    %v3003 = vmul.f32 %v2988, %v156
    %v3004 = vmul.f32 %v2988, %v157
    %v3005 = vmul.f32 %v2988, %v158
    %v3006 = vmul.f32 %v2988, %v159
    %v3007 = vmul.f32 %v2988, %v160
    %v3008 = vmul.f32 %v2988, %v161
    %v3009 = vmul.f32 %v2988, %v162
    %v3010 = vmul.f32 %v2988, %v163
    %v3011 = vmul.f32 %v2988, %v164
    %v3012 = vmul.f32 %v2988, %v165
    %v3013 = vmul.f32 %v2988, %v166
    %v3014 = vmul.f32 %v2988, %v167
    %v3015 = vmul.f32 %v2988, %v168
    %v3016 = vmul.f32 %v2988, %v169
    %v3045 = vrot.slane %v2989, 2
    %v3046 = vrot.slane %v2990, 2
    %v3047 = vsel %vm838, %v3045, %v3046
    %v3048 = vrot.slane %v2991, 2
    %v3049 = vrot.slane %v2992, 2
    %v3050 = vsel %vm838, %v3048, %v3049
    %v3051 = vrot.slane %v2993, 2
    %v3052 = vrot.slane %v2994, 2
    %v3053 = vsel %vm838, %v3051, %v3052
    %v3054 = vrot.slane %v2995, 2
    %v3055 = vrot.slane %v2996, 2
    %v3056 = vsel %vm838, %v3054, %v3055
    %v3057 = vrot.slane %v2997, 2
    %v3058 = vrot.slane %v2998, 2
    %v3059 = vsel %vm838, %v3057, %v3058
    %v3060 = vrot.slane %v2999, 2
    %v3061 = vrot.slane %v3000, 2
    %v3062 = vsel %vm838, %v3060, %v3061
    %v3063 = vrot.slane %v3001, 2
    %v3064 = vrot.slane %v3002, 2
    %v3065 = vsel %vm838, %v3063, %v3064
    %v3066 = vrot.slane %v3003, 2
    %v3067 = vrot.slane %v3004, 2
    %v3068 = vsel %vm838, %v3066, %v3067
    %v3069 = vrot.slane %v3005, 2
    %v3070 = vrot.slane %v3006, 2
    %v3071 = vsel %vm838, %v3069, %v3070
    %v3072 = vrot.slane %v3007, 2
    %v3073 = vrot.slane %v3008, 2
    %v3074 = vsel %vm838, %v3072, %v3073
    %v3075 = vrot.slane %v3009, 2
    %v3076 = vrot.slane %v3010, 2
    %v3077 = vsel %vm838, %v3075, %v3076
    %v3078 = vrot.slane %v3011, 2
    %v3079 = vrot.slane %v3012, 2
    %v3080 = vsel %vm838, %v3078, %v3079
    %v3081 = vrot.slane %v3013, 2
    %v3082 = vrot.slane %v3014, 2
    %v3083 = vsel %vm838, %v3081, %v3082
    %v3084 = vrot.slane %v3015, 2
    %v3085 = vrot.slane %v3016, 2
    %v3086 = vsel %vm838, %v3084, %v3085
    %v3115 = vadd.f32 %v2960, %v3047
    %v3116 = vadd.f32 %v2961, %v3046
    %v3117 = vadd.f32 %v2962, %v3050
    %v3118 = vadd.f32 %v2963, %v3049
    %v3119 = vadd.f32 %v2964, %v3053
    %v3120 = vadd.f32 %v2965, %v3052
    %v3121 = vadd.f32 %v2966, %v3056
    %v3122 = vadd.f32 %v2967, %v3055
    %v3123 = vadd.f32 %v2968, %v3059
    %v3124 = vadd.f32 %v2969, %v3058
    %v3125 = vadd.f32 %v2970, %v3062
    %v3126 = vadd.f32 %v2971, %v3061
    %v3127 = vadd.f32 %v2972, %v3065
    %v3128 = vadd.f32 %v2973, %v3064
    %v3129 = vadd.f32 %v2974, %v3068
    %v3130 = vadd.f32 %v2975, %v3067
    %v3131 = vadd.f32 %v2976, %v3071
    %v3132 = vadd.f32 %v2977, %v3070
    %v3133 = vadd.f32 %v2978, %v3074
    %v3134 = vadd.f32 %v2979, %v3073
    %v3135 = vadd.f32 %v2980, %v3077
    %v3136 = vadd.f32 %v2981, %v3076
    %v3137 = vadd.f32 %v2982, %v3080
    %v3138 = vadd.f32 %v2983, %v3079
    %v3139 = vadd.f32 %v2984, %v3083
    %v3140 = vadd.f32 %v2985, %v3082
    %v3141 = vadd.f32 %v2986, %v3086
    %v3142 = vadd.f32 %v2987, %v3085
    %v3143 = vstv %s80
    %v3144 = vmul.f32 %v3143, %v144
    %v3145 = vmul.f32 %v3143, %v145
    %v3146 = vmul.f32 %v3143, %v146
    %v3147 = vmul.f32 %v3143, %v147
    %v3148 = vmul.f32 %v3143, %v148
    %v3149 = vmul.f32 %v3143, %v149
    %v3150 = vmul.f32 %v3143, %v150
    %v3151 = vmul.f32 %v3143, %v151
    %v3152 = vmul.f32 %v3143, %v152
    %v3153 = vmul.f32 %v3143, %v153
    %v3154 = vmul.f32 %v3143, %v154
    %v3155 = vmul.f32 %v3143, %v155
    %v3156 = vmul.f32 %v3143, %v156
    %v3157 = vmul.f32 %v3143, %v157
    %v3158 = vmul.f32 %v3143, %v158
    %v3159 = vmul.f32 %v3143, %v159
    %v3160 = vmul.f32 %v3143, %v160
    %v3161 = vmul.f32 %v3143, %v161
    %v3162 = vmul.f32 %v3143, %v162
    %v3163 = vmul.f32 %v3143, %v163
    %v3164 = vmul.f32 %v3143, %v164
    %v3165 = vmul.f32 %v3143, %v165
    %v3166 = vmul.f32 %v3143, %v166
    %v3167 = vmul.f32 %v3143, %v167
    %v3168 = vmul.f32 %v3143, %v168
    %v3169 = vmul.f32 %v3143, %v169
    %v3170 = vmul.f32 %v3143, %v170
    %v3171 = vmul.f32 %v3143, %v171
    %v3200 = vrot.slane %v3144, 2
    %v3201 = vrot.slane %v3145, 2
    %v3202 = vsel %vm838, %v3200, %v3201
    %v3203 = vrot.slane %v3146, 2
    %v3204 = vrot.slane %v3147, 2
    %v3205 = vsel %vm838, %v3203, %v3204
    %v3206 = vrot.slane %v3148, 2
    %v3207 = vrot.slane %v3149, 2
    %v3208 = vsel %vm838, %v3206, %v3207
    %v3209 = vrot.slane %v3150, 2
    %v3210 = vrot.slane %v3151, 2
    %v3211 = vsel %vm838, %v3209, %v3210
    %v3212 = vrot.slane %v3152, 2
    %v3213 = vrot.slane %v3153, 2
    %v3214 = vsel %vm838, %v3212, %v3213
    %v3215 = vrot.slane %v3154, 2
    %v3216 = vrot.slane %v3155, 2
    %v3217 = vsel %vm838, %v3215, %v3216
    %v3218 = vrot.slane %v3156, 2
    %v3219 = vrot.slane %v3157, 2
    %v3220 = vsel %vm838, %v3218, %v3219
    %v3221 = vrot.slane %v3158, 2
    %v3222 = vrot.slane %v3159, 2
    %v3223 = vsel %vm838, %v3221, %v3222
    %v3224 = vrot.slane %v3160, 2
    %v3225 = vrot.slane %v3161, 2
    %v3226 = vsel %vm838, %v3224, %v3225
    %v3227 = vrot.slane %v3162, 2
    %v3228 = vrot.slane %v3163, 2
    %v3229 = vsel %vm838, %v3227, %v3228
    %v3230 = vrot.slane %v3164, 2
    %v3231 = vrot.slane %v3165, 2
    %v3232 = vsel %vm838, %v3230, %v3231
    %v3233 = vrot.slane %v3166, 2
    %v3234 = vrot.slane %v3167, 2
    %v3235 = vsel %vm838, %v3233, %v3234
    %v3236 = vrot.slane %v3168, 2
    %v3237 = vrot.slane %v3169, 2
    %v3238 = vsel %vm838, %v3236, %v3237
    %v3239 = vrot.slane %v3170, 2
    %v3240 = vrot.slane %v3171, 2
    %v3241 = vsel %vm838, %v3239, %v3240
    %v3270 = vadd.f32 %v3115, %v3202
    %v3271 = vadd.f32 %v3116, %v3201
    %v3272 = vadd.f32 %v3117, %v3205
    %v3273 = vadd.f32 %v3118, %v3204
    %v3274 = vadd.f32 %v3119, %v3208
    %v3275 = vadd.f32 %v3120, %v3207
    %v3276 = vadd.f32 %v3121, %v3211
    %v3277 = vadd.f32 %v3122, %v3210
    %v3278 = vadd.f32 %v3123, %v3214
    %v3279 = vadd.f32 %v3124, %v3213
    %v3280 = vadd.f32 %v3125, %v3217
    %v3281 = vadd.f32 %v3126, %v3216
    %v3282 = vadd.f32 %v3127, %v3220
    %v3283 = vadd.f32 %v3128, %v3219
    %v3284 = vadd.f32 %v3129, %v3223
    %v3285 = vadd.f32 %v3130, %v3222
    %v3286 = vadd.f32 %v3131, %v3226
    %v3287 = vadd.f32 %v3132, %v3225
    %v3288 = vadd.f32 %v3133, %v3229
    %v3289 = vadd.f32 %v3134, %v3228
    %v3290 = vadd.f32 %v3135, %v3232
    %v3291 = vadd.f32 %v3136, %v3231
    %v3292 = vadd.f32 %v3137, %v3235
    %v3293 = vadd.f32 %v3138, %v3234
    %v3294 = vadd.f32 %v3139, %v3238
    %v3295 = vadd.f32 %v3140, %v3237
    %v3296 = vadd.f32 %v3141, %v3241
    %v3297 = vadd.f32 %v3142, %v3240
    %v3298 = vstv %s100
    %v3299 = vadd.f32 %v3270, %v3298
    %v3300 = vadd.f32 %v3271, %v3298
    %v3301 = vadd.f32 %v3272, %v3298
    %v3302 = vadd.f32 %v3273, %v3298
    %v3303 = vadd.f32 %v3274, %v3298
    %v3304 = vadd.f32 %v3275, %v3298
    %v3305 = vadd.f32 %v3276, %v3298
    %v3306 = vadd.f32 %v3277, %v3298
    %v3307 = vadd.f32 %v3278, %v3298
    %v3308 = vadd.f32 %v3279, %v3298
    %v3309 = vadd.f32 %v3280, %v3298
    %v3310 = vadd.f32 %v3281, %v3298
    %v3311 = vadd.f32 %v3282, %v3298
    %v3312 = vadd.f32 %v3283, %v3298
    %v3313 = vadd.f32 %v3284, %v3298
    %v3314 = vadd.f32 %v3285, %v3298
    %v3315 = vadd.f32 %v3286, %v3298
    %v3316 = vadd.f32 %v3287, %v3298
    %v3317 = vadd.f32 %v3288, %v3298
    %v3318 = vadd.f32 %v3289, %v3298
    %v3319 = vadd.f32 %v3290, %v3298
    %v3320 = vadd.f32 %v3291, %v3298
    %v3321 = vadd.f32 %v3292, %v3298
    %v3322 = vadd.f32 %v3293, %v3298
    %v3323 = vadd.f32 %v3294, %v3298
    %v3324 = vadd.f32 %v3295, %v3298
    %v3325 = vadd.f32 %v3296, %v3298
    %v3326 = vadd.f32 %v3297, %v3298
    %v3327 = vmax.f32 %v3299, 0.0
    %v3328 = vmax.f32 %v3300, 0.0
    %v3329 = vmax.f32 %v3301, 0.0
    %v3330 = vmax.f32 %v3302, 0.0
    %v3331 = vmax.f32 %v3303, 0.0
    %v3332 = vmax.f32 %v3304, 0.0
    %v3333 = vmax.f32 %v3305, 0.0
    %v3334 = vmax.f32 %v3306, 0.0
    %v3335 = vmax.f32 %v3307, 0.0
    %v3336 = vmax.f32 %v3308, 0.0
    %v3337 = vmax.f32 %v3309, 0.0
    %v3338 = vmax.f32 %v3310, 0.0
    %v3339 = vmax.f32 %v3311, 0.0
    %v3340 = vmax.f32 %v3312, 0.0
    %v3341 = vmax.f32 %v3313, 0.0
    %v3342 = vmax.f32 %v3314, 0.0
    %v3343 = vmax.f32 %v3315, 0.0
    %v3344 = vmax.f32 %v3316, 0.0
    %v3345 = vmax.f32 %v3317, 0.0
    %v3346 = vmax.f32 %v3318, 0.0
    %v3347 = vmax.f32 %v3319, 0.0
    %v3348 = vmax.f32 %v3320, 0.0
    %v3349 = vmax.f32 %v3321, 0.0
    %v3350 = vmax.f32 %v3322, 0.0
    %v3351 = vmax.f32 %v3323, 0.0
    %v3352 = vmax.f32 %v3324, 0.0
    %v3353 = vmax.f32 %v3325, 0.0
    %v3354 = vmax.f32 %v3326, 0.0
    %v3355 = vstv %s112
    %v3356 = vmul.f32 %v3355, %v3327
    %v3357 = vmul.f32 %v3355, %v3328
    %v3358 = vmul.f32 %v3355, %v3329
    %v3359 = vmul.f32 %v3355, %v3330
    %v3360 = vmul.f32 %v3355, %v3331
    %v3361 = vmul.f32 %v3355, %v3332
    %v3362 = vmul.f32 %v3355, %v3333
    %v3363 = vmul.f32 %v3355, %v3334
    %v3364 = vmul.f32 %v3355, %v3335
    %v3365 = vmul.f32 %v3355, %v3336
    %v3366 = vmul.f32 %v3355, %v3337
    %v3367 = vmul.f32 %v3355, %v3338
    %v3368 = vmul.f32 %v3355, %v3339
    %v3369 = vmul.f32 %v3355, %v3340
    %v3370 = vmul.f32 %v3355, %v3341
    %v3371 = vmul.f32 %v3355, %v3342
    %v3372 = vmul.f32 %v3355, %v3343
    %v3373 = vmul.f32 %v3355, %v3344
    %v3374 = vmul.f32 %v3355, %v3345
    %v3375 = vmul.f32 %v3355, %v3346
    %v3376 = vmul.f32 %v3355, %v3347
    %v3377 = vmul.f32 %v3355, %v3348
    %v3378 = vmul.f32 %v3355, %v3349
    %v3379 = vmul.f32 %v3355, %v3350
    %v3380 = vadd.f32 %v2201, %v3356
    %v3381 = vadd.f32 %v2202, %v3357
    %v3382 = vadd.f32 %v2203, %v3358
    %v3383 = vadd.f32 %v2204, %v3359
    %v3384 = vadd.f32 %v2205, %v3360
    %v3385 = vadd.f32 %v2206, %v3361
    %v3386 = vadd.f32 %v2207, %v3362
    %v3387 = vadd.f32 %v2208, %v3363
    %v3388 = vadd.f32 %v2209, %v3364
    %v3389 = vadd.f32 %v2210, %v3365
    %v3390 = vadd.f32 %v2211, %v3366
    %v3391 = vadd.f32 %v2212, %v3367
    %v3392 = vadd.f32 %v2213, %v3368
    %v3393 = vadd.f32 %v2214, %v3369
    %v3394 = vadd.f32 %v2215, %v3370
    %v3395 = vadd.f32 %v2216, %v3371
    %v3396 = vadd.f32 %v2217, %v3372
    %v3397 = vadd.f32 %v2218, %v3373
    %v3398 = vadd.f32 %v2219, %v3374
    %v3399 = vadd.f32 %v2220, %v3375
    %v3400 = vadd.f32 %v2221, %v3376
    %v3401 = vadd.f32 %v2222, %v3377
    %v3402 = vadd.f32 %v2223, %v3378
    %v3403 = vadd.f32 %v2224, %v3379
    %v3404 = vstv %s115
    %v3405 = vmul.f32 %v3404, %v3329
    %v3406 = vmul.f32 %v3404, %v3330
    %v3407 = vmul.f32 %v3404, %v3331
    %v3408 = vmul.f32 %v3404, %v3332
    %v3409 = vmul.f32 %v3404, %v3333
    %v3410 = vmul.f32 %v3404, %v3334
    %v3411 = vmul.f32 %v3404, %v3335
    %v3412 = vmul.f32 %v3404, %v3336
    %v3413 = vmul.f32 %v3404, %v3337
    %v3414 = vmul.f32 %v3404, %v3338
    %v3415 = vmul.f32 %v3404, %v3339
    %v3416 = vmul.f32 %v3404, %v3340
    %v3417 = vmul.f32 %v3404, %v3341
    %v3418 = vmul.f32 %v3404, %v3342
    %v3419 = vmul.f32 %v3404, %v3343
    %v3420 = vmul.f32 %v3404, %v3344
    %v3421 = vmul.f32 %v3404, %v3345
    %v3422 = vmul.f32 %v3404, %v3346
    %v3423 = vmul.f32 %v3404, %v3347
    %v3424 = vmul.f32 %v3404, %v3348
    %v3425 = vmul.f32 %v3404, %v3349
    %v3426 = vmul.f32 %v3404, %v3350
    %v3427 = vmul.f32 %v3404, %v3351
    %v3428 = vmul.f32 %v3404, %v3352
    %v3429 = vadd.f32 %v3380, %v3405
    %v3430 = vadd.f32 %v3381, %v3406
    %v3431 = vadd.f32 %v3382, %v3407
    %v3432 = vadd.f32 %v3383, %v3408
    %v3433 = vadd.f32 %v3384, %v3409
    %v3434 = vadd.f32 %v3385, %v3410
    %v3435 = vadd.f32 %v3386, %v3411
    %v3436 = vadd.f32 %v3387, %v3412
    %v3437 = vadd.f32 %v3388, %v3413
    %v3438 = vadd.f32 %v3389, %v3414
    %v3439 = vadd.f32 %v3390, %v3415
    %v3440 = vadd.f32 %v3391, %v3416
    %v3441 = vadd.f32 %v3392, %v3417
    %v3442 = vadd.f32 %v3393, %v3418
    %v3443 = vadd.f32 %v3394, %v3419
    %v3444 = vadd.f32 %v3395, %v3420
    %v3445 = vadd.f32 %v3396, %v3421
    %v3446 = vadd.f32 %v3397, %v3422
    %v3447 = vadd.f32 %v3398, %v3423
    %v3448 = vadd.f32 %v3399, %v3424
    %v3449 = vadd.f32 %v3400, %v3425
    %v3450 = vadd.f32 %v3401, %v3426
    %v3451 = vadd.f32 %v3402, %v3427
    %v3452 = vadd.f32 %v3403, %v3428
    %v3453 = vstv %s118
    %v3454 = vmul.f32 %v3453, %v3331
    %v3455 = vmul.f32 %v3453, %v3332
    %v3456 = vmul.f32 %v3453, %v3333
    %v3457 = vmul.f32 %v3453, %v3334
    %v3458 = vmul.f32 %v3453, %v3335
    %v3459 = vmul.f32 %v3453, %v3336
    %v3460 = vmul.f32 %v3453, %v3337
    %v3461 = vmul.f32 %v3453, %v3338
    %v3462 = vmul.f32 %v3453, %v3339
    %v3463 = vmul.f32 %v3453, %v3340
    %v3464 = vmul.f32 %v3453, %v3341
    %v3465 = vmul.f32 %v3453, %v3342
    %v3466 = vmul.f32 %v3453, %v3343
    %v3467 = vmul.f32 %v3453, %v3344
    %v3468 = vmul.f32 %v3453, %v3345
    %v3469 = vmul.f32 %v3453, %v3346
    %v3470 = vmul.f32 %v3453, %v3347
    %v3471 = vmul.f32 %v3453, %v3348
    %v3472 = vmul.f32 %v3453, %v3349
    %v3473 = vmul.f32 %v3453, %v3350
    %v3474 = vmul.f32 %v3453, %v3351
    %v3475 = vmul.f32 %v3453, %v3352
    %v3476 = vmul.f32 %v3453, %v3353
    %v3477 = vmul.f32 %v3453, %v3354
    %v3478 = vadd.f32 %v3429, %v3454
    %v3479 = vadd.f32 %v3430, %v3455
    %v3480 = vadd.f32 %v3431, %v3456
    %v3481 = vadd.f32 %v3432, %v3457
    %v3482 = vadd.f32 %v3433, %v3458
    %v3483 = vadd.f32 %v3434, %v3459
    %v3484 = vadd.f32 %v3435, %v3460
    %v3485 = vadd.f32 %v3436, %v3461
    %v3486 = vadd.f32 %v3437, %v3462
    %v3487 = vadd.f32 %v3438, %v3463
    %v3488 = vadd.f32 %v3439, %v3464
    %v3489 = vadd.f32 %v3440, %v3465
    %v3490 = vadd.f32 %v3441, %v3466
    %v3491 = vadd.f32 %v3442, %v3467
    %v3492 = vadd.f32 %v3443, %v3468
    %v3493 = vadd.f32 %v3444, %v3469
    %v3494 = vadd.f32 %v3445, %v3470
    %v3495 = vadd.f32 %v3446, %v3471
    %v3496 = vadd.f32 %v3447, %v3472
    %v3497 = vadd.f32 %v3448, %v3473
    %v3498 = vadd.f32 %v3449, %v3474
    %v3499 = vadd.f32 %v3450, %v3475
    %v3500 = vadd.f32 %v3451, %v3476
    %v3501 = vadd.f32 %v3452, %v3477
    %v3502 = vstv %s113
    %v3503 = vmul.f32 %v3502, %v3327
    %v3504 = vmul.f32 %v3502, %v3328
    %v3505 = vmul.f32 %v3502, %v3329
    %v3506 = vmul.f32 %v3502, %v3330
    %v3507 = vmul.f32 %v3502, %v3331
    %v3508 = vmul.f32 %v3502, %v3332
    %v3509 = vmul.f32 %v3502, %v3333
    %v3510 = vmul.f32 %v3502, %v3334
    %v3511 = vmul.f32 %v3502, %v3335
    %v3512 = vmul.f32 %v3502, %v3336
    %v3513 = vmul.f32 %v3502, %v3337
    %v3514 = vmul.f32 %v3502, %v3338
    %v3515 = vmul.f32 %v3502, %v3339
    %v3516 = vmul.f32 %v3502, %v3340
    %v3517 = vmul.f32 %v3502, %v3341
    %v3518 = vmul.f32 %v3502, %v3342
    %v3519 = vmul.f32 %v3502, %v3343
    %v3520 = vmul.f32 %v3502, %v3344
    %v3521 = vmul.f32 %v3502, %v3345
    %v3522 = vmul.f32 %v3502, %v3346
    %v3523 = vmul.f32 %v3502, %v3347
    %v3524 = vmul.f32 %v3502, %v3348
    %v3525 = vmul.f32 %v3502, %v3349
    %v3526 = vmul.f32 %v3502, %v3350
    %v3551 = vrot.slane %v3503, 1
    %v3552 = vrot.slane %v3504, 1
    %v3553 = vsel %vm372, %v3551, %v3552
    %v3554 = vrot.slane %v3505, 1
    %v3555 = vrot.slane %v3506, 1
    %v3556 = vsel %vm372, %v3554, %v3555
    %v3557 = vrot.slane %v3507, 1
    %v3558 = vrot.slane %v3508, 1
    %v3559 = vsel %vm372, %v3557, %v3558
    %v3560 = vrot.slane %v3509, 1
    %v3561 = vrot.slane %v3510, 1
    %v3562 = vsel %vm372, %v3560, %v3561
    %v3563 = vrot.slane %v3511, 1
    %v3564 = vrot.slane %v3512, 1
    %v3565 = vsel %vm372, %v3563, %v3564
    %v3566 = vrot.slane %v3513, 1
    %v3567 = vrot.slane %v3514, 1
    %v3568 = vsel %vm372, %v3566, %v3567
    %v3569 = vrot.slane %v3515, 1
    %v3570 = vrot.slane %v3516, 1
    %v3571 = vsel %vm372, %v3569, %v3570
    %v3572 = vrot.slane %v3517, 1
    %v3573 = vrot.slane %v3518, 1
    %v3574 = vsel %vm372, %v3572, %v3573
    %v3575 = vrot.slane %v3519, 1
    %v3576 = vrot.slane %v3520, 1
    %v3577 = vsel %vm372, %v3575, %v3576
    %v3578 = vrot.slane %v3521, 1
    %v3579 = vrot.slane %v3522, 1
    %v3580 = vsel %vm372, %v3578, %v3579
    %v3581 = vrot.slane %v3523, 1
    %v3582 = vrot.slane %v3524, 1
    %v3583 = vsel %vm372, %v3581, %v3582
    %v3584 = vrot.slane %v3525, 1
    %v3585 = vrot.slane %v3526, 1
    %v3586 = vsel %vm372, %v3584, %v3585
    %v3611 = vadd.f32 %v3478, %v3553
    %v3612 = vadd.f32 %v3479, %v3552
    %v3613 = vadd.f32 %v3480, %v3556
    %v3614 = vadd.f32 %v3481, %v3555
    %v3615 = vadd.f32 %v3482, %v3559
    %v3616 = vadd.f32 %v3483, %v3558
    %v3617 = vadd.f32 %v3484, %v3562
    %v3618 = vadd.f32 %v3485, %v3561
    %v3619 = vadd.f32 %v3486, %v3565
    %v3620 = vadd.f32 %v3487, %v3564
    %v3621 = vadd.f32 %v3488, %v3568
    %v3622 = vadd.f32 %v3489, %v3567
    %v3623 = vadd.f32 %v3490, %v3571
    %v3624 = vadd.f32 %v3491, %v3570
    %v3625 = vadd.f32 %v3492, %v3574
    %v3626 = vadd.f32 %v3493, %v3573
    %v3627 = vadd.f32 %v3494, %v3577
    %v3628 = vadd.f32 %v3495, %v3576
    %v3629 = vadd.f32 %v3496, %v3580
    %v3630 = vadd.f32 %v3497, %v3579
    %v3631 = vadd.f32 %v3498, %v3583
    %v3632 = vadd.f32 %v3499, %v3582
    %v3633 = vadd.f32 %v3500, %v3586
    %v3634 = vadd.f32 %v3501, %v3585
    %v3635 = vstv %s116
    %v3636 = vmul.f32 %v3635, %v3329
    %v3637 = vmul.f32 %v3635, %v3330
    %v3638 = vmul.f32 %v3635, %v3331
    %v3639 = vmul.f32 %v3635, %v3332
    %v3640 = vmul.f32 %v3635, %v3333
    %v3641 = vmul.f32 %v3635, %v3334
    %v3642 = vmul.f32 %v3635, %v3335
    %v3643 = vmul.f32 %v3635, %v3336
    %v3644 = vmul.f32 %v3635, %v3337
    %v3645 = vmul.f32 %v3635, %v3338
    %v3646 = vmul.f32 %v3635, %v3339
    %v3647 = vmul.f32 %v3635, %v3340
    %v3648 = vmul.f32 %v3635, %v3341
    %v3649 = vmul.f32 %v3635, %v3342
    %v3650 = vmul.f32 %v3635, %v3343
    %v3651 = vmul.f32 %v3635, %v3344
    %v3652 = vmul.f32 %v3635, %v3345
    %v3653 = vmul.f32 %v3635, %v3346
    %v3654 = vmul.f32 %v3635, %v3347
    %v3655 = vmul.f32 %v3635, %v3348
    %v3656 = vmul.f32 %v3635, %v3349
    %v3657 = vmul.f32 %v3635, %v3350
    %v3658 = vmul.f32 %v3635, %v3351
    %v3659 = vmul.f32 %v3635, %v3352
    %v3684 = vrot.slane %v3636, 1
    %v3685 = vrot.slane %v3637, 1
    %v3686 = vsel %vm372, %v3684, %v3685
    %v3687 = vrot.slane %v3638, 1
    %v3688 = vrot.slane %v3639, 1
    %v3689 = vsel %vm372, %v3687, %v3688
    %v3690 = vrot.slane %v3640, 1
    %v3691 = vrot.slane %v3641, 1
    %v3692 = vsel %vm372, %v3690, %v3691
    %v3693 = vrot.slane %v3642, 1
    %v3694 = vrot.slane %v3643, 1
    %v3695 = vsel %vm372, %v3693, %v3694
    %v3696 = vrot.slane %v3644, 1
    %v3697 = vrot.slane %v3645, 1
    %v3698 = vsel %vm372, %v3696, %v3697
    %v3699 = vrot.slane %v3646, 1
    %v3700 = vrot.slane %v3647, 1
    %v3701 = vsel %vm372, %v3699, %v3700
    %v3702 = vrot.slane %v3648, 1
    %v3703 = vrot.slane %v3649, 1
    %v3704 = vsel %vm372, %v3702, %v3703
    %v3705 = vrot.slane %v3650, 1
    %v3706 = vrot.slane %v3651, 1
    %v3707 = vsel %vm372, %v3705, %v3706
    %v3708 = vrot.slane %v3652, 1
    %v3709 = vrot.slane %v3653, 1
    %v3710 = vsel %vm372, %v3708, %v3709
    %v3711 = vrot.slane %v3654, 1
    %v3712 = vrot.slane %v3655, 1
    %v3713 = vsel %vm372, %v3711, %v3712
    %v3714 = vrot.slane %v3656, 1
    %v3715 = vrot.slane %v3657, 1
    %v3716 = vsel %vm372, %v3714, %v3715
    %v3717 = vrot.slane %v3658, 1
    %v3718 = vrot.slane %v3659, 1
    %v3719 = vsel %vm372, %v3717, %v3718
    %v3744 = vadd.f32 %v3611, %v3686
    %v3745 = vadd.f32 %v3612, %v3685
    %v3746 = vadd.f32 %v3613, %v3689
    %v3747 = vadd.f32 %v3614, %v3688
    %v3748 = vadd.f32 %v3615, %v3692
    %v3749 = vadd.f32 %v3616, %v3691
    %v3750 = vadd.f32 %v3617, %v3695
    %v3751 = vadd.f32 %v3618, %v3694
    %v3752 = vadd.f32 %v3619, %v3698
    %v3753 = vadd.f32 %v3620, %v3697
    %v3754 = vadd.f32 %v3621, %v3701
    %v3755 = vadd.f32 %v3622, %v3700
    %v3756 = vadd.f32 %v3623, %v3704
    %v3757 = vadd.f32 %v3624, %v3703
    %v3758 = vadd.f32 %v3625, %v3707
    %v3759 = vadd.f32 %v3626, %v3706
    %v3760 = vadd.f32 %v3627, %v3710
    %v3761 = vadd.f32 %v3628, %v3709
    %v3762 = vadd.f32 %v3629, %v3713
    %v3763 = vadd.f32 %v3630, %v3712
    %v3764 = vadd.f32 %v3631, %v3716
    %v3765 = vadd.f32 %v3632, %v3715
    %v3766 = vadd.f32 %v3633, %v3719
    %v3767 = vadd.f32 %v3634, %v3718
    %v3768 = vstv %s119
    %v3769 = vmul.f32 %v3768, %v3331
    %v3770 = vmul.f32 %v3768, %v3332
    %v3771 = vmul.f32 %v3768, %v3333
    %v3772 = vmul.f32 %v3768, %v3334
    %v3773 = vmul.f32 %v3768, %v3335
    %v3774 = vmul.f32 %v3768, %v3336
    %v3775 = vmul.f32 %v3768, %v3337
    %v3776 = vmul.f32 %v3768, %v3338
    %v3777 = vmul.f32 %v3768, %v3339
    %v3778 = vmul.f32 %v3768, %v3340
    %v3779 = vmul.f32 %v3768, %v3341
    %v3780 = vmul.f32 %v3768, %v3342
    %v3781 = vmul.f32 %v3768, %v3343
    %v3782 = vmul.f32 %v3768, %v3344
    %v3783 = vmul.f32 %v3768, %v3345
    %v3784 = vmul.f32 %v3768, %v3346
    %v3785 = vmul.f32 %v3768, %v3347
    %v3786 = vmul.f32 %v3768, %v3348
    %v3787 = vmul.f32 %v3768, %v3349
    %v3788 = vmul.f32 %v3768, %v3350
    %v3789 = vmul.f32 %v3768, %v3351
    %v3790 = vmul.f32 %v3768, %v3352
    %v3791 = vmul.f32 %v3768, %v3353
    %v3792 = vmul.f32 %v3768, %v3354
    %v3817 = vrot.slane %v3769, 1
    %v3818 = vrot.slane %v3770, 1
    %v3819 = vsel %vm372, %v3817, %v3818
    %v3820 = vrot.slane %v3771, 1
    %v3821 = vrot.slane %v3772, 1
    %v3822 = vsel %vm372, %v3820, %v3821
    %v3823 = vrot.slane %v3773, 1
    %v3824 = vrot.slane %v3774, 1
    %v3825 = vsel %vm372, %v3823, %v3824
    %v3826 = vrot.slane %v3775, 1
    %v3827 = vrot.slane %v3776, 1
    %v3828 = vsel %vm372, %v3826, %v3827
    %v3829 = vrot.slane %v3777, 1
    %v3830 = vrot.slane %v3778, 1
    %v3831 = vsel %vm372, %v3829, %v3830
    %v3832 = vrot.slane %v3779, 1
    %v3833 = vrot.slane %v3780, 1
    %v3834 = vsel %vm372, %v3832, %v3833
    %v3835 = vrot.slane %v3781, 1
    %v3836 = vrot.slane %v3782, 1
    %v3837 = vsel %vm372, %v3835, %v3836
    %v3838 = vrot.slane %v3783, 1
    %v3839 = vrot.slane %v3784, 1
    %v3840 = vsel %vm372, %v3838, %v3839
    %v3841 = vrot.slane %v3785, 1
    %v3842 = vrot.slane %v3786, 1
    %v3843 = vsel %vm372, %v3841, %v3842
    %v3844 = vrot.slane %v3787, 1
    %v3845 = vrot.slane %v3788, 1
    %v3846 = vsel %vm372, %v3844, %v3845
    %v3847 = vrot.slane %v3789, 1
    %v3848 = vrot.slane %v3790, 1
    %v3849 = vsel %vm372, %v3847, %v3848
    %v3850 = vrot.slane %v3791, 1
    %v3851 = vrot.slane %v3792, 1
    %v3852 = vsel %vm372, %v3850, %v3851
    %v3877 = vadd.f32 %v3744, %v3819
    %v3878 = vadd.f32 %v3745, %v3818
    %v3879 = vadd.f32 %v3746, %v3822
    %v3880 = vadd.f32 %v3747, %v3821
    %v3881 = vadd.f32 %v3748, %v3825
    %v3882 = vadd.f32 %v3749, %v3824
    %v3883 = vadd.f32 %v3750, %v3828
    %v3884 = vadd.f32 %v3751, %v3827
    %v3885 = vadd.f32 %v3752, %v3831
    %v3886 = vadd.f32 %v3753, %v3830
    %v3887 = vadd.f32 %v3754, %v3834
    %v3888 = vadd.f32 %v3755, %v3833
    %v3889 = vadd.f32 %v3756, %v3837
    %v3890 = vadd.f32 %v3757, %v3836
    %v3891 = vadd.f32 %v3758, %v3840
    %v3892 = vadd.f32 %v3759, %v3839
    %v3893 = vadd.f32 %v3760, %v3843
    %v3894 = vadd.f32 %v3761, %v3842
    %v3895 = vadd.f32 %v3762, %v3846
    %v3896 = vadd.f32 %v3763, %v3845
    %v3897 = vadd.f32 %v3764, %v3849
    %v3898 = vadd.f32 %v3765, %v3848
    %v3899 = vadd.f32 %v3766, %v3852
    %v3900 = vadd.f32 %v3767, %v3851
    %v3901 = vstv %s114
    %v3902 = vmul.f32 %v3901, %v3327
    %v3903 = vmul.f32 %v3901, %v3328
    %v3904 = vmul.f32 %v3901, %v3329
    %v3905 = vmul.f32 %v3901, %v3330
    %v3906 = vmul.f32 %v3901, %v3331
    %v3907 = vmul.f32 %v3901, %v3332
    %v3908 = vmul.f32 %v3901, %v3333
    %v3909 = vmul.f32 %v3901, %v3334
    %v3910 = vmul.f32 %v3901, %v3335
    %v3911 = vmul.f32 %v3901, %v3336
    %v3912 = vmul.f32 %v3901, %v3337
    %v3913 = vmul.f32 %v3901, %v3338
    %v3914 = vmul.f32 %v3901, %v3339
    %v3915 = vmul.f32 %v3901, %v3340
    %v3916 = vmul.f32 %v3901, %v3341
    %v3917 = vmul.f32 %v3901, %v3342
    %v3918 = vmul.f32 %v3901, %v3343
    %v3919 = vmul.f32 %v3901, %v3344
    %v3920 = vmul.f32 %v3901, %v3345
    %v3921 = vmul.f32 %v3901, %v3346
    %v3922 = vmul.f32 %v3901, %v3347
    %v3923 = vmul.f32 %v3901, %v3348
    %v3924 = vmul.f32 %v3901, %v3349
    %v3925 = vmul.f32 %v3901, %v3350
    %v3950 = vrot.slane %v3902, 2
    %v3951 = vrot.slane %v3903, 2
    %v3952 = vsel %vm838, %v3950, %v3951
    %v3953 = vrot.slane %v3904, 2
    %v3954 = vrot.slane %v3905, 2
    %v3955 = vsel %vm838, %v3953, %v3954
    %v3956 = vrot.slane %v3906, 2
    %v3957 = vrot.slane %v3907, 2
    %v3958 = vsel %vm838, %v3956, %v3957
    %v3959 = vrot.slane %v3908, 2
    %v3960 = vrot.slane %v3909, 2
    %v3961 = vsel %vm838, %v3959, %v3960
    %v3962 = vrot.slane %v3910, 2
    %v3963 = vrot.slane %v3911, 2
    %v3964 = vsel %vm838, %v3962, %v3963
    %v3965 = vrot.slane %v3912, 2
    %v3966 = vrot.slane %v3913, 2
    %v3967 = vsel %vm838, %v3965, %v3966
    %v3968 = vrot.slane %v3914, 2
    %v3969 = vrot.slane %v3915, 2
    %v3970 = vsel %vm838, %v3968, %v3969
    %v3971 = vrot.slane %v3916, 2
    %v3972 = vrot.slane %v3917, 2
    %v3973 = vsel %vm838, %v3971, %v3972
    %v3974 = vrot.slane %v3918, 2
    %v3975 = vrot.slane %v3919, 2
    %v3976 = vsel %vm838, %v3974, %v3975
    %v3977 = vrot.slane %v3920, 2
    %v3978 = vrot.slane %v3921, 2
    %v3979 = vsel %vm838, %v3977, %v3978
    %v3980 = vrot.slane %v3922, 2
    %v3981 = vrot.slane %v3923, 2
    %v3982 = vsel %vm838, %v3980, %v3981
    %v3983 = vrot.slane %v3924, 2
    %v3984 = vrot.slane %v3925, 2
    %v3985 = vsel %vm838, %v3983, %v3984
    %v4010 = vadd.f32 %v3877, %v3952
    %v4011 = vadd.f32 %v3878, %v3951
    %v4012 = vadd.f32 %v3879, %v3955
    %v4013 = vadd.f32 %v3880, %v3954
    %v4014 = vadd.f32 %v3881, %v3958
    %v4015 = vadd.f32 %v3882, %v3957
    %v4016 = vadd.f32 %v3883, %v3961
    %v4017 = vadd.f32 %v3884, %v3960
    %v4018 = vadd.f32 %v3885, %v3964
    %v4019 = vadd.f32 %v3886, %v3963
    %v4020 = vadd.f32 %v3887, %v3967
    %v4021 = vadd.f32 %v3888, %v3966
    %v4022 = vadd.f32 %v3889, %v3970
    %v4023 = vadd.f32 %v3890, %v3969
    %v4024 = vadd.f32 %v3891, %v3973
    %v4025 = vadd.f32 %v3892, %v3972
    %v4026 = vadd.f32 %v3893, %v3976
    %v4027 = vadd.f32 %v3894, %v3975
    %v4028 = vadd.f32 %v3895, %v3979
    %v4029 = vadd.f32 %v3896, %v3978
    %v4030 = vadd.f32 %v3897, %v3982
    %v4031 = vadd.f32 %v3898, %v3981
    %v4032 = vadd.f32 %v3899, %v3985
    %v4033 = vadd.f32 %v3900, %v3984
    %v4034 = vstv %s117
    %v4035 = vmul.f32 %v4034, %v3329
    %v4036 = vmul.f32 %v4034, %v3330
    %v4037 = vmul.f32 %v4034, %v3331
    %v4038 = vmul.f32 %v4034, %v3332
    %v4039 = vmul.f32 %v4034, %v3333
    %v4040 = vmul.f32 %v4034, %v3334
    %v4041 = vmul.f32 %v4034, %v3335
    %v4042 = vmul.f32 %v4034, %v3336
    %v4043 = vmul.f32 %v4034, %v3337
    %v4044 = vmul.f32 %v4034, %v3338
    %v4045 = vmul.f32 %v4034, %v3339
    %v4046 = vmul.f32 %v4034, %v3340
    %v4047 = vmul.f32 %v4034, %v3341
    %v4048 = vmul.f32 %v4034, %v3342
    %v4049 = vmul.f32 %v4034, %v3343
    %v4050 = vmul.f32 %v4034, %v3344
    %v4051 = vmul.f32 %v4034, %v3345
    %v4052 = vmul.f32 %v4034, %v3346
    %v4053 = vmul.f32 %v4034, %v3347
    %v4054 = vmul.f32 %v4034, %v3348
    %v4055 = vmul.f32 %v4034, %v3349
    %v4056 = vmul.f32 %v4034, %v3350
    %v4057 = vmul.f32 %v4034, %v3351
    %v4058 = vmul.f32 %v4034, %v3352
    %v4083 = vrot.slane %v4035, 2
    %v4084 = vrot.slane %v4036, 2
    %v4085 = vsel %vm838, %v4083, %v4084
    %v4086 = vrot.slane %v4037, 2
    %v4087 = vrot.slane %v4038, 2
    %v4088 = vsel %vm838, %v4086, %v4087
    %v4089 = vrot.slane %v4039, 2
    %v4090 = vrot.slane %v4040, 2
    %v4091 = vsel %vm838, %v4089, %v4090
    %v4092 = vrot.slane %v4041, 2
    %v4093 = vrot.slane %v4042, 2
    %v4094 = vsel %vm838, %v4092, %v4093
    %v4095 = vrot.slane %v4043, 2
    %v4096 = vrot.slane %v4044, 2
    %v4097 = vsel %vm838, %v4095, %v4096
    %v4098 = vrot.slane %v4045, 2
    %v4099 = vrot.slane %v4046, 2
    %v4100 = vsel %vm838, %v4098, %v4099
    %v4101 = vrot.slane %v4047, 2
    %v4102 = vrot.slane %v4048, 2
    %v4103 = vsel %vm838, %v4101, %v4102
    %v4104 = vrot.slane %v4049, 2
    %v4105 = vrot.slane %v4050, 2
    %v4106 = vsel %vm838, %v4104, %v4105
    %v4107 = vrot.slane %v4051, 2
    %v4108 = vrot.slane %v4052, 2
    %v4109 = vsel %vm838, %v4107, %v4108
    %v4110 = vrot.slane %v4053, 2
    %v4111 = vrot.slane %v4054, 2
    %v4112 = vsel %vm838, %v4110, %v4111
    %v4113 = vrot.slane %v4055, 2
    %v4114 = vrot.slane %v4056, 2
    %v4115 = vsel %vm838, %v4113, %v4114
    %v4116 = vrot.slane %v4057, 2
    %v4117 = vrot.slane %v4058, 2
    %v4118 = vsel %vm838, %v4116, %v4117
    %v4143 = vadd.f32 %v4010, %v4085
    %v4144 = vadd.f32 %v4011, %v4084
    %v4145 = vadd.f32 %v4012, %v4088
    %v4146 = vadd.f32 %v4013, %v4087
    %v4147 = vadd.f32 %v4014, %v4091
    %v4148 = vadd.f32 %v4015, %v4090
    %v4149 = vadd.f32 %v4016, %v4094
    %v4150 = vadd.f32 %v4017, %v4093
    %v4151 = vadd.f32 %v4018, %v4097
    %v4152 = vadd.f32 %v4019, %v4096
    %v4153 = vadd.f32 %v4020, %v4100
    %v4154 = vadd.f32 %v4021, %v4099
    %v4155 = vadd.f32 %v4022, %v4103
    %v4156 = vadd.f32 %v4023, %v4102
    %v4157 = vadd.f32 %v4024, %v4106
    %v4158 = vadd.f32 %v4025, %v4105
    %v4159 = vadd.f32 %v4026, %v4109
    %v4160 = vadd.f32 %v4027, %v4108
    %v4161 = vadd.f32 %v4028, %v4112
    %v4162 = vadd.f32 %v4029, %v4111
    %v4163 = vadd.f32 %v4030, %v4115
    %v4164 = vadd.f32 %v4031, %v4114
    %v4165 = vadd.f32 %v4032, %v4118
    %v4166 = vadd.f32 %v4033, %v4117
    %v4167 = vstv %s120
    %v4168 = vmul.f32 %v4167, %v3331
    %v4169 = vmul.f32 %v4167, %v3332
    %v4170 = vmul.f32 %v4167, %v3333
    %v4171 = vmul.f32 %v4167, %v3334
    %v4172 = vmul.f32 %v4167, %v3335
    %v4173 = vmul.f32 %v4167, %v3336
    %v4174 = vmul.f32 %v4167, %v3337
    %v4175 = vmul.f32 %v4167, %v3338
    %v4176 = vmul.f32 %v4167, %v3339
    %v4177 = vmul.f32 %v4167, %v3340
    %v4178 = vmul.f32 %v4167, %v3341
    %v4179 = vmul.f32 %v4167, %v3342
    %v4180 = vmul.f32 %v4167, %v3343
    %v4181 = vmul.f32 %v4167, %v3344
    %v4182 = vmul.f32 %v4167, %v3345
    %v4183 = vmul.f32 %v4167, %v3346
    %v4184 = vmul.f32 %v4167, %v3347
    %v4185 = vmul.f32 %v4167, %v3348
    %v4186 = vmul.f32 %v4167, %v3349
    %v4187 = vmul.f32 %v4167, %v3350
    %v4188 = vmul.f32 %v4167, %v3351
    %v4189 = vmul.f32 %v4167, %v3352
    %v4190 = vmul.f32 %v4167, %v3353
    %v4191 = vmul.f32 %v4167, %v3354
    %v4216 = vrot.slane %v4168, 2
    %v4217 = vrot.slane %v4169, 2
    %v4218 = vsel %vm838, %v4216, %v4217
    %v4219 = vrot.slane %v4170, 2
    %v4220 = vrot.slane %v4171, 2
    %v4221 = vsel %vm838, %v4219, %v4220
    %v4222 = vrot.slane %v4172, 2
    %v4223 = vrot.slane %v4173, 2
    %v4224 = vsel %vm838, %v4222, %v4223
    %v4225 = vrot.slane %v4174, 2
    %v4226 = vrot.slane %v4175, 2
    %v4227 = vsel %vm838, %v4225, %v4226
    %v4228 = vrot.slane %v4176, 2
    %v4229 = vrot.slane %v4177, 2
    %v4230 = vsel %vm838, %v4228, %v4229
    %v4231 = vrot.slane %v4178, 2
    %v4232 = vrot.slane %v4179, 2
    %v4233 = vsel %vm838, %v4231, %v4232
    %v4234 = vrot.slane %v4180, 2
    %v4235 = vrot.slane %v4181, 2
    %v4236 = vsel %vm838, %v4234, %v4235
    %v4237 = vrot.slane %v4182, 2
    %v4238 = vrot.slane %v4183, 2
    %v4239 = vsel %vm838, %v4237, %v4238
    %v4240 = vrot.slane %v4184, 2
    %v4241 = vrot.slane %v4185, 2
    %v4242 = vsel %vm838, %v4240, %v4241
    %v4243 = vrot.slane %v4186, 2
    %v4244 = vrot.slane %v4187, 2
    %v4245 = vsel %vm838, %v4243, %v4244
    %v4246 = vrot.slane %v4188, 2
    %v4247 = vrot.slane %v4189, 2
    %v4248 = vsel %vm838, %v4246, %v4247
    %v4249 = vrot.slane %v4190, 2
    %v4250 = vrot.slane %v4191, 2
    %v4251 = vsel %vm838, %v4249, %v4250
    %v4276 = vadd.f32 %v4143, %v4218
    %v4277 = vadd.f32 %v4144, %v4217
    %v4278 = vadd.f32 %v4145, %v4221
    %v4279 = vadd.f32 %v4146, %v4220
    %v4280 = vadd.f32 %v4147, %v4224
    %v4281 = vadd.f32 %v4148, %v4223
    %v4282 = vadd.f32 %v4149, %v4227
    %v4283 = vadd.f32 %v4150, %v4226
    %v4284 = vadd.f32 %v4151, %v4230
    %v4285 = vadd.f32 %v4152, %v4229
    %v4286 = vadd.f32 %v4153, %v4233
    %v4287 = vadd.f32 %v4154, %v4232
    %v4288 = vadd.f32 %v4155, %v4236
    %v4289 = vadd.f32 %v4156, %v4235
    %v4290 = vadd.f32 %v4157, %v4239
    %v4291 = vadd.f32 %v4158, %v4238
    %v4292 = vadd.f32 %v4159, %v4242
    %v4293 = vadd.f32 %v4160, %v4241
    %v4294 = vadd.f32 %v4161, %v4245
    %v4295 = vadd.f32 %v4162, %v4244
    %v4296 = vadd.f32 %v4163, %v4248
    %v4297 = vadd.f32 %v4164, %v4247
    %v4298 = vadd.f32 %v4165, %v4251
    %v4299 = vadd.f32 %v4166, %v4250
    %v4300 = vstv %s81
    %v4301 = vmul.f32 %v4300, %v140
    %v4302 = vmul.f32 %v4300, %v141
    %v4303 = vmul.f32 %v4300, %v142
    %v4304 = vmul.f32 %v4300, %v143
    %v4305 = vmul.f32 %v4300, %v144
    %v4306 = vmul.f32 %v4300, %v145
    %v4307 = vmul.f32 %v4300, %v146
    %v4308 = vmul.f32 %v4300, %v147
    %v4309 = vmul.f32 %v4300, %v148
    %v4310 = vmul.f32 %v4300, %v149
    %v4311 = vmul.f32 %v4300, %v150
    %v4312 = vmul.f32 %v4300, %v151
    %v4313 = vmul.f32 %v4300, %v152
    %v4314 = vmul.f32 %v4300, %v153
    %v4315 = vmul.f32 %v4300, %v154
    %v4316 = vmul.f32 %v4300, %v155
    %v4317 = vmul.f32 %v4300, %v156
    %v4318 = vmul.f32 %v4300, %v157
    %v4319 = vmul.f32 %v4300, %v158
    %v4320 = vmul.f32 %v4300, %v159
    %v4321 = vmul.f32 %v4300, %v160
    %v4322 = vmul.f32 %v4300, %v161
    %v4323 = vmul.f32 %v4300, %v162
    %v4324 = vmul.f32 %v4300, %v163
    %v4325 = vmul.f32 %v4300, %v164
    %v4326 = vmul.f32 %v4300, %v165
    %v4327 = vmul.f32 %v4300, %v166
    %v4328 = vmul.f32 %v4300, %v167
    %v4329 = vstv %s84
    %v4330 = vmul.f32 %v4329, %v142
    %v4331 = vmul.f32 %v4329, %v143
    %v4332 = vmul.f32 %v4329, %v144
    %v4333 = vmul.f32 %v4329, %v145
    %v4334 = vmul.f32 %v4329, %v146
    %v4335 = vmul.f32 %v4329, %v147
    %v4336 = vmul.f32 %v4329, %v148
    %v4337 = vmul.f32 %v4329, %v149
    %v4338 = vmul.f32 %v4329, %v150
    %v4339 = vmul.f32 %v4329, %v151
    %v4340 = vmul.f32 %v4329, %v152
    %v4341 = vmul.f32 %v4329, %v153
    %v4342 = vmul.f32 %v4329, %v154
    %v4343 = vmul.f32 %v4329, %v155
    %v4344 = vmul.f32 %v4329, %v156
    %v4345 = vmul.f32 %v4329, %v157
    %v4346 = vmul.f32 %v4329, %v158
    %v4347 = vmul.f32 %v4329, %v159
    %v4348 = vmul.f32 %v4329, %v160
    %v4349 = vmul.f32 %v4329, %v161
    %v4350 = vmul.f32 %v4329, %v162
    %v4351 = vmul.f32 %v4329, %v163
    %v4352 = vmul.f32 %v4329, %v164
    %v4353 = vmul.f32 %v4329, %v165
    %v4354 = vmul.f32 %v4329, %v166
    %v4355 = vmul.f32 %v4329, %v167
    %v4356 = vmul.f32 %v4329, %v168
    %v4357 = vmul.f32 %v4329, %v169
    %v4358 = vadd.f32 %v4301, %v4330
    %v4359 = vadd.f32 %v4302, %v4331
    %v4360 = vadd.f32 %v4303, %v4332
    %v4361 = vadd.f32 %v4304, %v4333
    %v4362 = vadd.f32 %v4305, %v4334
    %v4363 = vadd.f32 %v4306, %v4335
    %v4364 = vadd.f32 %v4307, %v4336
    %v4365 = vadd.f32 %v4308, %v4337
    %v4366 = vadd.f32 %v4309, %v4338
    %v4367 = vadd.f32 %v4310, %v4339
    %v4368 = vadd.f32 %v4311, %v4340
    %v4369 = vadd.f32 %v4312, %v4341
    %v4370 = vadd.f32 %v4313, %v4342
    %v4371 = vadd.f32 %v4314, %v4343
    %v4372 = vadd.f32 %v4315, %v4344
    %v4373 = vadd.f32 %v4316, %v4345
    %v4374 = vadd.f32 %v4317, %v4346
    %v4375 = vadd.f32 %v4318, %v4347
    %v4376 = vadd.f32 %v4319, %v4348
    %v4377 = vadd.f32 %v4320, %v4349
    %v4378 = vadd.f32 %v4321, %v4350
    %v4379 = vadd.f32 %v4322, %v4351
    %v4380 = vadd.f32 %v4323, %v4352
    %v4381 = vadd.f32 %v4324, %v4353
    %v4382 = vadd.f32 %v4325, %v4354
    %v4383 = vadd.f32 %v4326, %v4355
    %v4384 = vadd.f32 %v4327, %v4356
    %v4385 = vadd.f32 %v4328, %v4357
    %v4386 = vstv %s87
    %v4387 = vmul.f32 %v4386, %v144
    %v4388 = vmul.f32 %v4386, %v145
    %v4389 = vmul.f32 %v4386, %v146
    %v4390 = vmul.f32 %v4386, %v147
    %v4391 = vmul.f32 %v4386, %v148
    %v4392 = vmul.f32 %v4386, %v149
    %v4393 = vmul.f32 %v4386, %v150
    %v4394 = vmul.f32 %v4386, %v151
    %v4395 = vmul.f32 %v4386, %v152
    %v4396 = vmul.f32 %v4386, %v153
    %v4397 = vmul.f32 %v4386, %v154
    %v4398 = vmul.f32 %v4386, %v155
    %v4399 = vmul.f32 %v4386, %v156
    %v4400 = vmul.f32 %v4386, %v157
    %v4401 = vmul.f32 %v4386, %v158
    %v4402 = vmul.f32 %v4386, %v159
    %v4403 = vmul.f32 %v4386, %v160
    %v4404 = vmul.f32 %v4386, %v161
    %v4405 = vmul.f32 %v4386, %v162
    %v4406 = vmul.f32 %v4386, %v163
    %v4407 = vmul.f32 %v4386, %v164
    %v4408 = vmul.f32 %v4386, %v165
    %v4409 = vmul.f32 %v4386, %v166
    %v4410 = vmul.f32 %v4386, %v167
    %v4411 = vmul.f32 %v4386, %v168
    %v4412 = vmul.f32 %v4386, %v169
    %v4413 = vmul.f32 %v4386, %v170
    %v4414 = vmul.f32 %v4386, %v171
    %v4415 = vadd.f32 %v4358, %v4387
    %v4416 = vadd.f32 %v4359, %v4388
    %v4417 = vadd.f32 %v4360, %v4389
    %v4418 = vadd.f32 %v4361, %v4390
    %v4419 = vadd.f32 %v4362, %v4391
    %v4420 = vadd.f32 %v4363, %v4392
    %v4421 = vadd.f32 %v4364, %v4393
    %v4422 = vadd.f32 %v4365, %v4394
    %v4423 = vadd.f32 %v4366, %v4395
    %v4424 = vadd.f32 %v4367, %v4396
    %v4425 = vadd.f32 %v4368, %v4397
    %v4426 = vadd.f32 %v4369, %v4398
    %v4427 = vadd.f32 %v4370, %v4399
    %v4428 = vadd.f32 %v4371, %v4400
    %v4429 = vadd.f32 %v4372, %v4401
    %v4430 = vadd.f32 %v4373, %v4402
    %v4431 = vadd.f32 %v4374, %v4403
    %v4432 = vadd.f32 %v4375, %v4404
    %v4433 = vadd.f32 %v4376, %v4405
    %v4434 = vadd.f32 %v4377, %v4406
    %v4435 = vadd.f32 %v4378, %v4407
    %v4436 = vadd.f32 %v4379, %v4408
    %v4437 = vadd.f32 %v4380, %v4409
    %v4438 = vadd.f32 %v4381, %v4410
    %v4439 = vadd.f32 %v4382, %v4411
    %v4440 = vadd.f32 %v4383, %v4412
    %v4441 = vadd.f32 %v4384, %v4413
    %v4442 = vadd.f32 %v4385, %v4414
    %v4443 = vstv %s82
    %v4444 = vmul.f32 %v4443, %v140
    %v4445 = vmul.f32 %v4443, %v141
    %v4446 = vmul.f32 %v4443, %v142
    %v4447 = vmul.f32 %v4443, %v143
    %v4448 = vmul.f32 %v4443, %v144
    %v4449 = vmul.f32 %v4443, %v145
    %v4450 = vmul.f32 %v4443, %v146
    %v4451 = vmul.f32 %v4443, %v147
    %v4452 = vmul.f32 %v4443, %v148
    %v4453 = vmul.f32 %v4443, %v149
    %v4454 = vmul.f32 %v4443, %v150
    %v4455 = vmul.f32 %v4443, %v151
    %v4456 = vmul.f32 %v4443, %v152
    %v4457 = vmul.f32 %v4443, %v153
    %v4458 = vmul.f32 %v4443, %v154
    %v4459 = vmul.f32 %v4443, %v155
    %v4460 = vmul.f32 %v4443, %v156
    %v4461 = vmul.f32 %v4443, %v157
    %v4462 = vmul.f32 %v4443, %v158
    %v4463 = vmul.f32 %v4443, %v159
    %v4464 = vmul.f32 %v4443, %v160
    %v4465 = vmul.f32 %v4443, %v161
    %v4466 = vmul.f32 %v4443, %v162
    %v4467 = vmul.f32 %v4443, %v163
    %v4468 = vmul.f32 %v4443, %v164
    %v4469 = vmul.f32 %v4443, %v165
    %v4470 = vmul.f32 %v4443, %v166
    %v4471 = vmul.f32 %v4443, %v167
    %v4500 = vrot.slane %v4444, 1
    %v4501 = vrot.slane %v4445, 1
    %v4502 = vsel %vm372, %v4500, %v4501
    %v4503 = vrot.slane %v4446, 1
    %v4504 = vrot.slane %v4447, 1
    %v4505 = vsel %vm372, %v4503, %v4504
    %v4506 = vrot.slane %v4448, 1
    %v4507 = vrot.slane %v4449, 1
    %v4508 = vsel %vm372, %v4506, %v4507
    %v4509 = vrot.slane %v4450, 1
    %v4510 = vrot.slane %v4451, 1
    %v4511 = vsel %vm372, %v4509, %v4510
    %v4512 = vrot.slane %v4452, 1
    %v4513 = vrot.slane %v4453, 1
    %v4514 = vsel %vm372, %v4512, %v4513
    %v4515 = vrot.slane %v4454, 1
    %v4516 = vrot.slane %v4455, 1
    %v4517 = vsel %vm372, %v4515, %v4516
    %v4518 = vrot.slane %v4456, 1
    %v4519 = vrot.slane %v4457, 1
    %v4520 = vsel %vm372, %v4518, %v4519
    %v4521 = vrot.slane %v4458, 1
    %v4522 = vrot.slane %v4459, 1
    %v4523 = vsel %vm372, %v4521, %v4522
    %v4524 = vrot.slane %v4460, 1
    %v4525 = vrot.slane %v4461, 1
    %v4526 = vsel %vm372, %v4524, %v4525
    %v4527 = vrot.slane %v4462, 1
    %v4528 = vrot.slane %v4463, 1
    %v4529 = vsel %vm372, %v4527, %v4528
    %v4530 = vrot.slane %v4464, 1
    %v4531 = vrot.slane %v4465, 1
    %v4532 = vsel %vm372, %v4530, %v4531
    %v4533 = vrot.slane %v4466, 1
    %v4534 = vrot.slane %v4467, 1
    %v4535 = vsel %vm372, %v4533, %v4534
    %v4536 = vrot.slane %v4468, 1
    %v4537 = vrot.slane %v4469, 1
    %v4538 = vsel %vm372, %v4536, %v4537
    %v4539 = vrot.slane %v4470, 1
    %v4540 = vrot.slane %v4471, 1
    %v4541 = vsel %vm372, %v4539, %v4540
    %v4570 = vadd.f32 %v4415, %v4502
    %v4571 = vadd.f32 %v4416, %v4501
    %v4572 = vadd.f32 %v4417, %v4505
    %v4573 = vadd.f32 %v4418, %v4504
    %v4574 = vadd.f32 %v4419, %v4508
    %v4575 = vadd.f32 %v4420, %v4507
    %v4576 = vadd.f32 %v4421, %v4511
    %v4577 = vadd.f32 %v4422, %v4510
    %v4578 = vadd.f32 %v4423, %v4514
    %v4579 = vadd.f32 %v4424, %v4513
    %v4580 = vadd.f32 %v4425, %v4517
    %v4581 = vadd.f32 %v4426, %v4516
    %v4582 = vadd.f32 %v4427, %v4520
    %v4583 = vadd.f32 %v4428, %v4519
    %v4584 = vadd.f32 %v4429, %v4523
    %v4585 = vadd.f32 %v4430, %v4522
    %v4586 = vadd.f32 %v4431, %v4526
    %v4587 = vadd.f32 %v4432, %v4525
    %v4588 = vadd.f32 %v4433, %v4529
    %v4589 = vadd.f32 %v4434, %v4528
    %v4590 = vadd.f32 %v4435, %v4532
    %v4591 = vadd.f32 %v4436, %v4531
    %v4592 = vadd.f32 %v4437, %v4535
    %v4593 = vadd.f32 %v4438, %v4534
    %v4594 = vadd.f32 %v4439, %v4538
    %v4595 = vadd.f32 %v4440, %v4537
    %v4596 = vadd.f32 %v4441, %v4541
    %v4597 = vadd.f32 %v4442, %v4540
    %v4598 = vstv %s85
    %v4599 = vmul.f32 %v4598, %v142
    %v4600 = vmul.f32 %v4598, %v143
    %v4601 = vmul.f32 %v4598, %v144
    %v4602 = vmul.f32 %v4598, %v145
    %v4603 = vmul.f32 %v4598, %v146
    %v4604 = vmul.f32 %v4598, %v147
    %v4605 = vmul.f32 %v4598, %v148
    %v4606 = vmul.f32 %v4598, %v149
    %v4607 = vmul.f32 %v4598, %v150
    %v4608 = vmul.f32 %v4598, %v151
    %v4609 = vmul.f32 %v4598, %v152
    %v4610 = vmul.f32 %v4598, %v153
    %v4611 = vmul.f32 %v4598, %v154
    %v4612 = vmul.f32 %v4598, %v155
    %v4613 = vmul.f32 %v4598, %v156
    %v4614 = vmul.f32 %v4598, %v157
    %v4615 = vmul.f32 %v4598, %v158
    %v4616 = vmul.f32 %v4598, %v159
    %v4617 = vmul.f32 %v4598, %v160
    %v4618 = vmul.f32 %v4598, %v161
    %v4619 = vmul.f32 %v4598, %v162
    %v4620 = vmul.f32 %v4598, %v163
    %v4621 = vmul.f32 %v4598, %v164
    %v4622 = vmul.f32 %v4598, %v165
    %v4623 = vmul.f32 %v4598, %v166
    %v4624 = vmul.f32 %v4598, %v167
    %v4625 = vmul.f32 %v4598, %v168
    %v4626 = vmul.f32 %v4598, %v169
    %v4655 = vrot.slane %v4599, 1
    %v4656 = vrot.slane %v4600, 1
    %v4657 = vsel %vm372, %v4655, %v4656
    %v4658 = vrot.slane %v4601, 1
    %v4659 = vrot.slane %v4602, 1
    %v4660 = vsel %vm372, %v4658, %v4659
    %v4661 = vrot.slane %v4603, 1
    %v4662 = vrot.slane %v4604, 1
    %v4663 = vsel %vm372, %v4661, %v4662
    %v4664 = vrot.slane %v4605, 1
    %v4665 = vrot.slane %v4606, 1
    %v4666 = vsel %vm372, %v4664, %v4665
    %v4667 = vrot.slane %v4607, 1
    %v4668 = vrot.slane %v4608, 1
    %v4669 = vsel %vm372, %v4667, %v4668
    %v4670 = vrot.slane %v4609, 1
    %v4671 = vrot.slane %v4610, 1
    %v4672 = vsel %vm372, %v4670, %v4671
    %v4673 = vrot.slane %v4611, 1
    %v4674 = vrot.slane %v4612, 1
    %v4675 = vsel %vm372, %v4673, %v4674
    %v4676 = vrot.slane %v4613, 1
    %v4677 = vrot.slane %v4614, 1
    %v4678 = vsel %vm372, %v4676, %v4677
    %v4679 = vrot.slane %v4615, 1
    %v4680 = vrot.slane %v4616, 1
    %v4681 = vsel %vm372, %v4679, %v4680
    %v4682 = vrot.slane %v4617, 1
    %v4683 = vrot.slane %v4618, 1
    %v4684 = vsel %vm372, %v4682, %v4683
    %v4685 = vrot.slane %v4619, 1
    %v4686 = vrot.slane %v4620, 1
    %v4687 = vsel %vm372, %v4685, %v4686
    %v4688 = vrot.slane %v4621, 1
    %v4689 = vrot.slane %v4622, 1
    %v4690 = vsel %vm372, %v4688, %v4689
    %v4691 = vrot.slane %v4623, 1
    %v4692 = vrot.slane %v4624, 1
    %v4693 = vsel %vm372, %v4691, %v4692
    %v4694 = vrot.slane %v4625, 1
    %v4695 = vrot.slane %v4626, 1
    %v4696 = vsel %vm372, %v4694, %v4695
    %v4725 = vadd.f32 %v4570, %v4657
    %v4726 = vadd.f32 %v4571, %v4656
    %v4727 = vadd.f32 %v4572, %v4660
    %v4728 = vadd.f32 %v4573, %v4659
    %v4729 = vadd.f32 %v4574, %v4663
    %v4730 = vadd.f32 %v4575, %v4662
    %v4731 = vadd.f32 %v4576, %v4666
    %v4732 = vadd.f32 %v4577, %v4665
    %v4733 = vadd.f32 %v4578, %v4669
    %v4734 = vadd.f32 %v4579, %v4668
    %v4735 = vadd.f32 %v4580, %v4672
    %v4736 = vadd.f32 %v4581, %v4671
    %v4737 = vadd.f32 %v4582, %v4675
    %v4738 = vadd.f32 %v4583, %v4674
    %v4739 = vadd.f32 %v4584, %v4678
    %v4740 = vadd.f32 %v4585, %v4677
    %v4741 = vadd.f32 %v4586, %v4681
    %v4742 = vadd.f32 %v4587, %v4680
    %v4743 = vadd.f32 %v4588, %v4684
    %v4744 = vadd.f32 %v4589, %v4683
    %v4745 = vadd.f32 %v4590, %v4687
    %v4746 = vadd.f32 %v4591, %v4686
    %v4747 = vadd.f32 %v4592, %v4690
    %v4748 = vadd.f32 %v4593, %v4689
    %v4749 = vadd.f32 %v4594, %v4693
    %v4750 = vadd.f32 %v4595, %v4692
    %v4751 = vadd.f32 %v4596, %v4696
    %v4752 = vadd.f32 %v4597, %v4695
    %v4753 = vstv %s88
    %v4754 = vmul.f32 %v4753, %v144
    %v4755 = vmul.f32 %v4753, %v145
    %v4756 = vmul.f32 %v4753, %v146
    %v4757 = vmul.f32 %v4753, %v147
    %v4758 = vmul.f32 %v4753, %v148
    %v4759 = vmul.f32 %v4753, %v149
    %v4760 = vmul.f32 %v4753, %v150
    %v4761 = vmul.f32 %v4753, %v151
    %v4762 = vmul.f32 %v4753, %v152
    %v4763 = vmul.f32 %v4753, %v153
    %v4764 = vmul.f32 %v4753, %v154
    %v4765 = vmul.f32 %v4753, %v155
    %v4766 = vmul.f32 %v4753, %v156
    %v4767 = vmul.f32 %v4753, %v157
    %v4768 = vmul.f32 %v4753, %v158
    %v4769 = vmul.f32 %v4753, %v159
    %v4770 = vmul.f32 %v4753, %v160
    %v4771 = vmul.f32 %v4753, %v161
    %v4772 = vmul.f32 %v4753, %v162
    %v4773 = vmul.f32 %v4753, %v163
    %v4774 = vmul.f32 %v4753, %v164
    %v4775 = vmul.f32 %v4753, %v165
    %v4776 = vmul.f32 %v4753, %v166
    %v4777 = vmul.f32 %v4753, %v167
    %v4778 = vmul.f32 %v4753, %v168
    %v4779 = vmul.f32 %v4753, %v169
    %v4780 = vmul.f32 %v4753, %v170
    %v4781 = vmul.f32 %v4753, %v171
    %v4810 = vrot.slane %v4754, 1
    %v4811 = vrot.slane %v4755, 1
    %v4812 = vsel %vm372, %v4810, %v4811
    %v4813 = vrot.slane %v4756, 1
    %v4814 = vrot.slane %v4757, 1
    %v4815 = vsel %vm372, %v4813, %v4814
    %v4816 = vrot.slane %v4758, 1
    %v4817 = vrot.slane %v4759, 1
    %v4818 = vsel %vm372, %v4816, %v4817
    %v4819 = vrot.slane %v4760, 1
    %v4820 = vrot.slane %v4761, 1
    %v4821 = vsel %vm372, %v4819, %v4820
    %v4822 = vrot.slane %v4762, 1
    %v4823 = vrot.slane %v4763, 1
    %v4824 = vsel %vm372, %v4822, %v4823
    %v4825 = vrot.slane %v4764, 1
    %v4826 = vrot.slane %v4765, 1
    %v4827 = vsel %vm372, %v4825, %v4826
    %v4828 = vrot.slane %v4766, 1
    %v4829 = vrot.slane %v4767, 1
    %v4830 = vsel %vm372, %v4828, %v4829
    %v4831 = vrot.slane %v4768, 1
    %v4832 = vrot.slane %v4769, 1
    %v4833 = vsel %vm372, %v4831, %v4832
    %v4834 = vrot.slane %v4770, 1
    %v4835 = vrot.slane %v4771, 1
    %v4836 = vsel %vm372, %v4834, %v4835
    %v4837 = vrot.slane %v4772, 1
    %v4838 = vrot.slane %v4773, 1
    %v4839 = vsel %vm372, %v4837, %v4838
    %v4840 = vrot.slane %v4774, 1
    %v4841 = vrot.slane %v4775, 1
    %v4842 = vsel %vm372, %v4840, %v4841
    %v4843 = vrot.slane %v4776, 1
    %v4844 = vrot.slane %v4777, 1
    %v4845 = vsel %vm372, %v4843, %v4844
    %v4846 = vrot.slane %v4778, 1
    %v4847 = vrot.slane %v4779, 1
    %v4848 = vsel %vm372, %v4846, %v4847
    %v4849 = vrot.slane %v4780, 1
    %v4850 = vrot.slane %v4781, 1
    %v4851 = vsel %vm372, %v4849, %v4850
    %v4880 = vadd.f32 %v4725, %v4812
    %v4881 = vadd.f32 %v4726, %v4811
    %v4882 = vadd.f32 %v4727, %v4815
    %v4883 = vadd.f32 %v4728, %v4814
    %v4884 = vadd.f32 %v4729, %v4818
    %v4885 = vadd.f32 %v4730, %v4817
    %v4886 = vadd.f32 %v4731, %v4821
    %v4887 = vadd.f32 %v4732, %v4820
    %v4888 = vadd.f32 %v4733, %v4824
    %v4889 = vadd.f32 %v4734, %v4823
    %v4890 = vadd.f32 %v4735, %v4827
    %v4891 = vadd.f32 %v4736, %v4826
    %v4892 = vadd.f32 %v4737, %v4830
    %v4893 = vadd.f32 %v4738, %v4829
    %v4894 = vadd.f32 %v4739, %v4833
    %v4895 = vadd.f32 %v4740, %v4832
    %v4896 = vadd.f32 %v4741, %v4836
    %v4897 = vadd.f32 %v4742, %v4835
    %v4898 = vadd.f32 %v4743, %v4839
    %v4899 = vadd.f32 %v4744, %v4838
    %v4900 = vadd.f32 %v4745, %v4842
    %v4901 = vadd.f32 %v4746, %v4841
    %v4902 = vadd.f32 %v4747, %v4845
    %v4903 = vadd.f32 %v4748, %v4844
    %v4904 = vadd.f32 %v4749, %v4848
    %v4905 = vadd.f32 %v4750, %v4847
    %v4906 = vadd.f32 %v4751, %v4851
    %v4907 = vadd.f32 %v4752, %v4850
    %v4908 = vstv %s83
    %v4909 = vmul.f32 %v4908, %v140
    %v4910 = vmul.f32 %v4908, %v141
    %v4911 = vmul.f32 %v4908, %v142
    %v4912 = vmul.f32 %v4908, %v143
    %v4913 = vmul.f32 %v4908, %v144
    %v4914 = vmul.f32 %v4908, %v145
    %v4915 = vmul.f32 %v4908, %v146
    %v4916 = vmul.f32 %v4908, %v147
    %v4917 = vmul.f32 %v4908, %v148
    %v4918 = vmul.f32 %v4908, %v149
    %v4919 = vmul.f32 %v4908, %v150
    %v4920 = vmul.f32 %v4908, %v151
    %v4921 = vmul.f32 %v4908, %v152
    %v4922 = vmul.f32 %v4908, %v153
    %v4923 = vmul.f32 %v4908, %v154
    %v4924 = vmul.f32 %v4908, %v155
    %v4925 = vmul.f32 %v4908, %v156
    %v4926 = vmul.f32 %v4908, %v157
    %v4927 = vmul.f32 %v4908, %v158
    %v4928 = vmul.f32 %v4908, %v159
    %v4929 = vmul.f32 %v4908, %v160
    %v4930 = vmul.f32 %v4908, %v161
    %v4931 = vmul.f32 %v4908, %v162
    %v4932 = vmul.f32 %v4908, %v163
    %v4933 = vmul.f32 %v4908, %v164
    %v4934 = vmul.f32 %v4908, %v165
    %v4935 = vmul.f32 %v4908, %v166
    %v4936 = vmul.f32 %v4908, %v167
    %v4965 = vrot.slane %v4909, 2
    %v4966 = vrot.slane %v4910, 2
    %v4967 = vsel %vm838, %v4965, %v4966
    %v4968 = vrot.slane %v4911, 2
    %v4969 = vrot.slane %v4912, 2
    %v4970 = vsel %vm838, %v4968, %v4969
    %v4971 = vrot.slane %v4913, 2
    %v4972 = vrot.slane %v4914, 2
    %v4973 = vsel %vm838, %v4971, %v4972
    %v4974 = vrot.slane %v4915, 2
    %v4975 = vrot.slane %v4916, 2
    %v4976 = vsel %vm838, %v4974, %v4975
    %v4977 = vrot.slane %v4917, 2
    %v4978 = vrot.slane %v4918, 2
    %v4979 = vsel %vm838, %v4977, %v4978
    %v4980 = vrot.slane %v4919, 2
    %v4981 = vrot.slane %v4920, 2
    %v4982 = vsel %vm838, %v4980, %v4981
    %v4983 = vrot.slane %v4921, 2
    %v4984 = vrot.slane %v4922, 2
    %v4985 = vsel %vm838, %v4983, %v4984
    %v4986 = vrot.slane %v4923, 2
    %v4987 = vrot.slane %v4924, 2
    %v4988 = vsel %vm838, %v4986, %v4987
    %v4989 = vrot.slane %v4925, 2
    %v4990 = vrot.slane %v4926, 2
    %v4991 = vsel %vm838, %v4989, %v4990
    %v4992 = vrot.slane %v4927, 2
    %v4993 = vrot.slane %v4928, 2
    %v4994 = vsel %vm838, %v4992, %v4993
    %v4995 = vrot.slane %v4929, 2
    %v4996 = vrot.slane %v4930, 2
    %v4997 = vsel %vm838, %v4995, %v4996
    %v4998 = vrot.slane %v4931, 2
    %v4999 = vrot.slane %v4932, 2
    %v5000 = vsel %vm838, %v4998, %v4999
    %v5001 = vrot.slane %v4933, 2
    %v5002 = vrot.slane %v4934, 2
    %v5003 = vsel %vm838, %v5001, %v5002
    %v5004 = vrot.slane %v4935, 2
    %v5005 = vrot.slane %v4936, 2
    %v5006 = vsel %vm838, %v5004, %v5005
    %v5035 = vadd.f32 %v4880, %v4967
    %v5036 = vadd.f32 %v4881, %v4966
    %v5037 = vadd.f32 %v4882, %v4970
    %v5038 = vadd.f32 %v4883, %v4969
    %v5039 = vadd.f32 %v4884, %v4973
    %v5040 = vadd.f32 %v4885, %v4972
    %v5041 = vadd.f32 %v4886, %v4976
    %v5042 = vadd.f32 %v4887, %v4975
    %v5043 = vadd.f32 %v4888, %v4979
    %v5044 = vadd.f32 %v4889, %v4978
    %v5045 = vadd.f32 %v4890, %v4982
    %v5046 = vadd.f32 %v4891, %v4981
    %v5047 = vadd.f32 %v4892, %v4985
    %v5048 = vadd.f32 %v4893, %v4984
    %v5049 = vadd.f32 %v4894, %v4988
    %v5050 = vadd.f32 %v4895, %v4987
    %v5051 = vadd.f32 %v4896, %v4991
    %v5052 = vadd.f32 %v4897, %v4990
    %v5053 = vadd.f32 %v4898, %v4994
    %v5054 = vadd.f32 %v4899, %v4993
    %v5055 = vadd.f32 %v4900, %v4997
    %v5056 = vadd.f32 %v4901, %v4996
    %v5057 = vadd.f32 %v4902, %v5000
    %v5058 = vadd.f32 %v4903, %v4999
    %v5059 = vadd.f32 %v4904, %v5003
    %v5060 = vadd.f32 %v4905, %v5002
    %v5061 = vadd.f32 %v4906, %v5006
    %v5062 = vadd.f32 %v4907, %v5005
    %v5063 = vstv %s86
    %v5064 = vmul.f32 %v5063, %v142
    %v5065 = vmul.f32 %v5063, %v143
    %v5066 = vmul.f32 %v5063, %v144
    %v5067 = vmul.f32 %v5063, %v145
    %v5068 = vmul.f32 %v5063, %v146
    %v5069 = vmul.f32 %v5063, %v147
    %v5070 = vmul.f32 %v5063, %v148
    %v5071 = vmul.f32 %v5063, %v149
    %v5072 = vmul.f32 %v5063, %v150
    %v5073 = vmul.f32 %v5063, %v151
    %v5074 = vmul.f32 %v5063, %v152
    %v5075 = vmul.f32 %v5063, %v153
    %v5076 = vmul.f32 %v5063, %v154
    %v5077 = vmul.f32 %v5063, %v155
    %v5078 = vmul.f32 %v5063, %v156
    %v5079 = vmul.f32 %v5063, %v157
    %v5080 = vmul.f32 %v5063, %v158
    %v5081 = vmul.f32 %v5063, %v159
    %v5082 = vmul.f32 %v5063, %v160
    %v5083 = vmul.f32 %v5063, %v161
    %v5084 = vmul.f32 %v5063, %v162
    %v5085 = vmul.f32 %v5063, %v163
    %v5086 = vmul.f32 %v5063, %v164
    %v5087 = vmul.f32 %v5063, %v165
    %v5088 = vmul.f32 %v5063, %v166
    %v5089 = vmul.f32 %v5063, %v167
    %v5090 = vmul.f32 %v5063, %v168
    %v5091 = vmul.f32 %v5063, %v169
    %v5120 = vrot.slane %v5064, 2
    %v5121 = vrot.slane %v5065, 2
    %v5122 = vsel %vm838, %v5120, %v5121
    %v5123 = vrot.slane %v5066, 2
    %v5124 = vrot.slane %v5067, 2
    %v5125 = vsel %vm838, %v5123, %v5124
    %v5126 = vrot.slane %v5068, 2
    %v5127 = vrot.slane %v5069, 2
    %v5128 = vsel %vm838, %v5126, %v5127
    %v5129 = vrot.slane %v5070, 2
    %v5130 = vrot.slane %v5071, 2
    %v5131 = vsel %vm838, %v5129, %v5130
    %v5132 = vrot.slane %v5072, 2
    %v5133 = vrot.slane %v5073, 2
    %v5134 = vsel %vm838, %v5132, %v5133
    %v5135 = vrot.slane %v5074, 2
    %v5136 = vrot.slane %v5075, 2
    %v5137 = vsel %vm838, %v5135, %v5136
    %v5138 = vrot.slane %v5076, 2
    %v5139 = vrot.slane %v5077, 2
    %v5140 = vsel %vm838, %v5138, %v5139
    %v5141 = vrot.slane %v5078, 2
    %v5142 = vrot.slane %v5079, 2
    %v5143 = vsel %vm838, %v5141, %v5142
    %v5144 = vrot.slane %v5080, 2
    %v5145 = vrot.slane %v5081, 2
    %v5146 = vsel %vm838, %v5144, %v5145
    %v5147 = vrot.slane %v5082, 2
    %v5148 = vrot.slane %v5083, 2
    %v5149 = vsel %vm838, %v5147, %v5148
    %v5150 = vrot.slane %v5084, 2
    %v5151 = vrot.slane %v5085, 2
    %v5152 = vsel %vm838, %v5150, %v5151
    %v5153 = vrot.slane %v5086, 2
    %v5154 = vrot.slane %v5087, 2
    %v5155 = vsel %vm838, %v5153, %v5154
    %v5156 = vrot.slane %v5088, 2
    %v5157 = vrot.slane %v5089, 2
    %v5158 = vsel %vm838, %v5156, %v5157
    %v5159 = vrot.slane %v5090, 2
    %v5160 = vrot.slane %v5091, 2
    %v5161 = vsel %vm838, %v5159, %v5160
    %v5190 = vadd.f32 %v5035, %v5122
    %v5191 = vadd.f32 %v5036, %v5121
    %v5192 = vadd.f32 %v5037, %v5125
    %v5193 = vadd.f32 %v5038, %v5124
    %v5194 = vadd.f32 %v5039, %v5128
    %v5195 = vadd.f32 %v5040, %v5127
    %v5196 = vadd.f32 %v5041, %v5131
    %v5197 = vadd.f32 %v5042, %v5130
    %v5198 = vadd.f32 %v5043, %v5134
    %v5199 = vadd.f32 %v5044, %v5133
    %v5200 = vadd.f32 %v5045, %v5137
    %v5201 = vadd.f32 %v5046, %v5136
    %v5202 = vadd.f32 %v5047, %v5140
    %v5203 = vadd.f32 %v5048, %v5139
    %v5204 = vadd.f32 %v5049, %v5143
    %v5205 = vadd.f32 %v5050, %v5142
    %v5206 = vadd.f32 %v5051, %v5146
    %v5207 = vadd.f32 %v5052, %v5145
    %v5208 = vadd.f32 %v5053, %v5149
    %v5209 = vadd.f32 %v5054, %v5148
    %v5210 = vadd.f32 %v5055, %v5152
    %v5211 = vadd.f32 %v5056, %v5151
    %v5212 = vadd.f32 %v5057, %v5155
    %v5213 = vadd.f32 %v5058, %v5154
    %v5214 = vadd.f32 %v5059, %v5158
    %v5215 = vadd.f32 %v5060, %v5157
    %v5216 = vadd.f32 %v5061, %v5161
    %v5217 = vadd.f32 %v5062, %v5160
    %v5218 = vstv %s89
    %v5219 = vmul.f32 %v5218, %v144
    %v5220 = vmul.f32 %v5218, %v145
    %v5221 = vmul.f32 %v5218, %v146
    %v5222 = vmul.f32 %v5218, %v147
    %v5223 = vmul.f32 %v5218, %v148
    %v5224 = vmul.f32 %v5218, %v149
    %v5225 = vmul.f32 %v5218, %v150
    %v5226 = vmul.f32 %v5218, %v151
    %v5227 = vmul.f32 %v5218, %v152
    %v5228 = vmul.f32 %v5218, %v153
    %v5229 = vmul.f32 %v5218, %v154
    %v5230 = vmul.f32 %v5218, %v155
    %v5231 = vmul.f32 %v5218, %v156
    %v5232 = vmul.f32 %v5218, %v157
    %v5233 = vmul.f32 %v5218, %v158
    %v5234 = vmul.f32 %v5218, %v159
    %v5235 = vmul.f32 %v5218, %v160
    %v5236 = vmul.f32 %v5218, %v161
    %v5237 = vmul.f32 %v5218, %v162
    %v5238 = vmul.f32 %v5218, %v163
    %v5239 = vmul.f32 %v5218, %v164
    %v5240 = vmul.f32 %v5218, %v165
    %v5241 = vmul.f32 %v5218, %v166
    %v5242 = vmul.f32 %v5218, %v167
    %v5243 = vmul.f32 %v5218, %v168
    %v5244 = vmul.f32 %v5218, %v169
    %v5245 = vmul.f32 %v5218, %v170
    %v5246 = vmul.f32 %v5218, %v171
    %v5275 = vrot.slane %v5219, 2
    %v5276 = vrot.slane %v5220, 2
    %v5277 = vsel %vm838, %v5275, %v5276
    %v5278 = vrot.slane %v5221, 2
    %v5279 = vrot.slane %v5222, 2
    %v5280 = vsel %vm838, %v5278, %v5279
    %v5281 = vrot.slane %v5223, 2
    %v5282 = vrot.slane %v5224, 2
    %v5283 = vsel %vm838, %v5281, %v5282
    %v5284 = vrot.slane %v5225, 2
    %v5285 = vrot.slane %v5226, 2
    %v5286 = vsel %vm838, %v5284, %v5285
    %v5287 = vrot.slane %v5227, 2
    %v5288 = vrot.slane %v5228, 2
    %v5289 = vsel %vm838, %v5287, %v5288
    %v5290 = vrot.slane %v5229, 2
    %v5291 = vrot.slane %v5230, 2
    %v5292 = vsel %vm838, %v5290, %v5291
    %v5293 = vrot.slane %v5231, 2
    %v5294 = vrot.slane %v5232, 2
    %v5295 = vsel %vm838, %v5293, %v5294
    %v5296 = vrot.slane %v5233, 2
    %v5297 = vrot.slane %v5234, 2
    %v5298 = vsel %vm838, %v5296, %v5297
    %v5299 = vrot.slane %v5235, 2
    %v5300 = vrot.slane %v5236, 2
    %v5301 = vsel %vm838, %v5299, %v5300
    %v5302 = vrot.slane %v5237, 2
    %v5303 = vrot.slane %v5238, 2
    %v5304 = vsel %vm838, %v5302, %v5303
    %v5305 = vrot.slane %v5239, 2
    %v5306 = vrot.slane %v5240, 2
    %v5307 = vsel %vm838, %v5305, %v5306
    %v5308 = vrot.slane %v5241, 2
    %v5309 = vrot.slane %v5242, 2
    %v5310 = vsel %vm838, %v5308, %v5309
    %v5311 = vrot.slane %v5243, 2
    %v5312 = vrot.slane %v5244, 2
    %v5313 = vsel %vm838, %v5311, %v5312
    %v5314 = vrot.slane %v5245, 2
    %v5315 = vrot.slane %v5246, 2
    %v5316 = vsel %vm838, %v5314, %v5315
    %v5345 = vadd.f32 %v5190, %v5277
    %v5346 = vadd.f32 %v5191, %v5276
    %v5347 = vadd.f32 %v5192, %v5280
    %v5348 = vadd.f32 %v5193, %v5279
    %v5349 = vadd.f32 %v5194, %v5283
    %v5350 = vadd.f32 %v5195, %v5282
    %v5351 = vadd.f32 %v5196, %v5286
    %v5352 = vadd.f32 %v5197, %v5285
    %v5353 = vadd.f32 %v5198, %v5289
    %v5354 = vadd.f32 %v5199, %v5288
    %v5355 = vadd.f32 %v5200, %v5292
    %v5356 = vadd.f32 %v5201, %v5291
    %v5357 = vadd.f32 %v5202, %v5295
    %v5358 = vadd.f32 %v5203, %v5294
    %v5359 = vadd.f32 %v5204, %v5298
    %v5360 = vadd.f32 %v5205, %v5297
    %v5361 = vadd.f32 %v5206, %v5301
    %v5362 = vadd.f32 %v5207, %v5300
    %v5363 = vadd.f32 %v5208, %v5304
    %v5364 = vadd.f32 %v5209, %v5303
    %v5365 = vadd.f32 %v5210, %v5307
    %v5366 = vadd.f32 %v5211, %v5306
    %v5367 = vadd.f32 %v5212, %v5310
    %v5368 = vadd.f32 %v5213, %v5309
    %v5369 = vadd.f32 %v5214, %v5313
    %v5370 = vadd.f32 %v5215, %v5312
    %v5371 = vadd.f32 %v5216, %v5316
    %v5372 = vadd.f32 %v5217, %v5315
    %v5373 = vstv %s101
    %v5374 = vadd.f32 %v5345, %v5373
    %v5375 = vadd.f32 %v5346, %v5373
    %v5376 = vadd.f32 %v5347, %v5373
    %v5377 = vadd.f32 %v5348, %v5373
    %v5378 = vadd.f32 %v5349, %v5373
    %v5379 = vadd.f32 %v5350, %v5373
    %v5380 = vadd.f32 %v5351, %v5373
    %v5381 = vadd.f32 %v5352, %v5373
    %v5382 = vadd.f32 %v5353, %v5373
    %v5383 = vadd.f32 %v5354, %v5373
    %v5384 = vadd.f32 %v5355, %v5373
    %v5385 = vadd.f32 %v5356, %v5373
    %v5386 = vadd.f32 %v5357, %v5373
    %v5387 = vadd.f32 %v5358, %v5373
    %v5388 = vadd.f32 %v5359, %v5373
    %v5389 = vadd.f32 %v5360, %v5373
    %v5390 = vadd.f32 %v5361, %v5373
    %v5391 = vadd.f32 %v5362, %v5373
    %v5392 = vadd.f32 %v5363, %v5373
    %v5393 = vadd.f32 %v5364, %v5373
    %v5394 = vadd.f32 %v5365, %v5373
    %v5395 = vadd.f32 %v5366, %v5373
    %v5396 = vadd.f32 %v5367, %v5373
    %v5397 = vadd.f32 %v5368, %v5373
    %v5398 = vadd.f32 %v5369, %v5373
    %v5399 = vadd.f32 %v5370, %v5373
    %v5400 = vadd.f32 %v5371, %v5373
    %v5401 = vadd.f32 %v5372, %v5373
    %v5402 = vmax.f32 %v5374, 0.0
    %v5403 = vmax.f32 %v5375, 0.0
    %v5404 = vmax.f32 %v5376, 0.0
    %v5405 = vmax.f32 %v5377, 0.0
    %v5406 = vmax.f32 %v5378, 0.0
    %v5407 = vmax.f32 %v5379, 0.0
    %v5408 = vmax.f32 %v5380, 0.0
    %v5409 = vmax.f32 %v5381, 0.0
    %v5410 = vmax.f32 %v5382, 0.0
    %v5411 = vmax.f32 %v5383, 0.0
    %v5412 = vmax.f32 %v5384, 0.0
    %v5413 = vmax.f32 %v5385, 0.0
    %v5414 = vmax.f32 %v5386, 0.0
    %v5415 = vmax.f32 %v5387, 0.0
    %v5416 = vmax.f32 %v5388, 0.0
    %v5417 = vmax.f32 %v5389, 0.0
    %v5418 = vmax.f32 %v5390, 0.0
    %v5419 = vmax.f32 %v5391, 0.0
    %v5420 = vmax.f32 %v5392, 0.0
    %v5421 = vmax.f32 %v5393, 0.0
    %v5422 = vmax.f32 %v5394, 0.0
    %v5423 = vmax.f32 %v5395, 0.0
    %v5424 = vmax.f32 %v5396, 0.0
    %v5425 = vmax.f32 %v5397, 0.0
    %v5426 = vmax.f32 %v5398, 0.0
    %v5427 = vmax.f32 %v5399, 0.0
    %v5428 = vmax.f32 %v5400, 0.0
    %v5429 = vmax.f32 %v5401, 0.0
    %v5430 = vstv %s121
    %v5431 = vmul.f32 %v5430, %v5402
    %v5432 = vmul.f32 %v5430, %v5403
    %v5433 = vmul.f32 %v5430, %v5404
    %v5434 = vmul.f32 %v5430, %v5405
    %v5435 = vmul.f32 %v5430, %v5406
    %v5436 = vmul.f32 %v5430, %v5407
    %v5437 = vmul.f32 %v5430, %v5408
    %v5438 = vmul.f32 %v5430, %v5409
    %v5439 = vmul.f32 %v5430, %v5410
    %v5440 = vmul.f32 %v5430, %v5411
    %v5441 = vmul.f32 %v5430, %v5412
    %v5442 = vmul.f32 %v5430, %v5413
    %v5443 = vmul.f32 %v5430, %v5414
    %v5444 = vmul.f32 %v5430, %v5415
    %v5445 = vmul.f32 %v5430, %v5416
    %v5446 = vmul.f32 %v5430, %v5417
    %v5447 = vmul.f32 %v5430, %v5418
    %v5448 = vmul.f32 %v5430, %v5419
    %v5449 = vmul.f32 %v5430, %v5420
    %v5450 = vmul.f32 %v5430, %v5421
    %v5451 = vmul.f32 %v5430, %v5422
    %v5452 = vmul.f32 %v5430, %v5423
    %v5453 = vmul.f32 %v5430, %v5424
    %v5454 = vmul.f32 %v5430, %v5425
    %v5455 = vadd.f32 %v4276, %v5431
    %v5456 = vadd.f32 %v4277, %v5432
    %v5457 = vadd.f32 %v4278, %v5433
    %v5458 = vadd.f32 %v4279, %v5434
    %v5459 = vadd.f32 %v4280, %v5435
    %v5460 = vadd.f32 %v4281, %v5436
    %v5461 = vadd.f32 %v4282, %v5437
    %v5462 = vadd.f32 %v4283, %v5438
    %v5463 = vadd.f32 %v4284, %v5439
    %v5464 = vadd.f32 %v4285, %v5440
    %v5465 = vadd.f32 %v4286, %v5441
    %v5466 = vadd.f32 %v4287, %v5442
    %v5467 = vadd.f32 %v4288, %v5443
    %v5468 = vadd.f32 %v4289, %v5444
    %v5469 = vadd.f32 %v4290, %v5445
    %v5470 = vadd.f32 %v4291, %v5446
    %v5471 = vadd.f32 %v4292, %v5447
    %v5472 = vadd.f32 %v4293, %v5448
    %v5473 = vadd.f32 %v4294, %v5449
    %v5474 = vadd.f32 %v4295, %v5450
    %v5475 = vadd.f32 %v4296, %v5451
    %v5476 = vadd.f32 %v4297, %v5452
    %v5477 = vadd.f32 %v4298, %v5453
    %v5478 = vadd.f32 %v4299, %v5454
    %v5479 = vstv %s124
    %v5480 = vmul.f32 %v5479, %v5404
    %v5481 = vmul.f32 %v5479, %v5405
    %v5482 = vmul.f32 %v5479, %v5406
    %v5483 = vmul.f32 %v5479, %v5407
    %v5484 = vmul.f32 %v5479, %v5408
    %v5485 = vmul.f32 %v5479, %v5409
    %v5486 = vmul.f32 %v5479, %v5410
    %v5487 = vmul.f32 %v5479, %v5411
    %v5488 = vmul.f32 %v5479, %v5412
    %v5489 = vmul.f32 %v5479, %v5413
    %v5490 = vmul.f32 %v5479, %v5414
    %v5491 = vmul.f32 %v5479, %v5415
    %v5492 = vmul.f32 %v5479, %v5416
    %v5493 = vmul.f32 %v5479, %v5417
    %v5494 = vmul.f32 %v5479, %v5418
    %v5495 = vmul.f32 %v5479, %v5419
    %v5496 = vmul.f32 %v5479, %v5420
    %v5497 = vmul.f32 %v5479, %v5421
    %v5498 = vmul.f32 %v5479, %v5422
    %v5499 = vmul.f32 %v5479, %v5423
    %v5500 = vmul.f32 %v5479, %v5424
    %v5501 = vmul.f32 %v5479, %v5425
    %v5502 = vmul.f32 %v5479, %v5426
    %v5503 = vmul.f32 %v5479, %v5427
    %v5504 = vadd.f32 %v5455, %v5480
    %v5505 = vadd.f32 %v5456, %v5481
    %v5506 = vadd.f32 %v5457, %v5482
    %v5507 = vadd.f32 %v5458, %v5483
    %v5508 = vadd.f32 %v5459, %v5484
    %v5509 = vadd.f32 %v5460, %v5485
    %v5510 = vadd.f32 %v5461, %v5486
    %v5511 = vadd.f32 %v5462, %v5487
    %v5512 = vadd.f32 %v5463, %v5488
    %v5513 = vadd.f32 %v5464, %v5489
    %v5514 = vadd.f32 %v5465, %v5490
    %v5515 = vadd.f32 %v5466, %v5491
    %v5516 = vadd.f32 %v5467, %v5492
    %v5517 = vadd.f32 %v5468, %v5493
    %v5518 = vadd.f32 %v5469, %v5494
    %v5519 = vadd.f32 %v5470, %v5495
    %v5520 = vadd.f32 %v5471, %v5496
    %v5521 = vadd.f32 %v5472, %v5497
    %v5522 = vadd.f32 %v5473, %v5498
    %v5523 = vadd.f32 %v5474, %v5499
    %v5524 = vadd.f32 %v5475, %v5500
    %v5525 = vadd.f32 %v5476, %v5501
    %v5526 = vadd.f32 %v5477, %v5502
    %v5527 = vadd.f32 %v5478, %v5503
    %v5528 = vstv %s127
    %v5529 = vmul.f32 %v5528, %v5406
    %v5530 = vmul.f32 %v5528, %v5407
    %v5531 = vmul.f32 %v5528, %v5408
    %v5532 = vmul.f32 %v5528, %v5409
    %v5533 = vmul.f32 %v5528, %v5410
    %v5534 = vmul.f32 %v5528, %v5411
    %v5535 = vmul.f32 %v5528, %v5412
    %v5536 = vmul.f32 %v5528, %v5413
    %v5537 = vmul.f32 %v5528, %v5414
    %v5538 = vmul.f32 %v5528, %v5415
    %v5539 = vmul.f32 %v5528, %v5416
    %v5540 = vmul.f32 %v5528, %v5417
    %v5541 = vmul.f32 %v5528, %v5418
    %v5542 = vmul.f32 %v5528, %v5419
    %v5543 = vmul.f32 %v5528, %v5420
    %v5544 = vmul.f32 %v5528, %v5421
    %v5545 = vmul.f32 %v5528, %v5422
    %v5546 = vmul.f32 %v5528, %v5423
    %v5547 = vmul.f32 %v5528, %v5424
    %v5548 = vmul.f32 %v5528, %v5425
    %v5549 = vmul.f32 %v5528, %v5426
    %v5550 = vmul.f32 %v5528, %v5427
    %v5551 = vmul.f32 %v5528, %v5428
    %v5552 = vmul.f32 %v5528, %v5429
    %v5553 = vadd.f32 %v5504, %v5529
    %v5554 = vadd.f32 %v5505, %v5530
    %v5555 = vadd.f32 %v5506, %v5531
    %v5556 = vadd.f32 %v5507, %v5532
    %v5557 = vadd.f32 %v5508, %v5533
    %v5558 = vadd.f32 %v5509, %v5534
    %v5559 = vadd.f32 %v5510, %v5535
    %v5560 = vadd.f32 %v5511, %v5536
    %v5561 = vadd.f32 %v5512, %v5537
    %v5562 = vadd.f32 %v5513, %v5538
    %v5563 = vadd.f32 %v5514, %v5539
    %v5564 = vadd.f32 %v5515, %v5540
    %v5565 = vadd.f32 %v5516, %v5541
    %v5566 = vadd.f32 %v5517, %v5542
    %v5567 = vadd.f32 %v5518, %v5543
    %v5568 = vadd.f32 %v5519, %v5544
    %v5569 = vadd.f32 %v5520, %v5545
    %v5570 = vadd.f32 %v5521, %v5546
    %v5571 = vadd.f32 %v5522, %v5547
    %v5572 = vadd.f32 %v5523, %v5548
    %v5573 = vadd.f32 %v5524, %v5549
    %v5574 = vadd.f32 %v5525, %v5550
    %v5575 = vadd.f32 %v5526, %v5551
    %v5576 = vadd.f32 %v5527, %v5552
    %v5577 = vstv %s122
    %v5578 = vmul.f32 %v5577, %v5402
    %v5579 = vmul.f32 %v5577, %v5403
    %v5580 = vmul.f32 %v5577, %v5404
    %v5581 = vmul.f32 %v5577, %v5405
    %v5582 = vmul.f32 %v5577, %v5406
    %v5583 = vmul.f32 %v5577, %v5407
    %v5584 = vmul.f32 %v5577, %v5408
    %v5585 = vmul.f32 %v5577, %v5409
    %v5586 = vmul.f32 %v5577, %v5410
    %v5587 = vmul.f32 %v5577, %v5411
    %v5588 = vmul.f32 %v5577, %v5412
    %v5589 = vmul.f32 %v5577, %v5413
    %v5590 = vmul.f32 %v5577, %v5414
    %v5591 = vmul.f32 %v5577, %v5415
    %v5592 = vmul.f32 %v5577, %v5416
    %v5593 = vmul.f32 %v5577, %v5417
    %v5594 = vmul.f32 %v5577, %v5418
    %v5595 = vmul.f32 %v5577, %v5419
    %v5596 = vmul.f32 %v5577, %v5420
    %v5597 = vmul.f32 %v5577, %v5421
    %v5598 = vmul.f32 %v5577, %v5422
    %v5599 = vmul.f32 %v5577, %v5423
    %v5600 = vmul.f32 %v5577, %v5424
    %v5601 = vmul.f32 %v5577, %v5425
    %v5626 = vrot.slane %v5578, 1
    %v5627 = vrot.slane %v5579, 1
    %v5628 = vsel %vm372, %v5626, %v5627
    %v5629 = vrot.slane %v5580, 1
    %v5630 = vrot.slane %v5581, 1
    %v5631 = vsel %vm372, %v5629, %v5630
    %v5632 = vrot.slane %v5582, 1
    %v5633 = vrot.slane %v5583, 1
    %v5634 = vsel %vm372, %v5632, %v5633
    %v5635 = vrot.slane %v5584, 1
    %v5636 = vrot.slane %v5585, 1
    %v5637 = vsel %vm372, %v5635, %v5636
    %v5638 = vrot.slane %v5586, 1
    %v5639 = vrot.slane %v5587, 1
    %v5640 = vsel %vm372, %v5638, %v5639
    %v5641 = vrot.slane %v5588, 1
    %v5642 = vrot.slane %v5589, 1
    %v5643 = vsel %vm372, %v5641, %v5642
    %v5644 = vrot.slane %v5590, 1
    %v5645 = vrot.slane %v5591, 1
    %v5646 = vsel %vm372, %v5644, %v5645
    %v5647 = vrot.slane %v5592, 1
    %v5648 = vrot.slane %v5593, 1
    %v5649 = vsel %vm372, %v5647, %v5648
    %v5650 = vrot.slane %v5594, 1
    %v5651 = vrot.slane %v5595, 1
    %v5652 = vsel %vm372, %v5650, %v5651
    %v5653 = vrot.slane %v5596, 1
    %v5654 = vrot.slane %v5597, 1
    %v5655 = vsel %vm372, %v5653, %v5654
    %v5656 = vrot.slane %v5598, 1
    %v5657 = vrot.slane %v5599, 1
    %v5658 = vsel %vm372, %v5656, %v5657
    %v5659 = vrot.slane %v5600, 1
    %v5660 = vrot.slane %v5601, 1
    %v5661 = vsel %vm372, %v5659, %v5660
    %v5686 = vadd.f32 %v5553, %v5628
    %v5687 = vadd.f32 %v5554, %v5627
    %v5688 = vadd.f32 %v5555, %v5631
    %v5689 = vadd.f32 %v5556, %v5630
    %v5690 = vadd.f32 %v5557, %v5634
    %v5691 = vadd.f32 %v5558, %v5633
    %v5692 = vadd.f32 %v5559, %v5637
    %v5693 = vadd.f32 %v5560, %v5636
    %v5694 = vadd.f32 %v5561, %v5640
    %v5695 = vadd.f32 %v5562, %v5639
    %v5696 = vadd.f32 %v5563, %v5643
    %v5697 = vadd.f32 %v5564, %v5642
    %v5698 = vadd.f32 %v5565, %v5646
    %v5699 = vadd.f32 %v5566, %v5645
    %v5700 = vadd.f32 %v5567, %v5649
    %v5701 = vadd.f32 %v5568, %v5648
    %v5702 = vadd.f32 %v5569, %v5652
    %v5703 = vadd.f32 %v5570, %v5651
    %v5704 = vadd.f32 %v5571, %v5655
    %v5705 = vadd.f32 %v5572, %v5654
    %v5706 = vadd.f32 %v5573, %v5658
    %v5707 = vadd.f32 %v5574, %v5657
    %v5708 = vadd.f32 %v5575, %v5661
    %v5709 = vadd.f32 %v5576, %v5660
    %v5710 = vstv %s125
    %v5711 = vmul.f32 %v5710, %v5404
    %v5712 = vmul.f32 %v5710, %v5405
    %v5713 = vmul.f32 %v5710, %v5406
    %v5714 = vmul.f32 %v5710, %v5407
    %v5715 = vmul.f32 %v5710, %v5408
    %v5716 = vmul.f32 %v5710, %v5409
    %v5717 = vmul.f32 %v5710, %v5410
    %v5718 = vmul.f32 %v5710, %v5411
    %v5719 = vmul.f32 %v5710, %v5412
    %v5720 = vmul.f32 %v5710, %v5413
    %v5721 = vmul.f32 %v5710, %v5414
    %v5722 = vmul.f32 %v5710, %v5415
    %v5723 = vmul.f32 %v5710, %v5416
    %v5724 = vmul.f32 %v5710, %v5417
    %v5725 = vmul.f32 %v5710, %v5418
    %v5726 = vmul.f32 %v5710, %v5419
    %v5727 = vmul.f32 %v5710, %v5420
    %v5728 = vmul.f32 %v5710, %v5421
    %v5729 = vmul.f32 %v5710, %v5422
    %v5730 = vmul.f32 %v5710, %v5423
    %v5731 = vmul.f32 %v5710, %v5424
    %v5732 = vmul.f32 %v5710, %v5425
    %v5733 = vmul.f32 %v5710, %v5426
    %v5734 = vmul.f32 %v5710, %v5427
    %v5759 = vrot.slane %v5711, 1
    %v5760 = vrot.slane %v5712, 1
    %v5761 = vsel %vm372, %v5759, %v5760
    %v5762 = vrot.slane %v5713, 1
    %v5763 = vrot.slane %v5714, 1
    %v5764 = vsel %vm372, %v5762, %v5763
    %v5765 = vrot.slane %v5715, 1
    %v5766 = vrot.slane %v5716, 1
    %v5767 = vsel %vm372, %v5765, %v5766
    %v5768 = vrot.slane %v5717, 1
    %v5769 = vrot.slane %v5718, 1
    %v5770 = vsel %vm372, %v5768, %v5769
    %v5771 = vrot.slane %v5719, 1
    %v5772 = vrot.slane %v5720, 1
    %v5773 = vsel %vm372, %v5771, %v5772
    %v5774 = vrot.slane %v5721, 1
    %v5775 = vrot.slane %v5722, 1
    %v5776 = vsel %vm372, %v5774, %v5775
    %v5777 = vrot.slane %v5723, 1
    %v5778 = vrot.slane %v5724, 1
    %v5779 = vsel %vm372, %v5777, %v5778
    %v5780 = vrot.slane %v5725, 1
    %v5781 = vrot.slane %v5726, 1
    %v5782 = vsel %vm372, %v5780, %v5781
    %v5783 = vrot.slane %v5727, 1
    %v5784 = vrot.slane %v5728, 1
    %v5785 = vsel %vm372, %v5783, %v5784
    %v5786 = vrot.slane %v5729, 1
    %v5787 = vrot.slane %v5730, 1
    %v5788 = vsel %vm372, %v5786, %v5787
    %v5789 = vrot.slane %v5731, 1
    %v5790 = vrot.slane %v5732, 1
    %v5791 = vsel %vm372, %v5789, %v5790
    %v5792 = vrot.slane %v5733, 1
    %v5793 = vrot.slane %v5734, 1
    %v5794 = vsel %vm372, %v5792, %v5793
    %v5819 = vadd.f32 %v5686, %v5761
    %v5820 = vadd.f32 %v5687, %v5760
    %v5821 = vadd.f32 %v5688, %v5764
    %v5822 = vadd.f32 %v5689, %v5763
    %v5823 = vadd.f32 %v5690, %v5767
    %v5824 = vadd.f32 %v5691, %v5766
    %v5825 = vadd.f32 %v5692, %v5770
    %v5826 = vadd.f32 %v5693, %v5769
    %v5827 = vadd.f32 %v5694, %v5773
    %v5828 = vadd.f32 %v5695, %v5772
    %v5829 = vadd.f32 %v5696, %v5776
    %v5830 = vadd.f32 %v5697, %v5775
    %v5831 = vadd.f32 %v5698, %v5779
    %v5832 = vadd.f32 %v5699, %v5778
    %v5833 = vadd.f32 %v5700, %v5782
    %v5834 = vadd.f32 %v5701, %v5781
    %v5835 = vadd.f32 %v5702, %v5785
    %v5836 = vadd.f32 %v5703, %v5784
    %v5837 = vadd.f32 %v5704, %v5788
    %v5838 = vadd.f32 %v5705, %v5787
    %v5839 = vadd.f32 %v5706, %v5791
    %v5840 = vadd.f32 %v5707, %v5790
    %v5841 = vadd.f32 %v5708, %v5794
    %v5842 = vadd.f32 %v5709, %v5793
    %v5843 = vstv %s128
    %v5844 = vmul.f32 %v5843, %v5406
    %v5845 = vmul.f32 %v5843, %v5407
    %v5846 = vmul.f32 %v5843, %v5408
    %v5847 = vmul.f32 %v5843, %v5409
    %v5848 = vmul.f32 %v5843, %v5410
    %v5849 = vmul.f32 %v5843, %v5411
    %v5850 = vmul.f32 %v5843, %v5412
    %v5851 = vmul.f32 %v5843, %v5413
    %v5852 = vmul.f32 %v5843, %v5414
    %v5853 = vmul.f32 %v5843, %v5415
    %v5854 = vmul.f32 %v5843, %v5416
    %v5855 = vmul.f32 %v5843, %v5417
    %v5856 = vmul.f32 %v5843, %v5418
    %v5857 = vmul.f32 %v5843, %v5419
    %v5858 = vmul.f32 %v5843, %v5420
    %v5859 = vmul.f32 %v5843, %v5421
    %v5860 = vmul.f32 %v5843, %v5422
    %v5861 = vmul.f32 %v5843, %v5423
    %v5862 = vmul.f32 %v5843, %v5424
    %v5863 = vmul.f32 %v5843, %v5425
    %v5864 = vmul.f32 %v5843, %v5426
    %v5865 = vmul.f32 %v5843, %v5427
    %v5866 = vmul.f32 %v5843, %v5428
    %v5867 = vmul.f32 %v5843, %v5429
    %v5892 = vrot.slane %v5844, 1
    %v5893 = vrot.slane %v5845, 1
    %v5894 = vsel %vm372, %v5892, %v5893
    %v5895 = vrot.slane %v5846, 1
    %v5896 = vrot.slane %v5847, 1
    %v5897 = vsel %vm372, %v5895, %v5896
    %v5898 = vrot.slane %v5848, 1
    %v5899 = vrot.slane %v5849, 1
    %v5900 = vsel %vm372, %v5898, %v5899
    %v5901 = vrot.slane %v5850, 1
    %v5902 = vrot.slane %v5851, 1
    %v5903 = vsel %vm372, %v5901, %v5902
    %v5904 = vrot.slane %v5852, 1
    %v5905 = vrot.slane %v5853, 1
    %v5906 = vsel %vm372, %v5904, %v5905
    %v5907 = vrot.slane %v5854, 1
    %v5908 = vrot.slane %v5855, 1
    %v5909 = vsel %vm372, %v5907, %v5908
    %v5910 = vrot.slane %v5856, 1
    %v5911 = vrot.slane %v5857, 1
    %v5912 = vsel %vm372, %v5910, %v5911
    %v5913 = vrot.slane %v5858, 1
    %v5914 = vrot.slane %v5859, 1
    %v5915 = vsel %vm372, %v5913, %v5914
    %v5916 = vrot.slane %v5860, 1
    %v5917 = vrot.slane %v5861, 1
    %v5918 = vsel %vm372, %v5916, %v5917
    %v5919 = vrot.slane %v5862, 1
    %v5920 = vrot.slane %v5863, 1
    %v5921 = vsel %vm372, %v5919, %v5920
    %v5922 = vrot.slane %v5864, 1
    %v5923 = vrot.slane %v5865, 1
    %v5924 = vsel %vm372, %v5922, %v5923
    %v5925 = vrot.slane %v5866, 1
    %v5926 = vrot.slane %v5867, 1
    %v5927 = vsel %vm372, %v5925, %v5926
    %v5952 = vadd.f32 %v5819, %v5894
    %v5953 = vadd.f32 %v5820, %v5893
    %v5954 = vadd.f32 %v5821, %v5897
    %v5955 = vadd.f32 %v5822, %v5896
    %v5956 = vadd.f32 %v5823, %v5900
    %v5957 = vadd.f32 %v5824, %v5899
    %v5958 = vadd.f32 %v5825, %v5903
    %v5959 = vadd.f32 %v5826, %v5902
    %v5960 = vadd.f32 %v5827, %v5906
    %v5961 = vadd.f32 %v5828, %v5905
    %v5962 = vadd.f32 %v5829, %v5909
    %v5963 = vadd.f32 %v5830, %v5908
    %v5964 = vadd.f32 %v5831, %v5912
    %v5965 = vadd.f32 %v5832, %v5911
    %v5966 = vadd.f32 %v5833, %v5915
    %v5967 = vadd.f32 %v5834, %v5914
    %v5968 = vadd.f32 %v5835, %v5918
    %v5969 = vadd.f32 %v5836, %v5917
    %v5970 = vadd.f32 %v5837, %v5921
    %v5971 = vadd.f32 %v5838, %v5920
    %v5972 = vadd.f32 %v5839, %v5924
    %v5973 = vadd.f32 %v5840, %v5923
    %v5974 = vadd.f32 %v5841, %v5927
    %v5975 = vadd.f32 %v5842, %v5926
    %v5976 = vstv %s123
    %v5977 = vmul.f32 %v5976, %v5402
    %v5978 = vmul.f32 %v5976, %v5403
    %v5979 = vmul.f32 %v5976, %v5404
    %v5980 = vmul.f32 %v5976, %v5405
    %v5981 = vmul.f32 %v5976, %v5406
    %v5982 = vmul.f32 %v5976, %v5407
    %v5983 = vmul.f32 %v5976, %v5408
    %v5984 = vmul.f32 %v5976, %v5409
    %v5985 = vmul.f32 %v5976, %v5410
    %v5986 = vmul.f32 %v5976, %v5411
    %v5987 = vmul.f32 %v5976, %v5412
    %v5988 = vmul.f32 %v5976, %v5413
    %v5989 = vmul.f32 %v5976, %v5414
    %v5990 = vmul.f32 %v5976, %v5415
    %v5991 = vmul.f32 %v5976, %v5416
    %v5992 = vmul.f32 %v5976, %v5417
    %v5993 = vmul.f32 %v5976, %v5418
    %v5994 = vmul.f32 %v5976, %v5419
    %v5995 = vmul.f32 %v5976, %v5420
    %v5996 = vmul.f32 %v5976, %v5421
    %v5997 = vmul.f32 %v5976, %v5422
    %v5998 = vmul.f32 %v5976, %v5423
    %v5999 = vmul.f32 %v5976, %v5424
    %v6000 = vmul.f32 %v5976, %v5425
    %v6025 = vrot.slane %v5977, 2
    %v6026 = vrot.slane %v5978, 2
    %v6027 = vsel %vm838, %v6025, %v6026
    %v6028 = vrot.slane %v5979, 2
    %v6029 = vrot.slane %v5980, 2
    %v6030 = vsel %vm838, %v6028, %v6029
    %v6031 = vrot.slane %v5981, 2
    %v6032 = vrot.slane %v5982, 2
    %v6033 = vsel %vm838, %v6031, %v6032
    %v6034 = vrot.slane %v5983, 2
    %v6035 = vrot.slane %v5984, 2
    %v6036 = vsel %vm838, %v6034, %v6035
    %v6037 = vrot.slane %v5985, 2
    %v6038 = vrot.slane %v5986, 2
    %v6039 = vsel %vm838, %v6037, %v6038
    %v6040 = vrot.slane %v5987, 2
    %v6041 = vrot.slane %v5988, 2
    %v6042 = vsel %vm838, %v6040, %v6041
    %v6043 = vrot.slane %v5989, 2
    %v6044 = vrot.slane %v5990, 2
    %v6045 = vsel %vm838, %v6043, %v6044
    %v6046 = vrot.slane %v5991, 2
    %v6047 = vrot.slane %v5992, 2
    %v6048 = vsel %vm838, %v6046, %v6047
    %v6049 = vrot.slane %v5993, 2
    %v6050 = vrot.slane %v5994, 2
    %v6051 = vsel %vm838, %v6049, %v6050
    %v6052 = vrot.slane %v5995, 2
    %v6053 = vrot.slane %v5996, 2
    %v6054 = vsel %vm838, %v6052, %v6053
    %v6055 = vrot.slane %v5997, 2
    %v6056 = vrot.slane %v5998, 2
    %v6057 = vsel %vm838, %v6055, %v6056
    %v6058 = vrot.slane %v5999, 2
    %v6059 = vrot.slane %v6000, 2
    %v6060 = vsel %vm838, %v6058, %v6059
    %v6085 = vadd.f32 %v5952, %v6027
    %v6086 = vadd.f32 %v5953, %v6026
    %v6087 = vadd.f32 %v5954, %v6030
    %v6088 = vadd.f32 %v5955, %v6029
    %v6089 = vadd.f32 %v5956, %v6033
    %v6090 = vadd.f32 %v5957, %v6032
    %v6091 = vadd.f32 %v5958, %v6036
    %v6092 = vadd.f32 %v5959, %v6035
    %v6093 = vadd.f32 %v5960, %v6039
    %v6094 = vadd.f32 %v5961, %v6038
    %v6095 = vadd.f32 %v5962, %v6042
    %v6096 = vadd.f32 %v5963, %v6041
    %v6097 = vadd.f32 %v5964, %v6045
    %v6098 = vadd.f32 %v5965, %v6044
    %v6099 = vadd.f32 %v5966, %v6048
    %v6100 = vadd.f32 %v5967, %v6047
    %v6101 = vadd.f32 %v5968, %v6051
    %v6102 = vadd.f32 %v5969, %v6050
    %v6103 = vadd.f32 %v5970, %v6054
    %v6104 = vadd.f32 %v5971, %v6053
    %v6105 = vadd.f32 %v5972, %v6057
    %v6106 = vadd.f32 %v5973, %v6056
    %v6107 = vadd.f32 %v5974, %v6060
    %v6108 = vadd.f32 %v5975, %v6059
    %v6109 = vstv %s126
    %v6110 = vmul.f32 %v6109, %v5404
    %v6111 = vmul.f32 %v6109, %v5405
    %v6112 = vmul.f32 %v6109, %v5406
    %v6113 = vmul.f32 %v6109, %v5407
    %v6114 = vmul.f32 %v6109, %v5408
    %v6115 = vmul.f32 %v6109, %v5409
    %v6116 = vmul.f32 %v6109, %v5410
    %v6117 = vmul.f32 %v6109, %v5411
    %v6118 = vmul.f32 %v6109, %v5412
    %v6119 = vmul.f32 %v6109, %v5413
    %v6120 = vmul.f32 %v6109, %v5414
    %v6121 = vmul.f32 %v6109, %v5415
    %v6122 = vmul.f32 %v6109, %v5416
    %v6123 = vmul.f32 %v6109, %v5417
    %v6124 = vmul.f32 %v6109, %v5418
    %v6125 = vmul.f32 %v6109, %v5419
    %v6126 = vmul.f32 %v6109, %v5420
    %v6127 = vmul.f32 %v6109, %v5421
    %v6128 = vmul.f32 %v6109, %v5422
    %v6129 = vmul.f32 %v6109, %v5423
    %v6130 = vmul.f32 %v6109, %v5424
    %v6131 = vmul.f32 %v6109, %v5425
    %v6132 = vmul.f32 %v6109, %v5426
    %v6133 = vmul.f32 %v6109, %v5427
    %v6158 = vrot.slane %v6110, 2
    %v6159 = vrot.slane %v6111, 2
    %v6160 = vsel %vm838, %v6158, %v6159
    %v6161 = vrot.slane %v6112, 2
    %v6162 = vrot.slane %v6113, 2
    %v6163 = vsel %vm838, %v6161, %v6162
    %v6164 = vrot.slane %v6114, 2
    %v6165 = vrot.slane %v6115, 2
    %v6166 = vsel %vm838, %v6164, %v6165
    %v6167 = vrot.slane %v6116, 2
    %v6168 = vrot.slane %v6117, 2
    %v6169 = vsel %vm838, %v6167, %v6168
    %v6170 = vrot.slane %v6118, 2
    %v6171 = vrot.slane %v6119, 2
    %v6172 = vsel %vm838, %v6170, %v6171
    %v6173 = vrot.slane %v6120, 2
    %v6174 = vrot.slane %v6121, 2
    %v6175 = vsel %vm838, %v6173, %v6174
    %v6176 = vrot.slane %v6122, 2
    %v6177 = vrot.slane %v6123, 2
    %v6178 = vsel %vm838, %v6176, %v6177
    %v6179 = vrot.slane %v6124, 2
    %v6180 = vrot.slane %v6125, 2
    %v6181 = vsel %vm838, %v6179, %v6180
    %v6182 = vrot.slane %v6126, 2
    %v6183 = vrot.slane %v6127, 2
    %v6184 = vsel %vm838, %v6182, %v6183
    %v6185 = vrot.slane %v6128, 2
    %v6186 = vrot.slane %v6129, 2
    %v6187 = vsel %vm838, %v6185, %v6186
    %v6188 = vrot.slane %v6130, 2
    %v6189 = vrot.slane %v6131, 2
    %v6190 = vsel %vm838, %v6188, %v6189
    %v6191 = vrot.slane %v6132, 2
    %v6192 = vrot.slane %v6133, 2
    %v6193 = vsel %vm838, %v6191, %v6192
    %v6218 = vadd.f32 %v6085, %v6160
    %v6219 = vadd.f32 %v6086, %v6159
    %v6220 = vadd.f32 %v6087, %v6163
    %v6221 = vadd.f32 %v6088, %v6162
    %v6222 = vadd.f32 %v6089, %v6166
    %v6223 = vadd.f32 %v6090, %v6165
    %v6224 = vadd.f32 %v6091, %v6169
    %v6225 = vadd.f32 %v6092, %v6168
    %v6226 = vadd.f32 %v6093, %v6172
    %v6227 = vadd.f32 %v6094, %v6171
    %v6228 = vadd.f32 %v6095, %v6175
    %v6229 = vadd.f32 %v6096, %v6174
    %v6230 = vadd.f32 %v6097, %v6178
    %v6231 = vadd.f32 %v6098, %v6177
    %v6232 = vadd.f32 %v6099, %v6181
    %v6233 = vadd.f32 %v6100, %v6180
    %v6234 = vadd.f32 %v6101, %v6184
    %v6235 = vadd.f32 %v6102, %v6183
    %v6236 = vadd.f32 %v6103, %v6187
    %v6237 = vadd.f32 %v6104, %v6186
    %v6238 = vadd.f32 %v6105, %v6190
    %v6239 = vadd.f32 %v6106, %v6189
    %v6240 = vadd.f32 %v6107, %v6193
    %v6241 = vadd.f32 %v6108, %v6192
    %v6242 = vstv %s129
    %v6243 = vmul.f32 %v6242, %v5406
    %v6244 = vmul.f32 %v6242, %v5407
    %v6245 = vmul.f32 %v6242, %v5408
    %v6246 = vmul.f32 %v6242, %v5409
    %v6247 = vmul.f32 %v6242, %v5410
    %v6248 = vmul.f32 %v6242, %v5411
    %v6249 = vmul.f32 %v6242, %v5412
    %v6250 = vmul.f32 %v6242, %v5413
    %v6251 = vmul.f32 %v6242, %v5414
    %v6252 = vmul.f32 %v6242, %v5415
    %v6253 = vmul.f32 %v6242, %v5416
    %v6254 = vmul.f32 %v6242, %v5417
    %v6255 = vmul.f32 %v6242, %v5418
    %v6256 = vmul.f32 %v6242, %v5419
    %v6257 = vmul.f32 %v6242, %v5420
    %v6258 = vmul.f32 %v6242, %v5421
    %v6259 = vmul.f32 %v6242, %v5422
    %v6260 = vmul.f32 %v6242, %v5423
    %v6261 = vmul.f32 %v6242, %v5424
    %v6262 = vmul.f32 %v6242, %v5425
    %v6263 = vmul.f32 %v6242, %v5426
    %v6264 = vmul.f32 %v6242, %v5427
    %v6265 = vmul.f32 %v6242, %v5428
    %v6266 = vmul.f32 %v6242, %v5429
    %v6291 = vrot.slane %v6243, 2
    %v6292 = vrot.slane %v6244, 2
    %v6293 = vsel %vm838, %v6291, %v6292
    %v6294 = vrot.slane %v6245, 2
    %v6295 = vrot.slane %v6246, 2
    %v6296 = vsel %vm838, %v6294, %v6295
    %v6297 = vrot.slane %v6247, 2
    %v6298 = vrot.slane %v6248, 2
    %v6299 = vsel %vm838, %v6297, %v6298
    %v6300 = vrot.slane %v6249, 2
    %v6301 = vrot.slane %v6250, 2
    %v6302 = vsel %vm838, %v6300, %v6301
    %v6303 = vrot.slane %v6251, 2
    %v6304 = vrot.slane %v6252, 2
    %v6305 = vsel %vm838, %v6303, %v6304
    %v6306 = vrot.slane %v6253, 2
    %v6307 = vrot.slane %v6254, 2
    %v6308 = vsel %vm838, %v6306, %v6307
    %v6309 = vrot.slane %v6255, 2
    %v6310 = vrot.slane %v6256, 2
    %v6311 = vsel %vm838, %v6309, %v6310
    %v6312 = vrot.slane %v6257, 2
    %v6313 = vrot.slane %v6258, 2
    %v6314 = vsel %vm838, %v6312, %v6313
    %v6315 = vrot.slane %v6259, 2
    %v6316 = vrot.slane %v6260, 2
    %v6317 = vsel %vm838, %v6315, %v6316
    %v6318 = vrot.slane %v6261, 2
    %v6319 = vrot.slane %v6262, 2
    %v6320 = vsel %vm838, %v6318, %v6319
    %v6321 = vrot.slane %v6263, 2
    %v6322 = vrot.slane %v6264, 2
    %v6323 = vsel %vm838, %v6321, %v6322
    %v6324 = vrot.slane %v6265, 2
    %v6325 = vrot.slane %v6266, 2
    %v6326 = vsel %vm838, %v6324, %v6325
    %v6351 = vadd.f32 %v6218, %v6293
    %v6352 = vadd.f32 %v6219, %v6292
    %v6353 = vadd.f32 %v6220, %v6296
    %v6354 = vadd.f32 %v6221, %v6295
    %v6355 = vadd.f32 %v6222, %v6299
    %v6356 = vadd.f32 %v6223, %v6298
    %v6357 = vadd.f32 %v6224, %v6302
    %v6358 = vadd.f32 %v6225, %v6301
    %v6359 = vadd.f32 %v6226, %v6305
    %v6360 = vadd.f32 %v6227, %v6304
    %v6361 = vadd.f32 %v6228, %v6308
    %v6362 = vadd.f32 %v6229, %v6307
    %v6363 = vadd.f32 %v6230, %v6311
    %v6364 = vadd.f32 %v6231, %v6310
    %v6365 = vadd.f32 %v6232, %v6314
    %v6366 = vadd.f32 %v6233, %v6313
    %v6367 = vadd.f32 %v6234, %v6317
    %v6368 = vadd.f32 %v6235, %v6316
    %v6369 = vadd.f32 %v6236, %v6320
    %v6370 = vadd.f32 %v6237, %v6319
    %v6371 = vadd.f32 %v6238, %v6323
    %v6372 = vadd.f32 %v6239, %v6322
    %v6373 = vadd.f32 %v6240, %v6326
    %v6374 = vadd.f32 %v6241, %v6325
    %v6375 = vstv %s90
    %v6376 = vmul.f32 %v6375, %v140
    %v6377 = vmul.f32 %v6375, %v141
    %v6378 = vmul.f32 %v6375, %v142
    %v6379 = vmul.f32 %v6375, %v143
    %v6380 = vmul.f32 %v6375, %v144
    %v6381 = vmul.f32 %v6375, %v145
    %v6382 = vmul.f32 %v6375, %v146
    %v6383 = vmul.f32 %v6375, %v147
    %v6384 = vmul.f32 %v6375, %v148
    %v6385 = vmul.f32 %v6375, %v149
    %v6386 = vmul.f32 %v6375, %v150
    %v6387 = vmul.f32 %v6375, %v151
    %v6388 = vmul.f32 %v6375, %v152
    %v6389 = vmul.f32 %v6375, %v153
    %v6390 = vmul.f32 %v6375, %v154
    %v6391 = vmul.f32 %v6375, %v155
    %v6392 = vmul.f32 %v6375, %v156
    %v6393 = vmul.f32 %v6375, %v157
    %v6394 = vmul.f32 %v6375, %v158
    %v6395 = vmul.f32 %v6375, %v159
    %v6396 = vmul.f32 %v6375, %v160
    %v6397 = vmul.f32 %v6375, %v161
    %v6398 = vmul.f32 %v6375, %v162
    %v6399 = vmul.f32 %v6375, %v163
    %v6400 = vmul.f32 %v6375, %v164
    %v6401 = vmul.f32 %v6375, %v165
    %v6402 = vmul.f32 %v6375, %v166
    %v6403 = vmul.f32 %v6375, %v167
    %v6404 = vstv %s93
    %v6405 = vmul.f32 %v6404, %v142
    %v6406 = vmul.f32 %v6404, %v143
    %v6407 = vmul.f32 %v6404, %v144
    %v6408 = vmul.f32 %v6404, %v145
    %v6409 = vmul.f32 %v6404, %v146
    %v6410 = vmul.f32 %v6404, %v147
    %v6411 = vmul.f32 %v6404, %v148
    %v6412 = vmul.f32 %v6404, %v149
    %v6413 = vmul.f32 %v6404, %v150
    %v6414 = vmul.f32 %v6404, %v151
    %v6415 = vmul.f32 %v6404, %v152
    %v6416 = vmul.f32 %v6404, %v153
    %v6417 = vmul.f32 %v6404, %v154
    %v6418 = vmul.f32 %v6404, %v155
    %v6419 = vmul.f32 %v6404, %v156
    %v6420 = vmul.f32 %v6404, %v157
    %v6421 = vmul.f32 %v6404, %v158
    %v6422 = vmul.f32 %v6404, %v159
    %v6423 = vmul.f32 %v6404, %v160
    %v6424 = vmul.f32 %v6404, %v161
    %v6425 = vmul.f32 %v6404, %v162
    %v6426 = vmul.f32 %v6404, %v163
    %v6427 = vmul.f32 %v6404, %v164
    %v6428 = vmul.f32 %v6404, %v165
    %v6429 = vmul.f32 %v6404, %v166
    %v6430 = vmul.f32 %v6404, %v167
    %v6431 = vmul.f32 %v6404, %v168
    %v6432 = vmul.f32 %v6404, %v169
    %v6433 = vadd.f32 %v6376, %v6405
    %v6434 = vadd.f32 %v6377, %v6406
    %v6435 = vadd.f32 %v6378, %v6407
    %v6436 = vadd.f32 %v6379, %v6408
    %v6437 = vadd.f32 %v6380, %v6409
    %v6438 = vadd.f32 %v6381, %v6410
    %v6439 = vadd.f32 %v6382, %v6411
    %v6440 = vadd.f32 %v6383, %v6412
    %v6441 = vadd.f32 %v6384, %v6413
    %v6442 = vadd.f32 %v6385, %v6414
    %v6443 = vadd.f32 %v6386, %v6415
    %v6444 = vadd.f32 %v6387, %v6416
    %v6445 = vadd.f32 %v6388, %v6417
    %v6446 = vadd.f32 %v6389, %v6418
    %v6447 = vadd.f32 %v6390, %v6419
    %v6448 = vadd.f32 %v6391, %v6420
    %v6449 = vadd.f32 %v6392, %v6421
    %v6450 = vadd.f32 %v6393, %v6422
    %v6451 = vadd.f32 %v6394, %v6423
    %v6452 = vadd.f32 %v6395, %v6424
    %v6453 = vadd.f32 %v6396, %v6425
    %v6454 = vadd.f32 %v6397, %v6426
    %v6455 = vadd.f32 %v6398, %v6427
    %v6456 = vadd.f32 %v6399, %v6428
    %v6457 = vadd.f32 %v6400, %v6429
    %v6458 = vadd.f32 %v6401, %v6430
    %v6459 = vadd.f32 %v6402, %v6431
    %v6460 = vadd.f32 %v6403, %v6432
    %v6461 = vstv %s96
    %v6462 = vmul.f32 %v6461, %v144
    %v6463 = vmul.f32 %v6461, %v145
    %v6464 = vmul.f32 %v6461, %v146
    %v6465 = vmul.f32 %v6461, %v147
    %v6466 = vmul.f32 %v6461, %v148
    %v6467 = vmul.f32 %v6461, %v149
    %v6468 = vmul.f32 %v6461, %v150
    %v6469 = vmul.f32 %v6461, %v151
    %v6470 = vmul.f32 %v6461, %v152
    %v6471 = vmul.f32 %v6461, %v153
    %v6472 = vmul.f32 %v6461, %v154
    %v6473 = vmul.f32 %v6461, %v155
    %v6474 = vmul.f32 %v6461, %v156
    %v6475 = vmul.f32 %v6461, %v157
    %v6476 = vmul.f32 %v6461, %v158
    %v6477 = vmul.f32 %v6461, %v159
    %v6478 = vmul.f32 %v6461, %v160
    %v6479 = vmul.f32 %v6461, %v161
    %v6480 = vmul.f32 %v6461, %v162
    %v6481 = vmul.f32 %v6461, %v163
    %v6482 = vmul.f32 %v6461, %v164
    %v6483 = vmul.f32 %v6461, %v165
    %v6484 = vmul.f32 %v6461, %v166
    %v6485 = vmul.f32 %v6461, %v167
    %v6486 = vmul.f32 %v6461, %v168
    %v6487 = vmul.f32 %v6461, %v169
    %v6488 = vmul.f32 %v6461, %v170
    %v6489 = vmul.f32 %v6461, %v171
    %v6490 = vadd.f32 %v6433, %v6462
    %v6491 = vadd.f32 %v6434, %v6463
    %v6492 = vadd.f32 %v6435, %v6464
    %v6493 = vadd.f32 %v6436, %v6465
    %v6494 = vadd.f32 %v6437, %v6466
    %v6495 = vadd.f32 %v6438, %v6467
    %v6496 = vadd.f32 %v6439, %v6468
    %v6497 = vadd.f32 %v6440, %v6469
    %v6498 = vadd.f32 %v6441, %v6470
    %v6499 = vadd.f32 %v6442, %v6471
    %v6500 = vadd.f32 %v6443, %v6472
    %v6501 = vadd.f32 %v6444, %v6473
    %v6502 = vadd.f32 %v6445, %v6474
    %v6503 = vadd.f32 %v6446, %v6475
    %v6504 = vadd.f32 %v6447, %v6476
    %v6505 = vadd.f32 %v6448, %v6477
    %v6506 = vadd.f32 %v6449, %v6478
    %v6507 = vadd.f32 %v6450, %v6479
    %v6508 = vadd.f32 %v6451, %v6480
    %v6509 = vadd.f32 %v6452, %v6481
    %v6510 = vadd.f32 %v6453, %v6482
    %v6511 = vadd.f32 %v6454, %v6483
    %v6512 = vadd.f32 %v6455, %v6484
    %v6513 = vadd.f32 %v6456, %v6485
    %v6514 = vadd.f32 %v6457, %v6486
    %v6515 = vadd.f32 %v6458, %v6487
    %v6516 = vadd.f32 %v6459, %v6488
    %v6517 = vadd.f32 %v6460, %v6489
    %v6518 = vstv %s91
    %v6519 = vmul.f32 %v6518, %v140
    %v6520 = vmul.f32 %v6518, %v141
    %v6521 = vmul.f32 %v6518, %v142
    %v6522 = vmul.f32 %v6518, %v143
    %v6523 = vmul.f32 %v6518, %v144
    %v6524 = vmul.f32 %v6518, %v145
    %v6525 = vmul.f32 %v6518, %v146
    %v6526 = vmul.f32 %v6518, %v147
    %v6527 = vmul.f32 %v6518, %v148
    %v6528 = vmul.f32 %v6518, %v149
    %v6529 = vmul.f32 %v6518, %v150
    %v6530 = vmul.f32 %v6518, %v151
    %v6531 = vmul.f32 %v6518, %v152
    %v6532 = vmul.f32 %v6518, %v153
    %v6533 = vmul.f32 %v6518, %v154
    %v6534 = vmul.f32 %v6518, %v155
    %v6535 = vmul.f32 %v6518, %v156
    %v6536 = vmul.f32 %v6518, %v157
    %v6537 = vmul.f32 %v6518, %v158
    %v6538 = vmul.f32 %v6518, %v159
    %v6539 = vmul.f32 %v6518, %v160
    %v6540 = vmul.f32 %v6518, %v161
    %v6541 = vmul.f32 %v6518, %v162
    %v6542 = vmul.f32 %v6518, %v163
    %v6543 = vmul.f32 %v6518, %v164
    %v6544 = vmul.f32 %v6518, %v165
    %v6545 = vmul.f32 %v6518, %v166
    %v6546 = vmul.f32 %v6518, %v167
    %v6575 = vrot.slane %v6519, 1
    %v6576 = vrot.slane %v6520, 1
    %v6577 = vsel %vm372, %v6575, %v6576
    %v6578 = vrot.slane %v6521, 1
    %v6579 = vrot.slane %v6522, 1
    %v6580 = vsel %vm372, %v6578, %v6579
    %v6581 = vrot.slane %v6523, 1
    %v6582 = vrot.slane %v6524, 1
    %v6583 = vsel %vm372, %v6581, %v6582
    %v6584 = vrot.slane %v6525, 1
    %v6585 = vrot.slane %v6526, 1
    %v6586 = vsel %vm372, %v6584, %v6585
    %v6587 = vrot.slane %v6527, 1
    %v6588 = vrot.slane %v6528, 1
    %v6589 = vsel %vm372, %v6587, %v6588
    %v6590 = vrot.slane %v6529, 1
    %v6591 = vrot.slane %v6530, 1
    %v6592 = vsel %vm372, %v6590, %v6591
    %v6593 = vrot.slane %v6531, 1
    %v6594 = vrot.slane %v6532, 1
    %v6595 = vsel %vm372, %v6593, %v6594
    %v6596 = vrot.slane %v6533, 1
    %v6597 = vrot.slane %v6534, 1
    %v6598 = vsel %vm372, %v6596, %v6597
    %v6599 = vrot.slane %v6535, 1
    %v6600 = vrot.slane %v6536, 1
    %v6601 = vsel %vm372, %v6599, %v6600
    %v6602 = vrot.slane %v6537, 1
    %v6603 = vrot.slane %v6538, 1
    %v6604 = vsel %vm372, %v6602, %v6603
    %v6605 = vrot.slane %v6539, 1
    %v6606 = vrot.slane %v6540, 1
    %v6607 = vsel %vm372, %v6605, %v6606
    %v6608 = vrot.slane %v6541, 1
    %v6609 = vrot.slane %v6542, 1
    %v6610 = vsel %vm372, %v6608, %v6609
    %v6611 = vrot.slane %v6543, 1
    %v6612 = vrot.slane %v6544, 1
    %v6613 = vsel %vm372, %v6611, %v6612
    %v6614 = vrot.slane %v6545, 1
    %v6615 = vrot.slane %v6546, 1
    %v6616 = vsel %vm372, %v6614, %v6615
    %v6645 = vadd.f32 %v6490, %v6577
    %v6646 = vadd.f32 %v6491, %v6576
    %v6647 = vadd.f32 %v6492, %v6580
    %v6648 = vadd.f32 %v6493, %v6579
    %v6649 = vadd.f32 %v6494, %v6583
    %v6650 = vadd.f32 %v6495, %v6582
    %v6651 = vadd.f32 %v6496, %v6586
    %v6652 = vadd.f32 %v6497, %v6585
    %v6653 = vadd.f32 %v6498, %v6589
    %v6654 = vadd.f32 %v6499, %v6588
    %v6655 = vadd.f32 %v6500, %v6592
    %v6656 = vadd.f32 %v6501, %v6591
    %v6657 = vadd.f32 %v6502, %v6595
    %v6658 = vadd.f32 %v6503, %v6594
    %v6659 = vadd.f32 %v6504, %v6598
    %v6660 = vadd.f32 %v6505, %v6597
    %v6661 = vadd.f32 %v6506, %v6601
    %v6662 = vadd.f32 %v6507, %v6600
    %v6663 = vadd.f32 %v6508, %v6604
    %v6664 = vadd.f32 %v6509, %v6603
    %v6665 = vadd.f32 %v6510, %v6607
    %v6666 = vadd.f32 %v6511, %v6606
    %v6667 = vadd.f32 %v6512, %v6610
    %v6668 = vadd.f32 %v6513, %v6609
    %v6669 = vadd.f32 %v6514, %v6613
    %v6670 = vadd.f32 %v6515, %v6612
    %v6671 = vadd.f32 %v6516, %v6616
    %v6672 = vadd.f32 %v6517, %v6615
    %v6673 = vstv %s94
    %v6674 = vmul.f32 %v6673, %v142
    %v6675 = vmul.f32 %v6673, %v143
    %v6676 = vmul.f32 %v6673, %v144
    %v6677 = vmul.f32 %v6673, %v145
    %v6678 = vmul.f32 %v6673, %v146
    %v6679 = vmul.f32 %v6673, %v147
    %v6680 = vmul.f32 %v6673, %v148
    %v6681 = vmul.f32 %v6673, %v149
    %v6682 = vmul.f32 %v6673, %v150
    %v6683 = vmul.f32 %v6673, %v151
    %v6684 = vmul.f32 %v6673, %v152
    %v6685 = vmul.f32 %v6673, %v153
    %v6686 = vmul.f32 %v6673, %v154
    %v6687 = vmul.f32 %v6673, %v155
    %v6688 = vmul.f32 %v6673, %v156
    %v6689 = vmul.f32 %v6673, %v157
    %v6690 = vmul.f32 %v6673, %v158
    %v6691 = vmul.f32 %v6673, %v159
    %v6692 = vmul.f32 %v6673, %v160
    %v6693 = vmul.f32 %v6673, %v161
    %v6694 = vmul.f32 %v6673, %v162
    %v6695 = vmul.f32 %v6673, %v163
    %v6696 = vmul.f32 %v6673, %v164
    %v6697 = vmul.f32 %v6673, %v165
    %v6698 = vmul.f32 %v6673, %v166
    %v6699 = vmul.f32 %v6673, %v167
    %v6700 = vmul.f32 %v6673, %v168
    %v6701 = vmul.f32 %v6673, %v169
    %v6730 = vrot.slane %v6674, 1
    %v6731 = vrot.slane %v6675, 1
    %v6732 = vsel %vm372, %v6730, %v6731
    %v6733 = vrot.slane %v6676, 1
    %v6734 = vrot.slane %v6677, 1
    %v6735 = vsel %vm372, %v6733, %v6734
    %v6736 = vrot.slane %v6678, 1
    %v6737 = vrot.slane %v6679, 1
    %v6738 = vsel %vm372, %v6736, %v6737
    %v6739 = vrot.slane %v6680, 1
    %v6740 = vrot.slane %v6681, 1
    %v6741 = vsel %vm372, %v6739, %v6740
    %v6742 = vrot.slane %v6682, 1
    %v6743 = vrot.slane %v6683, 1
    %v6744 = vsel %vm372, %v6742, %v6743
    %v6745 = vrot.slane %v6684, 1
    %v6746 = vrot.slane %v6685, 1
    %v6747 = vsel %vm372, %v6745, %v6746
    %v6748 = vrot.slane %v6686, 1
    %v6749 = vrot.slane %v6687, 1
    %v6750 = vsel %vm372, %v6748, %v6749
    %v6751 = vrot.slane %v6688, 1
    %v6752 = vrot.slane %v6689, 1
    %v6753 = vsel %vm372, %v6751, %v6752
    %v6754 = vrot.slane %v6690, 1
    %v6755 = vrot.slane %v6691, 1
    %v6756 = vsel %vm372, %v6754, %v6755
    %v6757 = vrot.slane %v6692, 1
    %v6758 = vrot.slane %v6693, 1
    %v6759 = vsel %vm372, %v6757, %v6758
    %v6760 = vrot.slane %v6694, 1
    %v6761 = vrot.slane %v6695, 1
    %v6762 = vsel %vm372, %v6760, %v6761
    %v6763 = vrot.slane %v6696, 1
    %v6764 = vrot.slane %v6697, 1
    %v6765 = vsel %vm372, %v6763, %v6764
    %v6766 = vrot.slane %v6698, 1
    %v6767 = vrot.slane %v6699, 1
    %v6768 = vsel %vm372, %v6766, %v6767
    %v6769 = vrot.slane %v6700, 1
    %v6770 = vrot.slane %v6701, 1
    %v6771 = vsel %vm372, %v6769, %v6770
    %v6800 = vadd.f32 %v6645, %v6732
    %v6801 = vadd.f32 %v6646, %v6731
    %v6802 = vadd.f32 %v6647, %v6735
    %v6803 = vadd.f32 %v6648, %v6734
    %v6804 = vadd.f32 %v6649, %v6738
    %v6805 = vadd.f32 %v6650, %v6737
    %v6806 = vadd.f32 %v6651, %v6741
    %v6807 = vadd.f32 %v6652, %v6740
    %v6808 = vadd.f32 %v6653, %v6744
    %v6809 = vadd.f32 %v6654, %v6743
    %v6810 = vadd.f32 %v6655, %v6747
    %v6811 = vadd.f32 %v6656, %v6746
    %v6812 = vadd.f32 %v6657, %v6750
    %v6813 = vadd.f32 %v6658, %v6749
    %v6814 = vadd.f32 %v6659, %v6753
    %v6815 = vadd.f32 %v6660, %v6752
    %v6816 = vadd.f32 %v6661, %v6756
    %v6817 = vadd.f32 %v6662, %v6755
    %v6818 = vadd.f32 %v6663, %v6759
    %v6819 = vadd.f32 %v6664, %v6758
    %v6820 = vadd.f32 %v6665, %v6762
    %v6821 = vadd.f32 %v6666, %v6761
    %v6822 = vadd.f32 %v6667, %v6765
    %v6823 = vadd.f32 %v6668, %v6764
    %v6824 = vadd.f32 %v6669, %v6768
    %v6825 = vadd.f32 %v6670, %v6767
    %v6826 = vadd.f32 %v6671, %v6771
    %v6827 = vadd.f32 %v6672, %v6770
    %v6828 = vstv %s97
    %v6829 = vmul.f32 %v6828, %v144
    %v6830 = vmul.f32 %v6828, %v145
    %v6831 = vmul.f32 %v6828, %v146
    %v6832 = vmul.f32 %v6828, %v147
    %v6833 = vmul.f32 %v6828, %v148
    %v6834 = vmul.f32 %v6828, %v149
    %v6835 = vmul.f32 %v6828, %v150
    %v6836 = vmul.f32 %v6828, %v151
    %v6837 = vmul.f32 %v6828, %v152
    %v6838 = vmul.f32 %v6828, %v153
    %v6839 = vmul.f32 %v6828, %v154
    %v6840 = vmul.f32 %v6828, %v155
    %v6841 = vmul.f32 %v6828, %v156
    %v6842 = vmul.f32 %v6828, %v157
    %v6843 = vmul.f32 %v6828, %v158
    %v6844 = vmul.f32 %v6828, %v159
    %v6845 = vmul.f32 %v6828, %v160
    %v6846 = vmul.f32 %v6828, %v161
    %v6847 = vmul.f32 %v6828, %v162
    %v6848 = vmul.f32 %v6828, %v163
    %v6849 = vmul.f32 %v6828, %v164
    %v6850 = vmul.f32 %v6828, %v165
    %v6851 = vmul.f32 %v6828, %v166
    %v6852 = vmul.f32 %v6828, %v167
    %v6853 = vmul.f32 %v6828, %v168
    %v6854 = vmul.f32 %v6828, %v169
    %v6855 = vmul.f32 %v6828, %v170
    %v6856 = vmul.f32 %v6828, %v171
    %v6885 = vrot.slane %v6829, 1
    %v6886 = vrot.slane %v6830, 1
    %v6887 = vsel %vm372, %v6885, %v6886
    %v6888 = vrot.slane %v6831, 1
    %v6889 = vrot.slane %v6832, 1
    %v6890 = vsel %vm372, %v6888, %v6889
    %v6891 = vrot.slane %v6833, 1
    %v6892 = vrot.slane %v6834, 1
    %v6893 = vsel %vm372, %v6891, %v6892
    %v6894 = vrot.slane %v6835, 1
    %v6895 = vrot.slane %v6836, 1
    %v6896 = vsel %vm372, %v6894, %v6895
    %v6897 = vrot.slane %v6837, 1
    %v6898 = vrot.slane %v6838, 1
    %v6899 = vsel %vm372, %v6897, %v6898
    %v6900 = vrot.slane %v6839, 1
    %v6901 = vrot.slane %v6840, 1
    %v6902 = vsel %vm372, %v6900, %v6901
    %v6903 = vrot.slane %v6841, 1
    %v6904 = vrot.slane %v6842, 1
    %v6905 = vsel %vm372, %v6903, %v6904
    %v6906 = vrot.slane %v6843, 1
    %v6907 = vrot.slane %v6844, 1
    %v6908 = vsel %vm372, %v6906, %v6907
    %v6909 = vrot.slane %v6845, 1
    %v6910 = vrot.slane %v6846, 1
    %v6911 = vsel %vm372, %v6909, %v6910
    %v6912 = vrot.slane %v6847, 1
    %v6913 = vrot.slane %v6848, 1
    %v6914 = vsel %vm372, %v6912, %v6913
    %v6915 = vrot.slane %v6849, 1
    %v6916 = vrot.slane %v6850, 1
    %v6917 = vsel %vm372, %v6915, %v6916
    %v6918 = vrot.slane %v6851, 1
    %v6919 = vrot.slane %v6852, 1
    %v6920 = vsel %vm372, %v6918, %v6919
    %v6921 = vrot.slane %v6853, 1
    %v6922 = vrot.slane %v6854, 1
    %v6923 = vsel %vm372, %v6921, %v6922
    %v6924 = vrot.slane %v6855, 1
    %v6925 = vrot.slane %v6856, 1
    %v6926 = vsel %vm372, %v6924, %v6925
    %v6955 = vadd.f32 %v6800, %v6887
    %v6956 = vadd.f32 %v6801, %v6886
    %v6957 = vadd.f32 %v6802, %v6890
    %v6958 = vadd.f32 %v6803, %v6889
    %v6959 = vadd.f32 %v6804, %v6893
    %v6960 = vadd.f32 %v6805, %v6892
    %v6961 = vadd.f32 %v6806, %v6896
    %v6962 = vadd.f32 %v6807, %v6895
    %v6963 = vadd.f32 %v6808, %v6899
    %v6964 = vadd.f32 %v6809, %v6898
    %v6965 = vadd.f32 %v6810, %v6902
    %v6966 = vadd.f32 %v6811, %v6901
    %v6967 = vadd.f32 %v6812, %v6905
    %v6968 = vadd.f32 %v6813, %v6904
    %v6969 = vadd.f32 %v6814, %v6908
    %v6970 = vadd.f32 %v6815, %v6907
    %v6971 = vadd.f32 %v6816, %v6911
    %v6972 = vadd.f32 %v6817, %v6910
    %v6973 = vadd.f32 %v6818, %v6914
    %v6974 = vadd.f32 %v6819, %v6913
    %v6975 = vadd.f32 %v6820, %v6917
    %v6976 = vadd.f32 %v6821, %v6916
    %v6977 = vadd.f32 %v6822, %v6920
    %v6978 = vadd.f32 %v6823, %v6919
    %v6979 = vadd.f32 %v6824, %v6923
    %v6980 = vadd.f32 %v6825, %v6922
    %v6981 = vadd.f32 %v6826, %v6926
    %v6982 = vadd.f32 %v6827, %v6925
    %v6983 = vstv %s92
    %v6984 = vmul.f32 %v6983, %v140
    %v6985 = vmul.f32 %v6983, %v141
    %v6986 = vmul.f32 %v6983, %v142
    %v6987 = vmul.f32 %v6983, %v143
    %v6988 = vmul.f32 %v6983, %v144
    %v6989 = vmul.f32 %v6983, %v145
    %v6990 = vmul.f32 %v6983, %v146
    %v6991 = vmul.f32 %v6983, %v147
    %v6992 = vmul.f32 %v6983, %v148
    %v6993 = vmul.f32 %v6983, %v149
    %v6994 = vmul.f32 %v6983, %v150
    %v6995 = vmul.f32 %v6983, %v151
    %v6996 = vmul.f32 %v6983, %v152
    %v6997 = vmul.f32 %v6983, %v153
    %v6998 = vmul.f32 %v6983, %v154
    %v6999 = vmul.f32 %v6983, %v155
    %v7000 = vmul.f32 %v6983, %v156
    %v7001 = vmul.f32 %v6983, %v157
    %v7002 = vmul.f32 %v6983, %v158
    %v7003 = vmul.f32 %v6983, %v159
    %v7004 = vmul.f32 %v6983, %v160
    %v7005 = vmul.f32 %v6983, %v161
    %v7006 = vmul.f32 %v6983, %v162
    %v7007 = vmul.f32 %v6983, %v163
    %v7008 = vmul.f32 %v6983, %v164
    %v7009 = vmul.f32 %v6983, %v165
    %v7010 = vmul.f32 %v6983, %v166
    %v7011 = vmul.f32 %v6983, %v167
    %v7040 = vrot.slane %v6984, 2
    %v7041 = vrot.slane %v6985, 2
    %v7042 = vsel %vm838, %v7040, %v7041
    %v7043 = vrot.slane %v6986, 2
    %v7044 = vrot.slane %v6987, 2
    %v7045 = vsel %vm838, %v7043, %v7044
    %v7046 = vrot.slane %v6988, 2
    %v7047 = vrot.slane %v6989, 2
    %v7048 = vsel %vm838, %v7046, %v7047
    %v7049 = vrot.slane %v6990, 2
    %v7050 = vrot.slane %v6991, 2
    %v7051 = vsel %vm838, %v7049, %v7050
    %v7052 = vrot.slane %v6992, 2
    %v7053 = vrot.slane %v6993, 2
    %v7054 = vsel %vm838, %v7052, %v7053
    %v7055 = vrot.slane %v6994, 2
    %v7056 = vrot.slane %v6995, 2
    %v7057 = vsel %vm838, %v7055, %v7056
    %v7058 = vrot.slane %v6996, 2
    %v7059 = vrot.slane %v6997, 2
    %v7060 = vsel %vm838, %v7058, %v7059
    %v7061 = vrot.slane %v6998, 2
    %v7062 = vrot.slane %v6999, 2
    %v7063 = vsel %vm838, %v7061, %v7062
    %v7064 = vrot.slane %v7000, 2
    %v7065 = vrot.slane %v7001, 2
    %v7066 = vsel %vm838, %v7064, %v7065
    %v7067 = vrot.slane %v7002, 2
    %v7068 = vrot.slane %v7003, 2
    %v7069 = vsel %vm838, %v7067, %v7068
    %v7070 = vrot.slane %v7004, 2
    %v7071 = vrot.slane %v7005, 2
    %v7072 = vsel %vm838, %v7070, %v7071
    %v7073 = vrot.slane %v7006, 2
    %v7074 = vrot.slane %v7007, 2
    %v7075 = vsel %vm838, %v7073, %v7074
    %v7076 = vrot.slane %v7008, 2
    %v7077 = vrot.slane %v7009, 2
    %v7078 = vsel %vm838, %v7076, %v7077
    %v7079 = vrot.slane %v7010, 2
    %v7080 = vrot.slane %v7011, 2
    %v7081 = vsel %vm838, %v7079, %v7080
    %v7110 = vadd.f32 %v6955, %v7042
    %v7111 = vadd.f32 %v6956, %v7041
    %v7112 = vadd.f32 %v6957, %v7045
    %v7113 = vadd.f32 %v6958, %v7044
    %v7114 = vadd.f32 %v6959, %v7048
    %v7115 = vadd.f32 %v6960, %v7047
    %v7116 = vadd.f32 %v6961, %v7051
    %v7117 = vadd.f32 %v6962, %v7050
    %v7118 = vadd.f32 %v6963, %v7054
    %v7119 = vadd.f32 %v6964, %v7053
    %v7120 = vadd.f32 %v6965, %v7057
    %v7121 = vadd.f32 %v6966, %v7056
    %v7122 = vadd.f32 %v6967, %v7060
    %v7123 = vadd.f32 %v6968, %v7059
    %v7124 = vadd.f32 %v6969, %v7063
    %v7125 = vadd.f32 %v6970, %v7062
    %v7126 = vadd.f32 %v6971, %v7066
    %v7127 = vadd.f32 %v6972, %v7065
    %v7128 = vadd.f32 %v6973, %v7069
    %v7129 = vadd.f32 %v6974, %v7068
    %v7130 = vadd.f32 %v6975, %v7072
    %v7131 = vadd.f32 %v6976, %v7071
    %v7132 = vadd.f32 %v6977, %v7075
    %v7133 = vadd.f32 %v6978, %v7074
    %v7134 = vadd.f32 %v6979, %v7078
    %v7135 = vadd.f32 %v6980, %v7077
    %v7136 = vadd.f32 %v6981, %v7081
    %v7137 = vadd.f32 %v6982, %v7080
    %v7138 = vstv %s95
    %v7139 = vmul.f32 %v7138, %v142
    %v7140 = vmul.f32 %v7138, %v143
    %v7141 = vmul.f32 %v7138, %v144
    %v7142 = vmul.f32 %v7138, %v145
    %v7143 = vmul.f32 %v7138, %v146
    %v7144 = vmul.f32 %v7138, %v147
    %v7145 = vmul.f32 %v7138, %v148
    %v7146 = vmul.f32 %v7138, %v149
    %v7147 = vmul.f32 %v7138, %v150
    %v7148 = vmul.f32 %v7138, %v151
    %v7149 = vmul.f32 %v7138, %v152
    %v7150 = vmul.f32 %v7138, %v153
    %v7151 = vmul.f32 %v7138, %v154
    %v7152 = vmul.f32 %v7138, %v155
    %v7153 = vmul.f32 %v7138, %v156
    %v7154 = vmul.f32 %v7138, %v157
    %v7155 = vmul.f32 %v7138, %v158
    %v7156 = vmul.f32 %v7138, %v159
    %v7157 = vmul.f32 %v7138, %v160
    %v7158 = vmul.f32 %v7138, %v161
    %v7159 = vmul.f32 %v7138, %v162
    %v7160 = vmul.f32 %v7138, %v163
    %v7161 = vmul.f32 %v7138, %v164
    %v7162 = vmul.f32 %v7138, %v165
    %v7163 = vmul.f32 %v7138, %v166
    %v7164 = vmul.f32 %v7138, %v167
    %v7165 = vmul.f32 %v7138, %v168
    %v7166 = vmul.f32 %v7138, %v169
    %v7195 = vrot.slane %v7139, 2
    %v7196 = vrot.slane %v7140, 2
    %v7197 = vsel %vm838, %v7195, %v7196
    %v7198 = vrot.slane %v7141, 2
    %v7199 = vrot.slane %v7142, 2
    %v7200 = vsel %vm838, %v7198, %v7199
    %v7201 = vrot.slane %v7143, 2
    %v7202 = vrot.slane %v7144, 2
    %v7203 = vsel %vm838, %v7201, %v7202
    %v7204 = vrot.slane %v7145, 2
    %v7205 = vrot.slane %v7146, 2
    %v7206 = vsel %vm838, %v7204, %v7205
    %v7207 = vrot.slane %v7147, 2
    %v7208 = vrot.slane %v7148, 2
    %v7209 = vsel %vm838, %v7207, %v7208
    %v7210 = vrot.slane %v7149, 2
    %v7211 = vrot.slane %v7150, 2
    %v7212 = vsel %vm838, %v7210, %v7211
    %v7213 = vrot.slane %v7151, 2
    %v7214 = vrot.slane %v7152, 2
    %v7215 = vsel %vm838, %v7213, %v7214
    %v7216 = vrot.slane %v7153, 2
    %v7217 = vrot.slane %v7154, 2
    %v7218 = vsel %vm838, %v7216, %v7217
    %v7219 = vrot.slane %v7155, 2
    %v7220 = vrot.slane %v7156, 2
    %v7221 = vsel %vm838, %v7219, %v7220
    %v7222 = vrot.slane %v7157, 2
    %v7223 = vrot.slane %v7158, 2
    %v7224 = vsel %vm838, %v7222, %v7223
    %v7225 = vrot.slane %v7159, 2
    %v7226 = vrot.slane %v7160, 2
    %v7227 = vsel %vm838, %v7225, %v7226
    %v7228 = vrot.slane %v7161, 2
    %v7229 = vrot.slane %v7162, 2
    %v7230 = vsel %vm838, %v7228, %v7229
    %v7231 = vrot.slane %v7163, 2
    %v7232 = vrot.slane %v7164, 2
    %v7233 = vsel %vm838, %v7231, %v7232
    %v7234 = vrot.slane %v7165, 2
    %v7235 = vrot.slane %v7166, 2
    %v7236 = vsel %vm838, %v7234, %v7235
    %v7265 = vadd.f32 %v7110, %v7197
    %v7266 = vadd.f32 %v7111, %v7196
    %v7267 = vadd.f32 %v7112, %v7200
    %v7268 = vadd.f32 %v7113, %v7199
    %v7269 = vadd.f32 %v7114, %v7203
    %v7270 = vadd.f32 %v7115, %v7202
    %v7271 = vadd.f32 %v7116, %v7206
    %v7272 = vadd.f32 %v7117, %v7205
    %v7273 = vadd.f32 %v7118, %v7209
    %v7274 = vadd.f32 %v7119, %v7208
    %v7275 = vadd.f32 %v7120, %v7212
    %v7276 = vadd.f32 %v7121, %v7211
    %v7277 = vadd.f32 %v7122, %v7215
    %v7278 = vadd.f32 %v7123, %v7214
    %v7279 = vadd.f32 %v7124, %v7218
    %v7280 = vadd.f32 %v7125, %v7217
    %v7281 = vadd.f32 %v7126, %v7221
    %v7282 = vadd.f32 %v7127, %v7220
    %v7283 = vadd.f32 %v7128, %v7224
    %v7284 = vadd.f32 %v7129, %v7223
    %v7285 = vadd.f32 %v7130, %v7227
    %v7286 = vadd.f32 %v7131, %v7226
    %v7287 = vadd.f32 %v7132, %v7230
    %v7288 = vadd.f32 %v7133, %v7229
    %v7289 = vadd.f32 %v7134, %v7233
    %v7290 = vadd.f32 %v7135, %v7232
    %v7291 = vadd.f32 %v7136, %v7236
    %v7292 = vadd.f32 %v7137, %v7235
    %v7293 = vstv %s98
    %v7294 = vmul.f32 %v7293, %v144
    %v7295 = vmul.f32 %v7293, %v145
    %v7296 = vmul.f32 %v7293, %v146
    %v7297 = vmul.f32 %v7293, %v147
    %v7298 = vmul.f32 %v7293, %v148
    %v7299 = vmul.f32 %v7293, %v149
    %v7300 = vmul.f32 %v7293, %v150
    %v7301 = vmul.f32 %v7293, %v151
    %v7302 = vmul.f32 %v7293, %v152
    %v7303 = vmul.f32 %v7293, %v153
    %v7304 = vmul.f32 %v7293, %v154
    %v7305 = vmul.f32 %v7293, %v155
    %v7306 = vmul.f32 %v7293, %v156
    %v7307 = vmul.f32 %v7293, %v157
    %v7308 = vmul.f32 %v7293, %v158
    %v7309 = vmul.f32 %v7293, %v159
    %v7310 = vmul.f32 %v7293, %v160
    %v7311 = vmul.f32 %v7293, %v161
    %v7312 = vmul.f32 %v7293, %v162
    %v7313 = vmul.f32 %v7293, %v163
    %v7314 = vmul.f32 %v7293, %v164
    %v7315 = vmul.f32 %v7293, %v165
    %v7316 = vmul.f32 %v7293, %v166
    %v7317 = vmul.f32 %v7293, %v167
    %v7318 = vmul.f32 %v7293, %v168
    %v7319 = vmul.f32 %v7293, %v169
    %v7320 = vmul.f32 %v7293, %v170
    %v7321 = vmul.f32 %v7293, %v171
    %v7350 = vrot.slane %v7294, 2
    %v7351 = vrot.slane %v7295, 2
    %v7352 = vsel %vm838, %v7350, %v7351
    %v7353 = vrot.slane %v7296, 2
    %v7354 = vrot.slane %v7297, 2
    %v7355 = vsel %vm838, %v7353, %v7354
    %v7356 = vrot.slane %v7298, 2
    %v7357 = vrot.slane %v7299, 2
    %v7358 = vsel %vm838, %v7356, %v7357
    %v7359 = vrot.slane %v7300, 2
    %v7360 = vrot.slane %v7301, 2
    %v7361 = vsel %vm838, %v7359, %v7360
    %v7362 = vrot.slane %v7302, 2
    %v7363 = vrot.slane %v7303, 2
    %v7364 = vsel %vm838, %v7362, %v7363
    %v7365 = vrot.slane %v7304, 2
    %v7366 = vrot.slane %v7305, 2
    %v7367 = vsel %vm838, %v7365, %v7366
    %v7368 = vrot.slane %v7306, 2
    %v7369 = vrot.slane %v7307, 2
    %v7370 = vsel %vm838, %v7368, %v7369
    %v7371 = vrot.slane %v7308, 2
    %v7372 = vrot.slane %v7309, 2
    %v7373 = vsel %vm838, %v7371, %v7372
    %v7374 = vrot.slane %v7310, 2
    %v7375 = vrot.slane %v7311, 2
    %v7376 = vsel %vm838, %v7374, %v7375
    %v7377 = vrot.slane %v7312, 2
    %v7378 = vrot.slane %v7313, 2
    %v7379 = vsel %vm838, %v7377, %v7378
    %v7380 = vrot.slane %v7314, 2
    %v7381 = vrot.slane %v7315, 2
    %v7382 = vsel %vm838, %v7380, %v7381
    %v7383 = vrot.slane %v7316, 2
    %v7384 = vrot.slane %v7317, 2
    %v7385 = vsel %vm838, %v7383, %v7384
    %v7386 = vrot.slane %v7318, 2
    %v7387 = vrot.slane %v7319, 2
    %v7388 = vsel %vm838, %v7386, %v7387
    %v7389 = vrot.slane %v7320, 2
    %v7390 = vrot.slane %v7321, 2
    %v7391 = vsel %vm838, %v7389, %v7390
    %v7420 = vadd.f32 %v7265, %v7352
    %v7421 = vadd.f32 %v7266, %v7351
    %v7422 = vadd.f32 %v7267, %v7355
    %v7423 = vadd.f32 %v7268, %v7354
    %v7424 = vadd.f32 %v7269, %v7358
    %v7425 = vadd.f32 %v7270, %v7357
    %v7426 = vadd.f32 %v7271, %v7361
    %v7427 = vadd.f32 %v7272, %v7360
    %v7428 = vadd.f32 %v7273, %v7364
    %v7429 = vadd.f32 %v7274, %v7363
    %v7430 = vadd.f32 %v7275, %v7367
    %v7431 = vadd.f32 %v7276, %v7366
    %v7432 = vadd.f32 %v7277, %v7370
    %v7433 = vadd.f32 %v7278, %v7369
    %v7434 = vadd.f32 %v7279, %v7373
    %v7435 = vadd.f32 %v7280, %v7372
    %v7436 = vadd.f32 %v7281, %v7376
    %v7437 = vadd.f32 %v7282, %v7375
    %v7438 = vadd.f32 %v7283, %v7379
    %v7439 = vadd.f32 %v7284, %v7378
    %v7440 = vadd.f32 %v7285, %v7382
    %v7441 = vadd.f32 %v7286, %v7381
    %v7442 = vadd.f32 %v7287, %v7385
    %v7443 = vadd.f32 %v7288, %v7384
    %v7444 = vadd.f32 %v7289, %v7388
    %v7445 = vadd.f32 %v7290, %v7387
    %v7446 = vadd.f32 %v7291, %v7391
    %v7447 = vadd.f32 %v7292, %v7390
    %v7448 = vstv %s102
    %v7449 = vadd.f32 %v7420, %v7448
    %v7450 = vadd.f32 %v7421, %v7448
    %v7451 = vadd.f32 %v7422, %v7448
    %v7452 = vadd.f32 %v7423, %v7448
    %v7453 = vadd.f32 %v7424, %v7448
    %v7454 = vadd.f32 %v7425, %v7448
    %v7455 = vadd.f32 %v7426, %v7448
    %v7456 = vadd.f32 %v7427, %v7448
    %v7457 = vadd.f32 %v7428, %v7448
    %v7458 = vadd.f32 %v7429, %v7448
    %v7459 = vadd.f32 %v7430, %v7448
    %v7460 = vadd.f32 %v7431, %v7448
    %v7461 = vadd.f32 %v7432, %v7448
    %v7462 = vadd.f32 %v7433, %v7448
    %v7463 = vadd.f32 %v7434, %v7448
    %v7464 = vadd.f32 %v7435, %v7448
    %v7465 = vadd.f32 %v7436, %v7448
    %v7466 = vadd.f32 %v7437, %v7448
    %v7467 = vadd.f32 %v7438, %v7448
    %v7468 = vadd.f32 %v7439, %v7448
    %v7469 = vadd.f32 %v7440, %v7448
    %v7470 = vadd.f32 %v7441, %v7448
    %v7471 = vadd.f32 %v7442, %v7448
    %v7472 = vadd.f32 %v7443, %v7448
    %v7473 = vadd.f32 %v7444, %v7448
    %v7474 = vadd.f32 %v7445, %v7448
    %v7475 = vadd.f32 %v7446, %v7448
    %v7476 = vadd.f32 %v7447, %v7448
    %v7477 = vmax.f32 %v7449, 0.0
    %v7478 = vmax.f32 %v7450, 0.0
    %v7479 = vmax.f32 %v7451, 0.0
    %v7480 = vmax.f32 %v7452, 0.0
    %v7481 = vmax.f32 %v7453, 0.0
    %v7482 = vmax.f32 %v7454, 0.0
    %v7483 = vmax.f32 %v7455, 0.0
    %v7484 = vmax.f32 %v7456, 0.0
    %v7485 = vmax.f32 %v7457, 0.0
    %v7486 = vmax.f32 %v7458, 0.0
    %v7487 = vmax.f32 %v7459, 0.0
    %v7488 = vmax.f32 %v7460, 0.0
    %v7489 = vmax.f32 %v7461, 0.0
    %v7490 = vmax.f32 %v7462, 0.0
    %v7491 = vmax.f32 %v7463, 0.0
    %v7492 = vmax.f32 %v7464, 0.0
    %v7493 = vmax.f32 %v7465, 0.0
    %v7494 = vmax.f32 %v7466, 0.0
    %v7495 = vmax.f32 %v7467, 0.0
    %v7496 = vmax.f32 %v7468, 0.0
    %v7497 = vmax.f32 %v7469, 0.0
    %v7498 = vmax.f32 %v7470, 0.0
    %v7499 = vmax.f32 %v7471, 0.0
    %v7500 = vmax.f32 %v7472, 0.0
    %v7501 = vmax.f32 %v7473, 0.0
    %v7502 = vmax.f32 %v7474, 0.0
    %v7503 = vmax.f32 %v7475, 0.0
    %v7504 = vmax.f32 %v7476, 0.0
    %v7505 = vstv %s130
    %v7506 = vmul.f32 %v7505, %v7477
    %v7507 = vmul.f32 %v7505, %v7478
    %v7508 = vmul.f32 %v7505, %v7479
    %v7509 = vmul.f32 %v7505, %v7480
    %v7510 = vmul.f32 %v7505, %v7481
    %v7511 = vmul.f32 %v7505, %v7482
    %v7512 = vmul.f32 %v7505, %v7483
    %v7513 = vmul.f32 %v7505, %v7484
    %v7514 = vmul.f32 %v7505, %v7485
    %v7515 = vmul.f32 %v7505, %v7486
    %v7516 = vmul.f32 %v7505, %v7487
    %v7517 = vmul.f32 %v7505, %v7488
    %v7518 = vmul.f32 %v7505, %v7489
    %v7519 = vmul.f32 %v7505, %v7490
    %v7520 = vmul.f32 %v7505, %v7491
    %v7521 = vmul.f32 %v7505, %v7492
    %v7522 = vmul.f32 %v7505, %v7493
    %v7523 = vmul.f32 %v7505, %v7494
    %v7524 = vmul.f32 %v7505, %v7495
    %v7525 = vmul.f32 %v7505, %v7496
    %v7526 = vmul.f32 %v7505, %v7497
    %v7527 = vmul.f32 %v7505, %v7498
    %v7528 = vmul.f32 %v7505, %v7499
    %v7529 = vmul.f32 %v7505, %v7500
    %v7530 = vadd.f32 %v6351, %v7506
    %v7531 = vadd.f32 %v6352, %v7507
    %v7532 = vadd.f32 %v6353, %v7508
    %v7533 = vadd.f32 %v6354, %v7509
    %v7534 = vadd.f32 %v6355, %v7510
    %v7535 = vadd.f32 %v6356, %v7511
    %v7536 = vadd.f32 %v6357, %v7512
    %v7537 = vadd.f32 %v6358, %v7513
    %v7538 = vadd.f32 %v6359, %v7514
    %v7539 = vadd.f32 %v6360, %v7515
    %v7540 = vadd.f32 %v6361, %v7516
    %v7541 = vadd.f32 %v6362, %v7517
    %v7542 = vadd.f32 %v6363, %v7518
    %v7543 = vadd.f32 %v6364, %v7519
    %v7544 = vadd.f32 %v6365, %v7520
    %v7545 = vadd.f32 %v6366, %v7521
    %v7546 = vadd.f32 %v6367, %v7522
    %v7547 = vadd.f32 %v6368, %v7523
    %v7548 = vadd.f32 %v6369, %v7524
    %v7549 = vadd.f32 %v6370, %v7525
    %v7550 = vadd.f32 %v6371, %v7526
    %v7551 = vadd.f32 %v6372, %v7527
    %v7552 = vadd.f32 %v6373, %v7528
    %v7553 = vadd.f32 %v6374, %v7529
    %v7554 = vstv %s133
    %v7555 = vmul.f32 %v7554, %v7479
    %v7556 = vmul.f32 %v7554, %v7480
    %v7557 = vmul.f32 %v7554, %v7481
    %v7558 = vmul.f32 %v7554, %v7482
    %v7559 = vmul.f32 %v7554, %v7483
    %v7560 = vmul.f32 %v7554, %v7484
    %v7561 = vmul.f32 %v7554, %v7485
    %v7562 = vmul.f32 %v7554, %v7486
    %v7563 = vmul.f32 %v7554, %v7487
    %v7564 = vmul.f32 %v7554, %v7488
    %v7565 = vmul.f32 %v7554, %v7489
    %v7566 = vmul.f32 %v7554, %v7490
    %v7567 = vmul.f32 %v7554, %v7491
    %v7568 = vmul.f32 %v7554, %v7492
    %v7569 = vmul.f32 %v7554, %v7493
    %v7570 = vmul.f32 %v7554, %v7494
    %v7571 = vmul.f32 %v7554, %v7495
    %v7572 = vmul.f32 %v7554, %v7496
    %v7573 = vmul.f32 %v7554, %v7497
    %v7574 = vmul.f32 %v7554, %v7498
    %v7575 = vmul.f32 %v7554, %v7499
    %v7576 = vmul.f32 %v7554, %v7500
    %v7577 = vmul.f32 %v7554, %v7501
    %v7578 = vmul.f32 %v7554, %v7502
    %v7579 = vadd.f32 %v7530, %v7555
    %v7580 = vadd.f32 %v7531, %v7556
    %v7581 = vadd.f32 %v7532, %v7557
    %v7582 = vadd.f32 %v7533, %v7558
    %v7583 = vadd.f32 %v7534, %v7559
    %v7584 = vadd.f32 %v7535, %v7560
    %v7585 = vadd.f32 %v7536, %v7561
    %v7586 = vadd.f32 %v7537, %v7562
    %v7587 = vadd.f32 %v7538, %v7563
    %v7588 = vadd.f32 %v7539, %v7564
    %v7589 = vadd.f32 %v7540, %v7565
    %v7590 = vadd.f32 %v7541, %v7566
    %v7591 = vadd.f32 %v7542, %v7567
    %v7592 = vadd.f32 %v7543, %v7568
    %v7593 = vadd.f32 %v7544, %v7569
    %v7594 = vadd.f32 %v7545, %v7570
    %v7595 = vadd.f32 %v7546, %v7571
    %v7596 = vadd.f32 %v7547, %v7572
    %v7597 = vadd.f32 %v7548, %v7573
    %v7598 = vadd.f32 %v7549, %v7574
    %v7599 = vadd.f32 %v7550, %v7575
    %v7600 = vadd.f32 %v7551, %v7576
    %v7601 = vadd.f32 %v7552, %v7577
    %v7602 = vadd.f32 %v7553, %v7578
    %v7603 = vstv %s136
    %v7604 = vmul.f32 %v7603, %v7481
    %v7605 = vmul.f32 %v7603, %v7482
    %v7606 = vmul.f32 %v7603, %v7483
    %v7607 = vmul.f32 %v7603, %v7484
    %v7608 = vmul.f32 %v7603, %v7485
    %v7609 = vmul.f32 %v7603, %v7486
    %v7610 = vmul.f32 %v7603, %v7487
    %v7611 = vmul.f32 %v7603, %v7488
    %v7612 = vmul.f32 %v7603, %v7489
    %v7613 = vmul.f32 %v7603, %v7490
    %v7614 = vmul.f32 %v7603, %v7491
    %v7615 = vmul.f32 %v7603, %v7492
    %v7616 = vmul.f32 %v7603, %v7493
    %v7617 = vmul.f32 %v7603, %v7494
    %v7618 = vmul.f32 %v7603, %v7495
    %v7619 = vmul.f32 %v7603, %v7496
    %v7620 = vmul.f32 %v7603, %v7497
    %v7621 = vmul.f32 %v7603, %v7498
    %v7622 = vmul.f32 %v7603, %v7499
    %v7623 = vmul.f32 %v7603, %v7500
    %v7624 = vmul.f32 %v7603, %v7501
    %v7625 = vmul.f32 %v7603, %v7502
    %v7626 = vmul.f32 %v7603, %v7503
    %v7627 = vmul.f32 %v7603, %v7504
    %v7628 = vadd.f32 %v7579, %v7604
    %v7629 = vadd.f32 %v7580, %v7605
    %v7630 = vadd.f32 %v7581, %v7606
    %v7631 = vadd.f32 %v7582, %v7607
    %v7632 = vadd.f32 %v7583, %v7608
    %v7633 = vadd.f32 %v7584, %v7609
    %v7634 = vadd.f32 %v7585, %v7610
    %v7635 = vadd.f32 %v7586, %v7611
    %v7636 = vadd.f32 %v7587, %v7612
    %v7637 = vadd.f32 %v7588, %v7613
    %v7638 = vadd.f32 %v7589, %v7614
    %v7639 = vadd.f32 %v7590, %v7615
    %v7640 = vadd.f32 %v7591, %v7616
    %v7641 = vadd.f32 %v7592, %v7617
    %v7642 = vadd.f32 %v7593, %v7618
    %v7643 = vadd.f32 %v7594, %v7619
    %v7644 = vadd.f32 %v7595, %v7620
    %v7645 = vadd.f32 %v7596, %v7621
    %v7646 = vadd.f32 %v7597, %v7622
    %v7647 = vadd.f32 %v7598, %v7623
    %v7648 = vadd.f32 %v7599, %v7624
    %v7649 = vadd.f32 %v7600, %v7625
    %v7650 = vadd.f32 %v7601, %v7626
    %v7651 = vadd.f32 %v7602, %v7627
    %v7652 = vstv %s131
    %v7653 = vmul.f32 %v7652, %v7477
    %v7654 = vmul.f32 %v7652, %v7478
    %v7655 = vmul.f32 %v7652, %v7479
    %v7656 = vmul.f32 %v7652, %v7480
    %v7657 = vmul.f32 %v7652, %v7481
    %v7658 = vmul.f32 %v7652, %v7482
    %v7659 = vmul.f32 %v7652, %v7483
    %v7660 = vmul.f32 %v7652, %v7484
    %v7661 = vmul.f32 %v7652, %v7485
    %v7662 = vmul.f32 %v7652, %v7486
    %v7663 = vmul.f32 %v7652, %v7487
    %v7664 = vmul.f32 %v7652, %v7488
    %v7665 = vmul.f32 %v7652, %v7489
    %v7666 = vmul.f32 %v7652, %v7490
    %v7667 = vmul.f32 %v7652, %v7491
    %v7668 = vmul.f32 %v7652, %v7492
    %v7669 = vmul.f32 %v7652, %v7493
    %v7670 = vmul.f32 %v7652, %v7494
    %v7671 = vmul.f32 %v7652, %v7495
    %v7672 = vmul.f32 %v7652, %v7496
    %v7673 = vmul.f32 %v7652, %v7497
    %v7674 = vmul.f32 %v7652, %v7498
    %v7675 = vmul.f32 %v7652, %v7499
    %v7676 = vmul.f32 %v7652, %v7500
    %v7701 = vrot.slane %v7653, 1
    %v7702 = vrot.slane %v7654, 1
    %v7703 = vsel %vm372, %v7701, %v7702
    %v7704 = vrot.slane %v7655, 1
    %v7705 = vrot.slane %v7656, 1
    %v7706 = vsel %vm372, %v7704, %v7705
    %v7707 = vrot.slane %v7657, 1
    %v7708 = vrot.slane %v7658, 1
    %v7709 = vsel %vm372, %v7707, %v7708
    %v7710 = vrot.slane %v7659, 1
    %v7711 = vrot.slane %v7660, 1
    %v7712 = vsel %vm372, %v7710, %v7711
    %v7713 = vrot.slane %v7661, 1
    %v7714 = vrot.slane %v7662, 1
    %v7715 = vsel %vm372, %v7713, %v7714
    %v7716 = vrot.slane %v7663, 1
    %v7717 = vrot.slane %v7664, 1
    %v7718 = vsel %vm372, %v7716, %v7717
    %v7719 = vrot.slane %v7665, 1
    %v7720 = vrot.slane %v7666, 1
    %v7721 = vsel %vm372, %v7719, %v7720
    %v7722 = vrot.slane %v7667, 1
    %v7723 = vrot.slane %v7668, 1
    %v7724 = vsel %vm372, %v7722, %v7723
    %v7725 = vrot.slane %v7669, 1
    %v7726 = vrot.slane %v7670, 1
    %v7727 = vsel %vm372, %v7725, %v7726
    %v7728 = vrot.slane %v7671, 1
    %v7729 = vrot.slane %v7672, 1
    %v7730 = vsel %vm372, %v7728, %v7729
    %v7731 = vrot.slane %v7673, 1
    %v7732 = vrot.slane %v7674, 1
    %v7733 = vsel %vm372, %v7731, %v7732
    %v7734 = vrot.slane %v7675, 1
    %v7735 = vrot.slane %v7676, 1
    %v7736 = vsel %vm372, %v7734, %v7735
    %v7761 = vadd.f32 %v7628, %v7703
    %v7762 = vadd.f32 %v7629, %v7702
    %v7763 = vadd.f32 %v7630, %v7706
    %v7764 = vadd.f32 %v7631, %v7705
    %v7765 = vadd.f32 %v7632, %v7709
    %v7766 = vadd.f32 %v7633, %v7708
    %v7767 = vadd.f32 %v7634, %v7712
    %v7768 = vadd.f32 %v7635, %v7711
    %v7769 = vadd.f32 %v7636, %v7715
    %v7770 = vadd.f32 %v7637, %v7714
    %v7771 = vadd.f32 %v7638, %v7718
    %v7772 = vadd.f32 %v7639, %v7717
    %v7773 = vadd.f32 %v7640, %v7721
    %v7774 = vadd.f32 %v7641, %v7720
    %v7775 = vadd.f32 %v7642, %v7724
    %v7776 = vadd.f32 %v7643, %v7723
    %v7777 = vadd.f32 %v7644, %v7727
    %v7778 = vadd.f32 %v7645, %v7726
    %v7779 = vadd.f32 %v7646, %v7730
    %v7780 = vadd.f32 %v7647, %v7729
    %v7781 = vadd.f32 %v7648, %v7733
    %v7782 = vadd.f32 %v7649, %v7732
    %v7783 = vadd.f32 %v7650, %v7736
    %v7784 = vadd.f32 %v7651, %v7735
    %v7785 = vstv %s134
    %v7786 = vmul.f32 %v7785, %v7479
    %v7787 = vmul.f32 %v7785, %v7480
    %v7788 = vmul.f32 %v7785, %v7481
    %v7789 = vmul.f32 %v7785, %v7482
    %v7790 = vmul.f32 %v7785, %v7483
    %v7791 = vmul.f32 %v7785, %v7484
    %v7792 = vmul.f32 %v7785, %v7485
    %v7793 = vmul.f32 %v7785, %v7486
    %v7794 = vmul.f32 %v7785, %v7487
    %v7795 = vmul.f32 %v7785, %v7488
    %v7796 = vmul.f32 %v7785, %v7489
    %v7797 = vmul.f32 %v7785, %v7490
    %v7798 = vmul.f32 %v7785, %v7491
    %v7799 = vmul.f32 %v7785, %v7492
    %v7800 = vmul.f32 %v7785, %v7493
    %v7801 = vmul.f32 %v7785, %v7494
    %v7802 = vmul.f32 %v7785, %v7495
    %v7803 = vmul.f32 %v7785, %v7496
    %v7804 = vmul.f32 %v7785, %v7497
    %v7805 = vmul.f32 %v7785, %v7498
    %v7806 = vmul.f32 %v7785, %v7499
    %v7807 = vmul.f32 %v7785, %v7500
    %v7808 = vmul.f32 %v7785, %v7501
    %v7809 = vmul.f32 %v7785, %v7502
    %v7834 = vrot.slane %v7786, 1
    %v7835 = vrot.slane %v7787, 1
    %v7836 = vsel %vm372, %v7834, %v7835
    %v7837 = vrot.slane %v7788, 1
    %v7838 = vrot.slane %v7789, 1
    %v7839 = vsel %vm372, %v7837, %v7838
    %v7840 = vrot.slane %v7790, 1
    %v7841 = vrot.slane %v7791, 1
    %v7842 = vsel %vm372, %v7840, %v7841
    %v7843 = vrot.slane %v7792, 1
    %v7844 = vrot.slane %v7793, 1
    %v7845 = vsel %vm372, %v7843, %v7844
    %v7846 = vrot.slane %v7794, 1
    %v7847 = vrot.slane %v7795, 1
    %v7848 = vsel %vm372, %v7846, %v7847
    %v7849 = vrot.slane %v7796, 1
    %v7850 = vrot.slane %v7797, 1
    %v7851 = vsel %vm372, %v7849, %v7850
    %v7852 = vrot.slane %v7798, 1
    %v7853 = vrot.slane %v7799, 1
    %v7854 = vsel %vm372, %v7852, %v7853
    %v7855 = vrot.slane %v7800, 1
    %v7856 = vrot.slane %v7801, 1
    %v7857 = vsel %vm372, %v7855, %v7856
    %v7858 = vrot.slane %v7802, 1
    %v7859 = vrot.slane %v7803, 1
    %v7860 = vsel %vm372, %v7858, %v7859
    %v7861 = vrot.slane %v7804, 1
    %v7862 = vrot.slane %v7805, 1
    %v7863 = vsel %vm372, %v7861, %v7862
    %v7864 = vrot.slane %v7806, 1
    %v7865 = vrot.slane %v7807, 1
    %v7866 = vsel %vm372, %v7864, %v7865
    %v7867 = vrot.slane %v7808, 1
    %v7868 = vrot.slane %v7809, 1
    %v7869 = vsel %vm372, %v7867, %v7868
    %v7894 = vadd.f32 %v7761, %v7836
    %v7895 = vadd.f32 %v7762, %v7835
    %v7896 = vadd.f32 %v7763, %v7839
    %v7897 = vadd.f32 %v7764, %v7838
    %v7898 = vadd.f32 %v7765, %v7842
    %v7899 = vadd.f32 %v7766, %v7841
    %v7900 = vadd.f32 %v7767, %v7845
    %v7901 = vadd.f32 %v7768, %v7844
    %v7902 = vadd.f32 %v7769, %v7848
    %v7903 = vadd.f32 %v7770, %v7847
    %v7904 = vadd.f32 %v7771, %v7851
    %v7905 = vadd.f32 %v7772, %v7850
    %v7906 = vadd.f32 %v7773, %v7854
    %v7907 = vadd.f32 %v7774, %v7853
    %v7908 = vadd.f32 %v7775, %v7857
    %v7909 = vadd.f32 %v7776, %v7856
    %v7910 = vadd.f32 %v7777, %v7860
    %v7911 = vadd.f32 %v7778, %v7859
    %v7912 = vadd.f32 %v7779, %v7863
    %v7913 = vadd.f32 %v7780, %v7862
    %v7914 = vadd.f32 %v7781, %v7866
    %v7915 = vadd.f32 %v7782, %v7865
    %v7916 = vadd.f32 %v7783, %v7869
    %v7917 = vadd.f32 %v7784, %v7868
    %v7918 = vstv %s137
    %v7919 = vmul.f32 %v7918, %v7481
    %v7920 = vmul.f32 %v7918, %v7482
    %v7921 = vmul.f32 %v7918, %v7483
    %v7922 = vmul.f32 %v7918, %v7484
    %v7923 = vmul.f32 %v7918, %v7485
    %v7924 = vmul.f32 %v7918, %v7486
    %v7925 = vmul.f32 %v7918, %v7487
    %v7926 = vmul.f32 %v7918, %v7488
    %v7927 = vmul.f32 %v7918, %v7489
    %v7928 = vmul.f32 %v7918, %v7490
    %v7929 = vmul.f32 %v7918, %v7491
    %v7930 = vmul.f32 %v7918, %v7492
    %v7931 = vmul.f32 %v7918, %v7493
    %v7932 = vmul.f32 %v7918, %v7494
    %v7933 = vmul.f32 %v7918, %v7495
    %v7934 = vmul.f32 %v7918, %v7496
    %v7935 = vmul.f32 %v7918, %v7497
    %v7936 = vmul.f32 %v7918, %v7498
    %v7937 = vmul.f32 %v7918, %v7499
    %v7938 = vmul.f32 %v7918, %v7500
    %v7939 = vmul.f32 %v7918, %v7501
    %v7940 = vmul.f32 %v7918, %v7502
    %v7941 = vmul.f32 %v7918, %v7503
    %v7942 = vmul.f32 %v7918, %v7504
    %v7967 = vrot.slane %v7919, 1
    %v7968 = vrot.slane %v7920, 1
    %v7969 = vsel %vm372, %v7967, %v7968
    %v7970 = vrot.slane %v7921, 1
    %v7971 = vrot.slane %v7922, 1
    %v7972 = vsel %vm372, %v7970, %v7971
    %v7973 = vrot.slane %v7923, 1
    %v7974 = vrot.slane %v7924, 1
    %v7975 = vsel %vm372, %v7973, %v7974
    %v7976 = vrot.slane %v7925, 1
    %v7977 = vrot.slane %v7926, 1
    %v7978 = vsel %vm372, %v7976, %v7977
    %v7979 = vrot.slane %v7927, 1
    %v7980 = vrot.slane %v7928, 1
    %v7981 = vsel %vm372, %v7979, %v7980
    %v7982 = vrot.slane %v7929, 1
    %v7983 = vrot.slane %v7930, 1
    %v7984 = vsel %vm372, %v7982, %v7983
    %v7985 = vrot.slane %v7931, 1
    %v7986 = vrot.slane %v7932, 1
    %v7987 = vsel %vm372, %v7985, %v7986
    %v7988 = vrot.slane %v7933, 1
    %v7989 = vrot.slane %v7934, 1
    %v7990 = vsel %vm372, %v7988, %v7989
    %v7991 = vrot.slane %v7935, 1
    %v7992 = vrot.slane %v7936, 1
    %v7993 = vsel %vm372, %v7991, %v7992
    %v7994 = vrot.slane %v7937, 1
    %v7995 = vrot.slane %v7938, 1
    %v7996 = vsel %vm372, %v7994, %v7995
    %v7997 = vrot.slane %v7939, 1
    %v7998 = vrot.slane %v7940, 1
    %v7999 = vsel %vm372, %v7997, %v7998
    %v8000 = vrot.slane %v7941, 1
    %v8001 = vrot.slane %v7942, 1
    %v8002 = vsel %vm372, %v8000, %v8001
    %v8027 = vadd.f32 %v7894, %v7969
    %v8028 = vadd.f32 %v7895, %v7968
    %v8029 = vadd.f32 %v7896, %v7972
    %v8030 = vadd.f32 %v7897, %v7971
    %v8031 = vadd.f32 %v7898, %v7975
    %v8032 = vadd.f32 %v7899, %v7974
    %v8033 = vadd.f32 %v7900, %v7978
    %v8034 = vadd.f32 %v7901, %v7977
    %v8035 = vadd.f32 %v7902, %v7981
    %v8036 = vadd.f32 %v7903, %v7980
    %v8037 = vadd.f32 %v7904, %v7984
    %v8038 = vadd.f32 %v7905, %v7983
    %v8039 = vadd.f32 %v7906, %v7987
    %v8040 = vadd.f32 %v7907, %v7986
    %v8041 = vadd.f32 %v7908, %v7990
    %v8042 = vadd.f32 %v7909, %v7989
    %v8043 = vadd.f32 %v7910, %v7993
    %v8044 = vadd.f32 %v7911, %v7992
    %v8045 = vadd.f32 %v7912, %v7996
    %v8046 = vadd.f32 %v7913, %v7995
    %v8047 = vadd.f32 %v7914, %v7999
    %v8048 = vadd.f32 %v7915, %v7998
    %v8049 = vadd.f32 %v7916, %v8002
    %v8050 = vadd.f32 %v7917, %v8001
    %v8051 = vstv %s132
    %v8052 = vmul.f32 %v8051, %v7477
    %v8053 = vmul.f32 %v8051, %v7478
    %v8054 = vmul.f32 %v8051, %v7479
    %v8055 = vmul.f32 %v8051, %v7480
    %v8056 = vmul.f32 %v8051, %v7481
    %v8057 = vmul.f32 %v8051, %v7482
    %v8058 = vmul.f32 %v8051, %v7483
    %v8059 = vmul.f32 %v8051, %v7484
    %v8060 = vmul.f32 %v8051, %v7485
    %v8061 = vmul.f32 %v8051, %v7486
    %v8062 = vmul.f32 %v8051, %v7487
    %v8063 = vmul.f32 %v8051, %v7488
    %v8064 = vmul.f32 %v8051, %v7489
    %v8065 = vmul.f32 %v8051, %v7490
    %v8066 = vmul.f32 %v8051, %v7491
    %v8067 = vmul.f32 %v8051, %v7492
    %v8068 = vmul.f32 %v8051, %v7493
    %v8069 = vmul.f32 %v8051, %v7494
    %v8070 = vmul.f32 %v8051, %v7495
    %v8071 = vmul.f32 %v8051, %v7496
    %v8072 = vmul.f32 %v8051, %v7497
    %v8073 = vmul.f32 %v8051, %v7498
    %v8074 = vmul.f32 %v8051, %v7499
    %v8075 = vmul.f32 %v8051, %v7500
    %v8100 = vrot.slane %v8052, 2
    %v8101 = vrot.slane %v8053, 2
    %v8102 = vsel %vm838, %v8100, %v8101
    %v8103 = vrot.slane %v8054, 2
    %v8104 = vrot.slane %v8055, 2
    %v8105 = vsel %vm838, %v8103, %v8104
    %v8106 = vrot.slane %v8056, 2
    %v8107 = vrot.slane %v8057, 2
    %v8108 = vsel %vm838, %v8106, %v8107
    %v8109 = vrot.slane %v8058, 2
    %v8110 = vrot.slane %v8059, 2
    %v8111 = vsel %vm838, %v8109, %v8110
    %v8112 = vrot.slane %v8060, 2
    %v8113 = vrot.slane %v8061, 2
    %v8114 = vsel %vm838, %v8112, %v8113
    %v8115 = vrot.slane %v8062, 2
    %v8116 = vrot.slane %v8063, 2
    %v8117 = vsel %vm838, %v8115, %v8116
    %v8118 = vrot.slane %v8064, 2
    %v8119 = vrot.slane %v8065, 2
    %v8120 = vsel %vm838, %v8118, %v8119
    %v8121 = vrot.slane %v8066, 2
    %v8122 = vrot.slane %v8067, 2
    %v8123 = vsel %vm838, %v8121, %v8122
    %v8124 = vrot.slane %v8068, 2
    %v8125 = vrot.slane %v8069, 2
    %v8126 = vsel %vm838, %v8124, %v8125
    %v8127 = vrot.slane %v8070, 2
    %v8128 = vrot.slane %v8071, 2
    %v8129 = vsel %vm838, %v8127, %v8128
    %v8130 = vrot.slane %v8072, 2
    %v8131 = vrot.slane %v8073, 2
    %v8132 = vsel %vm838, %v8130, %v8131
    %v8133 = vrot.slane %v8074, 2
    %v8134 = vrot.slane %v8075, 2
    %v8135 = vsel %vm838, %v8133, %v8134
    %v8160 = vadd.f32 %v8027, %v8102
    %v8161 = vadd.f32 %v8028, %v8101
    %v8162 = vadd.f32 %v8029, %v8105
    %v8163 = vadd.f32 %v8030, %v8104
    %v8164 = vadd.f32 %v8031, %v8108
    %v8165 = vadd.f32 %v8032, %v8107
    %v8166 = vadd.f32 %v8033, %v8111
    %v8167 = vadd.f32 %v8034, %v8110
    %v8168 = vadd.f32 %v8035, %v8114
    %v8169 = vadd.f32 %v8036, %v8113
    %v8170 = vadd.f32 %v8037, %v8117
    %v8171 = vadd.f32 %v8038, %v8116
    %v8172 = vadd.f32 %v8039, %v8120
    %v8173 = vadd.f32 %v8040, %v8119
    %v8174 = vadd.f32 %v8041, %v8123
    %v8175 = vadd.f32 %v8042, %v8122
    %v8176 = vadd.f32 %v8043, %v8126
    %v8177 = vadd.f32 %v8044, %v8125
    %v8178 = vadd.f32 %v8045, %v8129
    %v8179 = vadd.f32 %v8046, %v8128
    %v8180 = vadd.f32 %v8047, %v8132
    %v8181 = vadd.f32 %v8048, %v8131
    %v8182 = vadd.f32 %v8049, %v8135
    %v8183 = vadd.f32 %v8050, %v8134
    %v8184 = vstv %s135
    %v8185 = vmul.f32 %v8184, %v7479
    %v8186 = vmul.f32 %v8184, %v7480
    %v8187 = vmul.f32 %v8184, %v7481
    %v8188 = vmul.f32 %v8184, %v7482
    %v8189 = vmul.f32 %v8184, %v7483
    %v8190 = vmul.f32 %v8184, %v7484
    %v8191 = vmul.f32 %v8184, %v7485
    %v8192 = vmul.f32 %v8184, %v7486
    %v8193 = vmul.f32 %v8184, %v7487
    %v8194 = vmul.f32 %v8184, %v7488
    %v8195 = vmul.f32 %v8184, %v7489
    %v8196 = vmul.f32 %v8184, %v7490
    %v8197 = vmul.f32 %v8184, %v7491
    %v8198 = vmul.f32 %v8184, %v7492
    %v8199 = vmul.f32 %v8184, %v7493
    %v8200 = vmul.f32 %v8184, %v7494
    %v8201 = vmul.f32 %v8184, %v7495
    %v8202 = vmul.f32 %v8184, %v7496
    %v8203 = vmul.f32 %v8184, %v7497
    %v8204 = vmul.f32 %v8184, %v7498
    %v8205 = vmul.f32 %v8184, %v7499
    %v8206 = vmul.f32 %v8184, %v7500
    %v8207 = vmul.f32 %v8184, %v7501
    %v8208 = vmul.f32 %v8184, %v7502
    %v8233 = vrot.slane %v8185, 2
    %v8234 = vrot.slane %v8186, 2
    %v8235 = vsel %vm838, %v8233, %v8234
    %v8236 = vrot.slane %v8187, 2
    %v8237 = vrot.slane %v8188, 2
    %v8238 = vsel %vm838, %v8236, %v8237
    %v8239 = vrot.slane %v8189, 2
    %v8240 = vrot.slane %v8190, 2
    %v8241 = vsel %vm838, %v8239, %v8240
    %v8242 = vrot.slane %v8191, 2
    %v8243 = vrot.slane %v8192, 2
    %v8244 = vsel %vm838, %v8242, %v8243
    %v8245 = vrot.slane %v8193, 2
    %v8246 = vrot.slane %v8194, 2
    %v8247 = vsel %vm838, %v8245, %v8246
    %v8248 = vrot.slane %v8195, 2
    %v8249 = vrot.slane %v8196, 2
    %v8250 = vsel %vm838, %v8248, %v8249
    %v8251 = vrot.slane %v8197, 2
    %v8252 = vrot.slane %v8198, 2
    %v8253 = vsel %vm838, %v8251, %v8252
    %v8254 = vrot.slane %v8199, 2
    %v8255 = vrot.slane %v8200, 2
    %v8256 = vsel %vm838, %v8254, %v8255
    %v8257 = vrot.slane %v8201, 2
    %v8258 = vrot.slane %v8202, 2
    %v8259 = vsel %vm838, %v8257, %v8258
    %v8260 = vrot.slane %v8203, 2
    %v8261 = vrot.slane %v8204, 2
    %v8262 = vsel %vm838, %v8260, %v8261
    %v8263 = vrot.slane %v8205, 2
    %v8264 = vrot.slane %v8206, 2
    %v8265 = vsel %vm838, %v8263, %v8264
    %v8266 = vrot.slane %v8207, 2
    %v8267 = vrot.slane %v8208, 2
    %v8268 = vsel %vm838, %v8266, %v8267
    %v8293 = vadd.f32 %v8160, %v8235
    %v8294 = vadd.f32 %v8161, %v8234
    %v8295 = vadd.f32 %v8162, %v8238
    %v8296 = vadd.f32 %v8163, %v8237
    %v8297 = vadd.f32 %v8164, %v8241
    %v8298 = vadd.f32 %v8165, %v8240
    %v8299 = vadd.f32 %v8166, %v8244
    %v8300 = vadd.f32 %v8167, %v8243
    %v8301 = vadd.f32 %v8168, %v8247
    %v8302 = vadd.f32 %v8169, %v8246
    %v8303 = vadd.f32 %v8170, %v8250
    %v8304 = vadd.f32 %v8171, %v8249
    %v8305 = vadd.f32 %v8172, %v8253
    %v8306 = vadd.f32 %v8173, %v8252
    %v8307 = vadd.f32 %v8174, %v8256
    %v8308 = vadd.f32 %v8175, %v8255
    %v8309 = vadd.f32 %v8176, %v8259
    %v8310 = vadd.f32 %v8177, %v8258
    %v8311 = vadd.f32 %v8178, %v8262
    %v8312 = vadd.f32 %v8179, %v8261
    %v8313 = vadd.f32 %v8180, %v8265
    %v8314 = vadd.f32 %v8181, %v8264
    %v8315 = vadd.f32 %v8182, %v8268
    %v8316 = vadd.f32 %v8183, %v8267
    %v8317 = vstv %s138
    %v8318 = vmul.f32 %v8317, %v7481
    %v8319 = vmul.f32 %v8317, %v7482
    %v8320 = vmul.f32 %v8317, %v7483
    %v8321 = vmul.f32 %v8317, %v7484
    %v8322 = vmul.f32 %v8317, %v7485
    %v8323 = vmul.f32 %v8317, %v7486
    %v8324 = vmul.f32 %v8317, %v7487
    %v8325 = vmul.f32 %v8317, %v7488
    %v8326 = vmul.f32 %v8317, %v7489
    %v8327 = vmul.f32 %v8317, %v7490
    %v8328 = vmul.f32 %v8317, %v7491
    %v8329 = vmul.f32 %v8317, %v7492
    %v8330 = vmul.f32 %v8317, %v7493
    %v8331 = vmul.f32 %v8317, %v7494
    %v8332 = vmul.f32 %v8317, %v7495
    %v8333 = vmul.f32 %v8317, %v7496
    %v8334 = vmul.f32 %v8317, %v7497
    %v8335 = vmul.f32 %v8317, %v7498
    %v8336 = vmul.f32 %v8317, %v7499
    %v8337 = vmul.f32 %v8317, %v7500
    %v8338 = vmul.f32 %v8317, %v7501
    %v8339 = vmul.f32 %v8317, %v7502
    %v8340 = vmul.f32 %v8317, %v7503
    %v8341 = vmul.f32 %v8317, %v7504
    %v8366 = vrot.slane %v8318, 2
    %v8367 = vrot.slane %v8319, 2
    %v8368 = vsel %vm838, %v8366, %v8367
    %v8369 = vrot.slane %v8320, 2
    %v8370 = vrot.slane %v8321, 2
    %v8371 = vsel %vm838, %v8369, %v8370
    %v8372 = vrot.slane %v8322, 2
    %v8373 = vrot.slane %v8323, 2
    %v8374 = vsel %vm838, %v8372, %v8373
    %v8375 = vrot.slane %v8324, 2
    %v8376 = vrot.slane %v8325, 2
    %v8377 = vsel %vm838, %v8375, %v8376
    %v8378 = vrot.slane %v8326, 2
    %v8379 = vrot.slane %v8327, 2
    %v8380 = vsel %vm838, %v8378, %v8379
    %v8381 = vrot.slane %v8328, 2
    %v8382 = vrot.slane %v8329, 2
    %v8383 = vsel %vm838, %v8381, %v8382
    %v8384 = vrot.slane %v8330, 2
    %v8385 = vrot.slane %v8331, 2
    %v8386 = vsel %vm838, %v8384, %v8385
    %v8387 = vrot.slane %v8332, 2
    %v8388 = vrot.slane %v8333, 2
    %v8389 = vsel %vm838, %v8387, %v8388
    %v8390 = vrot.slane %v8334, 2
    %v8391 = vrot.slane %v8335, 2
    %v8392 = vsel %vm838, %v8390, %v8391
    %v8393 = vrot.slane %v8336, 2
    %v8394 = vrot.slane %v8337, 2
    %v8395 = vsel %vm838, %v8393, %v8394
    %v8396 = vrot.slane %v8338, 2
    %v8397 = vrot.slane %v8339, 2
    %v8398 = vsel %vm838, %v8396, %v8397
    %v8399 = vrot.slane %v8340, 2
    %v8400 = vrot.slane %v8341, 2
    %v8401 = vsel %vm838, %v8399, %v8400
    %v8426 = vadd.f32 %v8293, %v8368
    %v8427 = vadd.f32 %v8294, %v8367
    %v8428 = vadd.f32 %v8295, %v8371
    %v8429 = vadd.f32 %v8296, %v8370
    %v8430 = vadd.f32 %v8297, %v8374
    %v8431 = vadd.f32 %v8298, %v8373
    %v8432 = vadd.f32 %v8299, %v8377
    %v8433 = vadd.f32 %v8300, %v8376
    %v8434 = vadd.f32 %v8301, %v8380
    %v8435 = vadd.f32 %v8302, %v8379
    %v8436 = vadd.f32 %v8303, %v8383
    %v8437 = vadd.f32 %v8304, %v8382
    %v8438 = vadd.f32 %v8305, %v8386
    %v8439 = vadd.f32 %v8306, %v8385
    %v8440 = vadd.f32 %v8307, %v8389
    %v8441 = vadd.f32 %v8308, %v8388
    %v8442 = vadd.f32 %v8309, %v8392
    %v8443 = vadd.f32 %v8310, %v8391
    %v8444 = vadd.f32 %v8311, %v8395
    %v8445 = vadd.f32 %v8312, %v8394
    %v8446 = vadd.f32 %v8313, %v8398
    %v8447 = vadd.f32 %v8314, %v8397
    %v8448 = vadd.f32 %v8315, %v8401
    %v8449 = vadd.f32 %v8316, %v8400
    %v8450 = vstv %s139
    %v8451 = vadd.f32 %v8426, %v8450
    %v8452 = vadd.f32 %v8427, %v8450
    %v8453 = vadd.f32 %v8428, %v8450
    %v8454 = vadd.f32 %v8429, %v8450
    %v8455 = vadd.f32 %v8430, %v8450
    %v8456 = vadd.f32 %v8431, %v8450
    %v8457 = vadd.f32 %v8432, %v8450
    %v8458 = vadd.f32 %v8433, %v8450
    %v8459 = vadd.f32 %v8434, %v8450
    %v8460 = vadd.f32 %v8435, %v8450
    %v8461 = vadd.f32 %v8436, %v8450
    %v8462 = vadd.f32 %v8437, %v8450
    %v8463 = vadd.f32 %v8438, %v8450
    %v8464 = vadd.f32 %v8439, %v8450
    %v8465 = vadd.f32 %v8440, %v8450
    %v8466 = vadd.f32 %v8441, %v8450
    %v8467 = vadd.f32 %v8442, %v8450
    %v8468 = vadd.f32 %v8443, %v8450
    %v8469 = vadd.f32 %v8444, %v8450
    %v8470 = vadd.f32 %v8445, %v8450
    %v8471 = vadd.f32 %v8446, %v8450
    %v8472 = vadd.f32 %v8447, %v8450
    %v8473 = vadd.f32 %v8448, %v8450
    %v8474 = vadd.f32 %v8449, %v8450
    %vm8475 = vcmask 15360
    %8476 = vst.msk [vmem:[%s6] sm:$0xff] %vm8475, %v8451
    %vm8477 = vcmask 11264
    %8478 = vst.msk [vmem:[%s6 + $0x8] sm:$0xf] %vm8477, %v8452
    %8479 = vst.msk [vmem:[%s6 + $0x10] sm:$0xff] %vm8475, %v8453
    %8480 = vst.msk [vmem:[%s6 + $0x18] sm:$0xf] %vm8477, %v8454
    %8481 = vst.msk [vmem:[%s6 + $0x20] sm:$0xff] %vm8475, %v8455
    %8482 = vst.msk [vmem:[%s6 + $0x28] sm:$0xf] %vm8477, %v8456
    %8483 = vst.msk [vmem:[%s6 + $0x30] sm:$0xff] %vm8475, %v8457
    %8484 = vst.msk [vmem:[%s6 + $0x38] sm:$0xf] %vm8477, %v8458
    %8485 = vst.msk [vmem:[%s6 + $0x40] sm:$0xff] %vm8475, %v8459
    %8486 = vst.msk [vmem:[%s6 + $0x48] sm:$0xf] %vm8477, %v8460
    %8487 = vst.msk [vmem:[%s6 + $0x50] sm:$0xff] %vm8475, %v8461
    %8488 = vst.msk [vmem:[%s6 + $0x58] sm:$0xf] %vm8477, %v8462
    %8489 = vst.msk [vmem:[%s6 + $0x60] sm:$0xff] %vm8475, %v8463
    %8490 = vst.msk [vmem:[%s6 + $0x68] sm:$0xf] %vm8477, %v8464
    %8491 = vst.msk [vmem:[%s6 + $0x70] sm:$0xff] %vm8475, %v8465
    %8492 = vst.msk [vmem:[%s6 + $0x78] sm:$0xf] %vm8477, %v8466
    %8493 = vst.msk [vmem:[%s6 + $0x80] sm:$0xff] %vm8475, %v8467
    %8494 = vst.msk [vmem:[%s6 + $0x88] sm:$0xf] %vm8477, %v8468
    %8495 = vst.msk [vmem:[%s6 + $0x90] sm:$0xff] %vm8475, %v8469
    %8496 = vst.msk [vmem:[%s6 + $0x98] sm:$0xf] %vm8477, %v8470
    %8497 = vst.msk [vmem:[%s6 + $0xa0] sm:$0xff] %vm8475, %v8471
    %8498 = vst.msk [vmem:[%s6 + $0xa8] sm:$0xf] %vm8477, %v8472
    %8499 = vst.msk [vmem:[%s6 + $0xb0] sm:$0xff] %vm8475, %v8473
    %8500 = vst.msk [vmem:[%s6 + $0xb8] sm:$0xf] %vm8477, %v8474
    %v8501 = vld [vmem:[%s5] sm:$0xff]
    %v8502 = vld [vmem:[%s5 + $0x8] sm:$0xf]
    %v8503 = vld [vmem:[%s5 + $0x10] sm:$0xff]
    %v8504 = vld [vmem:[%s5 + $0x18] sm:$0xf]
    %v8505 = vld [vmem:[%s5 + $0x20] sm:$0xff]
    %v8506 = vld [vmem:[%s5 + $0x28] sm:$0xf]
    %v8507 = vld [vmem:[%s5 + $0x30] sm:$0xff]
    %v8508 = vld [vmem:[%s5 + $0x38] sm:$0xf]
    %v8509 = vld [vmem:[%s5 + $0x40] sm:$0xff]
    %v8510 = vld [vmem:[%s5 + $0x48] sm:$0xf]
    %v8511 = vld [vmem:[%s5 + $0x50] sm:$0xff]
    %v8512 = vld [vmem:[%s5 + $0x58] sm:$0xf]
    %v8513 = vld [vmem:[%s5 + $0x60] sm:$0xff]
    %v8514 = vld [vmem:[%s5 + $0x68] sm:$0xf]
    %v8515 = vld [vmem:[%s5 + $0x70] sm:$0xff]
    %v8516 = vld [vmem:[%s5 + $0x78] sm:$0xf]
    %v8517 = vld [vmem:[%s5 + $0x80] sm:$0xff]
    %v8518 = vld [vmem:[%s5 + $0x88] sm:$0xf]
    %v8519 = vld [vmem:[%s5 + $0x90] sm:$0xff]
    %v8520 = vld [vmem:[%s5 + $0x98] sm:$0xf]
    %v8521 = vld [vmem:[%s5 + $0xa0] sm:$0xff]
    %v8522 = vld [vmem:[%s5 + $0xa8] sm:$0xf]
    %v8523 = vld [vmem:[%s5 + $0xb0] sm:$0xff]
    %v8524 = vld [vmem:[%s5 + $0xb8] sm:$0xf]
    %v8525 = vsub.f32 0.0, %v8451
    %v8526 = vsub.f32 0.0, %v8452
    %v8527 = vsub.f32 0.0, %v8453
    %v8528 = vsub.f32 0.0, %v8454
    %v8529 = vsub.f32 0.0, %v8455
    %v8530 = vsub.f32 0.0, %v8456
    %v8531 = vsub.f32 0.0, %v8457
    %v8532 = vsub.f32 0.0, %v8458
    %v8533 = vsub.f32 0.0, %v8459
    %v8534 = vsub.f32 0.0, %v8460
    %v8535 = vsub.f32 0.0, %v8461
    %v8536 = vsub.f32 0.0, %v8462
    %v8537 = vsub.f32 0.0, %v8463
    %v8538 = vsub.f32 0.0, %v8464
    %v8539 = vsub.f32 0.0, %v8465
    %v8540 = vsub.f32 0.0, %v8466
    %v8541 = vsub.f32 0.0, %v8467
    %v8542 = vsub.f32 0.0, %v8468
    %v8543 = vsub.f32 0.0, %v8469
    %v8544 = vsub.f32 0.0, %v8470
    %v8545 = vsub.f32 0.0, %v8471
    %v8546 = vsub.f32 0.0, %v8472
    %v8547 = vsub.f32 0.0, %v8473
    %v8548 = vsub.f32 0.0, %v8474
    %v8549 = vmax.f32 %v8525, 0.0
    %v8550 = vmax.f32 %v8526, 0.0
    %v8551 = vmax.f32 %v8527, 0.0
    %v8552 = vmax.f32 %v8528, 0.0
    %v8553 = vmax.f32 %v8529, 0.0
    %v8554 = vmax.f32 %v8530, 0.0
    %v8555 = vmax.f32 %v8531, 0.0
    %v8556 = vmax.f32 %v8532, 0.0
    %v8557 = vmax.f32 %v8533, 0.0
    %v8558 = vmax.f32 %v8534, 0.0
    %v8559 = vmax.f32 %v8535, 0.0
    %v8560 = vmax.f32 %v8536, 0.0
    %v8561 = vmax.f32 %v8537, 0.0
    %v8562 = vmax.f32 %v8538, 0.0
    %v8563 = vmax.f32 %v8539, 0.0
    %v8564 = vmax.f32 %v8540, 0.0
    %v8565 = vmax.f32 %v8541, 0.0
    %v8566 = vmax.f32 %v8542, 0.0
    %v8567 = vmax.f32 %v8543, 0.0
    %v8568 = vmax.f32 %v8544, 0.0
    %v8569 = vmax.f32 %v8545, 0.0
    %v8570 = vmax.f32 %v8546, 0.0
    %v8571 = vmax.f32 %v8547, 0.0
    %v8572 = vmax.f32 %v8548, 0.0
    %v8573 = vsub.f32 0.0, %v8549
    %v8574 = vsub.f32 0.0, %v8550
    %v8575 = vsub.f32 0.0, %v8551
    %v8576 = vsub.f32 0.0, %v8552
    %v8577 = vsub.f32 0.0, %v8553
    %v8578 = vsub.f32 0.0, %v8554
    %v8579 = vsub.f32 0.0, %v8555
    %v8580 = vsub.f32 0.0, %v8556
    %v8581 = vsub.f32 0.0, %v8557
    %v8582 = vsub.f32 0.0, %v8558
    %v8583 = vsub.f32 0.0, %v8559
    %v8584 = vsub.f32 0.0, %v8560
    %v8585 = vsub.f32 0.0, %v8561
    %v8586 = vsub.f32 0.0, %v8562
    %v8587 = vsub.f32 0.0, %v8563
    %v8588 = vsub.f32 0.0, %v8564
    %v8589 = vsub.f32 0.0, %v8565
    %v8590 = vsub.f32 0.0, %v8566
    %v8591 = vsub.f32 0.0, %v8567
    %v8592 = vsub.f32 0.0, %v8568
    %v8593 = vsub.f32 0.0, %v8569
    %v8594 = vsub.f32 0.0, %v8570
    %v8595 = vsub.f32 0.0, %v8571
    %v8596 = vsub.f32 0.0, %v8572
    %v8597 = vmul.f32 %v8573, 1.442695
    %v8598 = vpow.pop %v8597
    %v8599 = vmul.f32 %v8574, 1.442695
    %v8600 = vpow.pop %v8599
    %v8601 = vmul.f32 %v8575, 1.442695
    %v8602 = vpow.pop %v8601
    %v8603 = vmul.f32 %v8576, 1.442695
    %v8604 = vpow.pop %v8603
    %v8605 = vmul.f32 %v8577, 1.442695
    %v8606 = vpow.pop %v8605
    %v8607 = vmul.f32 %v8578, 1.442695
    %v8608 = vpow.pop %v8607
    %v8609 = vmul.f32 %v8579, 1.442695
    %v8610 = vpow.pop %v8609
    %v8611 = vmul.f32 %v8580, 1.442695
    %v8612 = vpow.pop %v8611
    %v8613 = vmul.f32 %v8581, 1.442695
    %v8614 = vpow.pop %v8613
    %v8615 = vmul.f32 %v8582, 1.442695
    %v8616 = vpow.pop %v8615
    %v8617 = vmul.f32 %v8583, 1.442695
    %v8618 = vpow.pop %v8617
    %v8619 = vmul.f32 %v8584, 1.442695
    %v8620 = vpow.pop %v8619
    %v8621 = vmul.f32 %v8585, 1.442695
    %v8622 = vpow.pop %v8621
    %v8623 = vmul.f32 %v8586, 1.442695
    %v8624 = vpow.pop %v8623
    %v8625 = vmul.f32 %v8587, 1.442695
    %v8626 = vpow.pop %v8625
    %v8627 = vmul.f32 %v8588, 1.442695
    %v8628 = vpow.pop %v8627
    %v8629 = vmul.f32 %v8589, 1.442695
    %v8630 = vpow.pop %v8629
    %v8631 = vmul.f32 %v8590, 1.442695
    %v8632 = vpow.pop %v8631
    %v8633 = vmul.f32 %v8591, 1.442695
    %v8634 = vpow.pop %v8633
    %v8635 = vmul.f32 %v8592, 1.442695
    %v8636 = vpow.pop %v8635
    %v8637 = vmul.f32 %v8593, 1.442695
    %v8638 = vpow.pop %v8637
    %v8639 = vmul.f32 %v8594, 1.442695
    %v8640 = vpow.pop %v8639
    %v8641 = vmul.f32 %v8595, 1.442695
    %v8642 = vpow.pop %v8641
    %v8643 = vmul.f32 %v8596, 1.442695
    %v8644 = vpow.pop %v8643
    %v8645 = vsub.f32 %v8525, %v8549
    %v8646 = vsub.f32 %v8526, %v8550
    %v8647 = vsub.f32 %v8527, %v8551
    %v8648 = vsub.f32 %v8528, %v8552
    %v8649 = vsub.f32 %v8529, %v8553
    %v8650 = vsub.f32 %v8530, %v8554
    %v8651 = vsub.f32 %v8531, %v8555
    %v8652 = vsub.f32 %v8532, %v8556
    %v8653 = vsub.f32 %v8533, %v8557
    %v8654 = vsub.f32 %v8534, %v8558
    %v8655 = vsub.f32 %v8535, %v8559
    %v8656 = vsub.f32 %v8536, %v8560
    %v8657 = vsub.f32 %v8537, %v8561
    %v8658 = vsub.f32 %v8538, %v8562
    %v8659 = vsub.f32 %v8539, %v8563
    %v8660 = vsub.f32 %v8540, %v8564
    %v8661 = vsub.f32 %v8541, %v8565
    %v8662 = vsub.f32 %v8542, %v8566
    %v8663 = vsub.f32 %v8543, %v8567
    %v8664 = vsub.f32 %v8544, %v8568
    %v8665 = vsub.f32 %v8545, %v8569
    %v8666 = vsub.f32 %v8546, %v8570
    %v8667 = vsub.f32 %v8547, %v8571
    %v8668 = vsub.f32 %v8548, %v8572
    %v8669 = vmul.f32 %v8645, 1.442695
    %v8670 = vpow.pop %v8669
    %v8671 = vmul.f32 %v8646, 1.442695
    %v8672 = vpow.pop %v8671
    %v8673 = vmul.f32 %v8647, 1.442695
    %v8674 = vpow.pop %v8673
    %v8675 = vmul.f32 %v8648, 1.442695
    %v8676 = vpow.pop %v8675
    %v8677 = vmul.f32 %v8649, 1.442695
    %v8678 = vpow.pop %v8677
    %v8679 = vmul.f32 %v8650, 1.442695
    %v8680 = vpow.pop %v8679
    %v8681 = vmul.f32 %v8651, 1.442695
    %v8682 = vpow.pop %v8681
    %v8683 = vmul.f32 %v8652, 1.442695
    %v8684 = vpow.pop %v8683
    %v8685 = vmul.f32 %v8653, 1.442695
    %v8686 = vpow.pop %v8685
    %v8687 = vmul.f32 %v8654, 1.442695
    %v8688 = vpow.pop %v8687
    %v8689 = vmul.f32 %v8655, 1.442695
    %v8690 = vpow.pop %v8689
    %v8691 = vmul.f32 %v8656, 1.442695
    %v8692 = vpow.pop %v8691
    %v8693 = vmul.f32 %v8657, 1.442695
    %v8694 = vpow.pop %v8693
    %v8695 = vmul.f32 %v8658, 1.442695
    %v8696 = vpow.pop %v8695
    %v8697 = vmul.f32 %v8659, 1.442695
    %v8698 = vpow.pop %v8697
    %v8699 = vmul.f32 %v8660, 1.442695
    %v8700 = vpow.pop %v8699
    %v8701 = vmul.f32 %v8661, 1.442695
    %v8702 = vpow.pop %v8701
    %v8703 = vmul.f32 %v8662, 1.442695
    %v8704 = vpow.pop %v8703
    %v8705 = vmul.f32 %v8663, 1.442695
    %v8706 = vpow.pop %v8705
    %v8707 = vmul.f32 %v8664, 1.442695
    %v8708 = vpow.pop %v8707
    %v8709 = vmul.f32 %v8665, 1.442695
    %v8710 = vpow.pop %v8709
    %v8711 = vmul.f32 %v8666, 1.442695
    %v8712 = vpow.pop %v8711
    %v8713 = vmul.f32 %v8667, 1.442695
    %v8714 = vpow.pop %v8713
    %v8715 = vmul.f32 %v8668, 1.442695
    %v8716 = vpow.pop %v8715
    %v8717 = vadd.f32 %v8598, %v8670
    %v8718 = vadd.f32 %v8600, %v8672
    %v8719 = vadd.f32 %v8602, %v8674
    %v8720 = vadd.f32 %v8604, %v8676
    %v8721 = vadd.f32 %v8606, %v8678
    %v8722 = vadd.f32 %v8608, %v8680
    %v8723 = vadd.f32 %v8610, %v8682
    %v8724 = vadd.f32 %v8612, %v8684
    %v8725 = vadd.f32 %v8614, %v8686
    %v8726 = vadd.f32 %v8616, %v8688
    %v8727 = vadd.f32 %v8618, %v8690
    %v8728 = vadd.f32 %v8620, %v8692
    %v8729 = vadd.f32 %v8622, %v8694
    %v8730 = vadd.f32 %v8624, %v8696
    %v8731 = vadd.f32 %v8626, %v8698
    %v8732 = vadd.f32 %v8628, %v8700
    %v8733 = vadd.f32 %v8630, %v8702
    %v8734 = vadd.f32 %v8632, %v8704
    %v8735 = vadd.f32 %v8634, %v8706
    %v8736 = vadd.f32 %v8636, %v8708
    %v8737 = vadd.f32 %v8638, %v8710
    %v8738 = vadd.f32 %v8640, %v8712
    %v8739 = vadd.f32 %v8642, %v8714
    %v8740 = vadd.f32 %v8644, %v8716
    %v8741 = vlog2.pop %v8717
    %v8742 = vmul.f32 %v8741, 0.6931472
    %v8743 = vlog2.pop %v8718
    %v8744 = vmul.f32 %v8743, 0.6931472
    %v8745 = vlog2.pop %v8719
    %v8746 = vmul.f32 %v8745, 0.6931472
    %v8747 = vlog2.pop %v8720
    %v8748 = vmul.f32 %v8747, 0.6931472
    %v8749 = vlog2.pop %v8721
    %v8750 = vmul.f32 %v8749, 0.6931472
    %v8751 = vlog2.pop %v8722
    %v8752 = vmul.f32 %v8751, 0.6931472
    %v8753 = vlog2.pop %v8723
    %v8754 = vmul.f32 %v8753, 0.6931472
    %v8755 = vlog2.pop %v8724
    %v8756 = vmul.f32 %v8755, 0.6931472
    %v8757 = vlog2.pop %v8725
    %v8758 = vmul.f32 %v8757, 0.6931472
    %v8759 = vlog2.pop %v8726
    %v8760 = vmul.f32 %v8759, 0.6931472
    %v8761 = vlog2.pop %v8727
    %v8762 = vmul.f32 %v8761, 0.6931472
    %v8763 = vlog2.pop %v8728
    %v8764 = vmul.f32 %v8763, 0.6931472
    %v8765 = vlog2.pop %v8729
    %v8766 = vmul.f32 %v8765, 0.6931472
    %v8767 = vlog2.pop %v8730
    %v8768 = vmul.f32 %v8767, 0.6931472
    %v8769 = vlog2.pop %v8731
    %v8770 = vmul.f32 %v8769, 0.6931472
    %v8771 = vlog2.pop %v8732
    %v8772 = vmul.f32 %v8771, 0.6931472
    %v8773 = vlog2.pop %v8733
    %v8774 = vmul.f32 %v8773, 0.6931472
    %v8775 = vlog2.pop %v8734
    %v8776 = vmul.f32 %v8775, 0.6931472
    %v8777 = vlog2.pop %v8735
    %v8778 = vmul.f32 %v8777, 0.6931472
    %v8779 = vlog2.pop %v8736
    %v8780 = vmul.f32 %v8779, 0.6931472
    %v8781 = vlog2.pop %v8737
    %v8782 = vmul.f32 %v8781, 0.6931472
    %v8783 = vlog2.pop %v8738
    %v8784 = vmul.f32 %v8783, 0.6931472
    %v8785 = vlog2.pop %v8739
    %v8786 = vmul.f32 %v8785, 0.6931472
    %v8787 = vlog2.pop %v8740
    %v8788 = vmul.f32 %v8787, 0.6931472
    %v8789 = vadd.f32 %v8549, %v8742
    %v8790 = vadd.f32 %v8550, %v8744
    %v8791 = vadd.f32 %v8551, %v8746
    %v8792 = vadd.f32 %v8552, %v8748
    %v8793 = vadd.f32 %v8553, %v8750
    %v8794 = vadd.f32 %v8554, %v8752
    %v8795 = vadd.f32 %v8555, %v8754
    %v8796 = vadd.f32 %v8556, %v8756
    %v8797 = vadd.f32 %v8557, %v8758
    %v8798 = vadd.f32 %v8558, %v8760
    %v8799 = vadd.f32 %v8559, %v8762
    %v8800 = vadd.f32 %v8560, %v8764
    %v8801 = vadd.f32 %v8561, %v8766
    %v8802 = vadd.f32 %v8562, %v8768
    %v8803 = vadd.f32 %v8563, %v8770
    %v8804 = vadd.f32 %v8564, %v8772
    %v8805 = vadd.f32 %v8565, %v8774
    %v8806 = vadd.f32 %v8566, %v8776
    %v8807 = vadd.f32 %v8567, %v8778
    %v8808 = vadd.f32 %v8568, %v8780
    %v8809 = vadd.f32 %v8569, %v8782
    %v8810 = vadd.f32 %v8570, %v8784
    %v8811 = vadd.f32 %v8571, %v8786
    %v8812 = vadd.f32 %v8572, %v8788
    %v8813 = vrcp.pop %v8717
    %v8814 = vrcp.pop %v8718
    %v8815 = vrcp.pop %v8719
    %v8816 = vrcp.pop %v8720
    %v8817 = vrcp.pop %v8721
    %v8818 = vrcp.pop %v8722
    %v8819 = vrcp.pop %v8723
    %v8820 = vrcp.pop %v8724
    %v8821 = vrcp.pop %v8725
    %v8822 = vrcp.pop %v8726
    %v8823 = vrcp.pop %v8727
    %v8824 = vrcp.pop %v8728
    %v8825 = vrcp.pop %v8729
    %v8826 = vrcp.pop %v8730
    %v8827 = vrcp.pop %v8731
    %v8828 = vrcp.pop %v8732
    %v8829 = vrcp.pop %v8733
    %v8830 = vrcp.pop %v8734
    %v8831 = vrcp.pop %v8735
    %v8832 = vrcp.pop %v8736
    %v8833 = vrcp.pop %v8737
    %v8834 = vrcp.pop %v8738
    %v8835 = vrcp.pop %v8739
    %v8836 = vrcp.pop %v8740
    %v8837 = vmul.f32 %v8717, %v8813
    %v8838 = vmul.f32 %v8718, %v8814
    %v8839 = vmul.f32 %v8719, %v8815
    %v8840 = vmul.f32 %v8720, %v8816
    %v8841 = vmul.f32 %v8721, %v8817
    %v8842 = vmul.f32 %v8722, %v8818
    %v8843 = vmul.f32 %v8723, %v8819
    %v8844 = vmul.f32 %v8724, %v8820
    %v8845 = vmul.f32 %v8725, %v8821
    %v8846 = vmul.f32 %v8726, %v8822
    %v8847 = vmul.f32 %v8727, %v8823
    %v8848 = vmul.f32 %v8728, %v8824
    %v8849 = vmul.f32 %v8729, %v8825
    %v8850 = vmul.f32 %v8730, %v8826
    %v8851 = vmul.f32 %v8731, %v8827
    %v8852 = vmul.f32 %v8732, %v8828
    %v8853 = vmul.f32 %v8733, %v8829
    %v8854 = vmul.f32 %v8734, %v8830
    %v8855 = vmul.f32 %v8735, %v8831
    %v8856 = vmul.f32 %v8736, %v8832
    %v8857 = vmul.f32 %v8737, %v8833
    %v8858 = vmul.f32 %v8738, %v8834
    %v8859 = vmul.f32 %v8739, %v8835
    %v8860 = vmul.f32 %v8740, %v8836
    %v8861 = vsub.f32 2.0, %v8837
    %v8862 = vsub.f32 2.0, %v8838
    %v8863 = vsub.f32 2.0, %v8839
    %v8864 = vsub.f32 2.0, %v8840
    %v8865 = vsub.f32 2.0, %v8841
    %v8866 = vsub.f32 2.0, %v8842
    %v8867 = vsub.f32 2.0, %v8843
    %v8868 = vsub.f32 2.0, %v8844
    %v8869 = vsub.f32 2.0, %v8845
    %v8870 = vsub.f32 2.0, %v8846
    %v8871 = vsub.f32 2.0, %v8847
    %v8872 = vsub.f32 2.0, %v8848
    %v8873 = vsub.f32 2.0, %v8849
    %v8874 = vsub.f32 2.0, %v8850
    %v8875 = vsub.f32 2.0, %v8851
    %v8876 = vsub.f32 2.0, %v8852
    %v8877 = vsub.f32 2.0, %v8853
    %v8878 = vsub.f32 2.0, %v8854
    %v8879 = vsub.f32 2.0, %v8855
    %v8880 = vsub.f32 2.0, %v8856
    %v8881 = vsub.f32 2.0, %v8857
    %v8882 = vsub.f32 2.0, %v8858
    %v8883 = vsub.f32 2.0, %v8859
    %v8884 = vsub.f32 2.0, %v8860
    %v8885 = vmul.f32 %v8813, %v8861
    %v8886 = vmul.f32 %v8814, %v8862
    %v8887 = vmul.f32 %v8815, %v8863
    %v8888 = vmul.f32 %v8816, %v8864
    %v8889 = vmul.f32 %v8817, %v8865
    %v8890 = vmul.f32 %v8818, %v8866
    %v8891 = vmul.f32 %v8819, %v8867
    %v8892 = vmul.f32 %v8820, %v8868
    %v8893 = vmul.f32 %v8821, %v8869
    %v8894 = vmul.f32 %v8822, %v8870
    %v8895 = vmul.f32 %v8823, %v8871
    %v8896 = vmul.f32 %v8824, %v8872
    %v8897 = vmul.f32 %v8825, %v8873
    %v8898 = vmul.f32 %v8826, %v8874
    %v8899 = vmul.f32 %v8827, %v8875
    %v8900 = vmul.f32 %v8828, %v8876
    %v8901 = vmul.f32 %v8829, %v8877
    %v8902 = vmul.f32 %v8830, %v8878
    %v8903 = vmul.f32 %v8831, %v8879
    %v8904 = vmul.f32 %v8832, %v8880
    %v8905 = vmul.f32 %v8833, %v8881
    %v8906 = vmul.f32 %v8834, %v8882
    %v8907 = vmul.f32 %v8835, %v8883
    %v8908 = vmul.f32 %v8836, %v8884
    %v8909 = vmul.f32 %v8598, %v8885
    %v8910 = vmul.f32 %v8600, %v8886
    %v8911 = vmul.f32 %v8602, %v8887
    %v8912 = vmul.f32 %v8604, %v8888
    %v8913 = vmul.f32 %v8606, %v8889
    %v8914 = vmul.f32 %v8608, %v8890
    %v8915 = vmul.f32 %v8610, %v8891
    %v8916 = vmul.f32 %v8612, %v8892
    %v8917 = vmul.f32 %v8614, %v8893
    %v8918 = vmul.f32 %v8616, %v8894
    %v8919 = vmul.f32 %v8618, %v8895
    %v8920 = vmul.f32 %v8620, %v8896
    %v8921 = vmul.f32 %v8622, %v8897
    %v8922 = vmul.f32 %v8624, %v8898
    %v8923 = vmul.f32 %v8626, %v8899
    %v8924 = vmul.f32 %v8628, %v8900
    %v8925 = vmul.f32 %v8630, %v8901
    %v8926 = vmul.f32 %v8632, %v8902
    %v8927 = vmul.f32 %v8634, %v8903
    %v8928 = vmul.f32 %v8636, %v8904
    %v8929 = vmul.f32 %v8638, %v8905
    %v8930 = vmul.f32 %v8640, %v8906
    %v8931 = vmul.f32 %v8642, %v8907
    %v8932 = vmul.f32 %v8644, %v8908
    %v8933 = vmul.f32 %v8670, %v8885
    %v8934 = vmul.f32 %v8672, %v8886
    %v8935 = vmul.f32 %v8674, %v8887
    %v8936 = vmul.f32 %v8676, %v8888
    %v8937 = vmul.f32 %v8678, %v8889
    %v8938 = vmul.f32 %v8680, %v8890
    %v8939 = vmul.f32 %v8682, %v8891
    %v8940 = vmul.f32 %v8684, %v8892
    %v8941 = vmul.f32 %v8686, %v8893
    %v8942 = vmul.f32 %v8688, %v8894
    %v8943 = vmul.f32 %v8690, %v8895
    %v8944 = vmul.f32 %v8692, %v8896
    %v8945 = vmul.f32 %v8694, %v8897
    %v8946 = vmul.f32 %v8696, %v8898
    %v8947 = vmul.f32 %v8698, %v8899
    %v8948 = vmul.f32 %v8700, %v8900
    %v8949 = vmul.f32 %v8702, %v8901
    %v8950 = vmul.f32 %v8704, %v8902
    %v8951 = vmul.f32 %v8706, %v8903
    %v8952 = vmul.f32 %v8708, %v8904
    %v8953 = vmul.f32 %v8710, %v8905
    %v8954 = vmul.f32 %v8712, %v8906
    %v8955 = vmul.f32 %v8714, %v8907
    %v8956 = vmul.f32 %v8716, %v8908
    %v8957 = vmul.f32 %v8909, %v8909
    %v8958 = vmul.f32 %v8910, %v8910
    %v8959 = vmul.f32 %v8911, %v8911
    %v8960 = vmul.f32 %v8912, %v8912
    %v8961 = vmul.f32 %v8913, %v8913
    %v8962 = vmul.f32 %v8914, %v8914
    %v8963 = vmul.f32 %v8915, %v8915
    %v8964 = vmul.f32 %v8916, %v8916
    %v8965 = vmul.f32 %v8917, %v8917
    %v8966 = vmul.f32 %v8918, %v8918
    %v8967 = vmul.f32 %v8919, %v8919
    %v8968 = vmul.f32 %v8920, %v8920
    %v8969 = vmul.f32 %v8921, %v8921
    %v8970 = vmul.f32 %v8922, %v8922
    %v8971 = vmul.f32 %v8923, %v8923
    %v8972 = vmul.f32 %v8924, %v8924
    %v8973 = vmul.f32 %v8925, %v8925
    %v8974 = vmul.f32 %v8926, %v8926
    %v8975 = vmul.f32 %v8927, %v8927
    %v8976 = vmul.f32 %v8928, %v8928
    %v8977 = vmul.f32 %v8929, %v8929
    %v8978 = vmul.f32 %v8930, %v8930
    %v8979 = vmul.f32 %v8931, %v8931
    %v8980 = vmul.f32 %v8932, %v8932
    %v8981 = vmul.f32 %v8933, %v8933
    %v8982 = vmul.f32 %v8934, %v8934
    %v8983 = vmul.f32 %v8935, %v8935
    %v8984 = vmul.f32 %v8936, %v8936
    %v8985 = vmul.f32 %v8937, %v8937
    %v8986 = vmul.f32 %v8938, %v8938
    %v8987 = vmul.f32 %v8939, %v8939
    %v8988 = vmul.f32 %v8940, %v8940
    %v8989 = vmul.f32 %v8941, %v8941
    %v8990 = vmul.f32 %v8942, %v8942
    %v8991 = vmul.f32 %v8943, %v8943
    %v8992 = vmul.f32 %v8944, %v8944
    %v8993 = vmul.f32 %v8945, %v8945
    %v8994 = vmul.f32 %v8946, %v8946
    %v8995 = vmul.f32 %v8947, %v8947
    %v8996 = vmul.f32 %v8948, %v8948
    %v8997 = vmul.f32 %v8949, %v8949
    %v8998 = vmul.f32 %v8950, %v8950
    %v8999 = vmul.f32 %v8951, %v8951
    %v9000 = vmul.f32 %v8952, %v8952
    %v9001 = vmul.f32 %v8953, %v8953
    %v9002 = vmul.f32 %v8954, %v8954
    %v9003 = vmul.f32 %v8955, %v8955
    %v9004 = vmul.f32 %v8956, %v8956
    %v9005 = vmul.f32 %v8501, 0.8
    %v9006 = vmul.f32 %v8502, 0.8
    %v9007 = vmul.f32 %v8503, 0.8
    %v9008 = vmul.f32 %v8504, 0.8
    %v9009 = vmul.f32 %v8505, 0.8
    %v9010 = vmul.f32 %v8506, 0.8
    %v9011 = vmul.f32 %v8507, 0.8
    %v9012 = vmul.f32 %v8508, 0.8
    %v9013 = vmul.f32 %v8509, 0.8
    %v9014 = vmul.f32 %v8510, 0.8
    %v9015 = vmul.f32 %v8511, 0.8
    %v9016 = vmul.f32 %v8512, 0.8
    %v9017 = vmul.f32 %v8513, 0.8
    %v9018 = vmul.f32 %v8514, 0.8
    %v9019 = vmul.f32 %v8515, 0.8
    %v9020 = vmul.f32 %v8516, 0.8
    %v9021 = vmul.f32 %v8517, 0.8
    %v9022 = vmul.f32 %v8518, 0.8
    %v9023 = vmul.f32 %v8519, 0.8
    %v9024 = vmul.f32 %v8520, 0.8
    %v9025 = vmul.f32 %v8521, 0.8
    %v9026 = vmul.f32 %v8522, 0.8
    %v9027 = vmul.f32 %v8523, 0.8
    %v9028 = vmul.f32 %v8524, 0.8
    %v9029 = vmul.f32 %v9005, %v8981
    %v9030 = vmul.f32 %v9006, %v8982
    %v9031 = vmul.f32 %v9007, %v8983
    %v9032 = vmul.f32 %v9008, %v8984
    %v9033 = vmul.f32 %v9009, %v8985
    %v9034 = vmul.f32 %v9010, %v8986
    %v9035 = vmul.f32 %v9011, %v8987
    %v9036 = vmul.f32 %v9012, %v8988
    %v9037 = vmul.f32 %v9013, %v8989
    %v9038 = vmul.f32 %v9014, %v8990
    %v9039 = vmul.f32 %v9015, %v8991
    %v9040 = vmul.f32 %v9016, %v8992
    %v9041 = vmul.f32 %v9017, %v8993
    %v9042 = vmul.f32 %v9018, %v8994
    %v9043 = vmul.f32 %v9019, %v8995
    %v9044 = vmul.f32 %v9020, %v8996
    %v9045 = vmul.f32 %v9021, %v8997
    %v9046 = vmul.f32 %v9022, %v8998
    %v9047 = vmul.f32 %v9023, %v8999
    %v9048 = vmul.f32 %v9024, %v9000
    %v9049 = vmul.f32 %v9025, %v9001
    %v9050 = vmul.f32 %v9026, %v9002
    %v9051 = vmul.f32 %v9027, %v9003
    %v9052 = vmul.f32 %v9028, %v9004
    %v9053 = vmul.f32 %v9029, %v8789
    %v9054 = vmul.f32 %v9030, %v8790
    %v9055 = vmul.f32 %v9031, %v8791
    %v9056 = vmul.f32 %v9032, %v8792
    %v9057 = vmul.f32 %v9033, %v8793
    %v9058 = vmul.f32 %v9034, %v8794
    %v9059 = vmul.f32 %v9035, %v8795
    %v9060 = vmul.f32 %v9036, %v8796
    %v9061 = vmul.f32 %v9037, %v8797
    %v9062 = vmul.f32 %v9038, %v8798
    %v9063 = vmul.f32 %v9039, %v8799
    %v9064 = vmul.f32 %v9040, %v8800
    %v9065 = vmul.f32 %v9041, %v8801
    %v9066 = vmul.f32 %v9042, %v8802
    %v9067 = vmul.f32 %v9043, %v8803
    %v9068 = vmul.f32 %v9044, %v8804
    %v9069 = vmul.f32 %v9045, %v8805
    %v9070 = vmul.f32 %v9046, %v8806
    %v9071 = vmul.f32 %v9047, %v8807
    %v9072 = vmul.f32 %v9048, %v8808
    %v9073 = vmul.f32 %v9049, %v8809
    %v9074 = vmul.f32 %v9050, %v8810
    %v9075 = vmul.f32 %v9051, %v8811
    %v9076 = vmul.f32 %v9052, %v8812
    %v9077 = vsub.f32 1.0, %v8501
    %v9078 = vsub.f32 1.0, %v8502
    %v9079 = vsub.f32 1.0, %v8503
    %v9080 = vsub.f32 1.0, %v8504
    %v9081 = vsub.f32 1.0, %v8505
    %v9082 = vsub.f32 1.0, %v8506
    %v9083 = vsub.f32 1.0, %v8507
    %v9084 = vsub.f32 1.0, %v8508
    %v9085 = vsub.f32 1.0, %v8509
    %v9086 = vsub.f32 1.0, %v8510
    %v9087 = vsub.f32 1.0, %v8511
    %v9088 = vsub.f32 1.0, %v8512
    %v9089 = vsub.f32 1.0, %v8513
    %v9090 = vsub.f32 1.0, %v8514
    %v9091 = vsub.f32 1.0, %v8515
    %v9092 = vsub.f32 1.0, %v8516
    %v9093 = vsub.f32 1.0, %v8517
    %v9094 = vsub.f32 1.0, %v8518
    %v9095 = vsub.f32 1.0, %v8519
    %v9096 = vsub.f32 1.0, %v8520
    %v9097 = vsub.f32 1.0, %v8521
    %v9098 = vsub.f32 1.0, %v8522
    %v9099 = vsub.f32 1.0, %v8523
    %v9100 = vsub.f32 1.0, %v8524
    %v9101 = vmul.f32 %v8957, %v9077
    %v9102 = vmul.f32 %v8958, %v9078
    %v9103 = vmul.f32 %v8959, %v9079
    %v9104 = vmul.f32 %v8960, %v9080
    %v9105 = vmul.f32 %v8961, %v9081
    %v9106 = vmul.f32 %v8962, %v9082
    %v9107 = vmul.f32 %v8963, %v9083
    %v9108 = vmul.f32 %v8964, %v9084
    %v9109 = vmul.f32 %v8965, %v9085
    %v9110 = vmul.f32 %v8966, %v9086
    %v9111 = vmul.f32 %v8967, %v9087
    %v9112 = vmul.f32 %v8968, %v9088
    %v9113 = vmul.f32 %v8969, %v9089
    %v9114 = vmul.f32 %v8970, %v9090
    %v9115 = vmul.f32 %v8971, %v9091
    %v9116 = vmul.f32 %v8972, %v9092
    %v9117 = vmul.f32 %v8973, %v9093
    %v9118 = vmul.f32 %v8974, %v9094
    %v9119 = vmul.f32 %v8975, %v9095
    %v9120 = vmul.f32 %v8976, %v9096
    %v9121 = vmul.f32 %v8977, %v9097
    %v9122 = vmul.f32 %v8978, %v9098
    %v9123 = vmul.f32 %v8979, %v9099
    %v9124 = vmul.f32 %v8980, %v9100
    %v9125 = vadd.f32 %v8451, %v8789
    %v9126 = vadd.f32 %v8452, %v8790
    %v9127 = vadd.f32 %v8453, %v8791
    %v9128 = vadd.f32 %v8454, %v8792
    %v9129 = vadd.f32 %v8455, %v8793
    %v9130 = vadd.f32 %v8456, %v8794
    %v9131 = vadd.f32 %v8457, %v8795
    %v9132 = vadd.f32 %v8458, %v8796
    %v9133 = vadd.f32 %v8459, %v8797
    %v9134 = vadd.f32 %v8460, %v8798
    %v9135 = vadd.f32 %v8461, %v8799
    %v9136 = vadd.f32 %v8462, %v8800
    %v9137 = vadd.f32 %v8463, %v8801
    %v9138 = vadd.f32 %v8464, %v8802
    %v9139 = vadd.f32 %v8465, %v8803
    %v9140 = vadd.f32 %v8466, %v8804
    %v9141 = vadd.f32 %v8467, %v8805
    %v9142 = vadd.f32 %v8468, %v8806
    %v9143 = vadd.f32 %v8469, %v8807
    %v9144 = vadd.f32 %v8470, %v8808
    %v9145 = vadd.f32 %v8471, %v8809
    %v9146 = vadd.f32 %v8472, %v8810
    %v9147 = vadd.f32 %v8473, %v8811
    %v9148 = vadd.f32 %v8474, %v8812
    %v9149 = vmul.f32 %v9101, %v9125
    %v9150 = vmul.f32 %v9102, %v9126
    %v9151 = vmul.f32 %v9103, %v9127
    %v9152 = vmul.f32 %v9104, %v9128
    %v9153 = vmul.f32 %v9105, %v9129
    %v9154 = vmul.f32 %v9106, %v9130
    %v9155 = vmul.f32 %v9107, %v9131
    %v9156 = vmul.f32 %v9108, %v9132
    %v9157 = vmul.f32 %v9109, %v9133
    %v9158 = vmul.f32 %v9110, %v9134
    %v9159 = vmul.f32 %v9111, %v9135
    %v9160 = vmul.f32 %v9112, %v9136
    %v9161 = vmul.f32 %v9113, %v9137
    %v9162 = vmul.f32 %v9114, %v9138
    %v9163 = vmul.f32 %v9115, %v9139
    %v9164 = vmul.f32 %v9116, %v9140
    %v9165 = vmul.f32 %v9117, %v9141
    %v9166 = vmul.f32 %v9118, %v9142
    %v9167 = vmul.f32 %v9119, %v9143
    %v9168 = vmul.f32 %v9120, %v9144
    %v9169 = vmul.f32 %v9121, %v9145
    %v9170 = vmul.f32 %v9122, %v9146
    %v9171 = vmul.f32 %v9123, %v9147
    %v9172 = vmul.f32 %v9124, %v9148
    %v9173 = vadd.f32 %v9053, %v9149
    %v9174 = vadd.f32 %v9054, %v9150
    %v9175 = vadd.f32 %v9055, %v9151
    %v9176 = vadd.f32 %v9056, %v9152
    %v9177 = vadd.f32 %v9057, %v9153
    %v9178 = vadd.f32 %v9058, %v9154
    %v9179 = vadd.f32 %v9059, %v9155
    %v9180 = vadd.f32 %v9060, %v9156
    %v9181 = vadd.f32 %v9061, %v9157
    %v9182 = vadd.f32 %v9062, %v9158
    %v9183 = vadd.f32 %v9063, %v9159
    %v9184 = vadd.f32 %v9064, %v9160
    %v9185 = vadd.f32 %v9065, %v9161
    %v9186 = vadd.f32 %v9066, %v9162
    %v9187 = vadd.f32 %v9067, %v9163
    %v9188 = vadd.f32 %v9068, %v9164
    %v9189 = vadd.f32 %v9069, %v9165
    %v9190 = vadd.f32 %v9070, %v9166
    %v9191 = vadd.f32 %v9071, %v9167
    %v9192 = vadd.f32 %v9072, %v9168
    %v9193 = vadd.f32 %v9073, %v9169
    %v9194 = vadd.f32 %v9074, %v9170
    %v9195 = vadd.f32 %v9075, %v9171
    %v9196 = vadd.f32 %v9076, %v9172
    %v9197 = vsel %vm8475, %v9173, 0.0
    %v9198 = vsel %vm8475, %v9175, 0.0
    %v9199 = vadd.f32 %v9197, %v9198
    %v9200 = vsel %vm8475, %v9177, 0.0
    %v9201 = vadd.f32 %v9199, %v9200
    %v9202 = vsel %vm8475, %v9179, 0.0
    %v9203 = vadd.f32 %v9201, %v9202
    %v9204 = vsel %vm8475, %v9181, 0.0
    %v9205 = vadd.f32 %v9203, %v9204
    %v9206 = vsel %vm8475, %v9183, 0.0
    %v9207 = vadd.f32 %v9205, %v9206
    %v9208 = vsel %vm8475, %v9185, 0.0
    %v9209 = vadd.f32 %v9207, %v9208
    %v9210 = vsel %vm8475, %v9187, 0.0
    %v9211 = vadd.f32 %v9209, %v9210
    %v9212 = vsel %vm8475, %v9189, 0.0
    %v9213 = vadd.f32 %v9211, %v9212
    %v9214 = vsel %vm8475, %v9191, 0.0
    %v9215 = vadd.f32 %v9213, %v9214
    %v9216 = vsel %vm8475, %v9193, 0.0
    %v9217 = vadd.f32 %v9215, %v9216
    %v9218 = vsel %vm8475, %v9195, 0.0
    %v9219 = vadd.f32 %v9217, %v9218
    %v9220 = vsel %vm8477, %v9174, 0.0
    %v9221 = vsel %vm8477, %v9176, 0.0
    %v9222 = vadd.f32 %v9220, %v9221
    %v9223 = vsel %vm8477, %v9178, 0.0
    %v9224 = vadd.f32 %v9222, %v9223
    %v9225 = vsel %vm8477, %v9180, 0.0
    %v9226 = vadd.f32 %v9224, %v9225
    %v9227 = vsel %vm8477, %v9182, 0.0
    %v9228 = vadd.f32 %v9226, %v9227
    %v9229 = vsel %vm8477, %v9184, 0.0
    %v9230 = vadd.f32 %v9228, %v9229
    %v9231 = vsel %vm8477, %v9186, 0.0
    %v9232 = vadd.f32 %v9230, %v9231
    %v9233 = vsel %vm8477, %v9188, 0.0
    %v9234 = vadd.f32 %v9232, %v9233
    %v9235 = vsel %vm8477, %v9190, 0.0
    %v9236 = vadd.f32 %v9234, %v9235
    %v9237 = vsel %vm8477, %v9192, 0.0
    %v9238 = vadd.f32 %v9236, %v9237
    %v9239 = vsel %vm8477, %v9194, 0.0
    %v9240 = vadd.f32 %v9238, %v9239
    %v9241 = vsel %vm8477, %v9196, 0.0
    %v9242 = vadd.f32 %v9240, %v9241
    %v9243 = vsel %vm8475, %v9219, 0.0
    %v9244 = vsel %vm8477, %v9242, 0.0
    %v9245 = vadd.f32 %v9243, %v9244
    %v9246 = vrot.slane %v9245, 4
    %v9247 = vadd.f32 %v9245, %v9246
    %v9248 = vrot.slane %v9247, 2
    %v9249 = vadd.f32 %v9247, %v9248
    %v9250 = vrot.slane %v9249, 1
    %v9251 = vadd.f32 %v9249, %v9250
    %vm9252 = vcmask 8192
    %9253 = vst.msk [vmem:[#allocation9] sm:$0x1] %vm9252, %v9251
    // Predicated region
    $region38: #{tpu_custom_call.1} parent=1 // pred_check
      _
    $region39: #{tpu_custom_call.1} parent=1 // pred_check_branch
      %9255 = sbr.rel (0) target = $region41
    $region40: #{tpu_custom_call.1} parent=1 // pred_region
      _
    $region41: #{tpu_custom_call.1} parent=1 // pred_fallthru
      _
    // Predicated region
    $region42: #{tpu_custom_call.1} parent=1 // pred_check
      _
    $region43: #{tpu_custom_call.1} parent=1 // pred_check_branch
      %9257 = sbr.rel (0) target = $region45
    $region44: #{tpu_custom_call.1} parent=1 // pred_region
      %s9259 = ssub.s32 16, 16
      %9260 = vsyncadd [#allocation4], %s9259
      %s9262 = sshll.u32 [#allocation9], 4
      %s9263 = int_to_ptr.vmem [resolvable:$true] %s9262
      %9265 = dma.vmem_to_hbm [thread:$0]  %s9263, 16, %s7, [#allocation4]
    $region45: #{tpu_custom_call.1} parent=1 // pred_fallthru
      _
    // Predicated region
    $region46: #{tpu_custom_call.1} parent=1 // pred_check
      _
    $region47: #{tpu_custom_call.1} parent=1 // pred_check_branch
      %9267 = sbr.rel (0) target = $region49
    $region48: #{tpu_custom_call.1} parent=1 // pred_region
      _
    $region49: #{tpu_custom_call.1} parent=1 // pred_fallthru
      _
    // Predicated region
    $region50: #{tpu_custom_call.1} parent=1 // pred_check
      _
    $region51: #{tpu_custom_call.1} parent=1 // pred_check_branch
      %9269 = sbr.rel (0) target = $region53
    $region52: #{tpu_custom_call.1} parent=1 // pred_region
      %9270 = dma.done [#allocation4], 16
    $region53: #{tpu_custom_call.1} parent=1 // pred_fallthru
      _
    %9271 = vsyncpa [#allocation4], 1
    %9272 = vsyncpa [#allocation5], 1
    %9273 = vsyncpa [#allocation7], 1

</llo_original>
